<compile_context>
chip_gen: v7x
topology: tpu7x:2x2x1
jax: 0.10.0
libtpu: 0.0.40
codegen_flags: <defaults>
</compile_context>

<pallas_src>
import jax
import jax.numpy as jnp
import numpy as np
from jax.experimental import pallas as pl
from jax.experimental.pallas import tpu as pltpu

EPS = 1e-5


# ----------------------------------------------------------------------------
# Shared helper: 3x3 / stride-1 conv from a zero-padded (H+2, W+2, Cin) VMEM ref.
# 3 matmuls (one per kernel row) with K = 3*Cin, accumulated in f32.
# ----------------------------------------------------------------------------
def _conv3x3_from_padded(xpad_ref, w_ref, H, W, Cin, Cout):
    acc = jnp.zeros((H * W, Cout), jnp.float32)
    for ky in range(3):
        rows = xpad_ref[ky:ky + H, :, :]                       # (H, W+2, Cin)
        patch = jnp.concatenate(
            (rows[:, 0:W, :], rows[:, 1:W + 1, :], rows[:, 2:W + 2, :]),
            axis=-1).reshape(H * W, 3 * Cin)                   # (H*W, 3*Cin)
        acc = acc + jnp.dot(patch, w_ref[ky],
                            preferred_element_type=jnp.float32)
    return acc                                                 # (H*W, Cout) f32


# ----------------------------------------------------------------------------
# Kernel A: conv1 (+ in-kernel zero pad) + per-image BN partial stats.
# ----------------------------------------------------------------------------
def _conv1_stats_kernel(x_ref, w_ref, y_ref, sum_ref, sq_ref, xpad_scr):
    # x_ref: (1,H,W,Cin)  w_ref: (3, 3*Cin, Cout)  y_ref: (1,H,W,Cout)
    # sum_ref/sq_ref: (1,1,Cout)  xpad_scr: VMEM (H+2, W+2, Cin)
    H, W = y_ref.shape[1], y_ref.shape[2]
    Cin, Cout = x_ref.shape[3], y_ref.shape[3]

    xpad_scr[...] = jnp.zeros_like(xpad_scr)            # re-zero borders each step
    xpad_scr[1:H + 1, 1:W + 1, :] = x_ref[0]

    acc = _conv3x3_from_padded(xpad_scr, w_ref, H, W, Cin, Cout)
    y_ref[0] = acc.reshape(H, W, Cout)
    # per-image partials; batch reduction happens in the wrapper (keeps N parallel)
    sum_ref[...] = jnp.sum(acc, axis=0).reshape(1, 1, Cout)
    sq_ref[...] = jnp.sum(acc * acc, axis=0).reshape(1, 1, Cout)


def _conv1_stats(x_nhwc, w3):
    N, H, W, Cin = x_nhwc.shape
    Cout = w3.shape[-1]
    return pl.pallas_call(
        _conv1_stats_kernel,
        out_shape=(jax.ShapeDtypeStruct((N, H, W, Cout), jnp.float32),
                   jax.ShapeDtypeStruct((N, 1, Cout), jnp.float32),
                   jax.ShapeDtypeStruct((N, 1, Cout), jnp.float32)),
        grid=(N,),
        in_specs=[pl.BlockSpec((1, H, W, Cin), lambda n: (n, 0, 0, 0)),
                  pl.BlockSpec((3, 3 * Cin, Cout), lambda n: (0, 0, 0))],
        out_specs=(pl.BlockSpec((1, H, W, Cout), lambda n: (n, 0, 0, 0)),
                   pl.BlockSpec((1, 1, Cout), lambda n: (n, 0, 0)),
                   pl.BlockSpec((1, 1, Cout), lambda n: (n, 0, 0))),
        scratch_shapes=[pltpu.VMEM((H + 2, W + 2, Cin), jnp.float32)],
        compiler_params=pltpu.CompilerParams(dimension_semantics=("parallel",)),
    )(x_nhwc, w3)


# ----------------------------------------------------------------------------
# Kernel B: BN1 affine + ReLU + in-kernel pad + conv2 + per-image partial stats.
# ----------------------------------------------------------------------------
def _bnrelu_conv2_stats_kernel(y1_ref, s_ref, b_ref, w_ref,
                               y2_ref, sum_ref, sq_ref, apad_scr):
    H, W, C = y2_ref.shape[1], y2_ref.shape[2], y2_ref.shape[3]
    s = s_ref[...].reshape(1, 1, C)
    b = b_ref[...].reshape(1, 1, C)
    a = jnp.maximum(y1_ref[0] * s + b, 0.0)              # folded BN1 + ReLU

    apad_scr[...] = jnp.zeros_like(apad_scr)
    apad_scr[1:H + 1, 1:W + 1, :] = a

    acc = _conv3x3_from_padded(apad_scr, w_ref, H, W, C, C)
    y2_ref[0] = acc.reshape(H, W, C)
    sum_ref[...] = jnp.sum(acc, axis=0).reshape(1, 1, C)
    sq_ref[...] = jnp.sum(acc * acc, axis=0).reshape(1, 1, C)


def _bnrelu_conv2_stats(y1, scale, bias, w3):
    N, H, W, C = y1.shape
    return pl.pallas_call(
        _bnrelu_conv2_stats_kernel,
        out_shape=(jax.ShapeDtypeStruct((N, H, W, C), jnp.float32),
                   jax.ShapeDtypeStruct((N, 1, C), jnp.float32),
                   jax.ShapeDtypeStruct((N, 1, C), jnp.float32)),
        grid=(N,),
        in_specs=[pl.BlockSpec((1, H, W, C), lambda n: (n, 0, 0, 0)),
                  pl.BlockSpec((1, C), lambda n: (0, 0)),
                  pl.BlockSpec((1, C), lambda n: (0, 0)),
                  pl.BlockSpec((3, 3 * C, C), lambda n: (0, 0, 0))],
        out_specs=(pl.BlockSpec((1, H, W, C), lambda n: (n, 0, 0, 0)),
                   pl.BlockSpec((1, 1, C), lambda n: (n, 0, 0)),
                   pl.BlockSpec((1, 1, C), lambda n: (n, 0, 0))),
        scratch_shapes=[pltpu.VMEM((H + 2, W + 2, C), jnp.float32)],
        compiler_params=pltpu.CompilerParams(dimension_semantics=("parallel",)),
    )(y1, scale.reshape(1, C), bias.reshape(1, C), w3)


# ----------------------------------------------------------------------------
# Kernel C: BN2 affine + residual add + ReLU (single epilogue pass).
# ----------------------------------------------------------------------------
def _bn2_add_relu_kernel(y2_ref, res_ref, s_ref, b_ref, o_ref):
    C = o_ref.shape[3]
    s = s_ref[...].reshape(1, 1, C)
    b = b_ref[...].reshape(1, 1, C)
    o_ref[0] = jnp.maximum(y2_ref[0] * s + b + res_ref[0], 0.0)


def _bn2_add_relu(y2, res, scale, bias):
    N, H, W, C = y2.shape
    return pl.pallas_call(
        _bn2_add_relu_kernel,
        out_shape=jax.ShapeDtypeStruct((N, H, W, C), jnp.float32),
        grid=(N,),
        in_specs=[pl.BlockSpec((1, H, W, C), lambda n: (n, 0, 0, 0)),
                  pl.BlockSpec((1, H, W, C), lambda n: (n, 0, 0, 0)),
                  pl.BlockSpec((1, C), lambda n: (0, 0)),
                  pl.BlockSpec((1, C), lambda n: (0, 0))],
        out_specs=pl.BlockSpec((1, H, W, C), lambda n: (n, 0, 0, 0)),
        compiler_params=pltpu.CompilerParams(dimension_semantics=("parallel",)),
    )(y2, res, scale.reshape(1, C), bias.reshape(1, C))


# ----------------------------------------------------------------------------
# Full ResidualBlock forward (shortcut=None => identity residual).
# ----------------------------------------------------------------------------
@jax.jit
def residual_block_forward(x_nchw, w1, g1, b1, w2, g2, b2):
    # x_nchw: (N, Cin, H, W);  w*: (Cout, Cin, 3, 3) PyTorch layout (no bias)
    N, Cin, H, W = x_nchw.shape
    Cout = w1.shape[0]
    # identity residual requires matching shapes / stride 1 (as in PyTorch)
    assert Cin == Cout and w2.shape[0] == Cout and w2.shape[1] == Cout

    # TODO(synk): for realistic ResNet spatial sizes, add H-row tiling with a
    # 2-row halo so per-step VMEM stays under v7x's 64 MiB; whole-image blocks
    # are used here because the example shapes are tiny.
    x_nhwc = jnp.transpose(x_nchw, (0, 2, 3, 1)).astype(jnp.float32)
    # (Cout,Cin,3,3) -> (ky, kx*Cin + ci, Cout): matches the kx-concat patch layout.
    w1r = jnp.transpose(w1, (2, 3, 1, 0)).reshape(3, 3 * Cin, Cout).astype(jnp.float32)
    w2r = jnp.transpose(w2, (2, 3, 1, 0)).reshape(3, 3 * Cout, Cout).astype(jnp.float32)

    count = float(N * H * W)

    # A: conv1 + stats (stats fused, no extra HBM pass over y1)
    y1, p1s, p1q = _conv1_stats(x_nhwc, w1r)
    m1 = jnp.sum(p1s, axis=(0, 1)) / count
    v1 = jnp.sum(p1q, axis=(0, 1)) / count - m1 * m1      # biased variance (BN train)
    s1 = g1 / jnp.sqrt(v1 + EPS)
    t1 = b1 - m1 * s1

    # B: BN1 + ReLU + conv2 + stats (single pass over y1, single pass producing y2)
    y2, p2s, p2q = _bnrelu_conv2_stats(y1, s1, t1, w2r)
    m2 = jnp.sum(p2s, axis=(0, 1)) / count
    v2 = jnp.sum(p2q, axis=(0, 1)) / count - m2 * m2
    s2 = g2 / jnp.sqrt(v2 + EPS)
    t2 = b2 - m2 * s2

    # C: BN2 + residual add + ReLU
    out = _bn2_add_relu(y2, x_nhwc, s2, t2)
    return jnp.transpose(out, (0, 3, 1, 2))               # back to NCHW


# ----------------------------------------------------------------------------
# Pure-JAX reference (correctness cross-check).
# ----------------------------------------------------------------------------
def ref_forward(x, w1, g1, b1, w2, g2, b2):
    def conv(z, w):
        return jax.lax.conv_general_dilated(
            z, w, (1, 1), ((1, 1), (1, 1)),
            dimension_numbers=("NCHW", "OIHW", "NCHW"))

    def bn(z, g, b):
        mean = jnp.mean(z, axis=(0, 2, 3), keepdims=True)
        var = jnp.var(z, axis=(0, 2, 3), keepdims=True)
        return (z - mean) / jnp.sqrt(var + EPS) * g.reshape(1, -1, 1, 1) \
            + b.reshape(1, -1, 1, 1)

    y = jax.nn.relu(bn(conv(x, w1), g1, b1))
    y = bn(conv(y, w2), g2, b2)
    return jax.nn.relu(y + x)


if __name__ == "__main__":
    # Small deterministic example: inchannel == outchannel (shortcut=None), stride=1.
    N, C, H, W = 2, 4, 16, 16
    key = jax.random.PRNGKey(0)
    k_x, k_w1, k_w2, k_g1, k_b1, k_g2, k_b2 = jax.random.split(key, 7)

    x = jax.random.normal(k_x, (N, C, H, W), jnp.float32)
    w1 = 0.1 * jax.random.normal(k_w1, (C, C, 3, 3), jnp.float32)
    w2 = 0.1 * jax.random.normal(k_w2, (C, C, 3, 3), jnp.float32)
    g1 = 1.0 + 0.1 * jax.random.normal(k_g1, (C,), jnp.float32)
    b1 = 0.1 * jax.random.normal(k_b1, (C,), jnp.float32)
    g2 = 1.0 + 0.1 * jax.random.normal(k_g2, (C,), jnp.float32)
    b2 = 0.1 * jax.random.normal(k_b2, (C,), jnp.float32)

    out = residual_block_forward(x, w1, g1, b1, w2, g2, b2)
    out = jax.block_until_ready(out)

    ref = jax.block_until_ready(ref_forward(x, w1, g1, b1, w2, g2, b2))
    np.testing.assert_allclose(np.asarray(out), np.asarray(ref),
                               rtol=1e-4, atol=1e-4)

    print("KERNEL_OK")
</pallas_src>

<mosaic_0001>
module attributes {stable_mosaic.version = 11 : i64} {
  func.func @_bnrelu_conv2_stats_kernel(%arg0: i32, %arg1: memref<1x16x16x4xf32, #tpu.memory_space<vmem>>, %arg2: memref<1x4xf32, #tpu.memory_space<vmem>>, %arg3: memref<1x4xf32, #tpu.memory_space<vmem>>, %arg4: memref<3x12x4xf32, #tpu.memory_space<vmem>>, %arg5: memref<1x16x16x4xf32, #tpu.memory_space<vmem>>, %arg6: memref<1x1x4xf32, #tpu.memory_space<vmem>>, %arg7: memref<1x1x4xf32, #tpu.memory_space<vmem>>, %arg8: memref<18x18x4xf32, #tpu.memory_space<vmem>>) attributes {dimension_semantics = [#tpu.dimension_semantics<parallel>], iteration_bounds = array<i64: 2>, scalar_prefetch = 0 : i64, scratch_operands = 1 : i64, tpu.core_type = #tpu.core_type<tc>, window_params = [{transform_indices = @transform_0, window_bounds = array<i64: 1, 16, 16, 4>}, {pipeline_mode = #tpu.pipeline_mode<synchronous>, transform_indices = @transform_1, window_bounds = array<i64: 1, 4>}, {pipeline_mode = #tpu.pipeline_mode<synchronous>, transform_indices = @transform_2, window_bounds = array<i64: 1, 4>}, {pipeline_mode = #tpu.pipeline_mode<synchronous>, transform_indices = @transform_3, window_bounds = array<i64: 3, 12, 4>}, {transform_indices = @transform_4, window_bounds = array<i64: 1, 16, 16, 4>}, {transform_indices = @transform_5, window_bounds = array<i64: 1, 1, 4>}, {transform_indices = @transform_6, window_bounds = array<i64: 1, 1, 4>}]} {
    %c0 = arith.constant 0 : index
    %c0_0 = arith.constant 0 : index
    %0 = vector.load %arg2[%c0, %c0_0] : memref<1x4xf32, #tpu.memory_space<vmem>>, vector<1x4xf32>
    %1 = vector.shape_cast %0 : vector<1x4xf32> to vector<1x1x4xf32>
    %c0_1 = arith.constant 0 : index
    %c0_2 = arith.constant 0 : index
    %2 = vector.load %arg3[%c0_1, %c0_2] : memref<1x4xf32, #tpu.memory_space<vmem>>, vector<1x4xf32>
    %3 = vector.shape_cast %2 : vector<1x4xf32> to vector<1x1x4xf32>
    %c0_3 = arith.constant 0 : index
    %c0_4 = arith.constant 0 : index
    %c0_5 = arith.constant 0 : index
    %c0_6 = arith.constant 0 : index
    %4 = vector.load %arg1[%c0_3, %c0_4, %c0_5, %c0_6] : memref<1x16x16x4xf32, #tpu.memory_space<vmem>>, vector<1x16x16x4xf32>
    %5 = vector.shape_cast %4 : vector<1x16x16x4xf32> to vector<16x16x4xf32>
    %6 = vector.broadcast %1 : vector<1x1x4xf32> to vector<16x16x4xf32>
    %7 = arith.mulf %5, %6 : vector<16x16x4xf32>
    %8 = vector.broadcast %3 : vector<1x1x4xf32> to vector<16x16x4xf32>
    %9 = arith.addf %7, %8 : vector<16x16x4xf32>
    %cst = arith.constant 0.000000e+00 : f32
    %10 = vector.broadcast %cst : f32 to vector<16x16x4xf32>
    %11 = arith.maximumf %9, %10 : vector<16x16x4xf32>
    %cst_7 = arith.constant 0.000000e+00 : f32
    %12 = vector.broadcast %cst_7 : f32 to vector<18x18x4xf32>
    %c0_8 = arith.constant 0 : index
    %c0_9 = arith.constant 0 : index
    %c0_10 = arith.constant 0 : index
    %13 = vector.load %arg8[%c0_8, %c0_9, %c0_10] : memref<18x18x4xf32, #tpu.memory_space<vmem>>, vector<18x18x4xf32>
    tpu.vector_store %arg8[%c0_8, %c0_9, %c0_10], %12 {strides = array<i32>} : memref<18x18x4xf32, #tpu.memory_space<vmem>>, vector<18x18x4xf32>,
    %c1 = arith.constant 1 : index
    %c1_11 = arith.constant 1 : index
    %c0_12 = arith.constant 0 : index
    %14 = vector.load %arg8[%c1, %c1_11, %c0_12] : memref<18x18x4xf32, #tpu.memory_space<vmem>>, vector<16x16x4xf32>
    tpu.vector_store %arg8[%c1, %c1_11, %c0_12], %11 {strides = array<i32>} : memref<18x18x4xf32, #tpu.memory_space<vmem>>, vector<16x16x4xf32>,
    %cst_13 = arith.constant 0.000000e+00 : f32
    %15 = vector.broadcast %cst_13 : f32 to vector<256x4xf32>
    %c0_14 = arith.constant 0 : index
    %c0_15 = arith.constant 0 : index
    %c0_16 = arith.constant 0 : index
    %16 = vector.load %arg8[%c0_14, %c0_15, %c0_16] : memref<18x18x4xf32, #tpu.memory_space<vmem>>, vector<16x18x4xf32>
    %17 = vector.extract_strided_slice %16 {offsets = [0, 0, 0], sizes = [16, 16, 4], strides = [1, 1, 1]} : vector<16x18x4xf32> to vector<16x16x4xf32>
    %18 = vector.extract_strided_slice %16 {offsets = [0, 1, 0], sizes = [16, 16, 4], strides = [1, 1, 1]} : vector<16x18x4xf32> to vector<16x16x4xf32>
    %19 = vector.extract_strided_slice %16 {offsets = [0, 2, 0], sizes = [16, 16, 4], strides = [1, 1, 1]} : vector<16x18x4xf32> to vector<16x16x4xf32>
    %20 = tpu.concatenate %17, %18, %19 in 2 : vector<16x16x4xf32>, vector<16x16x4xf32>, vector<16x16x4xf32> -> vector<16x16x12xf32>
    %21 = vector.shape_cast %20 : vector<16x16x12xf32> to vector<256x12xf32>
    %c0_17 = arith.constant 0 : index
    %c0_18 = arith.constant 0 : index
    %c0_19 = arith.constant 0 : index
    %22 = vector.load %arg4[%c0_17, %c0_18, %c0_19] : memref<3x12x4xf32, #tpu.memory_space<vmem>>, vector<1x12x4xf32>
    %23 = vector.shape_cast %22 : vector<1x12x4xf32> to vector<12x4xf32>
    %cst_20 = arith.constant dense<0.000000e+00> : vector<256x4xf32>
    %24 = tpu.matmul %21, %23, %cst_20 {dimension_numbers = #tpu.dot_dimension_numbers<[1], [0], [0], [1], [0, 0, 1, 1], [], []>} : vector<256x12xf32>, vector<12x4xf32>, vector<256x4xf32> -> vector<256x4xf32>
    %25 = arith.addf %15, %24 : vector<256x4xf32>
    %c1_21 = arith.constant 1 : index
    %c0_22 = arith.constant 0 : index
    %c0_23 = arith.constant 0 : index
    %26 = vector.load %arg8[%c1_21, %c0_22, %c0_23] : memref<18x18x4xf32, #tpu.memory_space<vmem>>, vector<16x18x4xf32>
    %27 = vector.extract_strided_slice %26 {offsets = [0, 0, 0], sizes = [16, 16, 4], strides = [1, 1, 1]} : vector<16x18x4xf32> to vector<16x16x4xf32>
    %28 = vector.extract_strided_slice %26 {offsets = [0, 1, 0], sizes = [16, 16, 4], strides = [1, 1, 1]} : vector<16x18x4xf32> to vector<16x16x4xf32>
    %29 = vector.extract_strided_slice %26 {offsets = [0, 2, 0], sizes = [16, 16, 4], strides = [1, 1, 1]} : vector<16x18x4xf32> to vector<16x16x4xf32>
    %30 = tpu.concatenate %27, %28, %29 in 2 : vector<16x16x4xf32>, vector<16x16x4xf32>, vector<16x16x4xf32> -> vector<16x16x12xf32>
    %31 = vector.shape_cast %30 : vector<16x16x12xf32> to vector<256x12xf32>
    %c1_24 = arith.constant 1 : index
    %c0_25 = arith.constant 0 : index
    %c0_26 = arith.constant 0 : index
    %32 = vector.load %arg4[%c1_24, %c0_25, %c0_26] : memref<3x12x4xf32, #tpu.memory_space<vmem>>, vector<1x12x4xf32>
    %33 = vector.shape_cast %32 : vector<1x12x4xf32> to vector<12x4xf32>
    %cst_27 = arith.constant dense<0.000000e+00> : vector<256x4xf32>
    %34 = tpu.matmul %31, %33, %cst_27 {dimension_numbers = #tpu.dot_dimension_numbers<[1], [0], [0], [1], [0, 0, 1, 1], [], []>} : vector<256x12xf32>, vector<12x4xf32>, vector<256x4xf32> -> vector<256x4xf32>
    %35 = arith.addf %25, %34 : vector<256x4xf32>
    %c2 = arith.constant 2 : index
    %c0_28 = arith.constant 0 : index
    %c0_29 = arith.constant 0 : index
    %36 = vector.load %arg8[%c2, %c0_28, %c0_29] : memref<18x18x4xf32, #tpu.memory_space<vmem>>, vector<16x18x4xf32>
    %37 = vector.extract_strided_slice %36 {offsets = [0, 0, 0], sizes = [16, 16, 4], strides = [1, 1, 1]} : vector<16x18x4xf32> to vector<16x16x4xf32>
    %38 = vector.extract_strided_slice %36 {offsets = [0, 1, 0], sizes = [16, 16, 4], strides = [1, 1, 1]} : vector<16x18x4xf32> to vector<16x16x4xf32>
    %39 = vector.extract_strided_slice %36 {offsets = [0, 2, 0], sizes = [16, 16, 4], strides = [1, 1, 1]} : vector<16x18x4xf32> to vector<16x16x4xf32>
    %40 = tpu.concatenate %37, %38, %39 in 2 : vector<16x16x4xf32>, vector<16x16x4xf32>, vector<16x16x4xf32> -> vector<16x16x12xf32>
    %41 = vector.shape_cast %40 : vector<16x16x12xf32> to vector<256x12xf32>
    %c2_30 = arith.constant 2 : index
    %c0_31 = arith.constant 0 : index
    %c0_32 = arith.constant 0 : index
    %42 = vector.load %arg4[%c2_30, %c0_31, %c0_32] : memref<3x12x4xf32, #tpu.memory_space<vmem>>, vector<1x12x4xf32>
    %43 = vector.shape_cast %42 : vector<1x12x4xf32> to vector<12x4xf32>
    %cst_33 = arith.constant dense<0.000000e+00> : vector<256x4xf32>
    %44 = tpu.matmul %41, %43, %cst_33 {dimension_numbers = #tpu.dot_dimension_numbers<[1], [0], [0], [1], [0, 0, 1, 1], [], []>} : vector<256x12xf32>, vector<12x4xf32>, vector<256x4xf32> -> vector<256x4xf32>
    %45 = arith.addf %35, %44 : vector<256x4xf32>
    %46 = vector.shape_cast %45 : vector<256x4xf32> to vector<16x16x4xf32>
    %c0_34 = arith.constant 0 : index
    %c0_35 = arith.constant 0 : index
    %c0_36 = arith.constant 0 : index
    %c0_37 = arith.constant 0 : index
    %47 = vector.load %arg5[%c0_34, %c0_35, %c0_36, %c0_37] : memref<1x16x16x4xf32, #tpu.memory_space<vmem>>, vector<1x16x16x4xf32>
    %48 = vector.shape_cast %47 : vector<1x16x16x4xf32> to vector<16x16x4xf32>
    %49 = vector.shape_cast %46 : vector<16x16x4xf32> to vector<1x16x16x4xf32>
    tpu.vector_store %arg5[%c0_34, %c0_35, %c0_36, %c0_37], %49 {strides = array<i32>} : memref<1x16x16x4xf32, #tpu.memory_space<vmem>>, vector<1x16x16x4xf32>,
    %cst_38 = arith.constant dense<0.000000e+00> : vector<4xf32>
    %50 = vector.multi_reduction <add>, %45, %cst_38 [0] : vector<256x4xf32> to vector<4xf32>
    %51 = vector.shape_cast %50 : vector<4xf32> to vector<1x1x4xf32>
    %c0_39 = arith.constant 0 : index
    %c0_40 = arith.constant 0 : index
    %c0_41 = arith.constant 0 : index
    %52 = vector.load %arg6[%c0_39, %c0_40, %c0_41] : memref<1x1x4xf32, #tpu.memory_space<vmem>>, vector<1x1x4xf32>
    tpu.vector_store %arg6[%c0_39, %c0_40, %c0_41], %51 {strides = array<i32>} : memref<1x1x4xf32, #tpu.memory_space<vmem>>, vector<1x1x4xf32>,
    %53 = arith.mulf %45, %45 : vector<256x4xf32>
    %cst_42 = arith.constant dense<0.000000e+00> : vector<4xf32>
    %54 = vector.multi_reduction <add>, %53, %cst_42 [0] : vector<256x4xf32> to vector<4xf32>
    %55 = vector.shape_cast %54 : vector<4xf32> to vector<1x1x4xf32>
    %c0_43 = arith.constant 0 : index
    %c0_44 = arith.constant 0 : index
    %c0_45 = arith.constant 0 : index
    %56 = vector.load %arg7[%c0_43, %c0_44, %c0_45] : memref<1x1x4xf32, #tpu.memory_space<vmem>>, vector<1x1x4xf32>
    tpu.vector_store %arg7[%c0_43, %c0_44, %c0_45], %55 {strides = array<i32>} : memref<1x1x4xf32, #tpu.memory_space<vmem>>, vector<1x1x4xf32>,
    return
  }
  func.func @transform_0(%arg0: i32) -> (i32, i32, i32, i32) {
    %c0_i32 = arith.constant 0 : i32
    %c0_i32_0 = arith.constant 0 : i32
    %c0_i32_1 = arith.constant 0 : i32
    %c0_i32_2 = arith.constant 0 : i32
    return %arg0, %c0_i32, %c0_i32_0, %c0_i32_1 : i32, i32, i32, i32
  }
  func.func @transform_1(%arg0: i32) -> (i32, i32) {
    %c0_i32 = arith.constant 0 : i32
    %c0_i32_0 = arith.constant 0 : i32
    %c0_i32_1 = arith.constant 0 : i32
    return %c0_i32, %c0_i32_0 : i32, i32
  }
  func.func @transform_2(%arg0: i32) -> (i32, i32) {
    %c0_i32 = arith.constant 0 : i32
    %c0_i32_0 = arith.constant 0 : i32
    %c0_i32_1 = arith.constant 0 : i32
    return %c0_i32, %c0_i32_0 : i32, i32
  }
  func.func @transform_3(%arg0: i32) -> (i32, i32, i32) {
    %c0_i32 = arith.constant 0 : i32
    %c0_i32_0 = arith.constant 0 : i32
    %c0_i32_1 = arith.constant 0 : i32
    %c0_i32_2 = arith.constant 0 : i32
    return %c0_i32, %c0_i32_0, %c0_i32_1 : i32, i32, i32
  }
  func.func @transform_4(%arg0: i32) -> (i32, i32, i32, i32) {
    %c0_i32 = arith.constant 0 : i32
    %c0_i32_0 = arith.constant 0 : i32
    %c0_i32_1 = arith.constant 0 : i32
    %c0_i32_2 = arith.constant 0 : i32
    return %arg0, %c0_i32, %c0_i32_0, %c0_i32_1 : i32, i32, i32, i32
  }
  func.func @transform_5(%arg0: i32) -> (i32, i32, i32) {
    %c0_i32 = arith.constant 0 : i32
    %c0_i32_0 = arith.constant 0 : i32
    %c0_i32_1 = arith.constant 0 : i32
    return %arg0, %c0_i32, %c0_i32_0 : i32, i32, i32
  }
  func.func @transform_6(%arg0: i32) -> (i32, i32, i32) {
    %c0_i32 = arith.constant 0 : i32
    %c0_i32_0 = arith.constant 0 : i32
    %c0_i32_1 = arith.constant 0 : i32
    return %arg0, %c0_i32, %c0_i32_0 : i32, i32, i32
  }
}

module attributes {stable_mosaic.version = 11 : i64} {
  func.func @_bn2_add_relu_kernel(%arg0: i32, %arg1: memref<1x16x16x4xf32, #tpu.memory_space<vmem>>, %arg2: memref<1x16x16x4xf32, #tpu.memory_space<vmem>>, %arg3: memref<1x4xf32, #tpu.memory_space<vmem>>, %arg4: memref<1x4xf32, #tpu.memory_space<vmem>>, %arg5: memref<1x16x16x4xf32, #tpu.memory_space<vmem>>) attributes {dimension_semantics = [#tpu.dimension_semantics<parallel>], iteration_bounds = array<i64: 2>, scalar_prefetch = 0 : i64, scratch_operands = 0 : i64, tpu.core_type = #tpu.core_type<tc>, window_params = [{transform_indices = @transform_0, window_bounds = array<i64: 1, 16, 16, 4>}, {transform_indices = @transform_1, window_bounds = array<i64: 1, 16, 16, 4>}, {pipeline_mode = #tpu.pipeline_mode<synchronous>, transform_indices = @transform_2, window_bounds = array<i64: 1, 4>}, {pipeline_mode = #tpu.pipeline_mode<synchronous>, transform_indices = @transform_3, window_bounds = array<i64: 1, 4>}, {transform_indices = @transform_4, window_bounds = array<i64: 1, 16, 16, 4>}]} {
    %c0 = arith.constant 0 : index
    %c0_0 = arith.constant 0 : index
    %0 = vector.load %arg3[%c0, %c0_0] : memref<1x4xf32, #tpu.memory_space<vmem>>, vector<1x4xf32>
    %1 = vector.shape_cast %0 : vector<1x4xf32> to vector<1x1x4xf32>
    %c0_1 = arith.constant 0 : index
    %c0_2 = arith.constant 0 : index
    %2 = vector.load %arg4[%c0_1, %c0_2] : memref<1x4xf32, #tpu.memory_space<vmem>>, vector<1x4xf32>
    %3 = vector.shape_cast %2 : vector<1x4xf32> to vector<1x1x4xf32>
    %c0_3 = arith.constant 0 : index
    %c0_4 = arith.constant 0 : index
    %c0_5 = arith.constant 0 : index
    %c0_6 = arith.constant 0 : index
    %4 = vector.load %arg1[%c0_3, %c0_4, %c0_5, %c0_6] : memref<1x16x16x4xf32, #tpu.memory_space<vmem>>, vector<1x16x16x4xf32>
    %5 = vector.shape_cast %4 : vector<1x16x16x4xf32> to vector<16x16x4xf32>
    %6 = vector.broadcast %1 : vector<1x1x4xf32> to vector<16x16x4xf32>
    %7 = arith.mulf %5, %6 : vector<16x16x4xf32>
    %8 = vector.broadcast %3 : vector<1x1x4xf32> to vector<16x16x4xf32>
    %9 = arith.addf %7, %8 : vector<16x16x4xf32>
    %c0_7 = arith.constant 0 : index
    %c0_8 = arith.constant 0 : index
    %c0_9 = arith.constant 0 : index
    %c0_10 = arith.constant 0 : index
    %10 = vector.load %arg2[%c0_7, %c0_8, %c0_9, %c0_10] : memref<1x16x16x4xf32, #tpu.memory_space<vmem>>, vector<1x16x16x4xf32>
    %11 = vector.shape_cast %10 : vector<1x16x16x4xf32> to vector<16x16x4xf32>
    %12 = arith.addf %9, %11 : vector<16x16x4xf32>
    %cst = arith.constant 0.000000e+00 : f32
    %13 = vector.broadcast %cst : f32 to vector<16x16x4xf32>
    %14 = arith.maximumf %12, %13 : vector<16x16x4xf32>
    %c0_11 = arith.constant 0 : index
    %c0_12 = arith.constant 0 : index
    %c0_13 = arith.constant 0 : index
    %c0_14 = arith.constant 0 : index
    %15 = vector.load %arg5[%c0_11, %c0_12, %c0_13, %c0_14] : memref<1x16x16x4xf32, #tpu.memory_space<vmem>>, vector<1x16x16x4xf32>
    %16 = vector.shape_cast %15 : vector<1x16x16x4xf32> to vector<16x16x4xf32>
    %17 = vector.shape_cast %14 : vector<16x16x4xf32> to vector<1x16x16x4xf32>
    tpu.vector_store %arg5[%c0_11, %c0_12, %c0_13, %c0_14], %17 {strides = array<i32>} : memref<1x16x16x4xf32, #tpu.memory_space<vmem>>, vector<1x16x16x4xf32>,
    return
  }
  func.func @transform_0(%arg0: i32) -> (i32, i32, i32, i32) {
    %c0_i32 = arith.constant 0 : i32
    %c0_i32_0 = arith.constant 0 : i32
    %c0_i32_1 = arith.constant 0 : i32
    %c0_i32_2 = arith.constant 0 : i32
    return %arg0, %c0_i32, %c0_i32_0, %c0_i32_1 : i32, i32, i32, i32
  }
  func.func @transform_1(%arg0: i32) -> (i32, i32, i32, i32) {
    %c0_i32 = arith.constant 0 : i32
    %c0_i32_0 = arith.constant 0 : i32
    %c0_i32_1 = arith.constant 0 : i32
    %c0_i32_2 = arith.constant 0 : i32
    return %arg0, %c0_i32, %c0_i32_0, %c0_i32_1 : i32, i32, i32, i32
  }
  func.func @transform_2(%arg0: i32) -> (i32, i32) {
    %c0_i32 = arith.constant 0 : i32
    %c0_i32_0 = arith.constant 0 : i32
    %c0_i32_1 = arith.constant 0 : i32
    return %c0_i32, %c0_i32_0 : i32, i32
  }
  func.func @transform_3(%arg0: i32) -> (i32, i32) {
    %c0_i32 = arith.constant 0 : i32
    %c0_i32_0 = arith.constant 0 : i32
    %c0_i32_1 = arith.constant 0 : i32
    return %c0_i32, %c0_i32_0 : i32, i32
  }
  func.func @transform_4(%arg0: i32) -> (i32, i32, i32, i32) {
    %c0_i32 = arith.constant 0 : i32
    %c0_i32_0 = arith.constant 0 : i32
    %c0_i32_1 = arith.constant 0 : i32
    %c0_i32_2 = arith.constant 0 : i32
    return %arg0, %c0_i32, %c0_i32_0, %c0_i32_1 : i32, i32, i32, i32
  }
}

module attributes {stable_mosaic.version = 11 : i64} {
  func.func @_conv1_stats_kernel(%arg0: i32, %arg1: memref<1x16x16x4xf32, #tpu.memory_space<vmem>>, %arg2: memref<3x12x4xf32, #tpu.memory_space<vmem>>, %arg3: memref<1x16x16x4xf32, #tpu.memory_space<vmem>>, %arg4: memref<1x1x4xf32, #tpu.memory_space<vmem>>, %arg5: memref<1x1x4xf32, #tpu.memory_space<vmem>>, %arg6: memref<18x18x4xf32, #tpu.memory_space<vmem>>) attributes {dimension_semantics = [#tpu.dimension_semantics<parallel>], iteration_bounds = array<i64: 2>, scalar_prefetch = 0 : i64, scratch_operands = 1 : i64, tpu.core_type = #tpu.core_type<tc>, window_params = [{transform_indices = @transform_0, window_bounds = array<i64: 1, 16, 16, 4>}, {pipeline_mode = #tpu.pipeline_mode<synchronous>, transform_indices = @transform_1, window_bounds = array<i64: 3, 12, 4>}, {transform_indices = @transform_2, window_bounds = array<i64: 1, 16, 16, 4>}, {transform_indices = @transform_3, window_bounds = array<i64: 1, 1, 4>}, {transform_indices = @transform_4, window_bounds = array<i64: 1, 1, 4>}]} {
    %cst = arith.constant 0.000000e+00 : f32
    %0 = vector.broadcast %cst : f32 to vector<18x18x4xf32>
    %c0 = arith.constant 0 : index
    %c0_0 = arith.constant 0 : index
    %c0_1 = arith.constant 0 : index
    %1 = vector.load %arg6[%c0, %c0_0, %c0_1] : memref<18x18x4xf32, #tpu.memory_space<vmem>>, vector<18x18x4xf32>
    tpu.vector_store %arg6[%c0, %c0_0, %c0_1], %0 {strides = array<i32>} : memref<18x18x4xf32, #tpu.memory_space<vmem>>, vector<18x18x4xf32>,
    %c0_2 = arith.constant 0 : index
    %c0_3 = arith.constant 0 : index
    %c0_4 = arith.constant 0 : index
    %c0_5 = arith.constant 0 : index
    %2 = vector.load %arg1[%c0_2, %c0_3, %c0_4, %c0_5] : memref<1x16x16x4xf32, #tpu.memory_space<vmem>>, vector<1x16x16x4xf32>
    %3 = vector.shape_cast %2 : vector<1x16x16x4xf32> to vector<16x16x4xf32>
    %c1 = arith.constant 1 : index
    %c1_6 = arith.constant 1 : index
    %c0_7 = arith.constant 0 : index
    %4 = vector.load %arg6[%c1, %c1_6, %c0_7] : memref<18x18x4xf32, #tpu.memory_space<vmem>>, vector<16x16x4xf32>
    tpu.vector_store %arg6[%c1, %c1_6, %c0_7], %3 {strides = array<i32>} : memref<18x18x4xf32, #tpu.memory_space<vmem>>, vector<16x16x4xf32>,
    %cst_8 = arith.constant 0.000000e+00 : f32
    %5 = vector.broadcast %cst_8 : f32 to vector<256x4xf32>
    %c0_9 = arith.constant 0 : index
    %c0_10 = arith.constant 0 : index
    %c0_11 = arith.constant 0 : index
    %6 = vector.load %arg6[%c0_9, %c0_10, %c0_11] : memref<18x18x4xf32, #tpu.memory_space<vmem>>, vector<16x18x4xf32>
    %7 = vector.extract_strided_slice %6 {offsets = [0, 0, 0], sizes = [16, 16, 4], strides = [1, 1, 1]} : vector<16x18x4xf32> to vector<16x16x4xf32>
    %8 = vector.extract_strided_slice %6 {offsets = [0, 1, 0], sizes = [16, 16, 4], strides = [1, 1, 1]} : vector<16x18x4xf32> to vector<16x16x4xf32>
    %9 = vector.extract_strided_slice %6 {offsets = [0, 2, 0], sizes = [16, 16, 4], strides = [1, 1, 1]} : vector<16x18x4xf32> to vector<16x16x4xf32>
    %10 = tpu.concatenate %7, %8, %9 in 2 : vector<16x16x4xf32>, vector<16x16x4xf32>, vector<16x16x4xf32> -> vector<16x16x12xf32>
    %11 = vector.shape_cast %10 : vector<16x16x12xf32> to vector<256x12xf32>
    %c0_12 = arith.constant 0 : index
    %c0_13 = arith.constant 0 : index
    %c0_14 = arith.constant 0 : index
    %12 = vector.load %arg2[%c0_12, %c0_13, %c0_14] : memref<3x12x4xf32, #tpu.memory_space<vmem>>, vector<1x12x4xf32>
    %13 = vector.shape_cast %12 : vector<1x12x4xf32> to vector<12x4xf32>
    %cst_15 = arith.constant dense<0.000000e+00> : vector<256x4xf32>
    %14 = tpu.matmul %11, %13, %cst_15 {dimension_numbers = #tpu.dot_dimension_numbers<[1], [0], [0], [1], [0, 0, 1, 1], [], []>} : vector<256x12xf32>, vector<12x4xf32>, vector<256x4xf32> -> vector<256x4xf32>
    %15 = arith.addf %5, %14 : vector<256x4xf32>
    %c1_16 = arith.constant 1 : index
    %c0_17 = arith.constant 0 : index
    %c0_18 = arith.constant 0 : index
    %16 = vector.load %arg6[%c1_16, %c0_17, %c0_18] : memref<18x18x4xf32, #tpu.memory_space<vmem>>, vector<16x18x4xf32>
    %17 = vector.extract_strided_slice %16 {offsets = [0, 0, 0], sizes = [16, 16, 4], strides = [1, 1, 1]} : vector<16x18x4xf32> to vector<16x16x4xf32>
    %18 = vector.extract_strided_slice %16 {offsets = [0, 1, 0], sizes = [16, 16, 4], strides = [1, 1, 1]} : vector<16x18x4xf32> to vector<16x16x4xf32>
    %19 = vector.extract_strided_slice %16 {offsets = [0, 2, 0], sizes = [16, 16, 4], strides = [1, 1, 1]} : vector<16x18x4xf32> to vector<16x16x4xf32>
    %20 = tpu.concatenate %17, %18, %19 in 2 : vector<16x16x4xf32>, vector<16x16x4xf32>, vector<16x16x4xf32> -> vector<16x16x12xf32>
    %21 = vector.shape_cast %20 : vector<16x16x12xf32> to vector<256x12xf32>
    %c1_19 = arith.constant 1 : index
    %c0_20 = arith.constant 0 : index
    %c0_21 = arith.constant 0 : index
    %22 = vector.load %arg2[%c1_19, %c0_20, %c0_21] : memref<3x12x4xf32, #tpu.memory_space<vmem>>, vector<1x12x4xf32>
    %23 = vector.shape_cast %22 : vector<1x12x4xf32> to vector<12x4xf32>
    %cst_22 = arith.constant dense<0.000000e+00> : vector<256x4xf32>
    %24 = tpu.matmul %21, %23, %cst_22 {dimension_numbers = #tpu.dot_dimension_numbers<[1], [0], [0], [1], [0, 0, 1, 1], [], []>} : vector<256x12xf32>, vector<12x4xf32>, vector<256x4xf32> -> vector<256x4xf32>
    %25 = arith.addf %15, %24 : vector<256x4xf32>
    %c2 = arith.constant 2 : index
    %c0_23 = arith.constant 0 : index
    %c0_24 = arith.constant 0 : index
    %26 = vector.load %arg6[%c2, %c0_23, %c0_24] : memref<18x18x4xf32, #tpu.memory_space<vmem>>, vector<16x18x4xf32>
    %27 = vector.extract_strided_slice %26 {offsets = [0, 0, 0], sizes = [16, 16, 4], strides = [1, 1, 1]} : vector<16x18x4xf32> to vector<16x16x4xf32>
    %28 = vector.extract_strided_slice %26 {offsets = [0, 1, 0], sizes = [16, 16, 4], strides = [1, 1, 1]} : vector<16x18x4xf32> to vector<16x16x4xf32>
    %29 = vector.extract_strided_slice %26 {offsets = [0, 2, 0], sizes = [16, 16, 4], strides = [1, 1, 1]} : vector<16x18x4xf32> to vector<16x16x4xf32>
    %30 = tpu.concatenate %27, %28, %29 in 2 : vector<16x16x4xf32>, vector<16x16x4xf32>, vector<16x16x4xf32> -> vector<16x16x12xf32>
    %31 = vector.shape_cast %30 : vector<16x16x12xf32> to vector<256x12xf32>
    %c2_25 = arith.constant 2 : index
    %c0_26 = arith.constant 0 : index
    %c0_27 = arith.constant 0 : index
    %32 = vector.load %arg2[%c2_25, %c0_26, %c0_27] : memref<3x12x4xf32, #tpu.memory_space<vmem>>, vector<1x12x4xf32>
    %33 = vector.shape_cast %32 : vector<1x12x4xf32> to vector<12x4xf32>
    %cst_28 = arith.constant dense<0.000000e+00> : vector<256x4xf32>
    %34 = tpu.matmul %31, %33, %cst_28 {dimension_numbers = #tpu.dot_dimension_numbers<[1], [0], [0], [1], [0, 0, 1, 1], [], []>} : vector<256x12xf32>, vector<12x4xf32>, vector<256x4xf32> -> vector<256x4xf32>
    %35 = arith.addf %25, %34 : vector<256x4xf32>
    %36 = vector.shape_cast %35 : vector<256x4xf32> to vector<16x16x4xf32>
    %c0_29 = arith.constant 0 : index
    %c0_30 = arith.constant 0 : index
    %c0_31 = arith.constant 0 : index
    %c0_32 = arith.constant 0 : index
    %37 = vector.load %arg3[%c0_29, %c0_30, %c0_31, %c0_32] : memref<1x16x16x4xf32, #tpu.memory_space<vmem>>, vector<1x16x16x4xf32>
    %38 = vector.shape_cast %37 : vector<1x16x16x4xf32> to vector<16x16x4xf32>
    %39 = vector.shape_cast %36 : vector<16x16x4xf32> to vector<1x16x16x4xf32>
    tpu.vector_store %arg3[%c0_29, %c0_30, %c0_31, %c0_32], %39 {strides = array<i32>} : memref<1x16x16x4xf32, #tpu.memory_space<vmem>>, vector<1x16x16x4xf32>,
    %cst_33 = arith.constant dense<0.000000e+00> : vector<4xf32>
    %40 = vector.multi_reduction <add>, %35, %cst_33 [0] : vector<256x4xf32> to vector<4xf32>
    %41 = vector.shape_cast %40 : vector<4xf32> to vector<1x1x4xf32>
    %c0_34 = arith.constant 0 : index
    %c0_35 = arith.constant 0 : index
    %c0_36 = arith.constant 0 : index
    %42 = vector.load %arg4[%c0_34, %c0_35, %c0_36] : memref<1x1x4xf32, #tpu.memory_space<vmem>>, vector<1x1x4xf32>
    tpu.vector_store %arg4[%c0_34, %c0_35, %c0_36], %41 {strides = array<i32>} : memref<1x1x4xf32, #tpu.memory_space<vmem>>, vector<1x1x4xf32>,
    %43 = arith.mulf %35, %35 : vector<256x4xf32>
    %cst_37 = arith.constant dense<0.000000e+00> : vector<4xf32>
    %44 = vector.multi_reduction <add>, %43, %cst_37 [0] : vector<256x4xf32> to vector<4xf32>
    %45 = vector.shape_cast %44 : vector<4xf32> to vector<1x1x4xf32>
    %c0_38 = arith.constant 0 : index
    %c0_39 = arith.constant 0 : index
    %c0_40 = arith.constant 0 : index
    %46 = vector.load %arg5[%c0_38, %c0_39, %c0_40] : memref<1x1x4xf32, #tpu.memory_space<vmem>>, vector<1x1x4xf32>
    tpu.vector_store %arg5[%c0_38, %c0_39, %c0_40], %45 {strides = array<i32>} : memref<1x1x4xf32, #tpu.memory_space<vmem>>, vector<1x1x4xf32>,
    return
  }
  func.func @transform_0(%arg0: i32) -> (i32, i32, i32, i32) {
    %c0_i32 = arith.constant 0 : i32
    %c0_i32_0 = arith.constant 0 : i32
    %c0_i32_1 = arith.constant 0 : i32
    %c0_i32_2 = arith.constant 0 : i32
    return %arg0, %c0_i32, %c0_i32_0, %c0_i32_1 : i32, i32, i32, i32
  }
  func.func @transform_1(%arg0: i32) -> (i32, i32, i32) {
    %c0_i32 = arith.constant 0 : i32
    %c0_i32_0 = arith.constant 0 : i32
    %c0_i32_1 = arith.constant 0 : i32
    %c0_i32_2 = arith.constant 0 : i32
    return %c0_i32, %c0_i32_0, %c0_i32_1 : i32, i32, i32
  }
  func.func @transform_2(%arg0: i32) -> (i32, i32, i32, i32) {
    %c0_i32 = arith.constant 0 : i32
    %c0_i32_0 = arith.constant 0 : i32
    %c0_i32_1 = arith.constant 0 : i32
    %c0_i32_2 = arith.constant 0 : i32
    return %arg0, %c0_i32, %c0_i32_0, %c0_i32_1 : i32, i32, i32, i32
  }
  func.func @transform_3(%arg0: i32) -> (i32, i32, i32) {
    %c0_i32 = arith.constant 0 : i32
    %c0_i32_0 = arith.constant 0 : i32
    %c0_i32_1 = arith.constant 0 : i32
    return %arg0, %c0_i32, %c0_i32_0 : i32, i32, i32
  }
  func.func @transform_4(%arg0: i32) -> (i32, i32, i32) {
    %c0_i32 = arith.constant 0 : i32
    %c0_i32_0 = arith.constant 0 : i32
    %c0_i32_1 = arith.constant 0 : i32
    return %arg0, %c0_i32, %c0_i32_0 : i32, i32, i32
  }
}

</mosaic_0001>

<llo_original>
// kernel: residual_block_forward.5
$region0: #{residual_block_forward.5}
  #allocation0 [shape = 'u32[]', space=smem, size = 0x4, offset = 0x4, fixed_abs, tag = 'smem constant byte address 0x4 - core index']
  #allocation1 [shape = 'u32[144,128]{1,0:T(1,128)}', space=vmem, size = 0x12000, scoped, tag = 'internal scratch']
  %s0 = inlined_call_operand.vmem [shape: f32[2,16,16,4], index: 0, kind: input, shape index: {}]
  %s1 = inlined_call_operand.vmem [shape: f32[2,16,16,4], index: 1, kind: input, shape index: {}]
  %s2 = inlined_call_operand.vmem [shape: f32[1,4], index: 2, kind: input, shape index: {}]
  %s3 = inlined_call_operand.vmem [shape: f32[1,4], index: 3, kind: input, shape index: {}]
  %s4 = inlined_call_operand.vmem [shape: f32[2,16,16,4], index: 4, kind: output, shape index: {}]
  %s5 = sld [smem:[#allocation0]]
  $region49: #{residual_block_forward.5} parent=0
    _
  %s7 = ssub.s32 1, %s5
  %s8 = scalar_select 0, %s7, %s5
  loop: start=0, step=1, limit=4
  $region2: #{residual_block_forward.5} parent=0 // loop_pre_header
    _
  $region3: #{residual_block_forward.5} parent=0 // loop_header
    %s10 = sphi 0, %s14
    %p11 = scmp.ge.s32.totalorder %s10, 4
    %s20 = sphi 0, %s22
    %s23 = sphi 0, %s20
    %s24 = sphi 0, %s23
    %s40 = sphi 0, %s24
    %s46 = sphi 0, %s48
    %s49 = sphi 0, %s46
    %s50 = sphi 0, %s49
    %s66 = sphi 0, %s50
    %s70 = sphi 0, %s70
    %s72 = sphi 0, %s70
    %s73 = sphi 0, %s72
    %s87 = sphi 0, %s73
    %s91 = sphi 0, %s91
    %s93 = sphi 0, %s91
    %s94 = sphi 0, %s93
    %s108 = sphi 0, %s94
    %s114 = sphi 0, %s116
    %s117 = sphi 0, %s114
    %s118 = sphi 0, %s117
    %s134 = sphi 0, %s118
  $region4: #{residual_block_forward.5} parent=0 // loop_header_branch
    %13 = sbr.rel (%p11) target = $region8
  $region5: #{residual_block_forward.5} parent=0 // loop_body
    %s15 = ssub.s32 %s10, 1
    %s16 = ssub.s32 %s10, 2
    %s17 = sadd.s32 %s10, 1
    %s18 = ssub.s32 %s10, %s17
    %p19 = scmp.eq.s32.totalorder %s18, 0
    %s21 = sadd.s32 %s20, 1
    %s22 = scalar_select %p19, %s20, %s21
    %p25 = pneg %p19
    %p26 = scmp.eq.s32.totalorder %s10, 1
    %p27 = por %p25, %p26
    %p28 = scmp.ne.s32.totalorder %s20, %s23
    %p29 = scmp.eq.s32.totalorder %s10, 0
    %p30 = por %p28, %p29
    %p31 = scmp.ne.s32.totalorder %s20, %s23
    %p32 = scmp.eq.s32.totalorder %s15, 1
    %p33 = por %p31, %p32
    %p34 = scmp.ne.s32.totalorder %s23, %s24
    %p35 = scmp.eq.s32.totalorder %s15, 0
    %p36 = por %p34, %p35
    %p37 = scmp.ne.s32.totalorder %s23, %s24
    %p38 = scmp.eq.s32.totalorder %s16, 1
    %p39 = por %p37, %p38
    %p41 = scmp.ne.s32.totalorder %s24, %s40
    %p42 = scmp.eq.s32.totalorder %s16, 0
    %p43 = por %p41, %p42
    %s44 = ssub.s32 %s10, %s17
    %p45 = scmp.eq.s32.totalorder %s44, 0
    %s47 = sadd.s32 %s46, 1
    %s48 = scalar_select %p45, %s46, %s47
    %p51 = pneg %p45
    %p52 = scmp.eq.s32.totalorder %s10, 1
    %p53 = por %p51, %p52
    %p54 = scmp.ne.s32.totalorder %s46, %s49
    %p55 = scmp.eq.s32.totalorder %s10, 0
    %p56 = por %p54, %p55
    %p57 = scmp.ne.s32.totalorder %s46, %s49
    %p58 = scmp.eq.s32.totalorder %s15, 1
    %p59 = por %p57, %p58
    %p60 = scmp.ne.s32.totalorder %s49, %s50
    %p61 = scmp.eq.s32.totalorder %s15, 0
    %p62 = por %p60, %p61
    %p63 = scmp.ne.s32.totalorder %s49, %s50
    %p64 = scmp.eq.s32.totalorder %s16, 1
    %p65 = por %p63, %p64
    %p67 = scmp.ne.s32.totalorder %s50, %s66
    %p68 = scmp.eq.s32.totalorder %s16, 0
    %p69 = por %p67, %p68
    %s71 = sadd.s32 %s70, 1
    %p74 = scmp.eq.s32.totalorder %s10, 1
    %p75 = scmp.ne.s32.totalorder %s70, %s72
    %p76 = scmp.eq.s32.totalorder %s10, 0
    %p77 = por %p75, %p76
    %p78 = scmp.ne.s32.totalorder %s70, %s72
    %p79 = scmp.eq.s32.totalorder %s15, 1
    %p80 = por %p78, %p79
    %p81 = scmp.ne.s32.totalorder %s72, %s73
    %p82 = scmp.eq.s32.totalorder %s15, 0
    %p83 = por %p81, %p82
    %p84 = scmp.ne.s32.totalorder %s72, %s73
    %p85 = scmp.eq.s32.totalorder %s16, 1
    %p86 = por %p84, %p85
    %p88 = scmp.ne.s32.totalorder %s73, %s87
    %p89 = scmp.eq.s32.totalorder %s16, 0
    %p90 = por %p88, %p89
    %s92 = sadd.s32 %s91, 1
    %p95 = scmp.eq.s32.totalorder %s10, 1
    %p96 = scmp.ne.s32.totalorder %s91, %s93
    %p97 = scmp.eq.s32.totalorder %s10, 0
    %p98 = por %p96, %p97
    %p99 = scmp.ne.s32.totalorder %s91, %s93
    %p100 = scmp.eq.s32.totalorder %s15, 1
    %p101 = por %p99, %p100
    %p102 = scmp.ne.s32.totalorder %s93, %s94
    %p103 = scmp.eq.s32.totalorder %s15, 0
    %p104 = por %p102, %p103
    %p105 = scmp.ne.s32.totalorder %s93, %s94
    %p106 = scmp.eq.s32.totalorder %s16, 1
    %p107 = por %p105, %p106
    %p109 = scmp.ne.s32.totalorder %s94, %s108
    %p110 = scmp.eq.s32.totalorder %s16, 0
    %p111 = por %p109, %p110
    %s112 = ssub.s32 %s10, %s17
    %p113 = scmp.eq.s32.totalorder %s112, 0
    %s115 = sadd.s32 %s114, 1
    %s116 = scalar_select %p113, %s114, %s115
    %p119 = pneg %p113
    %p120 = scmp.eq.s32.totalorder %s10, 1
    %p121 = por %p119, %p120
    %p122 = scmp.ne.s32.totalorder %s114, %s117
    %p123 = scmp.eq.s32.totalorder %s10, 0
    %p124 = por %p122, %p123
    %p125 = scmp.ne.s32.totalorder %s114, %s117
    %p126 = scmp.eq.s32.totalorder %s15, 1
    %p127 = por %p125, %p126
    %p128 = scmp.ne.s32.totalorder %s117, %s118
    %p129 = scmp.eq.s32.totalorder %s15, 0
    %p130 = por %p128, %p129
    %p131 = scmp.ne.s32.totalorder %s117, %s118
    %p132 = scmp.eq.s32.totalorder %s16, 1
    %p133 = por %p131, %p132
    %p135 = scmp.ne.s32.totalorder %s118, %s134
    %p136 = scmp.eq.s32.totalorder %s16, 0
    %p137 = por %p135, %p136
    %p138 = scmp.le.s32.totalorder 1, %s10
    %p139 = scmp.lt.s32.totalorder %s10, 3
    %p140 = pnand %p138, %p139
    %p141 = pneg %p140
    // Predicated region
    $region9: #{residual_block_forward.5} parent=5 // pred_check
      _
    $region10: #{residual_block_forward.5} parent=5 // pred_check_branch
      %143 = sbr.rel (%p140) target = $region12
    $region11: #{residual_block_forward.5} parent=5 // pred_region
      %s144 = ssub.s32 %s10, 1
      // Predicated region
      $region13: #{residual_block_forward.5} parent=11 // pred_check
        %p145 = pneg %p83
      $region14: #{residual_block_forward.5} parent=11 // pred_check_branch
        %147 = sbr.rel (%p145) target = $region16
      $region15: #{residual_block_forward.5} parent=11 // pred_region
        _
      $region16: #{residual_block_forward.5} parent=11 // pred_fallthru
        _
      // Predicated region
      $region17: #{residual_block_forward.5} parent=11 // pred_check
        %p148 = pneg %p104
      $region18: #{residual_block_forward.5} parent=11 // pred_check_branch
        %150 = sbr.rel (%p148) target = $region20
      $region19: #{residual_block_forward.5} parent=11 // pred_region
        _
      $region20: #{residual_block_forward.5} parent=11 // pred_fallthru
        _
    $region12: #{residual_block_forward.5} parent=5 // pred_fallthru
      _
    %p151 = scmp.lt.s32.totalorder %s10, 2
    // Predicated region
    $region21: #{residual_block_forward.5} parent=5 // pred_check
      %p152 = pneg %p151
    $region22: #{residual_block_forward.5} parent=5 // pred_check_branch
      %154 = sbr.rel (%p152) target = $region24
    $region23: #{residual_block_forward.5} parent=5 // pred_region
      // Predicated region
      $region25: #{residual_block_forward.5} parent=23 // pred_check
        %p155 = pneg %p30
      $region26: #{residual_block_forward.5} parent=23 // pred_check_branch
        %157 = sbr.rel (%p155) target = $region28
      $region27: #{residual_block_forward.5} parent=23 // pred_region
        %p158 = scmp.lt.s32.totalorder %s10, 1
        %s159 = scalar_select %p158, %s10, 1
        %s160 = smul.addr %s159, 32
        %s161 = smul.addr %s160, 8
        %s162 = scalar_lea.vmem %s0, %s161
      $region28: #{residual_block_forward.5} parent=23 // pred_fallthru
        _
      // Predicated region
      $region29: #{residual_block_forward.5} parent=23 // pred_check
        %p163 = pneg %p56
      $region30: #{residual_block_forward.5} parent=23 // pred_check_branch
        %165 = sbr.rel (%p163) target = $region32
      $region31: #{residual_block_forward.5} parent=23 // pred_region
        %p166 = scmp.lt.s32.totalorder %s10, 1
        %s167 = scalar_select %p166, %s10, 1
        %s168 = smul.addr %s167, 32
        %s169 = smul.addr %s168, 8
        %s170 = scalar_lea.vmem %s1, %s169
      $region32: #{residual_block_forward.5} parent=23 // pred_fallthru
        _
    $region24: #{residual_block_forward.5} parent=5 // pred_fallthru
      _
    %p171 = scmp.le.s32.totalorder 1, %s10
    %p172 = scmp.lt.s32.totalorder %s10, 3
    %p173 = pnand %p171, %p172
    %p174 = pneg %p173
    // Predicated region
    $region33: #{residual_block_forward.5} parent=5 // pred_check
      _
    $region34: #{residual_block_forward.5} parent=5 // pred_check_branch
      %176 = sbr.rel (%p173) target = $region36
    $region35: #{residual_block_forward.5} parent=5 // pred_region
      %s177 = ssub.s32 %s10, 1
      %p178 = scmp.lt.s32.totalorder %s15, 1
      %s179 = scalar_select %p178, %s15, 1
      %s180 = smul.addr %s179, 32
      %s181 = smul.addr %s180, 8
      %s182 = scalar_lea.vmem %s0, %s181
      %p183 = pneg %p36
      %p184 = pneg %p33
      %p185 = scmp.lt.s32.totalorder %s15, 1
      %s186 = scalar_select %p185, %s15, 1
      %s187 = smul.addr %s186, 32
      %s188 = smul.addr %s187, 8
      %s189 = scalar_lea.vmem %s1, %s188
      %p190 = pneg %p62
      %p191 = pneg %p59
      %p192 = pneg %p83
      %p193 = pneg %p80
      %p194 = pneg %p104
      %p195 = pneg %p101
      %p196 = pneg %p130
      %p197 = pneg %p127
      %p198 = scmp.lt.s32.totalorder %s15, 1
      %s199 = scalar_select %p198, %s15, 1
      %s200 = smul.addr %s199, 32
      %s201 = smul.addr %s200, 8
      %s202 = scalar_lea.vmem %s4, %s201
      %p203 = scmp.lt.s32.totalorder %s15, 1
      %s204 = scalar_select %p203, %s15, 1
      %s205 = smul.addr %s204, 32
      %s206 = smul.addr %s205, 8
      %s207 = scalar_lea.vmem %s0, %s206
      %p208 = scmp.lt.s32.totalorder %s15, 1
      %s209 = scalar_select %p208, %s15, 1
      %s210 = smul.addr %s209, 32
      %s211 = smul.addr %s210, 8
      %s212 = scalar_lea.vmem %s1, %s211
      %p213 = scmp.lt.s32.totalorder %s15, 1
      %s214 = scalar_select %p213, %s15, 1
      %s215 = smul.addr %s214, 32
      %s216 = smul.addr %s215, 8
      %s217 = scalar_lea.vmem %s4, %s216
      %v218 = vld [vmem:[%s2] sm:$0x1]
      %v219 = vld [vmem:[%s3] sm:$0x1]
      %v220 = vld [vmem:[%s207] sm:$0xff]
      %v221 = vld [vmem:[%s207 + $0x8] sm:$0xff]
      %v222 = vld [vmem:[%s207 + $0x10] sm:$0xff]
      %v223 = vld [vmem:[%s207 + $0x18] sm:$0xff]
      %v224 = vld [vmem:[%s207 + $0x20] sm:$0xff]
      %v225 = vld [vmem:[%s207 + $0x28] sm:$0xff]
      %v226 = vld [vmem:[%s207 + $0x30] sm:$0xff]
      %v227 = vld [vmem:[%s207 + $0x38] sm:$0xff]
      %v228 = vld [vmem:[%s207 + $0x40] sm:$0xff]
      %v229 = vld [vmem:[%s207 + $0x48] sm:$0xff]
      %v230 = vld [vmem:[%s207 + $0x50] sm:$0xff]
      %v231 = vld [vmem:[%s207 + $0x58] sm:$0xff]
      %v232 = vld [vmem:[%s207 + $0x60] sm:$0xff]
      %v233 = vld [vmem:[%s207 + $0x68] sm:$0xff]
      %v234 = vld [vmem:[%s207 + $0x70] sm:$0xff]
      %v235 = vld [vmem:[%s207 + $0x78] sm:$0xff]
      %v236 = vld [vmem:[%s207 + $0x80] sm:$0xff]
      %v237 = vld [vmem:[%s207 + $0x88] sm:$0xff]
      %v238 = vld [vmem:[%s207 + $0x90] sm:$0xff]
      %v239 = vld [vmem:[%s207 + $0x98] sm:$0xff]
      %v240 = vld [vmem:[%s207 + $0xa0] sm:$0xff]
      %v241 = vld [vmem:[%s207 + $0xa8] sm:$0xff]
      %v242 = vld [vmem:[%s207 + $0xb0] sm:$0xff]
      %v243 = vld [vmem:[%s207 + $0xb8] sm:$0xff]
      %v244 = vld [vmem:[%s207 + $0xc0] sm:$0xff]
      %v245 = vld [vmem:[%s207 + $0xc8] sm:$0xff]
      %v246 = vld [vmem:[%s207 + $0xd0] sm:$0xff]
      %v247 = vld [vmem:[%s207 + $0xd8] sm:$0xff]
      %v248 = vld [vmem:[%s207 + $0xe0] sm:$0xff]
      %v249 = vld [vmem:[%s207 + $0xe8] sm:$0xff]
      %v250 = vld [vmem:[%s207 + $0xf0] sm:$0xff]
      %v251 = vld [vmem:[%s207 + $0xf8] sm:$0xff]
      %v253 = vlaneseq
      %v254 = vshrl.u32 %v253, 7
      %v255 = vsub.s32 0, %v254
      %v256 = vrot.slane %v218, %v255
      %v258 = vmul.f32 %v220, %v256
      %v259 = vmul.f32 %v221, %v256
      %v260 = vmul.f32 %v222, %v256
      %v261 = vmul.f32 %v223, %v256
      %v262 = vmul.f32 %v224, %v256
      %v263 = vmul.f32 %v225, %v256
      %v264 = vmul.f32 %v226, %v256
      %v265 = vmul.f32 %v227, %v256
      %v266 = vmul.f32 %v228, %v256
      %v267 = vmul.f32 %v229, %v256
      %v268 = vmul.f32 %v230, %v256
      %v269 = vmul.f32 %v231, %v256
      %v270 = vmul.f32 %v232, %v256
      %v271 = vmul.f32 %v233, %v256
      %v272 = vmul.f32 %v234, %v256
      %v273 = vmul.f32 %v235, %v256
      %v274 = vmul.f32 %v236, %v256
      %v275 = vmul.f32 %v237, %v256
      %v276 = vmul.f32 %v238, %v256
      %v277 = vmul.f32 %v239, %v256
      %v278 = vmul.f32 %v240, %v256
      %v279 = vmul.f32 %v241, %v256
      %v280 = vmul.f32 %v242, %v256
      %v281 = vmul.f32 %v243, %v256
      %v282 = vmul.f32 %v244, %v256
      %v283 = vmul.f32 %v245, %v256
      %v284 = vmul.f32 %v246, %v256
      %v285 = vmul.f32 %v247, %v256
      %v286 = vmul.f32 %v248, %v256
      %v287 = vmul.f32 %v249, %v256
      %v288 = vmul.f32 %v250, %v256
      %v289 = vmul.f32 %v251, %v256
      %v291 = vlaneseq
      %v292 = vshrl.u32 %v291, 7
      %v293 = vsub.s32 0, %v292
      %v294 = vrot.slane %v219, %v293
      %v296 = vadd.f32 %v258, %v294
      %v297 = vadd.f32 %v259, %v294
      %v298 = vadd.f32 %v260, %v294
      %v299 = vadd.f32 %v261, %v294
      %v300 = vadd.f32 %v262, %v294
      %v301 = vadd.f32 %v263, %v294
      %v302 = vadd.f32 %v264, %v294
      %v303 = vadd.f32 %v265, %v294
      %v304 = vadd.f32 %v266, %v294
      %v305 = vadd.f32 %v267, %v294
      %v306 = vadd.f32 %v268, %v294
      %v307 = vadd.f32 %v269, %v294
      %v308 = vadd.f32 %v270, %v294
      %v309 = vadd.f32 %v271, %v294
      %v310 = vadd.f32 %v272, %v294
      %v311 = vadd.f32 %v273, %v294
      %v312 = vadd.f32 %v274, %v294
      %v313 = vadd.f32 %v275, %v294
      %v314 = vadd.f32 %v276, %v294
      %v315 = vadd.f32 %v277, %v294
      %v316 = vadd.f32 %v278, %v294
      %v317 = vadd.f32 %v279, %v294
      %v318 = vadd.f32 %v280, %v294
      %v319 = vadd.f32 %v281, %v294
      %v320 = vadd.f32 %v282, %v294
      %v321 = vadd.f32 %v283, %v294
      %v322 = vadd.f32 %v284, %v294
      %v323 = vadd.f32 %v285, %v294
      %v324 = vadd.f32 %v286, %v294
      %v325 = vadd.f32 %v287, %v294
      %v326 = vadd.f32 %v288, %v294
      %v327 = vadd.f32 %v289, %v294
      %v328 = vld [vmem:[%s212] sm:$0xff]
      %v329 = vld [vmem:[%s212 + $0x8] sm:$0xff]
      %v330 = vld [vmem:[%s212 + $0x10] sm:$0xff]
      %v331 = vld [vmem:[%s212 + $0x18] sm:$0xff]
      %v332 = vld [vmem:[%s212 + $0x20] sm:$0xff]
      %v333 = vld [vmem:[%s212 + $0x28] sm:$0xff]
      %v334 = vld [vmem:[%s212 + $0x30] sm:$0xff]
      %v335 = vld [vmem:[%s212 + $0x38] sm:$0xff]
      %v336 = vld [vmem:[%s212 + $0x40] sm:$0xff]
      %v337 = vld [vmem:[%s212 + $0x48] sm:$0xff]
      %v338 = vld [vmem:[%s212 + $0x50] sm:$0xff]
      %v339 = vld [vmem:[%s212 + $0x58] sm:$0xff]
      %v340 = vld [vmem:[%s212 + $0x60] sm:$0xff]
      %v341 = vld [vmem:[%s212 + $0x68] sm:$0xff]
      %v342 = vld [vmem:[%s212 + $0x70] sm:$0xff]
      %v343 = vld [vmem:[%s212 + $0x78] sm:$0xff]
      %v344 = vld [vmem:[%s212 + $0x80] sm:$0xff]
      %v345 = vld [vmem:[%s212 + $0x88] sm:$0xff]
      %v346 = vld [vmem:[%s212 + $0x90] sm:$0xff]
      %v347 = vld [vmem:[%s212 + $0x98] sm:$0xff]
      %v348 = vld [vmem:[%s212 + $0xa0] sm:$0xff]
      %v349 = vld [vmem:[%s212 + $0xa8] sm:$0xff]
      %v350 = vld [vmem:[%s212 + $0xb0] sm:$0xff]
      %v351 = vld [vmem:[%s212 + $0xb8] sm:$0xff]
      %v352 = vld [vmem:[%s212 + $0xc0] sm:$0xff]
      %v353 = vld [vmem:[%s212 + $0xc8] sm:$0xff]
      %v354 = vld [vmem:[%s212 + $0xd0] sm:$0xff]
      %v355 = vld [vmem:[%s212 + $0xd8] sm:$0xff]
      %v356 = vld [vmem:[%s212 + $0xe0] sm:$0xff]
      %v357 = vld [vmem:[%s212 + $0xe8] sm:$0xff]
      %v358 = vld [vmem:[%s212 + $0xf0] sm:$0xff]
      %v359 = vld [vmem:[%s212 + $0xf8] sm:$0xff]
      %v360 = vadd.f32 %v296, %v328
      %v361 = vadd.f32 %v297, %v329
      %v362 = vadd.f32 %v298, %v330
      %v363 = vadd.f32 %v299, %v331
      %v364 = vadd.f32 %v300, %v332
      %v365 = vadd.f32 %v301, %v333
      %v366 = vadd.f32 %v302, %v334
      %v367 = vadd.f32 %v303, %v335
      %v368 = vadd.f32 %v304, %v336
      %v369 = vadd.f32 %v305, %v337
      %v370 = vadd.f32 %v306, %v338
      %v371 = vadd.f32 %v307, %v339
      %v372 = vadd.f32 %v308, %v340
      %v373 = vadd.f32 %v309, %v341
      %v374 = vadd.f32 %v310, %v342
      %v375 = vadd.f32 %v311, %v343
      %v376 = vadd.f32 %v312, %v344
      %v377 = vadd.f32 %v313, %v345
      %v378 = vadd.f32 %v314, %v346
      %v379 = vadd.f32 %v315, %v347
      %v380 = vadd.f32 %v316, %v348
      %v381 = vadd.f32 %v317, %v349
      %v382 = vadd.f32 %v318, %v350
      %v383 = vadd.f32 %v319, %v351
      %v384 = vadd.f32 %v320, %v352
      %v385 = vadd.f32 %v321, %v353
      %v386 = vadd.f32 %v322, %v354
      %v387 = vadd.f32 %v323, %v355
      %v388 = vadd.f32 %v324, %v356
      %v389 = vadd.f32 %v325, %v357
      %v390 = vadd.f32 %v326, %v358
      %v391 = vadd.f32 %v327, %v359
      %v392 = vmax.f32 %v360, 0.0
      %v393 = vmax.f32 %v361, 0.0
      %v394 = vmax.f32 %v362, 0.0
      %v395 = vmax.f32 %v363, 0.0
      %v396 = vmax.f32 %v364, 0.0
      %v397 = vmax.f32 %v365, 0.0
      %v398 = vmax.f32 %v366, 0.0
      %v399 = vmax.f32 %v367, 0.0
      %v400 = vmax.f32 %v368, 0.0
      %v401 = vmax.f32 %v369, 0.0
      %v402 = vmax.f32 %v370, 0.0
      %v403 = vmax.f32 %v371, 0.0
      %v404 = vmax.f32 %v372, 0.0
      %v405 = vmax.f32 %v373, 0.0
      %v406 = vmax.f32 %v374, 0.0
      %v407 = vmax.f32 %v375, 0.0
      %v408 = vmax.f32 %v376, 0.0
      %v409 = vmax.f32 %v377, 0.0
      %v410 = vmax.f32 %v378, 0.0
      %v411 = vmax.f32 %v379, 0.0
      %v412 = vmax.f32 %v380, 0.0
      %v413 = vmax.f32 %v381, 0.0
      %v414 = vmax.f32 %v382, 0.0
      %v415 = vmax.f32 %v383, 0.0
      %v416 = vmax.f32 %v384, 0.0
      %v417 = vmax.f32 %v385, 0.0
      %v418 = vmax.f32 %v386, 0.0
      %v419 = vmax.f32 %v387, 0.0
      %v420 = vmax.f32 %v388, 0.0
      %v421 = vmax.f32 %v389, 0.0
      %v422 = vmax.f32 %v390, 0.0
      %v423 = vmax.f32 %v391, 0.0
      %vm424 = vcmask 31744
      %425 = vst.msk [vmem:[%s217] sm:$0xff] %vm424, %v392
      %426 = vst.msk [vmem:[%s217 + $0x8] sm:$0xff] %vm424, %v393
      %427 = vst.msk [vmem:[%s217 + $0x10] sm:$0xff] %vm424, %v394
      %428 = vst.msk [vmem:[%s217 + $0x18] sm:$0xff] %vm424, %v395
      %429 = vst.msk [vmem:[%s217 + $0x20] sm:$0xff] %vm424, %v396
      %430 = vst.msk [vmem:[%s217 + $0x28] sm:$0xff] %vm424, %v397
      %431 = vst.msk [vmem:[%s217 + $0x30] sm:$0xff] %vm424, %v398
      %432 = vst.msk [vmem:[%s217 + $0x38] sm:$0xff] %vm424, %v399
      %433 = vst.msk [vmem:[%s217 + $0x40] sm:$0xff] %vm424, %v400
      %434 = vst.msk [vmem:[%s217 + $0x48] sm:$0xff] %vm424, %v401
      %435 = vst.msk [vmem:[%s217 + $0x50] sm:$0xff] %vm424, %v402
      %436 = vst.msk [vmem:[%s217 + $0x58] sm:$0xff] %vm424, %v403
      %437 = vst.msk [vmem:[%s217 + $0x60] sm:$0xff] %vm424, %v404
      %438 = vst.msk [vmem:[%s217 + $0x68] sm:$0xff] %vm424, %v405
      %439 = vst.msk [vmem:[%s217 + $0x70] sm:$0xff] %vm424, %v406
      %440 = vst.msk [vmem:[%s217 + $0x78] sm:$0xff] %vm424, %v407
      %441 = vst.msk [vmem:[%s217 + $0x80] sm:$0xff] %vm424, %v408
      %442 = vst.msk [vmem:[%s217 + $0x88] sm:$0xff] %vm424, %v409
      %443 = vst.msk [vmem:[%s217 + $0x90] sm:$0xff] %vm424, %v410
      %444 = vst.msk [vmem:[%s217 + $0x98] sm:$0xff] %vm424, %v411
      %445 = vst.msk [vmem:[%s217 + $0xa0] sm:$0xff] %vm424, %v412
      %446 = vst.msk [vmem:[%s217 + $0xa8] sm:$0xff] %vm424, %v413
      %447 = vst.msk [vmem:[%s217 + $0xb0] sm:$0xff] %vm424, %v414
      %448 = vst.msk [vmem:[%s217 + $0xb8] sm:$0xff] %vm424, %v415
      %449 = vst.msk [vmem:[%s217 + $0xc0] sm:$0xff] %vm424, %v416
      %450 = vst.msk [vmem:[%s217 + $0xc8] sm:$0xff] %vm424, %v417
      %451 = vst.msk [vmem:[%s217 + $0xd0] sm:$0xff] %vm424, %v418
      %452 = vst.msk [vmem:[%s217 + $0xd8] sm:$0xff] %vm424, %v419
      %453 = vst.msk [vmem:[%s217 + $0xe0] sm:$0xff] %vm424, %v420
      %454 = vst.msk [vmem:[%s217 + $0xe8] sm:$0xff] %vm424, %v421
      %455 = vst.msk [vmem:[%s217 + $0xf0] sm:$0xff] %vm424, %v422
      %456 = vst.msk [vmem:[%s217 + $0xf8] sm:$0xff] %vm424, %v423
      %p457 = scmp.lt.s32.totalorder %s15, 1
      %s458 = scalar_select %p457, %s15, 1
      %s459 = smul.addr %s458, 32
      %s460 = smul.addr %s459, 8
      %s461 = scalar_lea.vmem %s4, %s460
      // Predicated region
      $region37: #{residual_block_forward.5} parent=35 // pred_check
        %p462 = pneg %p127
      $region38: #{residual_block_forward.5} parent=35 // pred_check_branch
        %464 = sbr.rel (%p462) target = $region40
      $region39: #{residual_block_forward.5} parent=35 // pred_region
        _
      $region40: #{residual_block_forward.5} parent=35 // pred_fallthru
        _
    $region36: #{residual_block_forward.5} parent=5 // pred_fallthru
      _
    %p465 = scmp.le.s32.totalorder 2, %s10
    // Predicated region
    $region41: #{residual_block_forward.5} parent=5 // pred_check
      %p466 = pneg %p465
    $region42: #{residual_block_forward.5} parent=5 // pred_check_branch
      %468 = sbr.rel (%p466) target = $region44
    $region43: #{residual_block_forward.5} parent=5 // pred_region
      %s469 = ssub.s32 %s10, 2
      // Predicated region
      $region45: #{residual_block_forward.5} parent=43 // pred_check
        %p470 = pneg %p133
      $region46: #{residual_block_forward.5} parent=43 // pred_check_branch
        %472 = sbr.rel (%p470) target = $region48
      $region47: #{residual_block_forward.5} parent=43 // pred_region
        %p473 = scmp.lt.s32.totalorder %s16, 1
        %s474 = scalar_select %p473, %s16, 1
        %s475 = smul.addr %s474, 32
        %s476 = smul.addr %s475, 8
        %s477 = scalar_lea.vmem %s4, %s476
      $region48: #{residual_block_forward.5} parent=43 // pred_fallthru
        _
    $region44: #{residual_block_forward.5} parent=5 // pred_fallthru
      _
  $region6: #{residual_block_forward.5} parent=0 // loop_footer
    %s14 = sadd.s32 1, %s10
  $region7: #{residual_block_forward.5} parent=0 // loop_footer_branch
    %9 = sbr.rel target = $region3
  $region8: #{residual_block_forward.5} parent=0 // loop_exit
    _

// kernel: residual_block_forward.3
$region0: #{residual_block_forward.3}
  #allocation0 [shape = 'u32[]', space=smem, size = 0x4, offset = 0x4, fixed_abs, tag = 'smem constant byte address 0x4 - core index']
  #allocation1 [shape = 'u32[144,128]{1,0:T(1,128)}', space=vmem, size = 0x12000, scoped, tag = 'internal scratch']
  #allocation2 [shape = 'f32[18,18,4]{2,1,0:T(8,128)}', space=vmem, size = 0x36000, scoped, tag = 'scratch operand']
  %s0 = inlined_call_operand.vmem [shape: f32[2,16,16,4], index: 0, kind: input, shape index: {}]
  %s1 = inlined_call_operand.vmem [shape: f32[3,12,4], index: 1, kind: input, shape index: {}]
  %s2 = inlined_call_operand.vmem [shape: f32[2,16,16,4], index: 2, kind: output, shape index: {0}]
  %s3 = inlined_call_operand.vmem [shape: f32[2,1,4], index: 3, kind: output, shape index: {1}]
  %s4 = inlined_call_operand.vmem [shape: f32[2,1,4], index: 4, kind: output, shape index: {2}]
  %5 = xla_tuple %s2, %s3, %s4
  %s6 = sld [smem:[#allocation0]]
  $region57: #{residual_block_forward.3} parent=0
    _
  %s8 = ssub.s32 1, %s6
  %s9 = scalar_select 0, %s8, %s6
  loop: start=0, step=1, limit=4
  $region2: #{residual_block_forward.3} parent=0 // loop_pre_header
    _
  $region3: #{residual_block_forward.3} parent=0 // loop_header
    %s11 = sphi 0, %s15
    %p12 = scmp.ge.s32.totalorder %s11, 4
    %s21 = sphi 0, %s23
    %s24 = sphi 0, %s21
    %s25 = sphi 0, %s24
    %s41 = sphi 0, %s25
    %s45 = sphi 0, %s45
    %s47 = sphi 0, %s45
    %s48 = sphi 0, %s47
    %s62 = sphi 0, %s48
    %s68 = sphi 0, %s70
    %s71 = sphi 0, %s68
    %s72 = sphi 0, %s71
    %s88 = sphi 0, %s72
    %s94 = sphi 0, %s96
    %s97 = sphi 0, %s94
    %s98 = sphi 0, %s97
    %s114 = sphi 0, %s98
    %s120 = sphi 0, %s122
    %s123 = sphi 0, %s120
    %s124 = sphi 0, %s123
    %s140 = sphi 0, %s124
  $region4: #{residual_block_forward.3} parent=0 // loop_header_branch
    %14 = sbr.rel (%p12) target = $region8
  $region5: #{residual_block_forward.3} parent=0 // loop_body
    %s16 = ssub.s32 %s11, 1
    %s17 = ssub.s32 %s11, 2
    %s18 = sadd.s32 %s11, 1
    %s19 = ssub.s32 %s11, %s18
    %p20 = scmp.eq.s32.totalorder %s19, 0
    %s22 = sadd.s32 %s21, 1
    %s23 = scalar_select %p20, %s21, %s22
    %p26 = pneg %p20
    %p27 = scmp.eq.s32.totalorder %s11, 1
    %p28 = por %p26, %p27
    %p29 = scmp.ne.s32.totalorder %s21, %s24
    %p30 = scmp.eq.s32.totalorder %s11, 0
    %p31 = por %p29, %p30
    %p32 = scmp.ne.s32.totalorder %s21, %s24
    %p33 = scmp.eq.s32.totalorder %s16, 1
    %p34 = por %p32, %p33
    %p35 = scmp.ne.s32.totalorder %s24, %s25
    %p36 = scmp.eq.s32.totalorder %s16, 0
    %p37 = por %p35, %p36
    %p38 = scmp.ne.s32.totalorder %s24, %s25
    %p39 = scmp.eq.s32.totalorder %s17, 1
    %p40 = por %p38, %p39
    %p42 = scmp.ne.s32.totalorder %s25, %s41
    %p43 = scmp.eq.s32.totalorder %s17, 0
    %p44 = por %p42, %p43
    %s46 = sadd.s32 %s45, 1
    %p49 = scmp.eq.s32.totalorder %s11, 1
    %p50 = scmp.ne.s32.totalorder %s45, %s47
    %p51 = scmp.eq.s32.totalorder %s11, 0
    %p52 = por %p50, %p51
    %p53 = scmp.ne.s32.totalorder %s45, %s47
    %p54 = scmp.eq.s32.totalorder %s16, 1
    %p55 = por %p53, %p54
    %p56 = scmp.ne.s32.totalorder %s47, %s48
    %p57 = scmp.eq.s32.totalorder %s16, 0
    %p58 = por %p56, %p57
    %p59 = scmp.ne.s32.totalorder %s47, %s48
    %p60 = scmp.eq.s32.totalorder %s17, 1
    %p61 = por %p59, %p60
    %p63 = scmp.ne.s32.totalorder %s48, %s62
    %p64 = scmp.eq.s32.totalorder %s17, 0
    %p65 = por %p63, %p64
    %s66 = ssub.s32 %s11, %s18
    %p67 = scmp.eq.s32.totalorder %s66, 0
    %s69 = sadd.s32 %s68, 1
    %s70 = scalar_select %p67, %s68, %s69
    %p73 = pneg %p67
    %p74 = scmp.eq.s32.totalorder %s11, 1
    %p75 = por %p73, %p74
    %p76 = scmp.ne.s32.totalorder %s68, %s71
    %p77 = scmp.eq.s32.totalorder %s11, 0
    %p78 = por %p76, %p77
    %p79 = scmp.ne.s32.totalorder %s68, %s71
    %p80 = scmp.eq.s32.totalorder %s16, 1
    %p81 = por %p79, %p80
    %p82 = scmp.ne.s32.totalorder %s71, %s72
    %p83 = scmp.eq.s32.totalorder %s16, 0
    %p84 = por %p82, %p83
    %p85 = scmp.ne.s32.totalorder %s71, %s72
    %p86 = scmp.eq.s32.totalorder %s17, 1
    %p87 = por %p85, %p86
    %p89 = scmp.ne.s32.totalorder %s72, %s88
    %p90 = scmp.eq.s32.totalorder %s17, 0
    %p91 = por %p89, %p90
    %s92 = ssub.s32 %s11, %s18
    %p93 = scmp.eq.s32.totalorder %s92, 0
    %s95 = sadd.s32 %s94, 1
    %s96 = scalar_select %p93, %s94, %s95
    %p99 = pneg %p93
    %p100 = scmp.eq.s32.totalorder %s11, 1
    %p101 = por %p99, %p100
    %p102 = scmp.ne.s32.totalorder %s94, %s97
    %p103 = scmp.eq.s32.totalorder %s11, 0
    %p104 = por %p102, %p103
    %p105 = scmp.ne.s32.totalorder %s94, %s97
    %p106 = scmp.eq.s32.totalorder %s16, 1
    %p107 = por %p105, %p106
    %p108 = scmp.ne.s32.totalorder %s97, %s98
    %p109 = scmp.eq.s32.totalorder %s16, 0
    %p110 = por %p108, %p109
    %p111 = scmp.ne.s32.totalorder %s97, %s98
    %p112 = scmp.eq.s32.totalorder %s17, 1
    %p113 = por %p111, %p112
    %p115 = scmp.ne.s32.totalorder %s98, %s114
    %p116 = scmp.eq.s32.totalorder %s17, 0
    %p117 = por %p115, %p116
    %s118 = ssub.s32 %s11, %s18
    %p119 = scmp.eq.s32.totalorder %s118, 0
    %s121 = sadd.s32 %s120, 1
    %s122 = scalar_select %p119, %s120, %s121
    %p125 = pneg %p119
    %p126 = scmp.eq.s32.totalorder %s11, 1
    %p127 = por %p125, %p126
    %p128 = scmp.ne.s32.totalorder %s120, %s123
    %p129 = scmp.eq.s32.totalorder %s11, 0
    %p130 = por %p128, %p129
    %p131 = scmp.ne.s32.totalorder %s120, %s123
    %p132 = scmp.eq.s32.totalorder %s16, 1
    %p133 = por %p131, %p132
    %p134 = scmp.ne.s32.totalorder %s123, %s124
    %p135 = scmp.eq.s32.totalorder %s16, 0
    %p136 = por %p134, %p135
    %p137 = scmp.ne.s32.totalorder %s123, %s124
    %p138 = scmp.eq.s32.totalorder %s17, 1
    %p139 = por %p137, %p138
    %p141 = scmp.ne.s32.totalorder %s124, %s140
    %p142 = scmp.eq.s32.totalorder %s17, 0
    %p143 = por %p141, %p142
    %p144 = scmp.le.s32.totalorder 1, %s11
    %p145 = scmp.lt.s32.totalorder %s11, 3
    %p146 = pnand %p144, %p145
    %p147 = pneg %p146
    // Predicated region
    $region9: #{residual_block_forward.3} parent=5 // pred_check
      _
    $region10: #{residual_block_forward.3} parent=5 // pred_check_branch
      %149 = sbr.rel (%p146) target = $region12
    $region11: #{residual_block_forward.3} parent=5 // pred_region
      %s150 = ssub.s32 %s11, 1
      // Predicated region
      $region13: #{residual_block_forward.3} parent=11 // pred_check
        %p151 = pneg %p58
      $region14: #{residual_block_forward.3} parent=11 // pred_check_branch
        %153 = sbr.rel (%p151) target = $region16
      $region15: #{residual_block_forward.3} parent=11 // pred_region
        _
      $region16: #{residual_block_forward.3} parent=11 // pred_fallthru
        _
    $region12: #{residual_block_forward.3} parent=5 // pred_fallthru
      _
    %p154 = scmp.lt.s32.totalorder %s11, 2
    // Predicated region
    $region17: #{residual_block_forward.3} parent=5 // pred_check
      %p155 = pneg %p154
    $region18: #{residual_block_forward.3} parent=5 // pred_check_branch
      %157 = sbr.rel (%p155) target = $region20
    $region19: #{residual_block_forward.3} parent=5 // pred_region
      // Predicated region
      $region21: #{residual_block_forward.3} parent=19 // pred_check
        %p158 = pneg %p31
      $region22: #{residual_block_forward.3} parent=19 // pred_check_branch
        %160 = sbr.rel (%p158) target = $region24
      $region23: #{residual_block_forward.3} parent=19 // pred_region
        %p161 = scmp.lt.s32.totalorder %s11, 1
        %s162 = scalar_select %p161, %s11, 1
        %s163 = smul.addr %s162, 32
        %s164 = smul.addr %s163, 8
        %s165 = scalar_lea.vmem %s0, %s164
      $region24: #{residual_block_forward.3} parent=19 // pred_fallthru
        _
    $region20: #{residual_block_forward.3} parent=5 // pred_fallthru
      _
    %p166 = scmp.le.s32.totalorder 1, %s11
    %p167 = scmp.lt.s32.totalorder %s11, 3
    %p168 = pnand %p166, %p167
    %p169 = pneg %p168
    // Predicated region
    $region25: #{residual_block_forward.3} parent=5 // pred_check
      _
    $region26: #{residual_block_forward.3} parent=5 // pred_check_branch
      %171 = sbr.rel (%p168) target = $region28
    $region27: #{residual_block_forward.3} parent=5 // pred_region
      %s172 = ssub.s32 %s11, 1
      %p173 = scmp.lt.s32.totalorder %s16, 1
      %s174 = scalar_select %p173, %s16, 1
      %s175 = smul.addr %s174, 32
      %s176 = smul.addr %s175, 8
      %s177 = scalar_lea.vmem %s0, %s176
      %p178 = pneg %p37
      %p179 = pneg %p34
      %p180 = pneg %p58
      %p181 = pneg %p55
      %p182 = pneg %p84
      %p183 = pneg %p81
      %p184 = scmp.lt.s32.totalorder %s16, 1
      %s185 = scalar_select %p184, %s16, 1
      %s186 = smul.addr %s185, 32
      %s187 = smul.addr %s186, 8
      %s188 = scalar_lea.vmem %s2, %s187
      %p189 = pneg %p110
      %p190 = pneg %p107
      %p191 = scmp.lt.s32.totalorder %s16, 1
      %s192 = scalar_select %p191, %s16, 1
      %s193 = scalar_lea.vmem %s3, %s192
      %p194 = pneg %p136
      %p195 = pneg %p133
      %p196 = scmp.lt.s32.totalorder %s16, 1
      %s197 = scalar_select %p196, %s16, 1
      %s198 = scalar_lea.vmem %s4, %s197
      %p199 = scmp.lt.s32.totalorder %s16, 1
      %s200 = scalar_select %p199, %s16, 1
      %s201 = smul.addr %s200, 32
      %s202 = smul.addr %s201, 8
      %s203 = scalar_lea.vmem %s0, %s202
      %p204 = scmp.lt.s32.totalorder %s16, 1
      %s205 = scalar_select %p204, %s16, 1
      %s206 = smul.addr %s205, 32
      %s207 = smul.addr %s206, 8
      %s208 = scalar_lea.vmem %s2, %s207
      %p209 = scmp.lt.s32.totalorder %s16, 1
      %s210 = scalar_select %p209, %s16, 1
      %s211 = scalar_lea.vmem %s3, %s210
      %p212 = scmp.lt.s32.totalorder %s16, 1
      %s213 = scalar_select %p212, %s16, 1
      %s214 = scalar_lea.vmem %s4, %s213
      %vm215 = vcmask 31744
      %216 = vst.msk [vmem:[#allocation2] sm:$0xff] %vm215, 0.0
      %217 = vst.msk [vmem:[#allocation2 + $0x8] sm:$0xff] %vm215, 0.0
      %vm218 = vcmask 25600
      %219 = vst.msk [vmem:[#allocation2 + $0x10] sm:$0x3] %vm218, 0.0
      %220 = vst.msk [vmem:[#allocation2 + $0x18] sm:$0xff] %vm215, 0.0
      %221 = vst.msk [vmem:[#allocation2 + $0x20] sm:$0xff] %vm215, 0.0
      %222 = vst.msk [vmem:[#allocation2 + $0x28] sm:$0x3] %vm218, 0.0
      %223 = vst.msk [vmem:[#allocation2 + $0x30] sm:$0xff] %vm215, 0.0
      %224 = vst.msk [vmem:[#allocation2 + $0x38] sm:$0xff] %vm215, 0.0
      %225 = vst.msk [vmem:[#allocation2 + $0x40] sm:$0x3] %vm218, 0.0
      %226 = vst.msk [vmem:[#allocation2 + $0x48] sm:$0xff] %vm215, 0.0
      %227 = vst.msk [vmem:[#allocation2 + $0x50] sm:$0xff] %vm215, 0.0
      %228 = vst.msk [vmem:[#allocation2 + $0x58] sm:$0x3] %vm218, 0.0
      %229 = vst.msk [vmem:[#allocation2 + $0x60] sm:$0xff] %vm215, 0.0
      %230 = vst.msk [vmem:[#allocation2 + $0x68] sm:$0xff] %vm215, 0.0
      %231 = vst.msk [vmem:[#allocation2 + $0x70] sm:$0x3] %vm218, 0.0
      %232 = vst.msk [vmem:[#allocation2 + $0x78] sm:$0xff] %vm215, 0.0
      %233 = vst.msk [vmem:[#allocation2 + $0x80] sm:$0xff] %vm215, 0.0
      %234 = vst.msk [vmem:[#allocation2 + $0x88] sm:$0x3] %vm218, 0.0
      %235 = vst.msk [vmem:[#allocation2 + $0x90] sm:$0xff] %vm215, 0.0
      %236 = vst.msk [vmem:[#allocation2 + $0x98] sm:$0xff] %vm215, 0.0
      %237 = vst.msk [vmem:[#allocation2 + $0xa0] sm:$0x3] %vm218, 0.0
      %238 = vst.msk [vmem:[#allocation2 + $0xa8] sm:$0xff] %vm215, 0.0
      %239 = vst.msk [vmem:[#allocation2 + $0xb0] sm:$0xff] %vm215, 0.0
      %240 = vst.msk [vmem:[#allocation2 + $0xb8] sm:$0x3] %vm218, 0.0
      %241 = vst.msk [vmem:[#allocation2 + $0xc0] sm:$0xff] %vm215, 0.0
      %242 = vst.msk [vmem:[#allocation2 + $0xc8] sm:$0xff] %vm215, 0.0
      %243 = vst.msk [vmem:[#allocation2 + $0xd0] sm:$0x3] %vm218, 0.0
      %244 = vst.msk [vmem:[#allocation2 + $0xd8] sm:$0xff] %vm215, 0.0
      %245 = vst.msk [vmem:[#allocation2 + $0xe0] sm:$0xff] %vm215, 0.0
      %246 = vst.msk [vmem:[#allocation2 + $0xe8] sm:$0x3] %vm218, 0.0
      %247 = vst.msk [vmem:[#allocation2 + $0xf0] sm:$0xff] %vm215, 0.0
      %248 = vst.msk [vmem:[#allocation2 + $0xf8] sm:$0xff] %vm215, 0.0
      %249 = vst.msk [vmem:[#allocation2 + $0x100] sm:$0x3] %vm218, 0.0
      %250 = vst.msk [vmem:[#allocation2 + $0x108] sm:$0xff] %vm215, 0.0
      %251 = vst.msk [vmem:[#allocation2 + $0x110] sm:$0xff] %vm215, 0.0
      %252 = vst.msk [vmem:[#allocation2 + $0x118] sm:$0x3] %vm218, 0.0
      %253 = vst.msk [vmem:[#allocation2 + $0x120] sm:$0xff] %vm215, 0.0
      %254 = vst.msk [vmem:[#allocation2 + $0x128] sm:$0xff] %vm215, 0.0
      %255 = vst.msk [vmem:[#allocation2 + $0x130] sm:$0x3] %vm218, 0.0
      %256 = vst.msk [vmem:[#allocation2 + $0x138] sm:$0xff] %vm215, 0.0
      %257 = vst.msk [vmem:[#allocation2 + $0x140] sm:$0xff] %vm215, 0.0
      %258 = vst.msk [vmem:[#allocation2 + $0x148] sm:$0x3] %vm218, 0.0
      %259 = vst.msk [vmem:[#allocation2 + $0x150] sm:$0xff] %vm215, 0.0
      %260 = vst.msk [vmem:[#allocation2 + $0x158] sm:$0xff] %vm215, 0.0
      %261 = vst.msk [vmem:[#allocation2 + $0x160] sm:$0x3] %vm218, 0.0
      %262 = vst.msk [vmem:[#allocation2 + $0x168] sm:$0xff] %vm215, 0.0
      %263 = vst.msk [vmem:[#allocation2 + $0x170] sm:$0xff] %vm215, 0.0
      %264 = vst.msk [vmem:[#allocation2 + $0x178] sm:$0x3] %vm218, 0.0
      %265 = vst.msk [vmem:[#allocation2 + $0x180] sm:$0xff] %vm215, 0.0
      %266 = vst.msk [vmem:[#allocation2 + $0x188] sm:$0xff] %vm215, 0.0
      %267 = vst.msk [vmem:[#allocation2 + $0x190] sm:$0x3] %vm218, 0.0
      %268 = vst.msk [vmem:[#allocation2 + $0x198] sm:$0xff] %vm215, 0.0
      %269 = vst.msk [vmem:[#allocation2 + $0x1a0] sm:$0xff] %vm215, 0.0
      %270 = vst.msk [vmem:[#allocation2 + $0x1a8] sm:$0x3] %vm218, 0.0
      %v271 = vld [vmem:[%s203] sm:$0xff]
      %v272 = vld [vmem:[%s203 + $0x8] sm:$0xff]
      %v273 = vld [vmem:[%s203 + $0x10] sm:$0xff]
      %v274 = vld [vmem:[%s203 + $0x18] sm:$0xff]
      %v275 = vld [vmem:[%s203 + $0x20] sm:$0xff]
      %v276 = vld [vmem:[%s203 + $0x28] sm:$0xff]
      %v277 = vld [vmem:[%s203 + $0x30] sm:$0xff]
      %v278 = vld [vmem:[%s203 + $0x38] sm:$0xff]
      %v279 = vld [vmem:[%s203 + $0x40] sm:$0xff]
      %v280 = vld [vmem:[%s203 + $0x48] sm:$0xff]
      %v281 = vld [vmem:[%s203 + $0x50] sm:$0xff]
      %v282 = vld [vmem:[%s203 + $0x58] sm:$0xff]
      %v283 = vld [vmem:[%s203 + $0x60] sm:$0xff]
      %v284 = vld [vmem:[%s203 + $0x68] sm:$0xff]
      %v285 = vld [vmem:[%s203 + $0x70] sm:$0xff]
      %v286 = vld [vmem:[%s203 + $0x78] sm:$0xff]
      %v287 = vld [vmem:[%s203 + $0x80] sm:$0xff]
      %v288 = vld [vmem:[%s203 + $0x88] sm:$0xff]
      %v289 = vld [vmem:[%s203 + $0x90] sm:$0xff]
      %v290 = vld [vmem:[%s203 + $0x98] sm:$0xff]
      %v291 = vld [vmem:[%s203 + $0xa0] sm:$0xff]
      %v292 = vld [vmem:[%s203 + $0xa8] sm:$0xff]
      %v293 = vld [vmem:[%s203 + $0xb0] sm:$0xff]
      %v294 = vld [vmem:[%s203 + $0xb8] sm:$0xff]
      %v295 = vld [vmem:[%s203 + $0xc0] sm:$0xff]
      %v296 = vld [vmem:[%s203 + $0xc8] sm:$0xff]
      %v297 = vld [vmem:[%s203 + $0xd0] sm:$0xff]
      %v298 = vld [vmem:[%s203 + $0xd8] sm:$0xff]
      %v299 = vld [vmem:[%s203 + $0xe0] sm:$0xff]
      %v300 = vld [vmem:[%s203 + $0xe8] sm:$0xff]
      %v301 = vld [vmem:[%s203 + $0xf0] sm:$0xff]
      %v302 = vld [vmem:[%s203 + $0xf8] sm:$0xff]
      %s303 = scalar_lea.vmem [#allocation2], 24
      %304 = vst.msk [vmem:[%s303 + $0x1] sm:$0xff] %vm215, %v271
      %305 = vst.msk [vmem:[%s303 + $0x9] sm:$0xff] %vm215, %v272
      %306 = vst.msk [vmem:[%s303 + $0x19] sm:$0xff] %vm215, %v273
      %307 = vst.msk [vmem:[%s303 + $0x21] sm:$0xff] %vm215, %v274
      %308 = vst.msk [vmem:[%s303 + $0x31] sm:$0xff] %vm215, %v275
      %309 = vst.msk [vmem:[%s303 + $0x39] sm:$0xff] %vm215, %v276
      %310 = vst.msk [vmem:[%s303 + $0x49] sm:$0xff] %vm215, %v277
      %311 = vst.msk [vmem:[%s303 + $0x51] sm:$0xff] %vm215, %v278
      %312 = vst.msk [vmem:[%s303 + $0x61] sm:$0xff] %vm215, %v279
      %313 = vst.msk [vmem:[%s303 + $0x69] sm:$0xff] %vm215, %v280
      %314 = vst.msk [vmem:[%s303 + $0x79] sm:$0xff] %vm215, %v281
      %315 = vst.msk [vmem:[%s303 + $0x81] sm:$0xff] %vm215, %v282
      %316 = vst.msk [vmem:[%s303 + $0x91] sm:$0xff] %vm215, %v283
      %317 = vst.msk [vmem:[%s303 + $0x99] sm:$0xff] %vm215, %v284
      %318 = vst.msk [vmem:[%s303 + $0xa9] sm:$0xff] %vm215, %v285
      %319 = vst.msk [vmem:[%s303 + $0xb1] sm:$0xff] %vm215, %v286
      %320 = vst.msk [vmem:[%s303 + $0xc1] sm:$0xff] %vm215, %v287
      %321 = vst.msk [vmem:[%s303 + $0xc9] sm:$0xff] %vm215, %v288
      %322 = vst.msk [vmem:[%s303 + $0xd9] sm:$0xff] %vm215, %v289
      %323 = vst.msk [vmem:[%s303 + $0xe1] sm:$0xff] %vm215, %v290
      %324 = vst.msk [vmem:[%s303 + $0xf1] sm:$0xff] %vm215, %v291
      %325 = vst.msk [vmem:[%s303 + $0xf9] sm:$0xff] %vm215, %v292
      %326 = vst.msk [vmem:[%s303 + $0x109] sm:$0xff] %vm215, %v293
      %327 = vst.msk [vmem:[%s303 + $0x111] sm:$0xff] %vm215, %v294
      %328 = vst.msk [vmem:[%s303 + $0x121] sm:$0xff] %vm215, %v295
      %329 = vst.msk [vmem:[%s303 + $0x129] sm:$0xff] %vm215, %v296
      %330 = vst.msk [vmem:[%s303 + $0x139] sm:$0xff] %vm215, %v297
      %331 = vst.msk [vmem:[%s303 + $0x141] sm:$0xff] %vm215, %v298
      %332 = vst.msk [vmem:[%s303 + $0x151] sm:$0xff] %vm215, %v299
      %333 = vst.msk [vmem:[%s303 + $0x159] sm:$0xff] %vm215, %v300
      %334 = vst.msk [vmem:[%s303 + $0x169] sm:$0xff] %vm215, %v301
      %335 = vst.msk [vmem:[%s303 + $0x171] sm:$0xff] %vm215, %v302
      %v336 = vld [vmem:[#allocation2] sm:$0xff]
      %v337 = vld [vmem:[#allocation2 + $0x8] sm:$0xff]
      %v338 = vld [vmem:[#allocation2 + $0x10] sm:$0x3]
      %v339 = vld [vmem:[#allocation2 + $0x18] sm:$0xff]
      %v340 = vld [vmem:[#allocation2 + $0x20] sm:$0xff]
      %v341 = vld [vmem:[#allocation2 + $0x28] sm:$0x3]
      %v342 = vld [vmem:[#allocation2 + $0x30] sm:$0xff]
      %v343 = vld [vmem:[#allocation2 + $0x38] sm:$0xff]
      %v344 = vld [vmem:[#allocation2 + $0x40] sm:$0x3]
      %v345 = vld [vmem:[#allocation2 + $0x48] sm:$0xff]
      %v346 = vld [vmem:[#allocation2 + $0x50] sm:$0xff]
      %v347 = vld [vmem:[#allocation2 + $0x58] sm:$0x3]
      %v348 = vld [vmem:[#allocation2 + $0x60] sm:$0xff]
      %v349 = vld [vmem:[#allocation2 + $0x68] sm:$0xff]
      %v350 = vld [vmem:[#allocation2 + $0x70] sm:$0x3]
      %v351 = vld [vmem:[#allocation2 + $0x78] sm:$0xff]
      %v352 = vld [vmem:[#allocation2 + $0x80] sm:$0xff]
      %v353 = vld [vmem:[#allocation2 + $0x88] sm:$0x3]
      %v354 = vld [vmem:[#allocation2 + $0x90] sm:$0xff]
      %v355 = vld [vmem:[#allocation2 + $0x98] sm:$0xff]
      %v356 = vld [vmem:[#allocation2 + $0xa0] sm:$0x3]
      %v357 = vld [vmem:[#allocation2 + $0xa8] sm:$0xff]
      %v358 = vld [vmem:[#allocation2 + $0xb0] sm:$0xff]
      %v359 = vld [vmem:[#allocation2 + $0xb8] sm:$0x3]
      %v360 = vld [vmem:[#allocation2 + $0xc0] sm:$0xff]
      %v361 = vld [vmem:[#allocation2 + $0xc8] sm:$0xff]
      %v362 = vld [vmem:[#allocation2 + $0xd0] sm:$0x3]
      %v363 = vld [vmem:[#allocation2 + $0xd8] sm:$0xff]
      %v364 = vld [vmem:[#allocation2 + $0xe0] sm:$0xff]
      %v365 = vld [vmem:[#allocation2 + $0xe8] sm:$0x3]
      %v366 = vld [vmem:[#allocation2 + $0xf0] sm:$0xff]
      %v367 = vld [vmem:[#allocation2 + $0xf8] sm:$0xff]
      %v368 = vld [vmem:[#allocation2 + $0x100] sm:$0x3]
      %v369 = vld [vmem:[#allocation2 + $0x108] sm:$0xff]
      %v370 = vld [vmem:[#allocation2 + $0x110] sm:$0xff]
      %v371 = vld [vmem:[#allocation2 + $0x118] sm:$0x3]
      %v372 = vld [vmem:[#allocation2 + $0x120] sm:$0xff]
      %v373 = vld [vmem:[#allocation2 + $0x128] sm:$0xff]
      %v374 = vld [vmem:[#allocation2 + $0x130] sm:$0x3]
      %v375 = vld [vmem:[#allocation2 + $0x138] sm:$0xff]
      %v376 = vld [vmem:[#allocation2 + $0x140] sm:$0xff]
      %v377 = vld [vmem:[#allocation2 + $0x148] sm:$0x3]
      %v378 = vld [vmem:[#allocation2 + $0x150] sm:$0xff]
      %v379 = vld [vmem:[#allocation2 + $0x158] sm:$0xff]
      %v380 = vld [vmem:[#allocation2 + $0x160] sm:$0x3]
      %v381 = vld [vmem:[#allocation2 + $0x168] sm:$0xff]
      %v382 = vld [vmem:[#allocation2 + $0x170] sm:$0xff]
      %v383 = vld [vmem:[#allocation2 + $0x178] sm:$0x3]
      %vm432 = vcmask 1046528
      %v433 = vrot.slane %v336, 1
      %v434 = vrot.slane %v337, 1
      %v435 = vsel %vm432, %v433, %v434
      %v436 = vrot.slane %v338, 1
      %v437 = vsel %vm432, %v434, %v436
      %v438 = vrot.slane %v339, 1
      %v439 = vrot.slane %v340, 1
      %v440 = vsel %vm432, %v438, %v439
      %v441 = vrot.slane %v341, 1
      %v442 = vsel %vm432, %v439, %v441
      %v443 = vrot.slane %v342, 1
      %v444 = vrot.slane %v343, 1
      %v445 = vsel %vm432, %v443, %v444
      %v446 = vrot.slane %v344, 1
      %v447 = vsel %vm432, %v444, %v446
      %v448 = vrot.slane %v345, 1
      %v449 = vrot.slane %v346, 1
      %v450 = vsel %vm432, %v448, %v449
      %v451 = vrot.slane %v347, 1
      %v452 = vsel %vm432, %v449, %v451
      %v453 = vrot.slane %v348, 1
      %v454 = vrot.slane %v349, 1
      %v455 = vsel %vm432, %v453, %v454
      %v456 = vrot.slane %v350, 1
      %v457 = vsel %vm432, %v454, %v456
      %v458 = vrot.slane %v351, 1
      %v459 = vrot.slane %v352, 1
      %v460 = vsel %vm432, %v458, %v459
      %v461 = vrot.slane %v353, 1
      %v462 = vsel %vm432, %v459, %v461
      %v463 = vrot.slane %v354, 1
      %v464 = vrot.slane %v355, 1
      %v465 = vsel %vm432, %v463, %v464
      %v466 = vrot.slane %v356, 1
      %v467 = vsel %vm432, %v464, %v466
      %v468 = vrot.slane %v357, 1
      %v469 = vrot.slane %v358, 1
      %v470 = vsel %vm432, %v468, %v469
      %v471 = vrot.slane %v359, 1
      %v472 = vsel %vm432, %v469, %v471
      %v473 = vrot.slane %v360, 1
      %v474 = vrot.slane %v361, 1
      %v475 = vsel %vm432, %v473, %v474
      %v476 = vrot.slane %v362, 1
      %v477 = vsel %vm432, %v474, %v476
      %v478 = vrot.slane %v363, 1
      %v479 = vrot.slane %v364, 1
      %v480 = vsel %vm432, %v478, %v479
      %v481 = vrot.slane %v365, 1
      %v482 = vsel %vm432, %v479, %v481
      %v483 = vrot.slane %v366, 1
      %v484 = vrot.slane %v367, 1
      %v485 = vsel %vm432, %v483, %v484
      %v486 = vrot.slane %v368, 1
      %v487 = vsel %vm432, %v484, %v486
      %v488 = vrot.slane %v369, 1
      %v489 = vrot.slane %v370, 1
      %v490 = vsel %vm432, %v488, %v489
      %v491 = vrot.slane %v371, 1
      %v492 = vsel %vm432, %v489, %v491
      %v493 = vrot.slane %v372, 1
      %v494 = vrot.slane %v373, 1
      %v495 = vsel %vm432, %v493, %v494
      %v496 = vrot.slane %v374, 1
      %v497 = vsel %vm432, %v494, %v496
      %v498 = vrot.slane %v375, 1
      %v499 = vrot.slane %v376, 1
      %v500 = vsel %vm432, %v498, %v499
      %v501 = vrot.slane %v377, 1
      %v502 = vsel %vm432, %v499, %v501
      %v503 = vrot.slane %v378, 1
      %v504 = vrot.slane %v379, 1
      %v505 = vsel %vm432, %v503, %v504
      %v506 = vrot.slane %v380, 1
      %v507 = vsel %vm432, %v504, %v506
      %v508 = vrot.slane %v381, 1
      %v509 = vrot.slane %v382, 1
      %v510 = vsel %vm432, %v508, %v509
      %v511 = vrot.slane %v383, 1
      %v512 = vsel %vm432, %v509, %v511
      %513 = vrot.lane.b32.xlu0 %v435, 4
      %v514 = vpop.permute.xlu0 %513
      %515 = vrot.lane.b32.xlu0 %v437, 4
      %v516 = vpop.permute.xlu0 %515
      %517 = vrot.lane.b32.xlu0 %v440, 4
      %v518 = vpop.permute.xlu0 %517
      %519 = vrot.lane.b32.xlu0 %v442, 4
      %v520 = vpop.permute.xlu0 %519
      %521 = vrot.lane.b32.xlu0 %v445, 4
      %v522 = vpop.permute.xlu0 %521
      %523 = vrot.lane.b32.xlu0 %v447, 4
      %v524 = vpop.permute.xlu0 %523
      %525 = vrot.lane.b32.xlu0 %v450, 4
      %v526 = vpop.permute.xlu0 %525
      %527 = vrot.lane.b32.xlu0 %v452, 4
      %v528 = vpop.permute.xlu0 %527
      %529 = vrot.lane.b32.xlu0 %v455, 4
      %v530 = vpop.permute.xlu0 %529
      %531 = vrot.lane.b32.xlu0 %v457, 4
      %v532 = vpop.permute.xlu0 %531
      %533 = vrot.lane.b32.xlu0 %v460, 4
      %v534 = vpop.permute.xlu0 %533
      %535 = vrot.lane.b32.xlu0 %v462, 4
      %v536 = vpop.permute.xlu0 %535
      %537 = vrot.lane.b32.xlu0 %v465, 4
      %v538 = vpop.permute.xlu0 %537
      %539 = vrot.lane.b32.xlu0 %v467, 4
      %v540 = vpop.permute.xlu0 %539
      %541 = vrot.lane.b32.xlu0 %v470, 4
      %v542 = vpop.permute.xlu0 %541
      %543 = vrot.lane.b32.xlu0 %v472, 4
      %v544 = vpop.permute.xlu0 %543
      %545 = vrot.lane.b32.xlu0 %v475, 4
      %v546 = vpop.permute.xlu0 %545
      %547 = vrot.lane.b32.xlu0 %v477, 4
      %v548 = vpop.permute.xlu0 %547
      %549 = vrot.lane.b32.xlu0 %v480, 4
      %v550 = vpop.permute.xlu0 %549
      %551 = vrot.lane.b32.xlu0 %v482, 4
      %v552 = vpop.permute.xlu0 %551
      %553 = vrot.lane.b32.xlu0 %v485, 4
      %v554 = vpop.permute.xlu0 %553
      %555 = vrot.lane.b32.xlu0 %v487, 4
      %v556 = vpop.permute.xlu0 %555
      %557 = vrot.lane.b32.xlu0 %v490, 4
      %v558 = vpop.permute.xlu0 %557
      %559 = vrot.lane.b32.xlu0 %v492, 4
      %v560 = vpop.permute.xlu0 %559
      %561 = vrot.lane.b32.xlu0 %v495, 4
      %v562 = vpop.permute.xlu0 %561
      %563 = vrot.lane.b32.xlu0 %v497, 4
      %v564 = vpop.permute.xlu0 %563
      %565 = vrot.lane.b32.xlu0 %v500, 4
      %v566 = vpop.permute.xlu0 %565
      %567 = vrot.lane.b32.xlu0 %v502, 4
      %v568 = vpop.permute.xlu0 %567
      %569 = vrot.lane.b32.xlu0 %v505, 4
      %v570 = vpop.permute.xlu0 %569
      %571 = vrot.lane.b32.xlu0 %v507, 4
      %v572 = vpop.permute.xlu0 %571
      %573 = vrot.lane.b32.xlu0 %v510, 4
      %v574 = vpop.permute.xlu0 %573
      %575 = vrot.lane.b32.xlu0 %v512, 4
      %v576 = vpop.permute.xlu0 %575
      %vm609 = vcmask 1045504
      %v610 = vrot.slane %v336, 2
      %v611 = vrot.slane %v337, 2
      %v612 = vsel %vm609, %v610, %v611
      %v613 = vrot.slane %v338, 2
      %v614 = vsel %vm609, %v611, %v613
      %v615 = vrot.slane %v339, 2
      %v616 = vrot.slane %v340, 2
      %v617 = vsel %vm609, %v615, %v616
      %v618 = vrot.slane %v341, 2
      %v619 = vsel %vm609, %v616, %v618
      %v620 = vrot.slane %v342, 2
      %v621 = vrot.slane %v343, 2
      %v622 = vsel %vm609, %v620, %v621
      %v623 = vrot.slane %v344, 2
      %v624 = vsel %vm609, %v621, %v623
      %v625 = vrot.slane %v345, 2
      %v626 = vrot.slane %v346, 2
      %v627 = vsel %vm609, %v625, %v626
      %v628 = vrot.slane %v347, 2
      %v629 = vsel %vm609, %v626, %v628
      %v630 = vrot.slane %v348, 2
      %v631 = vrot.slane %v349, 2
      %v632 = vsel %vm609, %v630, %v631
      %v633 = vrot.slane %v350, 2
      %v634 = vsel %vm609, %v631, %v633
      %v635 = vrot.slane %v351, 2
      %v636 = vrot.slane %v352, 2
      %v637 = vsel %vm609, %v635, %v636
      %v638 = vrot.slane %v353, 2
      %v639 = vsel %vm609, %v636, %v638
      %v640 = vrot.slane %v354, 2
      %v641 = vrot.slane %v355, 2
      %v642 = vsel %vm609, %v640, %v641
      %v643 = vrot.slane %v356, 2
      %v644 = vsel %vm609, %v641, %v643
      %v645 = vrot.slane %v357, 2
      %v646 = vrot.slane %v358, 2
      %v647 = vsel %vm609, %v645, %v646
      %v648 = vrot.slane %v359, 2
      %v649 = vsel %vm609, %v646, %v648
      %v650 = vrot.slane %v360, 2
      %v651 = vrot.slane %v361, 2
      %v652 = vsel %vm609, %v650, %v651
      %v653 = vrot.slane %v362, 2
      %v654 = vsel %vm609, %v651, %v653
      %v655 = vrot.slane %v363, 2
      %v656 = vrot.slane %v364, 2
      %v657 = vsel %vm609, %v655, %v656
      %v658 = vrot.slane %v365, 2
      %v659 = vsel %vm609, %v656, %v658
      %v660 = vrot.slane %v366, 2
      %v661 = vrot.slane %v367, 2
      %v662 = vsel %vm609, %v660, %v661
      %v663 = vrot.slane %v368, 2
      %v664 = vsel %vm609, %v661, %v663
      %v665 = vrot.slane %v369, 2
      %v666 = vrot.slane %v370, 2
      %v667 = vsel %vm609, %v665, %v666
      %v668 = vrot.slane %v371, 2
      %v669 = vsel %vm609, %v666, %v668
      %v670 = vrot.slane %v372, 2
      %v671 = vrot.slane %v373, 2
      %v672 = vsel %vm609, %v670, %v671
      %v673 = vrot.slane %v374, 2
      %v674 = vsel %vm609, %v671, %v673
      %v675 = vrot.slane %v375, 2
      %v676 = vrot.slane %v376, 2
      %v677 = vsel %vm609, %v675, %v676
      %v678 = vrot.slane %v377, 2
      %v679 = vsel %vm609, %v676, %v678
      %v680 = vrot.slane %v378, 2
      %v681 = vrot.slane %v379, 2
      %v682 = vsel %vm609, %v680, %v681
      %v683 = vrot.slane %v380, 2
      %v684 = vsel %vm609, %v681, %v683
      %v685 = vrot.slane %v381, 2
      %v686 = vrot.slane %v382, 2
      %v687 = vsel %vm609, %v685, %v686
      %v688 = vrot.slane %v383, 2
      %v689 = vsel %vm609, %v686, %v688
      %690 = vrot.lane.b32.xlu0 %v612, 8
      %v691 = vpop.permute.xlu0 %690
      %692 = vrot.lane.b32.xlu0 %v614, 8
      %v693 = vpop.permute.xlu0 %692
      %694 = vrot.lane.b32.xlu0 %v617, 8
      %v695 = vpop.permute.xlu0 %694
      %696 = vrot.lane.b32.xlu0 %v619, 8
      %v697 = vpop.permute.xlu0 %696
      %698 = vrot.lane.b32.xlu0 %v622, 8
      %v699 = vpop.permute.xlu0 %698
      %700 = vrot.lane.b32.xlu0 %v624, 8
      %v701 = vpop.permute.xlu0 %700
      %702 = vrot.lane.b32.xlu0 %v627, 8
      %v703 = vpop.permute.xlu0 %702
      %704 = vrot.lane.b32.xlu0 %v629, 8
      %v705 = vpop.permute.xlu0 %704
      %706 = vrot.lane.b32.xlu0 %v632, 8
      %v707 = vpop.permute.xlu0 %706
      %708 = vrot.lane.b32.xlu0 %v634, 8
      %v709 = vpop.permute.xlu0 %708
      %710 = vrot.lane.b32.xlu0 %v637, 8
      %v711 = vpop.permute.xlu0 %710
      %712 = vrot.lane.b32.xlu0 %v639, 8
      %v713 = vpop.permute.xlu0 %712
      %714 = vrot.lane.b32.xlu0 %v642, 8
      %v715 = vpop.permute.xlu0 %714
      %716 = vrot.lane.b32.xlu0 %v644, 8
      %v717 = vpop.permute.xlu0 %716
      %718 = vrot.lane.b32.xlu0 %v647, 8
      %v719 = vpop.permute.xlu0 %718
      %720 = vrot.lane.b32.xlu0 %v649, 8
      %v721 = vpop.permute.xlu0 %720
      %722 = vrot.lane.b32.xlu0 %v652, 8
      %v723 = vpop.permute.xlu0 %722
      %724 = vrot.lane.b32.xlu0 %v654, 8
      %v725 = vpop.permute.xlu0 %724
      %726 = vrot.lane.b32.xlu0 %v657, 8
      %v727 = vpop.permute.xlu0 %726
      %728 = vrot.lane.b32.xlu0 %v659, 8
      %v729 = vpop.permute.xlu0 %728
      %730 = vrot.lane.b32.xlu0 %v662, 8
      %v731 = vpop.permute.xlu0 %730
      %732 = vrot.lane.b32.xlu0 %v664, 8
      %v733 = vpop.permute.xlu0 %732
      %734 = vrot.lane.b32.xlu0 %v667, 8
      %v735 = vpop.permute.xlu0 %734
      %736 = vrot.lane.b32.xlu0 %v669, 8
      %v737 = vpop.permute.xlu0 %736
      %738 = vrot.lane.b32.xlu0 %v672, 8
      %v739 = vpop.permute.xlu0 %738
      %740 = vrot.lane.b32.xlu0 %v674, 8
      %v741 = vpop.permute.xlu0 %740
      %742 = vrot.lane.b32.xlu0 %v677, 8
      %v743 = vpop.permute.xlu0 %742
      %744 = vrot.lane.b32.xlu0 %v679, 8
      %v745 = vpop.permute.xlu0 %744
      %746 = vrot.lane.b32.xlu0 %v682, 8
      %v747 = vpop.permute.xlu0 %746
      %748 = vrot.lane.b32.xlu0 %v684, 8
      %v749 = vpop.permute.xlu0 %748
      %750 = vrot.lane.b32.xlu0 %v687, 8
      %v751 = vpop.permute.xlu0 %750
      %752 = vrot.lane.b32.xlu0 %v689, 8
      %v753 = vpop.permute.xlu0 %752
      %v786 = vsel %vm215, %v336, %v514
      %v787 = vsel %vm215, %v337, %v516
      %v788 = vsel %vm215, %v339, %v518
      %v789 = vsel %vm215, %v340, %v520
      %v790 = vsel %vm215, %v342, %v522
      %v791 = vsel %vm215, %v343, %v524
      %v792 = vsel %vm215, %v345, %v526
      %v793 = vsel %vm215, %v346, %v528
      %v794 = vsel %vm215, %v348, %v530
      %v795 = vsel %vm215, %v349, %v532
      %v796 = vsel %vm215, %v351, %v534
      %v797 = vsel %vm215, %v352, %v536
      %v798 = vsel %vm215, %v354, %v538
      %v799 = vsel %vm215, %v355, %v540
      %v800 = vsel %vm215, %v357, %v542
      %v801 = vsel %vm215, %v358, %v544
      %v802 = vsel %vm215, %v360, %v546
      %v803 = vsel %vm215, %v361, %v548
      %v804 = vsel %vm215, %v363, %v550
      %v805 = vsel %vm215, %v364, %v552
      %v806 = vsel %vm215, %v366, %v554
      %v807 = vsel %vm215, %v367, %v556
      %v808 = vsel %vm215, %v369, %v558
      %v809 = vsel %vm215, %v370, %v560
      %v810 = vsel %vm215, %v372, %v562
      %v811 = vsel %vm215, %v373, %v564
      %v812 = vsel %vm215, %v375, %v566
      %v813 = vsel %vm215, %v376, %v568
      %v814 = vsel %vm215, %v378, %v570
      %v815 = vsel %vm215, %v379, %v572
      %v816 = vsel %vm215, %v381, %v574
      %v817 = vsel %vm215, %v382, %v576
      %vm818 = vcmask 64512
      %v819 = vsel %vm818, %v786, %v691
      %v820 = vsel %vm818, %v787, %v693
      %v821 = vsel %vm818, %v788, %v695
      %v822 = vsel %vm818, %v789, %v697
      %v823 = vsel %vm818, %v790, %v699
      %v824 = vsel %vm818, %v791, %v701
      %v825 = vsel %vm818, %v792, %v703
      %v826 = vsel %vm818, %v793, %v705
      %v827 = vsel %vm818, %v794, %v707
      %v828 = vsel %vm818, %v795, %v709
      %v829 = vsel %vm818, %v796, %v711
      %v830 = vsel %vm818, %v797, %v713
      %v831 = vsel %vm818, %v798, %v715
      %v832 = vsel %vm818, %v799, %v717
      %v833 = vsel %vm818, %v800, %v719
      %v834 = vsel %vm818, %v801, %v721
      %v835 = vsel %vm818, %v802, %v723
      %v836 = vsel %vm818, %v803, %v725
      %v837 = vsel %vm818, %v804, %v727
      %v838 = vsel %vm818, %v805, %v729
      %v839 = vsel %vm818, %v806, %v731
      %v840 = vsel %vm818, %v807, %v733
      %v841 = vsel %vm818, %v808, %v735
      %v842 = vsel %vm818, %v809, %v737
      %v843 = vsel %vm818, %v810, %v739
      %v844 = vsel %vm818, %v811, %v741
      %v845 = vsel %vm818, %v812, %v743
      %v846 = vsel %vm818, %v813, %v745
      %v847 = vsel %vm818, %v814, %v747
      %v848 = vsel %vm818, %v815, %v749
      %v849 = vsel %vm818, %v816, %v751
      %v850 = vsel %vm818, %v817, %v753
      %v851 = vld [vmem:[%s1] sm:$0xff]
      %v852 = vld [vmem:[%s1 + $0x8] sm:$0xf]
      %v853 = vld [vmem:[%s303] sm:$0xff]
      %v854 = vld [vmem:[%s303 + $0x8] sm:$0xff]
      %v855 = vld [vmem:[%s303 + $0x10] sm:$0x3]
      %v856 = vld [vmem:[%s303 + $0x18] sm:$0xff]
      %v857 = vld [vmem:[%s303 + $0x20] sm:$0xff]
      %v858 = vld [vmem:[%s303 + $0x28] sm:$0x3]
      %v859 = vld [vmem:[%s303 + $0x30] sm:$0xff]
      %v860 = vld [vmem:[%s303 + $0x38] sm:$0xff]
      %v861 = vld [vmem:[%s303 + $0x40] sm:$0x3]
      %v862 = vld [vmem:[%s303 + $0x48] sm:$0xff]
      %v863 = vld [vmem:[%s303 + $0x50] sm:$0xff]
      %v864 = vld [vmem:[%s303 + $0x58] sm:$0x3]
      %v865 = vld [vmem:[%s303 + $0x60] sm:$0xff]
      %v866 = vld [vmem:[%s303 + $0x68] sm:$0xff]
      %v867 = vld [vmem:[%s303 + $0x70] sm:$0x3]
      %v868 = vld [vmem:[%s303 + $0x78] sm:$0xff]
      %v869 = vld [vmem:[%s303 + $0x80] sm:$0xff]
      %v870 = vld [vmem:[%s303 + $0x88] sm:$0x3]
      %v871 = vld [vmem:[%s303 + $0x90] sm:$0xff]
      %v872 = vld [vmem:[%s303 + $0x98] sm:$0xff]
      %v873 = vld [vmem:[%s303 + $0xa0] sm:$0x3]
      %v874 = vld [vmem:[%s303 + $0xa8] sm:$0xff]
      %v875 = vld [vmem:[%s303 + $0xb0] sm:$0xff]
      %v876 = vld [vmem:[%s303 + $0xb8] sm:$0x3]
      %v877 = vld [vmem:[%s303 + $0xc0] sm:$0xff]
      %v878 = vld [vmem:[%s303 + $0xc8] sm:$0xff]
      %v879 = vld [vmem:[%s303 + $0xd0] sm:$0x3]
      %v880 = vld [vmem:[%s303 + $0xd8] sm:$0xff]
      %v881 = vld [vmem:[%s303 + $0xe0] sm:$0xff]
      %v882 = vld [vmem:[%s303 + $0xe8] sm:$0x3]
      %v883 = vld [vmem:[%s303 + $0xf0] sm:$0xff]
      %v884 = vld [vmem:[%s303 + $0xf8] sm:$0xff]
      %v885 = vld [vmem:[%s303 + $0x100] sm:$0x3]
      %v886 = vld [vmem:[%s303 + $0x108] sm:$0xff]
      %v887 = vld [vmem:[%s303 + $0x110] sm:$0xff]
      %v888 = vld [vmem:[%s303 + $0x118] sm:$0x3]
      %v889 = vld [vmem:[%s303 + $0x120] sm:$0xff]
      %v890 = vld [vmem:[%s303 + $0x128] sm:$0xff]
      %v891 = vld [vmem:[%s303 + $0x130] sm:$0x3]
      %v892 = vld [vmem:[%s303 + $0x138] sm:$0xff]
      %v893 = vld [vmem:[%s303 + $0x140] sm:$0xff]
      %v894 = vld [vmem:[%s303 + $0x148] sm:$0x3]
      %v895 = vld [vmem:[%s303 + $0x150] sm:$0xff]
      %v896 = vld [vmem:[%s303 + $0x158] sm:$0xff]
      %v897 = vld [vmem:[%s303 + $0x160] sm:$0x3]
      %v898 = vld [vmem:[%s303 + $0x168] sm:$0xff]
      %v899 = vld [vmem:[%s303 + $0x170] sm:$0xff]
      %v900 = vld [vmem:[%s303 + $0x178] sm:$0x3]
      %v949 = vrot.slane %v853, 1
      %v950 = vrot.slane %v854, 1
      %v951 = vsel %vm432, %v949, %v950
      %v952 = vrot.slane %v855, 1
      %v953 = vsel %vm432, %v950, %v952
      %v954 = vrot.slane %v856, 1
      %v955 = vrot.slane %v857, 1
      %v956 = vsel %vm432, %v954, %v955
      %v957 = vrot.slane %v858, 1
      %v958 = vsel %vm432, %v955, %v957
      %v959 = vrot.slane %v859, 1
      %v960 = vrot.slane %v860, 1
      %v961 = vsel %vm432, %v959, %v960
      %v962 = vrot.slane %v861, 1
      %v963 = vsel %vm432, %v960, %v962
      %v964 = vrot.slane %v862, 1
      %v965 = vrot.slane %v863, 1
      %v966 = vsel %vm432, %v964, %v965
      %v967 = vrot.slane %v864, 1
      %v968 = vsel %vm432, %v965, %v967
      %v969 = vrot.slane %v865, 1
      %v970 = vrot.slane %v866, 1
      %v971 = vsel %vm432, %v969, %v970
      %v972 = vrot.slane %v867, 1
      %v973 = vsel %vm432, %v970, %v972
      %v974 = vrot.slane %v868, 1
      %v975 = vrot.slane %v869, 1
      %v976 = vsel %vm432, %v974, %v975
      %v977 = vrot.slane %v870, 1
      %v978 = vsel %vm432, %v975, %v977
      %v979 = vrot.slane %v871, 1
      %v980 = vrot.slane %v872, 1
      %v981 = vsel %vm432, %v979, %v980
      %v982 = vrot.slane %v873, 1
      %v983 = vsel %vm432, %v980, %v982
      %v984 = vrot.slane %v874, 1
      %v985 = vrot.slane %v875, 1
      %v986 = vsel %vm432, %v984, %v985
      %v987 = vrot.slane %v876, 1
      %v988 = vsel %vm432, %v985, %v987
      %v989 = vrot.slane %v877, 1
      %v990 = vrot.slane %v878, 1
      %v991 = vsel %vm432, %v989, %v990
      %v992 = vrot.slane %v879, 1
      %v993 = vsel %vm432, %v990, %v992
      %v994 = vrot.slane %v880, 1
      %v995 = vrot.slane %v881, 1
      %v996 = vsel %vm432, %v994, %v995
      %v997 = vrot.slane %v882, 1
      %v998 = vsel %vm432, %v995, %v997
      %v999 = vrot.slane %v883, 1
      %v1000 = vrot.slane %v884, 1
      %v1001 = vsel %vm432, %v999, %v1000
      %v1002 = vrot.slane %v885, 1
      %v1003 = vsel %vm432, %v1000, %v1002
      %v1004 = vrot.slane %v886, 1
      %v1005 = vrot.slane %v887, 1
      %v1006 = vsel %vm432, %v1004, %v1005
      %v1007 = vrot.slane %v888, 1
      %v1008 = vsel %vm432, %v1005, %v1007
      %v1009 = vrot.slane %v889, 1
      %v1010 = vrot.slane %v890, 1
      %v1011 = vsel %vm432, %v1009, %v1010
      %v1012 = vrot.slane %v891, 1
      %v1013 = vsel %vm432, %v1010, %v1012
      %v1014 = vrot.slane %v892, 1
      %v1015 = vrot.slane %v893, 1
      %v1016 = vsel %vm432, %v1014, %v1015
      %v1017 = vrot.slane %v894, 1
      %v1018 = vsel %vm432, %v1015, %v1017
      %v1019 = vrot.slane %v895, 1
      %v1020 = vrot.slane %v896, 1
      %v1021 = vsel %vm432, %v1019, %v1020
      %v1022 = vrot.slane %v897, 1
      %v1023 = vsel %vm432, %v1020, %v1022
      %v1024 = vrot.slane %v898, 1
      %v1025 = vrot.slane %v899, 1
      %v1026 = vsel %vm432, %v1024, %v1025
      %v1027 = vrot.slane %v900, 1
      %v1028 = vsel %vm432, %v1025, %v1027
      %1029 = vrot.lane.b32.xlu0 %v951, 4
      %v1030 = vpop.permute.xlu0 %1029
      %1031 = vrot.lane.b32.xlu0 %v953, 4
      %v1032 = vpop.permute.xlu0 %1031
      %1033 = vrot.lane.b32.xlu0 %v956, 4
      %v1034 = vpop.permute.xlu0 %1033
      %1035 = vrot.lane.b32.xlu0 %v958, 4
      %v1036 = vpop.permute.xlu0 %1035
      %1037 = vrot.lane.b32.xlu0 %v961, 4
      %v1038 = vpop.permute.xlu0 %1037
      %1039 = vrot.lane.b32.xlu0 %v963, 4
      %v1040 = vpop.permute.xlu0 %1039
      %1041 = vrot.lane.b32.xlu0 %v966, 4
      %v1042 = vpop.permute.xlu0 %1041
      %1043 = vrot.lane.b32.xlu0 %v968, 4
      %v1044 = vpop.permute.xlu0 %1043
      %1045 = vrot.lane.b32.xlu0 %v971, 4
      %v1046 = vpop.permute.xlu0 %1045
      %1047 = vrot.lane.b32.xlu0 %v973, 4
      %v1048 = vpop.permute.xlu0 %1047
      %1049 = vrot.lane.b32.xlu0 %v976, 4
      %v1050 = vpop.permute.xlu0 %1049
      %1051 = vrot.lane.b32.xlu0 %v978, 4
      %v1052 = vpop.permute.xlu0 %1051
      %1053 = vrot.lane.b32.xlu0 %v981, 4
      %v1054 = vpop.permute.xlu0 %1053
      %1055 = vrot.lane.b32.xlu0 %v983, 4
      %v1056 = vpop.permute.xlu0 %1055
      %1057 = vrot.lane.b32.xlu0 %v986, 4
      %v1058 = vpop.permute.xlu0 %1057
      %1059 = vrot.lane.b32.xlu0 %v988, 4
      %v1060 = vpop.permute.xlu0 %1059
      %1061 = vrot.lane.b32.xlu0 %v991, 4
      %v1062 = vpop.permute.xlu0 %1061
      %1063 = vrot.lane.b32.xlu0 %v993, 4
      %v1064 = vpop.permute.xlu0 %1063
      %1065 = vrot.lane.b32.xlu0 %v996, 4
      %v1066 = vpop.permute.xlu0 %1065
      %1067 = vrot.lane.b32.xlu0 %v998, 4
      %v1068 = vpop.permute.xlu0 %1067
      %1069 = vrot.lane.b32.xlu0 %v1001, 4
      %v1070 = vpop.permute.xlu0 %1069
      %1071 = vrot.lane.b32.xlu0 %v1003, 4
      %v1072 = vpop.permute.xlu0 %1071
      %1073 = vrot.lane.b32.xlu0 %v1006, 4
      %v1074 = vpop.permute.xlu0 %1073
      %1075 = vrot.lane.b32.xlu0 %v1008, 4
      %v1076 = vpop.permute.xlu0 %1075
      %1077 = vrot.lane.b32.xlu0 %v1011, 4
      %v1078 = vpop.permute.xlu0 %1077
      %1079 = vrot.lane.b32.xlu0 %v1013, 4
      %v1080 = vpop.permute.xlu0 %1079
      %1081 = vrot.lane.b32.xlu0 %v1016, 4
      %v1082 = vpop.permute.xlu0 %1081
      %1083 = vrot.lane.b32.xlu0 %v1018, 4
      %v1084 = vpop.permute.xlu0 %1083
      %1085 = vrot.lane.b32.xlu0 %v1021, 4
      %v1086 = vpop.permute.xlu0 %1085
      %1087 = vrot.lane.b32.xlu0 %v1023, 4
      %v1088 = vpop.permute.xlu0 %1087
      %1089 = vrot.lane.b32.xlu0 %v1026, 4
      %v1090 = vpop.permute.xlu0 %1089
      %1091 = vrot.lane.b32.xlu0 %v1028, 4
      %v1092 = vpop.permute.xlu0 %1091
      %v1125 = vrot.slane %v853, 2
      %v1126 = vrot.slane %v854, 2
      %v1127 = vsel %vm609, %v1125, %v1126
      %v1128 = vrot.slane %v855, 2
      %v1129 = vsel %vm609, %v1126, %v1128
      %v1130 = vrot.slane %v856, 2
      %v1131 = vrot.slane %v857, 2
      %v1132 = vsel %vm609, %v1130, %v1131
      %v1133 = vrot.slane %v858, 2
      %v1134 = vsel %vm609, %v1131, %v1133
      %v1135 = vrot.slane %v859, 2
      %v1136 = vrot.slane %v860, 2
      %v1137 = vsel %vm609, %v1135, %v1136
      %v1138 = vrot.slane %v861, 2
      %v1139 = vsel %vm609, %v1136, %v1138
      %v1140 = vrot.slane %v862, 2
      %v1141 = vrot.slane %v863, 2
      %v1142 = vsel %vm609, %v1140, %v1141
      %v1143 = vrot.slane %v864, 2
      %v1144 = vsel %vm609, %v1141, %v1143
      %v1145 = vrot.slane %v865, 2
      %v1146 = vrot.slane %v866, 2
      %v1147 = vsel %vm609, %v1145, %v1146
      %v1148 = vrot.slane %v867, 2
      %v1149 = vsel %vm609, %v1146, %v1148
      %v1150 = vrot.slane %v868, 2
      %v1151 = vrot.slane %v869, 2
      %v1152 = vsel %vm609, %v1150, %v1151
      %v1153 = vrot.slane %v870, 2
      %v1154 = vsel %vm609, %v1151, %v1153
      %v1155 = vrot.slane %v871, 2
      %v1156 = vrot.slane %v872, 2
      %v1157 = vsel %vm609, %v1155, %v1156
      %v1158 = vrot.slane %v873, 2
      %v1159 = vsel %vm609, %v1156, %v1158
      %v1160 = vrot.slane %v874, 2
      %v1161 = vrot.slane %v875, 2
      %v1162 = vsel %vm609, %v1160, %v1161
      %v1163 = vrot.slane %v876, 2
      %v1164 = vsel %vm609, %v1161, %v1163
      %v1165 = vrot.slane %v877, 2
      %v1166 = vrot.slane %v878, 2
      %v1167 = vsel %vm609, %v1165, %v1166
      %v1168 = vrot.slane %v879, 2
      %v1169 = vsel %vm609, %v1166, %v1168
      %v1170 = vrot.slane %v880, 2
      %v1171 = vrot.slane %v881, 2
      %v1172 = vsel %vm609, %v1170, %v1171
      %v1173 = vrot.slane %v882, 2
      %v1174 = vsel %vm609, %v1171, %v1173
      %v1175 = vrot.slane %v883, 2
      %v1176 = vrot.slane %v884, 2
      %v1177 = vsel %vm609, %v1175, %v1176
      %v1178 = vrot.slane %v885, 2
      %v1179 = vsel %vm609, %v1176, %v1178
      %v1180 = vrot.slane %v886, 2
      %v1181 = vrot.slane %v887, 2
      %v1182 = vsel %vm609, %v1180, %v1181
      %v1183 = vrot.slane %v888, 2
      %v1184 = vsel %vm609, %v1181, %v1183
      %v1185 = vrot.slane %v889, 2
      %v1186 = vrot.slane %v890, 2
      %v1187 = vsel %vm609, %v1185, %v1186
      %v1188 = vrot.slane %v891, 2
      %v1189 = vsel %vm609, %v1186, %v1188
      %v1190 = vrot.slane %v892, 2
      %v1191 = vrot.slane %v893, 2
      %v1192 = vsel %vm609, %v1190, %v1191
      %v1193 = vrot.slane %v894, 2
      %v1194 = vsel %vm609, %v1191, %v1193
      %v1195 = vrot.slane %v895, 2
      %v1196 = vrot.slane %v896, 2
      %v1197 = vsel %vm609, %v1195, %v1196
      %v1198 = vrot.slane %v897, 2
      %v1199 = vsel %vm609, %v1196, %v1198
      %v1200 = vrot.slane %v898, 2
      %v1201 = vrot.slane %v899, 2
      %v1202 = vsel %vm609, %v1200, %v1201
      %v1203 = vrot.slane %v900, 2
      %v1204 = vsel %vm609, %v1201, %v1203
      %1205 = vrot.lane.b32.xlu0 %v1127, 8
      %v1206 = vpop.permute.xlu0 %1205
      %1207 = vrot.lane.b32.xlu0 %v1129, 8
      %v1208 = vpop.permute.xlu0 %1207
      %1209 = vrot.lane.b32.xlu0 %v1132, 8
      %v1210 = vpop.permute.xlu0 %1209
      %1211 = vrot.lane.b32.xlu0 %v1134, 8
      %v1212 = vpop.permute.xlu0 %1211
      %1213 = vrot.lane.b32.xlu0 %v1137, 8
      %v1214 = vpop.permute.xlu0 %1213
      %1215 = vrot.lane.b32.xlu0 %v1139, 8
      %v1216 = vpop.permute.xlu0 %1215
      %1217 = vrot.lane.b32.xlu0 %v1142, 8
      %v1218 = vpop.permute.xlu0 %1217
      %1219 = vrot.lane.b32.xlu0 %v1144, 8
      %v1220 = vpop.permute.xlu0 %1219
      %1221 = vrot.lane.b32.xlu0 %v1147, 8
      %v1222 = vpop.permute.xlu0 %1221
      %1223 = vrot.lane.b32.xlu0 %v1149, 8
      %v1224 = vpop.permute.xlu0 %1223
      %1225 = vrot.lane.b32.xlu0 %v1152, 8
      %v1226 = vpop.permute.xlu0 %1225
      %1227 = vrot.lane.b32.xlu0 %v1154, 8
      %v1228 = vpop.permute.xlu0 %1227
      %1229 = vrot.lane.b32.xlu0 %v1157, 8
      %v1230 = vpop.permute.xlu0 %1229
      %1231 = vrot.lane.b32.xlu0 %v1159, 8
      %v1232 = vpop.permute.xlu0 %1231
      %1233 = vrot.lane.b32.xlu0 %v1162, 8
      %v1234 = vpop.permute.xlu0 %1233
      %1235 = vrot.lane.b32.xlu0 %v1164, 8
      %v1236 = vpop.permute.xlu0 %1235
      %1237 = vrot.lane.b32.xlu0 %v1167, 8
      %v1238 = vpop.permute.xlu0 %1237
      %1239 = vrot.lane.b32.xlu0 %v1169, 8
      %v1240 = vpop.permute.xlu0 %1239
      %1241 = vrot.lane.b32.xlu0 %v1172, 8
      %v1242 = vpop.permute.xlu0 %1241
      %1243 = vrot.lane.b32.xlu0 %v1174, 8
      %v1244 = vpop.permute.xlu0 %1243
      %1245 = vrot.lane.b32.xlu0 %v1177, 8
      %v1246 = vpop.permute.xlu0 %1245
      %1247 = vrot.lane.b32.xlu0 %v1179, 8
      %v1248 = vpop.permute.xlu0 %1247
      %1249 = vrot.lane.b32.xlu0 %v1182, 8
      %v1250 = vpop.permute.xlu0 %1249
      %1251 = vrot.lane.b32.xlu0 %v1184, 8
      %v1252 = vpop.permute.xlu0 %1251
      %1253 = vrot.lane.b32.xlu0 %v1187, 8
      %v1254 = vpop.permute.xlu0 %1253
      %1255 = vrot.lane.b32.xlu0 %v1189, 8
      %v1256 = vpop.permute.xlu0 %1255
      %1257 = vrot.lane.b32.xlu0 %v1192, 8
      %v1258 = vpop.permute.xlu0 %1257
      %1259 = vrot.lane.b32.xlu0 %v1194, 8
      %v1260 = vpop.permute.xlu0 %1259
      %1261 = vrot.lane.b32.xlu0 %v1197, 8
      %v1262 = vpop.permute.xlu0 %1261
      %1263 = vrot.lane.b32.xlu0 %v1199, 8
      %v1264 = vpop.permute.xlu0 %1263
      %1265 = vrot.lane.b32.xlu0 %v1202, 8
      %v1266 = vpop.permute.xlu0 %1265
      %1267 = vrot.lane.b32.xlu0 %v1204, 8
      %v1268 = vpop.permute.xlu0 %1267
      %v1301 = vsel %vm215, %v853, %v1030
      %v1302 = vsel %vm215, %v854, %v1032
      %v1303 = vsel %vm215, %v856, %v1034
      %v1304 = vsel %vm215, %v857, %v1036
      %v1305 = vsel %vm215, %v859, %v1038
      %v1306 = vsel %vm215, %v860, %v1040
      %v1307 = vsel %vm215, %v862, %v1042
      %v1308 = vsel %vm215, %v863, %v1044
      %v1309 = vsel %vm215, %v865, %v1046
      %v1310 = vsel %vm215, %v866, %v1048
      %v1311 = vsel %vm215, %v868, %v1050
      %v1312 = vsel %vm215, %v869, %v1052
      %v1313 = vsel %vm215, %v871, %v1054
      %v1314 = vsel %vm215, %v872, %v1056
      %v1315 = vsel %vm215, %v874, %v1058
      %v1316 = vsel %vm215, %v875, %v1060
      %v1317 = vsel %vm215, %v877, %v1062
      %v1318 = vsel %vm215, %v878, %v1064
      %v1319 = vsel %vm215, %v880, %v1066
      %v1320 = vsel %vm215, %v881, %v1068
      %v1321 = vsel %vm215, %v883, %v1070
      %v1322 = vsel %vm215, %v884, %v1072
      %v1323 = vsel %vm215, %v886, %v1074
      %v1324 = vsel %vm215, %v887, %v1076
      %v1325 = vsel %vm215, %v889, %v1078
      %v1326 = vsel %vm215, %v890, %v1080
      %v1327 = vsel %vm215, %v892, %v1082
      %v1328 = vsel %vm215, %v893, %v1084
      %v1329 = vsel %vm215, %v895, %v1086
      %v1330 = vsel %vm215, %v896, %v1088
      %v1331 = vsel %vm215, %v898, %v1090
      %v1332 = vsel %vm215, %v899, %v1092
      %v1333 = vsel %vm818, %v1301, %v1206
      %v1334 = vsel %vm818, %v1302, %v1208
      %v1335 = vsel %vm818, %v1303, %v1210
      %v1336 = vsel %vm818, %v1304, %v1212
      %v1337 = vsel %vm818, %v1305, %v1214
      %v1338 = vsel %vm818, %v1306, %v1216
      %v1339 = vsel %vm818, %v1307, %v1218
      %v1340 = vsel %vm818, %v1308, %v1220
      %v1341 = vsel %vm818, %v1309, %v1222
      %v1342 = vsel %vm818, %v1310, %v1224
      %v1343 = vsel %vm818, %v1311, %v1226
      %v1344 = vsel %vm818, %v1312, %v1228
      %v1345 = vsel %vm818, %v1313, %v1230
      %v1346 = vsel %vm818, %v1314, %v1232
      %v1347 = vsel %vm818, %v1315, %v1234
      %v1348 = vsel %vm818, %v1316, %v1236
      %v1349 = vsel %vm818, %v1317, %v1238
      %v1350 = vsel %vm818, %v1318, %v1240
      %v1351 = vsel %vm818, %v1319, %v1242
      %v1352 = vsel %vm818, %v1320, %v1244
      %v1353 = vsel %vm818, %v1321, %v1246
      %v1354 = vsel %vm818, %v1322, %v1248
      %v1355 = vsel %vm818, %v1323, %v1250
      %v1356 = vsel %vm818, %v1324, %v1252
      %v1357 = vsel %vm818, %v1325, %v1254
      %v1358 = vsel %vm818, %v1326, %v1256
      %v1359 = vsel %vm818, %v1327, %v1258
      %v1360 = vsel %vm818, %v1328, %v1260
      %v1361 = vsel %vm818, %v1329, %v1262
      %v1362 = vsel %vm818, %v1330, %v1264
      %v1363 = vsel %vm818, %v1331, %v1266
      %v1364 = vsel %vm818, %v1332, %v1268
      %s1365 = scalar_lea.vmem %s1, 16
      %v1366 = vld [vmem:[%s1365] sm:$0xff]
      %v1367 = vld [vmem:[%s1365 + $0x8] sm:$0xf]
      %vm1368 = vcmask 97280
      %v1370 = vsel %vm1368, %v1333, 0
      %v1373 = vsel %vm1368, %v1334, 0
      %v1376 = vsel %vm1368, %v1335, 0
      %v1379 = vsel %vm1368, %v1336, 0
      %v1382 = vsel %vm1368, %v1337, 0
      %v1385 = vsel %vm1368, %v1338, 0
      %v1388 = vsel %vm1368, %v1339, 0
      %v1391 = vsel %vm1368, %v1340, 0
      %v1394 = vsel %vm1368, %v1341, 0
      %v1397 = vsel %vm1368, %v1342, 0
      %v1400 = vsel %vm1368, %v1343, 0
      %v1403 = vsel %vm1368, %v1344, 0
      %v1406 = vsel %vm1368, %v1345, 0
      %v1409 = vsel %vm1368, %v1346, 0
      %v1412 = vsel %vm1368, %v1347, 0
      %v1415 = vsel %vm1368, %v1348, 0
      %v1418 = vsel %vm1368, %v1349, 0
      %v1421 = vsel %vm1368, %v1350, 0
      %v1424 = vsel %vm1368, %v1351, 0
      %v1427 = vsel %vm1368, %v1352, 0
      %v1430 = vsel %vm1368, %v1353, 0
      %v1433 = vsel %vm1368, %v1354, 0
      %v1436 = vsel %vm1368, %v1355, 0
      %v1439 = vsel %vm1368, %v1356, 0
      %v1442 = vsel %vm1368, %v1357, 0
      %v1445 = vsel %vm1368, %v1358, 0
      %v1448 = vsel %vm1368, %v1359, 0
      %v1451 = vsel %vm1368, %v1360, 0
      %v1454 = vsel %vm1368, %v1361, 0
      %v1457 = vsel %vm1368, %v1362, 0
      %v1460 = vsel %vm1368, %v1363, 0
      %v1463 = vsel %vm1368, %v1364, 0
      %vm1465 = vcmask 1043456
      %v1467 = vsel %vm1465, %v1367, 0
      %1469 = vmatprep.subr.mxu0 0.0
      %1470 = vmatpush1.msra.mxu0 %v1366
      %1471 = vmatprep.subr.mxu0 0.0
      %1472 = vmatpush1.msra.mxu0 %v1467
      %1473 = vmatprep.subr.mxu0 0.0
      %1474 = vmatpush1.msra.mxu0 0.0
      %1475 = vmatprep.subr.mxu0 0.0
      %1476 = vmatpush1.msra.mxu0 0.0
      %1477 = vmatprep.subr.mxu0 0.0
      %1478 = vmatpush1.msra.mxu0 0.0
      %1479 = vmatprep.subr.mxu0 0.0
      %1480 = vmatpush1.msra.mxu0 0.0
      %1481 = vmatprep.subr.mxu0 0.0
      %1482 = vmatpush1.msra.mxu0 0.0
      %1483 = vmatprep.subr.mxu0 0.0
      %1484 = vmatpush1.msra.mxu0 0.0
      %1485 = vmatprep.subr.mxu0 0.0
      %1486 = vmatpush1.msra.mxu0 0.0
      %1487 = vmatprep.subr.mxu0 0.0
      %1488 = vmatpush1.msra.mxu0 0.0
      %1489 = vmatprep.subr.mxu0 0.0
      %1490 = vmatpush1.msra.mxu0 0.0
      %1491 = vmatprep.subr.mxu0 0.0
      %1492 = vmatpush1.msra.mxu0 0.0
      %1493 = vmatprep.subr.mxu0 0.0
      %1494 = vmatpush1.msra.mxu0 0.0
      %1495 = vmatprep.subr.mxu0 0.0
      %1496 = vmatpush1.msra.mxu0 0.0
      %1497 = vmatprep.subr.mxu0 0.0
      %1498 = vmatpush1.msra.mxu0 0.0
      %1499 = vmatprep.subr.mxu0 0.0
      %1500 = vmatpush1.msra.mxu0 0.0
      %1501 = vmatprep.subr.mxu0 0.0
      %1502 = vmatpush1.msra.mxu0 0.0
      %1503 = vmatprep.subr.mxu0 0.0
      %1504 = vmatpush1.msra.mxu0 0.0
      %1505 = vmatprep.subr.mxu0 0.0
      %1506 = vmatpush1.msra.mxu0 0.0
      %1507 = vmatprep.subr.mxu0 0.0
      %1508 = vmatpush1.msra.mxu0 0.0
      %1509 = vmatprep.subr.mxu0 0.0
      %1510 = vmatpush1.msra.mxu0 0.0
      %1511 = vmatprep.subr.mxu0 0.0
      %1512 = vmatpush1.msra.mxu0 0.0
      %1513 = vmatprep.subr.mxu0 0.0
      %1514 = vmatpush1.msra.mxu0 0.0
      %1515 = vmatprep.subr.mxu0 0.0
      %1516 = vmatpush1.msra.mxu0 0.0
      %1517 = vmatprep.subr.mxu0 0.0
      %1518 = vmatpush1.msra.mxu0 0.0
      %1519 = vmatprep.subr.mxu0 0.0
      %1520 = vmatpush1.msra.mxu0 0.0
      %1521 = vmatprep.subr.mxu0 0.0
      %1522 = vmatpush1.msra.mxu0 0.0
      %1523 = vmatprep.subr.mxu0 0.0
      %1524 = vmatpush1.msra.mxu0 0.0
      %1525 = vmatprep.subr.mxu0 0.0
      %1526 = vmatpush1.msra.mxu0 0.0
      %1527 = vmatprep.subr.mxu0 0.0
      %1528 = vmatpush1.msra.mxu0 0.0
      %1529 = vmatprep.subr.mxu0 0.0
      %1530 = vmatpush1.msra.mxu0 0.0
      %1531 = vmatprep.subr.mxu0 0.0
      %1532 = vmatpush1.msra.mxu0 0.0
      %1533 = vmatprep.mubr.f32.mxu0 0.0
      %1534 = vmatmul.mubr.f32.gmra.mrb[0].mxu0 %v1370
      %v1535 = vpop.f32.mrb[0].mxu0
      %v1536 = vadd.f32 0.0, %v1535
      %v1537 = vpop.f32.mrb[0].mxu0
      %1538 = vmatprep.mubr.f32.mxu0 0.0
      %1539 = vmatmul.mubr.f32.gmra.mrb[0].mxu0 %v1373
      %v1540 = vpop.f32.mrb[0].mxu0
      %v1541 = vadd.f32 0.0, %v1540
      %v1542 = vpop.f32.mrb[0].mxu0
      %1543 = vmatprep.mubr.f32.mxu0 0.0
      %1544 = vmatmul.mubr.f32.gmra.mrb[0].mxu0 %v1376
      %v1545 = vpop.f32.mrb[0].mxu0
      %v1546 = vadd.f32 0.0, %v1545
      %v1547 = vpop.f32.mrb[0].mxu0
      %1548 = vmatprep.mubr.f32.mxu0 0.0
      %1549 = vmatmul.mubr.f32.gmra.mrb[0].mxu0 %v1379
      %v1550 = vpop.f32.mrb[0].mxu0
      %v1551 = vadd.f32 0.0, %v1550
      %v1552 = vpop.f32.mrb[0].mxu0
      %1553 = vmatprep.mubr.f32.mxu0 0.0
      %1554 = vmatmul.mubr.f32.gmra.mrb[0].mxu0 %v1382
      %v1555 = vpop.f32.mrb[0].mxu0
      %v1556 = vadd.f32 0.0, %v1555
      %v1557 = vpop.f32.mrb[0].mxu0
      %1558 = vmatprep.mubr.f32.mxu0 0.0
      %1559 = vmatmul.mubr.f32.gmra.mrb[0].mxu0 %v1385
      %v1560 = vpop.f32.mrb[0].mxu0
      %v1561 = vadd.f32 0.0, %v1560
      %v1562 = vpop.f32.mrb[0].mxu0
      %1563 = vmatprep.mubr.f32.mxu0 0.0
      %1564 = vmatmul.mubr.f32.gmra.mrb[0].mxu0 %v1388
      %v1565 = vpop.f32.mrb[0].mxu0
      %v1566 = vadd.f32 0.0, %v1565
      %v1567 = vpop.f32.mrb[0].mxu0
      %1568 = vmatprep.mubr.f32.mxu0 0.0
      %1569 = vmatmul.mubr.f32.gmra.mrb[0].mxu0 %v1391
      %v1570 = vpop.f32.mrb[0].mxu0
      %v1571 = vadd.f32 0.0, %v1570
      %v1572 = vpop.f32.mrb[0].mxu0
      %1573 = vmatprep.mubr.f32.mxu0 0.0
      %1574 = vmatmul.mubr.f32.gmra.mrb[0].mxu0 %v1394
      %v1575 = vpop.f32.mrb[0].mxu0
      %v1576 = vadd.f32 0.0, %v1575
      %v1577 = vpop.f32.mrb[0].mxu0
      %1578 = vmatprep.mubr.f32.mxu0 0.0
      %1579 = vmatmul.mubr.f32.gmra.mrb[0].mxu0 %v1397
      %v1580 = vpop.f32.mrb[0].mxu0
      %v1581 = vadd.f32 0.0, %v1580
      %v1582 = vpop.f32.mrb[0].mxu0
      %1583 = vmatprep.mubr.f32.mxu0 0.0
      %1584 = vmatmul.mubr.f32.gmra.mrb[0].mxu0 %v1400
      %v1585 = vpop.f32.mrb[0].mxu0
      %v1586 = vadd.f32 0.0, %v1585
      %v1587 = vpop.f32.mrb[0].mxu0
      %1588 = vmatprep.mubr.f32.mxu0 0.0
      %1589 = vmatmul.mubr.f32.gmra.mrb[0].mxu0 %v1403
      %v1590 = vpop.f32.mrb[0].mxu0
      %v1591 = vadd.f32 0.0, %v1590
      %v1592 = vpop.f32.mrb[0].mxu0
      %1593 = vmatprep.mubr.f32.mxu0 0.0
      %1594 = vmatmul.mubr.f32.gmra.mrb[0].mxu0 %v1406
      %v1595 = vpop.f32.mrb[0].mxu0
      %v1596 = vadd.f32 0.0, %v1595
      %v1597 = vpop.f32.mrb[0].mxu0
      %1598 = vmatprep.mubr.f32.mxu0 0.0
      %1599 = vmatmul.mubr.f32.gmra.mrb[0].mxu0 %v1409
      %v1600 = vpop.f32.mrb[0].mxu0
      %v1601 = vadd.f32 0.0, %v1600
      %v1602 = vpop.f32.mrb[0].mxu0
      %1603 = vmatprep.mubr.f32.mxu0 0.0
      %1604 = vmatmul.mubr.f32.gmra.mrb[0].mxu0 %v1412
      %v1605 = vpop.f32.mrb[0].mxu0
      %v1606 = vadd.f32 0.0, %v1605
      %v1607 = vpop.f32.mrb[0].mxu0
      %1608 = vmatprep.mubr.f32.mxu0 0.0
      %1609 = vmatmul.mubr.f32.gmra.mrb[0].mxu0 %v1415
      %v1610 = vpop.f32.mrb[0].mxu0
      %v1611 = vadd.f32 0.0, %v1610
      %v1612 = vpop.f32.mrb[0].mxu0
      %1613 = vmatprep.mubr.f32.mxu0 0.0
      %1614 = vmatmul.mubr.f32.gmra.mrb[0].mxu0 %v1418
      %v1615 = vpop.f32.mrb[0].mxu0
      %v1616 = vadd.f32 0.0, %v1615
      %v1617 = vpop.f32.mrb[0].mxu0
      %1618 = vmatprep.mubr.f32.mxu0 0.0
      %1619 = vmatmul.mubr.f32.gmra.mrb[0].mxu0 %v1421
      %v1620 = vpop.f32.mrb[0].mxu0
      %v1621 = vadd.f32 0.0, %v1620
      %v1622 = vpop.f32.mrb[0].mxu0
      %1623 = vmatprep.mubr.f32.mxu0 0.0
      %1624 = vmatmul.mubr.f32.gmra.mrb[0].mxu0 %v1424
      %v1625 = vpop.f32.mrb[0].mxu0
      %v1626 = vadd.f32 0.0, %v1625
      %v1627 = vpop.f32.mrb[0].mxu0
      %1628 = vmatprep.mubr.f32.mxu0 0.0
      %1629 = vmatmul.mubr.f32.gmra.mrb[0].mxu0 %v1427
      %v1630 = vpop.f32.mrb[0].mxu0
      %v1631 = vadd.f32 0.0, %v1630
      %v1632 = vpop.f32.mrb[0].mxu0
      %1633 = vmatprep.mubr.f32.mxu0 0.0
      %1634 = vmatmul.mubr.f32.gmra.mrb[0].mxu0 %v1430
      %v1635 = vpop.f32.mrb[0].mxu0
      %v1636 = vadd.f32 0.0, %v1635
      %v1637 = vpop.f32.mrb[0].mxu0
      %1638 = vmatprep.mubr.f32.mxu0 0.0
      %1639 = vmatmul.mubr.f32.gmra.mrb[0].mxu0 %v1433
      %v1640 = vpop.f32.mrb[0].mxu0
      %v1641 = vadd.f32 0.0, %v1640
      %v1642 = vpop.f32.mrb[0].mxu0
      %1643 = vmatprep.mubr.f32.mxu0 0.0
      %1644 = vmatmul.mubr.f32.gmra.mrb[0].mxu0 %v1436
      %v1645 = vpop.f32.mrb[0].mxu0
      %v1646 = vadd.f32 0.0, %v1645
      %v1647 = vpop.f32.mrb[0].mxu0
      %1648 = vmatprep.mubr.f32.mxu0 0.0
      %1649 = vmatmul.mubr.f32.gmra.mrb[0].mxu0 %v1439
      %v1650 = vpop.f32.mrb[0].mxu0
      %v1651 = vadd.f32 0.0, %v1650
      %v1652 = vpop.f32.mrb[0].mxu0
      %1653 = vmatprep.mubr.f32.mxu0 0.0
      %1654 = vmatmul.mubr.f32.gmra.mrb[0].mxu0 %v1442
      %v1655 = vpop.f32.mrb[0].mxu0
      %v1656 = vadd.f32 0.0, %v1655
      %v1657 = vpop.f32.mrb[0].mxu0
      %1658 = vmatprep.mubr.f32.mxu0 0.0
      %1659 = vmatmul.mubr.f32.gmra.mrb[0].mxu0 %v1445
      %v1660 = vpop.f32.mrb[0].mxu0
      %v1661 = vadd.f32 0.0, %v1660
      %v1662 = vpop.f32.mrb[0].mxu0
      %1663 = vmatprep.mubr.f32.mxu0 0.0
      %1664 = vmatmul.mubr.f32.gmra.mrb[0].mxu0 %v1448
      %v1665 = vpop.f32.mrb[0].mxu0
      %v1666 = vadd.f32 0.0, %v1665
      %v1667 = vpop.f32.mrb[0].mxu0
      %1668 = vmatprep.mubr.f32.mxu0 0.0
      %1669 = vmatmul.mubr.f32.gmra.mrb[0].mxu0 %v1451
      %v1670 = vpop.f32.mrb[0].mxu0
      %v1671 = vadd.f32 0.0, %v1670
      %v1672 = vpop.f32.mrb[0].mxu0
      %1673 = vmatprep.mubr.f32.mxu0 0.0
      %1674 = vmatmul.mubr.f32.gmra.mrb[0].mxu0 %v1454
      %v1675 = vpop.f32.mrb[0].mxu0
      %v1676 = vadd.f32 0.0, %v1675
      %v1677 = vpop.f32.mrb[0].mxu0
      %1678 = vmatprep.mubr.f32.mxu0 0.0
      %1679 = vmatmul.mubr.f32.gmra.mrb[0].mxu0 %v1457
      %v1680 = vpop.f32.mrb[0].mxu0
      %v1681 = vadd.f32 0.0, %v1680
      %v1682 = vpop.f32.mrb[0].mxu0
      %1683 = vmatprep.mubr.f32.mxu0 0.0
      %1684 = vmatmul.mubr.f32.gmra.mrb[0].mxu0 %v1460
      %v1685 = vpop.f32.mrb[0].mxu0
      %v1686 = vadd.f32 0.0, %v1685
      %v1687 = vpop.f32.mrb[0].mxu0
      %1688 = vmatprep.mubr.f32.mxu0 0.0
      %1689 = vmatmul.mubr.f32.gmra.mrb[0].mxu0 %v1463
      %v1690 = vpop.f32.mrb[0].mxu0
      %v1691 = vadd.f32 0.0, %v1690
      %v1692 = vpop.f32.mrb[0].mxu0
      %1693 = vdwg.mxu0
      %v1695 = vsel %vm1368, %v819, 0
      %v1698 = vsel %vm1368, %v820, 0
      %v1701 = vsel %vm1368, %v821, 0
      %v1704 = vsel %vm1368, %v822, 0
      %v1707 = vsel %vm1368, %v823, 0
      %v1710 = vsel %vm1368, %v824, 0
      %v1713 = vsel %vm1368, %v825, 0
      %v1716 = vsel %vm1368, %v826, 0
      %v1719 = vsel %vm1368, %v827, 0
      %v1722 = vsel %vm1368, %v828, 0
      %v1725 = vsel %vm1368, %v829, 0
      %v1728 = vsel %vm1368, %v830, 0
      %v1731 = vsel %vm1368, %v831, 0
      %v1734 = vsel %vm1368, %v832, 0
      %v1737 = vsel %vm1368, %v833, 0
      %v1740 = vsel %vm1368, %v834, 0
      %v1743 = vsel %vm1368, %v835, 0
      %v1746 = vsel %vm1368, %v836, 0
      %v1749 = vsel %vm1368, %v837, 0
      %v1752 = vsel %vm1368, %v838, 0
      %v1755 = vsel %vm1368, %v839, 0
      %v1758 = vsel %vm1368, %v840, 0
      %v1761 = vsel %vm1368, %v841, 0
      %v1764 = vsel %vm1368, %v842, 0
      %v1767 = vsel %vm1368, %v843, 0
      %v1770 = vsel %vm1368, %v844, 0
      %v1773 = vsel %vm1368, %v845, 0
      %v1776 = vsel %vm1368, %v846, 0
      %v1779 = vsel %vm1368, %v847, 0
      %v1782 = vsel %vm1368, %v848, 0
      %v1785 = vsel %vm1368, %v849, 0
      %v1788 = vsel %vm1368, %v850, 0
      %v1791 = vsel %vm1465, %v852, 0
      %1793 = vmatprep.subr.mxu0 0.0
      %1794 = vmatpush1.msra.mxu0 %v851
      %1795 = vmatprep.subr.mxu0 0.0
      %1796 = vmatpush1.msra.mxu0 %v1791
      %1797 = vmatprep.subr.mxu0 0.0
      %1798 = vmatpush1.msra.mxu0 0.0
      %1799 = vmatprep.subr.mxu0 0.0
      %1800 = vmatpush1.msra.mxu0 0.0
      %1801 = vmatprep.subr.mxu0 0.0
      %1802 = vmatpush1.msra.mxu0 0.0
      %1803 = vmatprep.subr.mxu0 0.0
      %1804 = vmatpush1.msra.mxu0 0.0
      %1805 = vmatprep.subr.mxu0 0.0
      %1806 = vmatpush1.msra.mxu0 0.0
      %1807 = vmatprep.subr.mxu0 0.0
      %1808 = vmatpush1.msra.mxu0 0.0
      %1809 = vmatprep.subr.mxu0 0.0
      %1810 = vmatpush1.msra.mxu0 0.0
      %1811 = vmatprep.subr.mxu0 0.0
      %1812 = vmatpush1.msra.mxu0 0.0
      %1813 = vmatprep.subr.mxu0 0.0
      %1814 = vmatpush1.msra.mxu0 0.0
      %1815 = vmatprep.subr.mxu0 0.0
      %1816 = vmatpush1.msra.mxu0 0.0
      %1817 = vmatprep.subr.mxu0 0.0
      %1818 = vmatpush1.msra.mxu0 0.0
      %1819 = vmatprep.subr.mxu0 0.0
      %1820 = vmatpush1.msra.mxu0 0.0
      %1821 = vmatprep.subr.mxu0 0.0
      %1822 = vmatpush1.msra.mxu0 0.0
      %1823 = vmatprep.subr.mxu0 0.0
      %1824 = vmatpush1.msra.mxu0 0.0
      %1825 = vmatprep.subr.mxu0 0.0
      %1826 = vmatpush1.msra.mxu0 0.0
      %1827 = vmatprep.subr.mxu0 0.0
      %1828 = vmatpush1.msra.mxu0 0.0
      %1829 = vmatprep.subr.mxu0 0.0
      %1830 = vmatpush1.msra.mxu0 0.0
      %1831 = vmatprep.subr.mxu0 0.0
      %1832 = vmatpush1.msra.mxu0 0.0
      %1833 = vmatprep.subr.mxu0 0.0
      %1834 = vmatpush1.msra.mxu0 0.0
      %1835 = vmatprep.subr.mxu0 0.0
      %1836 = vmatpush1.msra.mxu0 0.0
      %1837 = vmatprep.subr.mxu0 0.0
      %1838 = vmatpush1.msra.mxu0 0.0
      %1839 = vmatprep.subr.mxu0 0.0
      %1840 = vmatpush1.msra.mxu0 0.0
      %1841 = vmatprep.subr.mxu0 0.0
      %1842 = vmatpush1.msra.mxu0 0.0
      %1843 = vmatprep.subr.mxu0 0.0
      %1844 = vmatpush1.msra.mxu0 0.0
      %1845 = vmatprep.subr.mxu0 0.0
      %1846 = vmatpush1.msra.mxu0 0.0
      %1847 = vmatprep.subr.mxu0 0.0
      %1848 = vmatpush1.msra.mxu0 0.0
      %1849 = vmatprep.subr.mxu0 0.0
      %1850 = vmatpush1.msra.mxu0 0.0
      %1851 = vmatprep.subr.mxu0 0.0
      %1852 = vmatpush1.msra.mxu0 0.0
      %1853 = vmatprep.subr.mxu0 0.0
      %1854 = vmatpush1.msra.mxu0 0.0
      %1855 = vmatprep.subr.mxu0 0.0
      %1856 = vmatpush1.msra.mxu0 0.0
      %1857 = vmatprep.mubr.f32.mxu0 0.0
      %1858 = vmatmul.mubr.f32.gmra.mrb[0].mxu0 %v1695
      %v1859 = vpop.f32.mrb[0].mxu0
      %v1860 = vadd.f32 %v1536, %v1859
      %v1861 = vpop.f32.mrb[0].mxu0
      %1862 = vmatprep.mubr.f32.mxu0 0.0
      %1863 = vmatmul.mubr.f32.gmra.mrb[0].mxu0 %v1698
      %v1864 = vpop.f32.mrb[0].mxu0
      %v1865 = vadd.f32 %v1541, %v1864
      %v1866 = vpop.f32.mrb[0].mxu0
      %1867 = vmatprep.mubr.f32.mxu0 0.0
      %1868 = vmatmul.mubr.f32.gmra.mrb[0].mxu0 %v1701
      %v1869 = vpop.f32.mrb[0].mxu0
      %v1870 = vadd.f32 %v1546, %v1869
      %v1871 = vpop.f32.mrb[0].mxu0
      %1872 = vmatprep.mubr.f32.mxu0 0.0
      %1873 = vmatmul.mubr.f32.gmra.mrb[0].mxu0 %v1704
      %v1874 = vpop.f32.mrb[0].mxu0
      %v1875 = vadd.f32 %v1551, %v1874
      %v1876 = vpop.f32.mrb[0].mxu0
      %1877 = vmatprep.mubr.f32.mxu0 0.0
      %1878 = vmatmul.mubr.f32.gmra.mrb[0].mxu0 %v1707
      %v1879 = vpop.f32.mrb[0].mxu0
      %v1880 = vadd.f32 %v1556, %v1879
      %v1881 = vpop.f32.mrb[0].mxu0
      %1882 = vmatprep.mubr.f32.mxu0 0.0
      %1883 = vmatmul.mubr.f32.gmra.mrb[0].mxu0 %v1710
      %v1884 = vpop.f32.mrb[0].mxu0
      %v1885 = vadd.f32 %v1561, %v1884
      %v1886 = vpop.f32.mrb[0].mxu0
      %1887 = vmatprep.mubr.f32.mxu0 0.0
      %1888 = vmatmul.mubr.f32.gmra.mrb[0].mxu0 %v1713
      %v1889 = vpop.f32.mrb[0].mxu0
      %v1890 = vadd.f32 %v1566, %v1889
      %v1891 = vpop.f32.mrb[0].mxu0
      %1892 = vmatprep.mubr.f32.mxu0 0.0
      %1893 = vmatmul.mubr.f32.gmra.mrb[0].mxu0 %v1716
      %v1894 = vpop.f32.mrb[0].mxu0
      %v1895 = vadd.f32 %v1571, %v1894
      %v1896 = vpop.f32.mrb[0].mxu0
      %1897 = vmatprep.mubr.f32.mxu0 0.0
      %1898 = vmatmul.mubr.f32.gmra.mrb[0].mxu0 %v1719
      %v1899 = vpop.f32.mrb[0].mxu0
      %v1900 = vadd.f32 %v1576, %v1899
      %v1901 = vpop.f32.mrb[0].mxu0
      %1902 = vmatprep.mubr.f32.mxu0 0.0
      %1903 = vmatmul.mubr.f32.gmra.mrb[0].mxu0 %v1722
      %v1904 = vpop.f32.mrb[0].mxu0
      %v1905 = vadd.f32 %v1581, %v1904
      %v1906 = vpop.f32.mrb[0].mxu0
      %1907 = vmatprep.mubr.f32.mxu0 0.0
      %1908 = vmatmul.mubr.f32.gmra.mrb[0].mxu0 %v1725
      %v1909 = vpop.f32.mrb[0].mxu0
      %v1910 = vadd.f32 %v1586, %v1909
      %v1911 = vpop.f32.mrb[0].mxu0
      %1912 = vmatprep.mubr.f32.mxu0 0.0
      %1913 = vmatmul.mubr.f32.gmra.mrb[0].mxu0 %v1728
      %v1914 = vpop.f32.mrb[0].mxu0
      %v1915 = vadd.f32 %v1591, %v1914
      %v1916 = vpop.f32.mrb[0].mxu0
      %1917 = vmatprep.mubr.f32.mxu0 0.0
      %1918 = vmatmul.mubr.f32.gmra.mrb[0].mxu0 %v1731
      %v1919 = vpop.f32.mrb[0].mxu0
      %v1920 = vadd.f32 %v1596, %v1919
      %v1921 = vpop.f32.mrb[0].mxu0
      %1922 = vmatprep.mubr.f32.mxu0 0.0
      %1923 = vmatmul.mubr.f32.gmra.mrb[0].mxu0 %v1734
      %v1924 = vpop.f32.mrb[0].mxu0
      %v1925 = vadd.f32 %v1601, %v1924
      %v1926 = vpop.f32.mrb[0].mxu0
      %1927 = vmatprep.mubr.f32.mxu0 0.0
      %1928 = vmatmul.mubr.f32.gmra.mrb[0].mxu0 %v1737
      %v1929 = vpop.f32.mrb[0].mxu0
      %v1930 = vadd.f32 %v1606, %v1929
      %v1931 = vpop.f32.mrb[0].mxu0
      %1932 = vmatprep.mubr.f32.mxu0 0.0
      %1933 = vmatmul.mubr.f32.gmra.mrb[0].mxu0 %v1740
      %v1934 = vpop.f32.mrb[0].mxu0
      %v1935 = vadd.f32 %v1611, %v1934
      %v1936 = vpop.f32.mrb[0].mxu0
      %1937 = vmatprep.mubr.f32.mxu0 0.0
      %1938 = vmatmul.mubr.f32.gmra.mrb[0].mxu0 %v1743
      %v1939 = vpop.f32.mrb[0].mxu0
      %v1940 = vadd.f32 %v1616, %v1939
      %v1941 = vpop.f32.mrb[0].mxu0
      %1942 = vmatprep.mubr.f32.mxu0 0.0
      %1943 = vmatmul.mubr.f32.gmra.mrb[0].mxu0 %v1746
      %v1944 = vpop.f32.mrb[0].mxu0
      %v1945 = vadd.f32 %v1621, %v1944
      %v1946 = vpop.f32.mrb[0].mxu0
      %1947 = vmatprep.mubr.f32.mxu0 0.0
      %1948 = vmatmul.mubr.f32.gmra.mrb[0].mxu0 %v1749
      %v1949 = vpop.f32.mrb[0].mxu0
      %v1950 = vadd.f32 %v1626, %v1949
      %v1951 = vpop.f32.mrb[0].mxu0
      %1952 = vmatprep.mubr.f32.mxu0 0.0
      %1953 = vmatmul.mubr.f32.gmra.mrb[0].mxu0 %v1752
      %v1954 = vpop.f32.mrb[0].mxu0
      %v1955 = vadd.f32 %v1631, %v1954
      %v1956 = vpop.f32.mrb[0].mxu0
      %1957 = vmatprep.mubr.f32.mxu0 0.0
      %1958 = vmatmul.mubr.f32.gmra.mrb[0].mxu0 %v1755
      %v1959 = vpop.f32.mrb[0].mxu0
      %v1960 = vadd.f32 %v1636, %v1959
      %v1961 = vpop.f32.mrb[0].mxu0
      %1962 = vmatprep.mubr.f32.mxu0 0.0
      %1963 = vmatmul.mubr.f32.gmra.mrb[0].mxu0 %v1758
      %v1964 = vpop.f32.mrb[0].mxu0
      %v1965 = vadd.f32 %v1641, %v1964
      %v1966 = vpop.f32.mrb[0].mxu0
      %1967 = vmatprep.mubr.f32.mxu0 0.0
      %1968 = vmatmul.mubr.f32.gmra.mrb[0].mxu0 %v1761
      %v1969 = vpop.f32.mrb[0].mxu0
      %v1970 = vadd.f32 %v1646, %v1969
      %v1971 = vpop.f32.mrb[0].mxu0
      %1972 = vmatprep.mubr.f32.mxu0 0.0
      %1973 = vmatmul.mubr.f32.gmra.mrb[0].mxu0 %v1764
      %v1974 = vpop.f32.mrb[0].mxu0
      %v1975 = vadd.f32 %v1651, %v1974
      %v1976 = vpop.f32.mrb[0].mxu0
      %1977 = vmatprep.mubr.f32.mxu0 0.0
      %1978 = vmatmul.mubr.f32.gmra.mrb[0].mxu0 %v1767
      %v1979 = vpop.f32.mrb[0].mxu0
      %v1980 = vadd.f32 %v1656, %v1979
      %v1981 = vpop.f32.mrb[0].mxu0
      %1982 = vmatprep.mubr.f32.mxu0 0.0
      %1983 = vmatmul.mubr.f32.gmra.mrb[0].mxu0 %v1770
      %v1984 = vpop.f32.mrb[0].mxu0
      %v1985 = vadd.f32 %v1661, %v1984
      %v1986 = vpop.f32.mrb[0].mxu0
      %1987 = vmatprep.mubr.f32.mxu0 0.0
      %1988 = vmatmul.mubr.f32.gmra.mrb[0].mxu0 %v1773
      %v1989 = vpop.f32.mrb[0].mxu0
      %v1990 = vadd.f32 %v1666, %v1989
      %v1991 = vpop.f32.mrb[0].mxu0
      %1992 = vmatprep.mubr.f32.mxu0 0.0
      %1993 = vmatmul.mubr.f32.gmra.mrb[0].mxu0 %v1776
      %v1994 = vpop.f32.mrb[0].mxu0
      %v1995 = vadd.f32 %v1671, %v1994
      %v1996 = vpop.f32.mrb[0].mxu0
      %1997 = vmatprep.mubr.f32.mxu0 0.0
      %1998 = vmatmul.mubr.f32.gmra.mrb[0].mxu0 %v1779
      %v1999 = vpop.f32.mrb[0].mxu0
      %v2000 = vadd.f32 %v1676, %v1999
      %v2001 = vpop.f32.mrb[0].mxu0
      %2002 = vmatprep.mubr.f32.mxu0 0.0
      %2003 = vmatmul.mubr.f32.gmra.mrb[0].mxu0 %v1782
      %v2004 = vpop.f32.mrb[0].mxu0
      %v2005 = vadd.f32 %v1681, %v2004
      %v2006 = vpop.f32.mrb[0].mxu0
      %2007 = vmatprep.mubr.f32.mxu0 0.0
      %2008 = vmatmul.mubr.f32.gmra.mrb[0].mxu0 %v1785
      %v2009 = vpop.f32.mrb[0].mxu0
      %v2010 = vadd.f32 %v1686, %v2009
      %v2011 = vpop.f32.mrb[0].mxu0
      %2012 = vmatprep.mubr.f32.mxu0 0.0
      %2013 = vmatmul.mubr.f32.gmra.mrb[0].mxu0 %v1788
      %v2014 = vpop.f32.mrb[0].mxu0
      %v2015 = vadd.f32 %v1691, %v2014
      %v2016 = vpop.f32.mrb[0].mxu0
      %2017 = vdwg.mxu0
      %s2018 = scalar_lea.vmem [#allocation2], 48
      %v2019 = vld [vmem:[%s2018] sm:$0xff]
      %v2020 = vld [vmem:[%s2018 + $0x8] sm:$0xff]
      %v2021 = vld [vmem:[%s2018 + $0x10] sm:$0x3]
      %v2022 = vld [vmem:[%s2018 + $0x18] sm:$0xff]
      %v2023 = vld [vmem:[%s2018 + $0x20] sm:$0xff]
      %v2024 = vld [vmem:[%s2018 + $0x28] sm:$0x3]
      %v2025 = vld [vmem:[%s2018 + $0x30] sm:$0xff]
      %v2026 = vld [vmem:[%s2018 + $0x38] sm:$0xff]
      %v2027 = vld [vmem:[%s2018 + $0x40] sm:$0x3]
      %v2028 = vld [vmem:[%s2018 + $0x48] sm:$0xff]
      %v2029 = vld [vmem:[%s2018 + $0x50] sm:$0xff]
      %v2030 = vld [vmem:[%s2018 + $0x58] sm:$0x3]
      %v2031 = vld [vmem:[%s2018 + $0x60] sm:$0xff]
      %v2032 = vld [vmem:[%s2018 + $0x68] sm:$0xff]
      %v2033 = vld [vmem:[%s2018 + $0x70] sm:$0x3]
      %v2034 = vld [vmem:[%s2018 + $0x78] sm:$0xff]
      %v2035 = vld [vmem:[%s2018 + $0x80] sm:$0xff]
      %v2036 = vld [vmem:[%s2018 + $0x88] sm:$0x3]
      %v2037 = vld [vmem:[%s2018 + $0x90] sm:$0xff]
      %v2038 = vld [vmem:[%s2018 + $0x98] sm:$0xff]
      %v2039 = vld [vmem:[%s2018 + $0xa0] sm:$0x3]
      %v2040 = vld [vmem:[%s2018 + $0xa8] sm:$0xff]
      %v2041 = vld [vmem:[%s2018 + $0xb0] sm:$0xff]
      %v2042 = vld [vmem:[%s2018 + $0xb8] sm:$0x3]
      %v2043 = vld [vmem:[%s2018 + $0xc0] sm:$0xff]
      %v2044 = vld [vmem:[%s2018 + $0xc8] sm:$0xff]
      %v2045 = vld [vmem:[%s2018 + $0xd0] sm:$0x3]
      %v2046 = vld [vmem:[%s2018 + $0xd8] sm:$0xff]
      %v2047 = vld [vmem:[%s2018 + $0xe0] sm:$0xff]
      %v2048 = vld [vmem:[%s2018 + $0xe8] sm:$0x3]
      %v2049 = vld [vmem:[%s2018 + $0xf0] sm:$0xff]
      %v2050 = vld [vmem:[%s2018 + $0xf8] sm:$0xff]
      %v2051 = vld [vmem:[%s2018 + $0x100] sm:$0x3]
      %v2052 = vld [vmem:[%s2018 + $0x108] sm:$0xff]
      %v2053 = vld [vmem:[%s2018 + $0x110] sm:$0xff]
      %v2054 = vld [vmem:[%s2018 + $0x118] sm:$0x3]
      %v2055 = vld [vmem:[%s2018 + $0x120] sm:$0xff]
      %v2056 = vld [vmem:[%s2018 + $0x128] sm:$0xff]
      %v2057 = vld [vmem:[%s2018 + $0x130] sm:$0x3]
      %v2058 = vld [vmem:[%s2018 + $0x138] sm:$0xff]
      %v2059 = vld [vmem:[%s2018 + $0x140] sm:$0xff]
      %v2060 = vld [vmem:[%s2018 + $0x148] sm:$0x3]
      %v2061 = vld [vmem:[%s2018 + $0x150] sm:$0xff]
      %v2062 = vld [vmem:[%s2018 + $0x158] sm:$0xff]
      %v2063 = vld [vmem:[%s2018 + $0x160] sm:$0x3]
      %v2064 = vld [vmem:[%s2018 + $0x168] sm:$0xff]
      %v2065 = vld [vmem:[%s2018 + $0x170] sm:$0xff]
      %v2066 = vld [vmem:[%s2018 + $0x178] sm:$0x3]
      %v2115 = vrot.slane %v2019, 1
      %v2116 = vrot.slane %v2020, 1
      %v2117 = vsel %vm432, %v2115, %v2116
      %v2118 = vrot.slane %v2021, 1
      %v2119 = vsel %vm432, %v2116, %v2118
      %v2120 = vrot.slane %v2022, 1
      %v2121 = vrot.slane %v2023, 1
      %v2122 = vsel %vm432, %v2120, %v2121
      %v2123 = vrot.slane %v2024, 1
      %v2124 = vsel %vm432, %v2121, %v2123
      %v2125 = vrot.slane %v2025, 1
      %v2126 = vrot.slane %v2026, 1
      %v2127 = vsel %vm432, %v2125, %v2126
      %v2128 = vrot.slane %v2027, 1
      %v2129 = vsel %vm432, %v2126, %v2128
      %v2130 = vrot.slane %v2028, 1
      %v2131 = vrot.slane %v2029, 1
      %v2132 = vsel %vm432, %v2130, %v2131
      %v2133 = vrot.slane %v2030, 1
      %v2134 = vsel %vm432, %v2131, %v2133
      %v2135 = vrot.slane %v2031, 1
      %v2136 = vrot.slane %v2032, 1
      %v2137 = vsel %vm432, %v2135, %v2136
      %v2138 = vrot.slane %v2033, 1
      %v2139 = vsel %vm432, %v2136, %v2138
      %v2140 = vrot.slane %v2034, 1
      %v2141 = vrot.slane %v2035, 1
      %v2142 = vsel %vm432, %v2140, %v2141
      %v2143 = vrot.slane %v2036, 1
      %v2144 = vsel %vm432, %v2141, %v2143
      %v2145 = vrot.slane %v2037, 1
      %v2146 = vrot.slane %v2038, 1
      %v2147 = vsel %vm432, %v2145, %v2146
      %v2148 = vrot.slane %v2039, 1
      %v2149 = vsel %vm432, %v2146, %v2148
      %v2150 = vrot.slane %v2040, 1
      %v2151 = vrot.slane %v2041, 1
      %v2152 = vsel %vm432, %v2150, %v2151
      %v2153 = vrot.slane %v2042, 1
      %v2154 = vsel %vm432, %v2151, %v2153
      %v2155 = vrot.slane %v2043, 1
      %v2156 = vrot.slane %v2044, 1
      %v2157 = vsel %vm432, %v2155, %v2156
      %v2158 = vrot.slane %v2045, 1
      %v2159 = vsel %vm432, %v2156, %v2158
      %v2160 = vrot.slane %v2046, 1
      %v2161 = vrot.slane %v2047, 1
      %v2162 = vsel %vm432, %v2160, %v2161
      %v2163 = vrot.slane %v2048, 1
      %v2164 = vsel %vm432, %v2161, %v2163
      %v2165 = vrot.slane %v2049, 1
      %v2166 = vrot.slane %v2050, 1
      %v2167 = vsel %vm432, %v2165, %v2166
      %v2168 = vrot.slane %v2051, 1
      %v2169 = vsel %vm432, %v2166, %v2168
      %v2170 = vrot.slane %v2052, 1
      %v2171 = vrot.slane %v2053, 1
      %v2172 = vsel %vm432, %v2170, %v2171
      %v2173 = vrot.slane %v2054, 1
      %v2174 = vsel %vm432, %v2171, %v2173
      %v2175 = vrot.slane %v2055, 1
      %v2176 = vrot.slane %v2056, 1
      %v2177 = vsel %vm432, %v2175, %v2176
      %v2178 = vrot.slane %v2057, 1
      %v2179 = vsel %vm432, %v2176, %v2178
      %v2180 = vrot.slane %v2058, 1
      %v2181 = vrot.slane %v2059, 1
      %v2182 = vsel %vm432, %v2180, %v2181
      %v2183 = vrot.slane %v2060, 1
      %v2184 = vsel %vm432, %v2181, %v2183
      %v2185 = vrot.slane %v2061, 1
      %v2186 = vrot.slane %v2062, 1
      %v2187 = vsel %vm432, %v2185, %v2186
      %v2188 = vrot.slane %v2063, 1
      %v2189 = vsel %vm432, %v2186, %v2188
      %v2190 = vrot.slane %v2064, 1
      %v2191 = vrot.slane %v2065, 1
      %v2192 = vsel %vm432, %v2190, %v2191
      %v2193 = vrot.slane %v2066, 1
      %v2194 = vsel %vm432, %v2191, %v2193
      %2195 = vrot.lane.b32.xlu0 %v2117, 4
      %v2196 = vpop.permute.xlu0 %2195
      %2197 = vrot.lane.b32.xlu0 %v2119, 4
      %v2198 = vpop.permute.xlu0 %2197
      %2199 = vrot.lane.b32.xlu0 %v2122, 4
      %v2200 = vpop.permute.xlu0 %2199
      %2201 = vrot.lane.b32.xlu0 %v2124, 4
      %v2202 = vpop.permute.xlu0 %2201
      %2203 = vrot.lane.b32.xlu0 %v2127, 4
      %v2204 = vpop.permute.xlu0 %2203
      %2205 = vrot.lane.b32.xlu0 %v2129, 4
      %v2206 = vpop.permute.xlu0 %2205
      %2207 = vrot.lane.b32.xlu0 %v2132, 4
      %v2208 = vpop.permute.xlu0 %2207
      %2209 = vrot.lane.b32.xlu0 %v2134, 4
      %v2210 = vpop.permute.xlu0 %2209
      %2211 = vrot.lane.b32.xlu0 %v2137, 4
      %v2212 = vpop.permute.xlu0 %2211
      %2213 = vrot.lane.b32.xlu0 %v2139, 4
      %v2214 = vpop.permute.xlu0 %2213
      %2215 = vrot.lane.b32.xlu0 %v2142, 4
      %v2216 = vpop.permute.xlu0 %2215
      %2217 = vrot.lane.b32.xlu0 %v2144, 4
      %v2218 = vpop.permute.xlu0 %2217
      %2219 = vrot.lane.b32.xlu0 %v2147, 4
      %v2220 = vpop.permute.xlu0 %2219
      %2221 = vrot.lane.b32.xlu0 %v2149, 4
      %v2222 = vpop.permute.xlu0 %2221
      %2223 = vrot.lane.b32.xlu0 %v2152, 4
      %v2224 = vpop.permute.xlu0 %2223
      %2225 = vrot.lane.b32.xlu0 %v2154, 4
      %v2226 = vpop.permute.xlu0 %2225
      %2227 = vrot.lane.b32.xlu0 %v2157, 4
      %v2228 = vpop.permute.xlu0 %2227
      %2229 = vrot.lane.b32.xlu0 %v2159, 4
      %v2230 = vpop.permute.xlu0 %2229
      %2231 = vrot.lane.b32.xlu0 %v2162, 4
      %v2232 = vpop.permute.xlu0 %2231
      %2233 = vrot.lane.b32.xlu0 %v2164, 4
      %v2234 = vpop.permute.xlu0 %2233
      %2235 = vrot.lane.b32.xlu0 %v2167, 4
      %v2236 = vpop.permute.xlu0 %2235
      %2237 = vrot.lane.b32.xlu0 %v2169, 4
      %v2238 = vpop.permute.xlu0 %2237
      %2239 = vrot.lane.b32.xlu0 %v2172, 4
      %v2240 = vpop.permute.xlu0 %2239
      %2241 = vrot.lane.b32.xlu0 %v2174, 4
      %v2242 = vpop.permute.xlu0 %2241
      %2243 = vrot.lane.b32.xlu0 %v2177, 4
      %v2244 = vpop.permute.xlu0 %2243
      %2245 = vrot.lane.b32.xlu0 %v2179, 4
      %v2246 = vpop.permute.xlu0 %2245
      %2247 = vrot.lane.b32.xlu0 %v2182, 4
      %v2248 = vpop.permute.xlu0 %2247
      %2249 = vrot.lane.b32.xlu0 %v2184, 4
      %v2250 = vpop.permute.xlu0 %2249
      %2251 = vrot.lane.b32.xlu0 %v2187, 4
      %v2252 = vpop.permute.xlu0 %2251
      %2253 = vrot.lane.b32.xlu0 %v2189, 4
      %v2254 = vpop.permute.xlu0 %2253
      %2255 = vrot.lane.b32.xlu0 %v2192, 4
      %v2256 = vpop.permute.xlu0 %2255
      %2257 = vrot.lane.b32.xlu0 %v2194, 4
      %v2258 = vpop.permute.xlu0 %2257
      %v2291 = vrot.slane %v2019, 2
      %v2292 = vrot.slane %v2020, 2
      %v2293 = vsel %vm609, %v2291, %v2292
      %v2294 = vrot.slane %v2021, 2
      %v2295 = vsel %vm609, %v2292, %v2294
      %v2296 = vrot.slane %v2022, 2
      %v2297 = vrot.slane %v2023, 2
      %v2298 = vsel %vm609, %v2296, %v2297
      %v2299 = vrot.slane %v2024, 2
      %v2300 = vsel %vm609, %v2297, %v2299
      %v2301 = vrot.slane %v2025, 2
      %v2302 = vrot.slane %v2026, 2
      %v2303 = vsel %vm609, %v2301, %v2302
      %v2304 = vrot.slane %v2027, 2
      %v2305 = vsel %vm609, %v2302, %v2304
      %v2306 = vrot.slane %v2028, 2
      %v2307 = vrot.slane %v2029, 2
      %v2308 = vsel %vm609, %v2306, %v2307
      %v2309 = vrot.slane %v2030, 2
      %v2310 = vsel %vm609, %v2307, %v2309
      %v2311 = vrot.slane %v2031, 2
      %v2312 = vrot.slane %v2032, 2
      %v2313 = vsel %vm609, %v2311, %v2312
      %v2314 = vrot.slane %v2033, 2
      %v2315 = vsel %vm609, %v2312, %v2314
      %v2316 = vrot.slane %v2034, 2
      %v2317 = vrot.slane %v2035, 2
      %v2318 = vsel %vm609, %v2316, %v2317
      %v2319 = vrot.slane %v2036, 2
      %v2320 = vsel %vm609, %v2317, %v2319
      %v2321 = vrot.slane %v2037, 2
      %v2322 = vrot.slane %v2038, 2
      %v2323 = vsel %vm609, %v2321, %v2322
      %v2324 = vrot.slane %v2039, 2
      %v2325 = vsel %vm609, %v2322, %v2324
      %v2326 = vrot.slane %v2040, 2
      %v2327 = vrot.slane %v2041, 2
      %v2328 = vsel %vm609, %v2326, %v2327
      %v2329 = vrot.slane %v2042, 2
      %v2330 = vsel %vm609, %v2327, %v2329
      %v2331 = vrot.slane %v2043, 2
      %v2332 = vrot.slane %v2044, 2
      %v2333 = vsel %vm609, %v2331, %v2332
      %v2334 = vrot.slane %v2045, 2
      %v2335 = vsel %vm609, %v2332, %v2334
      %v2336 = vrot.slane %v2046, 2
      %v2337 = vrot.slane %v2047, 2
      %v2338 = vsel %vm609, %v2336, %v2337
      %v2339 = vrot.slane %v2048, 2
      %v2340 = vsel %vm609, %v2337, %v2339
      %v2341 = vrot.slane %v2049, 2
      %v2342 = vrot.slane %v2050, 2
      %v2343 = vsel %vm609, %v2341, %v2342
      %v2344 = vrot.slane %v2051, 2
      %v2345 = vsel %vm609, %v2342, %v2344
      %v2346 = vrot.slane %v2052, 2
      %v2347 = vrot.slane %v2053, 2
      %v2348 = vsel %vm609, %v2346, %v2347
      %v2349 = vrot.slane %v2054, 2
      %v2350 = vsel %vm609, %v2347, %v2349
      %v2351 = vrot.slane %v2055, 2
      %v2352 = vrot.slane %v2056, 2
      %v2353 = vsel %vm609, %v2351, %v2352
      %v2354 = vrot.slane %v2057, 2
      %v2355 = vsel %vm609, %v2352, %v2354
      %v2356 = vrot.slane %v2058, 2
      %v2357 = vrot.slane %v2059, 2
      %v2358 = vsel %vm609, %v2356, %v2357
      %v2359 = vrot.slane %v2060, 2
      %v2360 = vsel %vm609, %v2357, %v2359
      %v2361 = vrot.slane %v2061, 2
      %v2362 = vrot.slane %v2062, 2
      %v2363 = vsel %vm609, %v2361, %v2362
      %v2364 = vrot.slane %v2063, 2
      %v2365 = vsel %vm609, %v2362, %v2364
      %v2366 = vrot.slane %v2064, 2
      %v2367 = vrot.slane %v2065, 2
      %v2368 = vsel %vm609, %v2366, %v2367
      %v2369 = vrot.slane %v2066, 2
      %v2370 = vsel %vm609, %v2367, %v2369
      %2371 = vrot.lane.b32.xlu0 %v2293, 8
      %v2372 = vpop.permute.xlu0 %2371
      %2373 = vrot.lane.b32.xlu0 %v2295, 8
      %v2374 = vpop.permute.xlu0 %2373
      %2375 = vrot.lane.b32.xlu0 %v2298, 8
      %v2376 = vpop.permute.xlu0 %2375
      %2377 = vrot.lane.b32.xlu0 %v2300, 8
      %v2378 = vpop.permute.xlu0 %2377
      %2379 = vrot.lane.b32.xlu0 %v2303, 8
      %v2380 = vpop.permute.xlu0 %2379
      %2381 = vrot.lane.b32.xlu0 %v2305, 8
      %v2382 = vpop.permute.xlu0 %2381
      %2383 = vrot.lane.b32.xlu0 %v2308, 8
      %v2384 = vpop.permute.xlu0 %2383
      %2385 = vrot.lane.b32.xlu0 %v2310, 8
      %v2386 = vpop.permute.xlu0 %2385
      %2387 = vrot.lane.b32.xlu0 %v2313, 8
      %v2388 = vpop.permute.xlu0 %2387
      %2389 = vrot.lane.b32.xlu0 %v2315, 8
      %v2390 = vpop.permute.xlu0 %2389
      %2391 = vrot.lane.b32.xlu0 %v2318, 8
      %v2392 = vpop.permute.xlu0 %2391
      %2393 = vrot.lane.b32.xlu0 %v2320, 8
      %v2394 = vpop.permute.xlu0 %2393
      %2395 = vrot.lane.b32.xlu0 %v2323, 8
      %v2396 = vpop.permute.xlu0 %2395
      %2397 = vrot.lane.b32.xlu0 %v2325, 8
      %v2398 = vpop.permute.xlu0 %2397
      %2399 = vrot.lane.b32.xlu0 %v2328, 8
      %v2400 = vpop.permute.xlu0 %2399
      %2401 = vrot.lane.b32.xlu0 %v2330, 8
      %v2402 = vpop.permute.xlu0 %2401
      %2403 = vrot.lane.b32.xlu0 %v2333, 8
      %v2404 = vpop.permute.xlu0 %2403
      %2405 = vrot.lane.b32.xlu0 %v2335, 8
      %v2406 = vpop.permute.xlu0 %2405
      %2407 = vrot.lane.b32.xlu0 %v2338, 8
      %v2408 = vpop.permute.xlu0 %2407
      %2409 = vrot.lane.b32.xlu0 %v2340, 8
      %v2410 = vpop.permute.xlu0 %2409
      %2411 = vrot.lane.b32.xlu0 %v2343, 8
      %v2412 = vpop.permute.xlu0 %2411
      %2413 = vrot.lane.b32.xlu0 %v2345, 8
      %v2414 = vpop.permute.xlu0 %2413
      %2415 = vrot.lane.b32.xlu0 %v2348, 8
      %v2416 = vpop.permute.xlu0 %2415
      %2417 = vrot.lane.b32.xlu0 %v2350, 8
      %v2418 = vpop.permute.xlu0 %2417
      %2419 = vrot.lane.b32.xlu0 %v2353, 8
      %v2420 = vpop.permute.xlu0 %2419
      %2421 = vrot.lane.b32.xlu0 %v2355, 8
      %v2422 = vpop.permute.xlu0 %2421
      %2423 = vrot.lane.b32.xlu0 %v2358, 8
      %v2424 = vpop.permute.xlu0 %2423
      %2425 = vrot.lane.b32.xlu0 %v2360, 8
      %v2426 = vpop.permute.xlu0 %2425
      %2427 = vrot.lane.b32.xlu0 %v2363, 8
      %v2428 = vpop.permute.xlu0 %2427
      %2429 = vrot.lane.b32.xlu0 %v2365, 8
      %v2430 = vpop.permute.xlu0 %2429
      %2431 = vrot.lane.b32.xlu0 %v2368, 8
      %v2432 = vpop.permute.xlu0 %2431
      %2433 = vrot.lane.b32.xlu0 %v2370, 8
      %v2434 = vpop.permute.xlu0 %2433
      %v2467 = vsel %vm215, %v2019, %v2196
      %v2468 = vsel %vm215, %v2020, %v2198
      %v2469 = vsel %vm215, %v2022, %v2200
      %v2470 = vsel %vm215, %v2023, %v2202
      %v2471 = vsel %vm215, %v2025, %v2204
      %v2472 = vsel %vm215, %v2026, %v2206
      %v2473 = vsel %vm215, %v2028, %v2208
      %v2474 = vsel %vm215, %v2029, %v2210
      %v2475 = vsel %vm215, %v2031, %v2212
      %v2476 = vsel %vm215, %v2032, %v2214
      %v2477 = vsel %vm215, %v2034, %v2216
      %v2478 = vsel %vm215, %v2035, %v2218
      %v2479 = vsel %vm215, %v2037, %v2220
      %v2480 = vsel %vm215, %v2038, %v2222
      %v2481 = vsel %vm215, %v2040, %v2224
      %v2482 = vsel %vm215, %v2041, %v2226
      %v2483 = vsel %vm215, %v2043, %v2228
      %v2484 = vsel %vm215, %v2044, %v2230
      %v2485 = vsel %vm215, %v2046, %v2232
      %v2486 = vsel %vm215, %v2047, %v2234
      %v2487 = vsel %vm215, %v2049, %v2236
      %v2488 = vsel %vm215, %v2050, %v2238
      %v2489 = vsel %vm215, %v2052, %v2240
      %v2490 = vsel %vm215, %v2053, %v2242
      %v2491 = vsel %vm215, %v2055, %v2244
      %v2492 = vsel %vm215, %v2056, %v2246
      %v2493 = vsel %vm215, %v2058, %v2248
      %v2494 = vsel %vm215, %v2059, %v2250
      %v2495 = vsel %vm215, %v2061, %v2252
      %v2496 = vsel %vm215, %v2062, %v2254
      %v2497 = vsel %vm215, %v2064, %v2256
      %v2498 = vsel %vm215, %v2065, %v2258
      %v2499 = vsel %vm818, %v2467, %v2372
      %v2500 = vsel %vm818, %v2468, %v2374
      %v2501 = vsel %vm818, %v2469, %v2376
      %v2502 = vsel %vm818, %v2470, %v2378
      %v2503 = vsel %vm818, %v2471, %v2380
      %v2504 = vsel %vm818, %v2472, %v2382
      %v2505 = vsel %vm818, %v2473, %v2384
      %v2506 = vsel %vm818, %v2474, %v2386
      %v2507 = vsel %vm818, %v2475, %v2388
      %v2508 = vsel %vm818, %v2476, %v2390
      %v2509 = vsel %vm818, %v2477, %v2392
      %v2510 = vsel %vm818, %v2478, %v2394
      %v2511 = vsel %vm818, %v2479, %v2396
      %v2512 = vsel %vm818, %v2480, %v2398
      %v2513 = vsel %vm818, %v2481, %v2400
      %v2514 = vsel %vm818, %v2482, %v2402
      %v2515 = vsel %vm818, %v2483, %v2404
      %v2516 = vsel %vm818, %v2484, %v2406
      %v2517 = vsel %vm818, %v2485, %v2408
      %v2518 = vsel %vm818, %v2486, %v2410
      %v2519 = vsel %vm818, %v2487, %v2412
      %v2520 = vsel %vm818, %v2488, %v2414
      %v2521 = vsel %vm818, %v2489, %v2416
      %v2522 = vsel %vm818, %v2490, %v2418
      %v2523 = vsel %vm818, %v2491, %v2420
      %v2524 = vsel %vm818, %v2492, %v2422
      %v2525 = vsel %vm818, %v2493, %v2424
      %v2526 = vsel %vm818, %v2494, %v2426
      %v2527 = vsel %vm818, %v2495, %v2428
      %v2528 = vsel %vm818, %v2496, %v2430
      %v2529 = vsel %vm818, %v2497, %v2432
      %v2530 = vsel %vm818, %v2498, %v2434
      %s2531 = scalar_lea.vmem %s1, 32
      %v2532 = vld [vmem:[%s2531] sm:$0xff]
      %v2533 = vld [vmem:[%s2531 + $0x8] sm:$0xf]
      %v2535 = vsel %vm1368, %v2499, 0
      %v2538 = vsel %vm1368, %v2500, 0
      %v2541 = vsel %vm1368, %v2501, 0
      %v2544 = vsel %vm1368, %v2502, 0
      %v2547 = vsel %vm1368, %v2503, 0
      %v2550 = vsel %vm1368, %v2504, 0
      %v2553 = vsel %vm1368, %v2505, 0
      %v2556 = vsel %vm1368, %v2506, 0
      %v2559 = vsel %vm1368, %v2507, 0
      %v2562 = vsel %vm1368, %v2508, 0
      %v2565 = vsel %vm1368, %v2509, 0
      %v2568 = vsel %vm1368, %v2510, 0
      %v2571 = vsel %vm1368, %v2511, 0
      %v2574 = vsel %vm1368, %v2512, 0
      %v2577 = vsel %vm1368, %v2513, 0
      %v2580 = vsel %vm1368, %v2514, 0
      %v2583 = vsel %vm1368, %v2515, 0
      %v2586 = vsel %vm1368, %v2516, 0
      %v2589 = vsel %vm1368, %v2517, 0
      %v2592 = vsel %vm1368, %v2518, 0
      %v2595 = vsel %vm1368, %v2519, 0
      %v2598 = vsel %vm1368, %v2520, 0
      %v2601 = vsel %vm1368, %v2521, 0
      %v2604 = vsel %vm1368, %v2522, 0
      %v2607 = vsel %vm1368, %v2523, 0
      %v2610 = vsel %vm1368, %v2524, 0
      %v2613 = vsel %vm1368, %v2525, 0
      %v2616 = vsel %vm1368, %v2526, 0
      %v2619 = vsel %vm1368, %v2527, 0
      %v2622 = vsel %vm1368, %v2528, 0
      %v2625 = vsel %vm1368, %v2529, 0
      %v2628 = vsel %vm1368, %v2530, 0
      %v2631 = vsel %vm1465, %v2533, 0
      %2633 = vmatprep.subr.mxu0 0.0
      %2634 = vmatpush1.msra.mxu0 %v2532
      %2635 = vmatprep.subr.mxu0 0.0
      %2636 = vmatpush1.msra.mxu0 %v2631
      %2637 = vmatprep.subr.mxu0 0.0
      %2638 = vmatpush1.msra.mxu0 0.0
      %2639 = vmatprep.subr.mxu0 0.0
      %2640 = vmatpush1.msra.mxu0 0.0
      %2641 = vmatprep.subr.mxu0 0.0
      %2642 = vmatpush1.msra.mxu0 0.0
      %2643 = vmatprep.subr.mxu0 0.0
      %2644 = vmatpush1.msra.mxu0 0.0
      %2645 = vmatprep.subr.mxu0 0.0
      %2646 = vmatpush1.msra.mxu0 0.0
      %2647 = vmatprep.subr.mxu0 0.0
      %2648 = vmatpush1.msra.mxu0 0.0
      %2649 = vmatprep.subr.mxu0 0.0
      %2650 = vmatpush1.msra.mxu0 0.0
      %2651 = vmatprep.subr.mxu0 0.0
      %2652 = vmatpush1.msra.mxu0 0.0
      %2653 = vmatprep.subr.mxu0 0.0
      %2654 = vmatpush1.msra.mxu0 0.0
      %2655 = vmatprep.subr.mxu0 0.0
      %2656 = vmatpush1.msra.mxu0 0.0
      %2657 = vmatprep.subr.mxu0 0.0
      %2658 = vmatpush1.msra.mxu0 0.0
      %2659 = vmatprep.subr.mxu0 0.0
      %2660 = vmatpush1.msra.mxu0 0.0
      %2661 = vmatprep.subr.mxu0 0.0
      %2662 = vmatpush1.msra.mxu0 0.0
      %2663 = vmatprep.subr.mxu0 0.0
      %2664 = vmatpush1.msra.mxu0 0.0
      %2665 = vmatprep.subr.mxu0 0.0
      %2666 = vmatpush1.msra.mxu0 0.0
      %2667 = vmatprep.subr.mxu0 0.0
      %2668 = vmatpush1.msra.mxu0 0.0
      %2669 = vmatprep.subr.mxu0 0.0
      %2670 = vmatpush1.msra.mxu0 0.0
      %2671 = vmatprep.subr.mxu0 0.0
      %2672 = vmatpush1.msra.mxu0 0.0
      %2673 = vmatprep.subr.mxu0 0.0
      %2674 = vmatpush1.msra.mxu0 0.0
      %2675 = vmatprep.subr.mxu0 0.0
      %2676 = vmatpush1.msra.mxu0 0.0
      %2677 = vmatprep.subr.mxu0 0.0
      %2678 = vmatpush1.msra.mxu0 0.0
      %2679 = vmatprep.subr.mxu0 0.0
      %2680 = vmatpush1.msra.mxu0 0.0
      %2681 = vmatprep.subr.mxu0 0.0
      %2682 = vmatpush1.msra.mxu0 0.0
      %2683 = vmatprep.subr.mxu0 0.0
      %2684 = vmatpush1.msra.mxu0 0.0
      %2685 = vmatprep.subr.mxu0 0.0
      %2686 = vmatpush1.msra.mxu0 0.0
      %2687 = vmatprep.subr.mxu0 0.0
      %2688 = vmatpush1.msra.mxu0 0.0
      %2689 = vmatprep.subr.mxu0 0.0
      %2690 = vmatpush1.msra.mxu0 0.0
      %2691 = vmatprep.subr.mxu0 0.0
      %2692 = vmatpush1.msra.mxu0 0.0
      %2693 = vmatprep.subr.mxu0 0.0
      %2694 = vmatpush1.msra.mxu0 0.0
      %2695 = vmatprep.subr.mxu0 0.0
      %2696 = vmatpush1.msra.mxu0 0.0
      %2697 = vmatprep.mubr.f32.mxu0 0.0
      %2698 = vmatmul.mubr.f32.gmra.mrb[0].mxu0 %v2535
      %v2699 = vpop.f32.mrb[0].mxu0
      %v2700 = vadd.f32 0.0, %v2699
      %v2701 = vpop.f32.mrb[0].mxu0
      %2702 = vmatprep.mubr.f32.mxu0 0.0
      %2703 = vmatmul.mubr.f32.gmra.mrb[0].mxu0 %v2538
      %v2704 = vpop.f32.mrb[0].mxu0
      %v2705 = vadd.f32 0.0, %v2704
      %v2706 = vpop.f32.mrb[0].mxu0
      %2707 = vmatprep.mubr.f32.mxu0 0.0
      %2708 = vmatmul.mubr.f32.gmra.mrb[0].mxu0 %v2541
      %v2709 = vpop.f32.mrb[0].mxu0
      %v2710 = vadd.f32 0.0, %v2709
      %v2711 = vpop.f32.mrb[0].mxu0
      %2712 = vmatprep.mubr.f32.mxu0 0.0
      %2713 = vmatmul.mubr.f32.gmra.mrb[0].mxu0 %v2544
      %v2714 = vpop.f32.mrb[0].mxu0
      %v2715 = vadd.f32 0.0, %v2714
      %v2716 = vpop.f32.mrb[0].mxu0
      %2717 = vmatprep.mubr.f32.mxu0 0.0
      %2718 = vmatmul.mubr.f32.gmra.mrb[0].mxu0 %v2547
      %v2719 = vpop.f32.mrb[0].mxu0
      %v2720 = vadd.f32 0.0, %v2719
      %v2721 = vpop.f32.mrb[0].mxu0
      %2722 = vmatprep.mubr.f32.mxu0 0.0
      %2723 = vmatmul.mubr.f32.gmra.mrb[0].mxu0 %v2550
      %v2724 = vpop.f32.mrb[0].mxu0
      %v2725 = vadd.f32 0.0, %v2724
      %v2726 = vpop.f32.mrb[0].mxu0
      %2727 = vmatprep.mubr.f32.mxu0 0.0
      %2728 = vmatmul.mubr.f32.gmra.mrb[0].mxu0 %v2553
      %v2729 = vpop.f32.mrb[0].mxu0
      %v2730 = vadd.f32 0.0, %v2729
      %v2731 = vpop.f32.mrb[0].mxu0
      %2732 = vmatprep.mubr.f32.mxu0 0.0
      %2733 = vmatmul.mubr.f32.gmra.mrb[0].mxu0 %v2556
      %v2734 = vpop.f32.mrb[0].mxu0
      %v2735 = vadd.f32 0.0, %v2734
      %v2736 = vpop.f32.mrb[0].mxu0
      %2737 = vmatprep.mubr.f32.mxu0 0.0
      %2738 = vmatmul.mubr.f32.gmra.mrb[0].mxu0 %v2559
      %v2739 = vpop.f32.mrb[0].mxu0
      %v2740 = vadd.f32 0.0, %v2739
      %v2741 = vpop.f32.mrb[0].mxu0
      %2742 = vmatprep.mubr.f32.mxu0 0.0
      %2743 = vmatmul.mubr.f32.gmra.mrb[0].mxu0 %v2562
      %v2744 = vpop.f32.mrb[0].mxu0
      %v2745 = vadd.f32 0.0, %v2744
      %v2746 = vpop.f32.mrb[0].mxu0
      %2747 = vmatprep.mubr.f32.mxu0 0.0
      %2748 = vmatmul.mubr.f32.gmra.mrb[0].mxu0 %v2565
      %v2749 = vpop.f32.mrb[0].mxu0
      %v2750 = vadd.f32 0.0, %v2749
      %v2751 = vpop.f32.mrb[0].mxu0
      %2752 = vmatprep.mubr.f32.mxu0 0.0
      %2753 = vmatmul.mubr.f32.gmra.mrb[0].mxu0 %v2568
      %v2754 = vpop.f32.mrb[0].mxu0
      %v2755 = vadd.f32 0.0, %v2754
      %v2756 = vpop.f32.mrb[0].mxu0
      %2757 = vmatprep.mubr.f32.mxu0 0.0
      %2758 = vmatmul.mubr.f32.gmra.mrb[0].mxu0 %v2571
      %v2759 = vpop.f32.mrb[0].mxu0
      %v2760 = vadd.f32 0.0, %v2759
      %v2761 = vpop.f32.mrb[0].mxu0
      %2762 = vmatprep.mubr.f32.mxu0 0.0
      %2763 = vmatmul.mubr.f32.gmra.mrb[0].mxu0 %v2574
      %v2764 = vpop.f32.mrb[0].mxu0
      %v2765 = vadd.f32 0.0, %v2764
      %v2766 = vpop.f32.mrb[0].mxu0
      %2767 = vmatprep.mubr.f32.mxu0 0.0
      %2768 = vmatmul.mubr.f32.gmra.mrb[0].mxu0 %v2577
      %v2769 = vpop.f32.mrb[0].mxu0
      %v2770 = vadd.f32 0.0, %v2769
      %v2771 = vpop.f32.mrb[0].mxu0
      %2772 = vmatprep.mubr.f32.mxu0 0.0
      %2773 = vmatmul.mubr.f32.gmra.mrb[0].mxu0 %v2580
      %v2774 = vpop.f32.mrb[0].mxu0
      %v2775 = vadd.f32 0.0, %v2774
      %v2776 = vpop.f32.mrb[0].mxu0
      %2777 = vmatprep.mubr.f32.mxu0 0.0
      %2778 = vmatmul.mubr.f32.gmra.mrb[0].mxu0 %v2583
      %v2779 = vpop.f32.mrb[0].mxu0
      %v2780 = vadd.f32 0.0, %v2779
      %v2781 = vpop.f32.mrb[0].mxu0
      %2782 = vmatprep.mubr.f32.mxu0 0.0
      %2783 = vmatmul.mubr.f32.gmra.mrb[0].mxu0 %v2586
      %v2784 = vpop.f32.mrb[0].mxu0
      %v2785 = vadd.f32 0.0, %v2784
      %v2786 = vpop.f32.mrb[0].mxu0
      %2787 = vmatprep.mubr.f32.mxu0 0.0
      %2788 = vmatmul.mubr.f32.gmra.mrb[0].mxu0 %v2589
      %v2789 = vpop.f32.mrb[0].mxu0
      %v2790 = vadd.f32 0.0, %v2789
      %v2791 = vpop.f32.mrb[0].mxu0
      %2792 = vmatprep.mubr.f32.mxu0 0.0
      %2793 = vmatmul.mubr.f32.gmra.mrb[0].mxu0 %v2592
      %v2794 = vpop.f32.mrb[0].mxu0
      %v2795 = vadd.f32 0.0, %v2794
      %v2796 = vpop.f32.mrb[0].mxu0
      %2797 = vmatprep.mubr.f32.mxu0 0.0
      %2798 = vmatmul.mubr.f32.gmra.mrb[0].mxu0 %v2595
      %v2799 = vpop.f32.mrb[0].mxu0
      %v2800 = vadd.f32 0.0, %v2799
      %v2801 = vpop.f32.mrb[0].mxu0
      %2802 = vmatprep.mubr.f32.mxu0 0.0
      %2803 = vmatmul.mubr.f32.gmra.mrb[0].mxu0 %v2598
      %v2804 = vpop.f32.mrb[0].mxu0
      %v2805 = vadd.f32 0.0, %v2804
      %v2806 = vpop.f32.mrb[0].mxu0
      %2807 = vmatprep.mubr.f32.mxu0 0.0
      %2808 = vmatmul.mubr.f32.gmra.mrb[0].mxu0 %v2601
      %v2809 = vpop.f32.mrb[0].mxu0
      %v2810 = vadd.f32 0.0, %v2809
      %v2811 = vpop.f32.mrb[0].mxu0
      %2812 = vmatprep.mubr.f32.mxu0 0.0
      %2813 = vmatmul.mubr.f32.gmra.mrb[0].mxu0 %v2604
      %v2814 = vpop.f32.mrb[0].mxu0
      %v2815 = vadd.f32 0.0, %v2814
      %v2816 = vpop.f32.mrb[0].mxu0
      %2817 = vmatprep.mubr.f32.mxu0 0.0
      %2818 = vmatmul.mubr.f32.gmra.mrb[0].mxu0 %v2607
      %v2819 = vpop.f32.mrb[0].mxu0
      %v2820 = vadd.f32 0.0, %v2819
      %v2821 = vpop.f32.mrb[0].mxu0
      %2822 = vmatprep.mubr.f32.mxu0 0.0
      %2823 = vmatmul.mubr.f32.gmra.mrb[0].mxu0 %v2610
      %v2824 = vpop.f32.mrb[0].mxu0
      %v2825 = vadd.f32 0.0, %v2824
      %v2826 = vpop.f32.mrb[0].mxu0
      %2827 = vmatprep.mubr.f32.mxu0 0.0
      %2828 = vmatmul.mubr.f32.gmra.mrb[0].mxu0 %v2613
      %v2829 = vpop.f32.mrb[0].mxu0
      %v2830 = vadd.f32 0.0, %v2829
      %v2831 = vpop.f32.mrb[0].mxu0
      %2832 = vmatprep.mubr.f32.mxu0 0.0
      %2833 = vmatmul.mubr.f32.gmra.mrb[0].mxu0 %v2616
      %v2834 = vpop.f32.mrb[0].mxu0
      %v2835 = vadd.f32 0.0, %v2834
      %v2836 = vpop.f32.mrb[0].mxu0
      %2837 = vmatprep.mubr.f32.mxu0 0.0
      %2838 = vmatmul.mubr.f32.gmra.mrb[0].mxu0 %v2619
      %v2839 = vpop.f32.mrb[0].mxu0
      %v2840 = vadd.f32 0.0, %v2839
      %v2841 = vpop.f32.mrb[0].mxu0
      %2842 = vmatprep.mubr.f32.mxu0 0.0
      %2843 = vmatmul.mubr.f32.gmra.mrb[0].mxu0 %v2622
      %v2844 = vpop.f32.mrb[0].mxu0
      %v2845 = vadd.f32 0.0, %v2844
      %v2846 = vpop.f32.mrb[0].mxu0
      %2847 = vmatprep.mubr.f32.mxu0 0.0
      %2848 = vmatmul.mubr.f32.gmra.mrb[0].mxu0 %v2625
      %v2849 = vpop.f32.mrb[0].mxu0
      %v2850 = vadd.f32 0.0, %v2849
      %v2851 = vpop.f32.mrb[0].mxu0
      %2852 = vmatprep.mubr.f32.mxu0 0.0
      %2853 = vmatmul.mubr.f32.gmra.mrb[0].mxu0 %v2628
      %v2854 = vpop.f32.mrb[0].mxu0
      %v2855 = vadd.f32 0.0, %v2854
      %v2856 = vpop.f32.mrb[0].mxu0
      %2857 = vdwg.mxu0
      %v2858 = vadd.f32 %v1860, %v2700
      %v2859 = vadd.f32 %v1865, %v2705
      %v2860 = vadd.f32 %v1870, %v2710
      %v2861 = vadd.f32 %v1875, %v2715
      %v2862 = vadd.f32 %v1880, %v2720
      %v2863 = vadd.f32 %v1885, %v2725
      %v2864 = vadd.f32 %v1890, %v2730
      %v2865 = vadd.f32 %v1895, %v2735
      %v2866 = vadd.f32 %v1900, %v2740
      %v2867 = vadd.f32 %v1905, %v2745
      %v2868 = vadd.f32 %v1910, %v2750
      %v2869 = vadd.f32 %v1915, %v2755
      %v2870 = vadd.f32 %v1920, %v2760
      %v2871 = vadd.f32 %v1925, %v2765
      %v2872 = vadd.f32 %v1930, %v2770
      %v2873 = vadd.f32 %v1935, %v2775
      %v2874 = vadd.f32 %v1940, %v2780
      %v2875 = vadd.f32 %v1945, %v2785
      %v2876 = vadd.f32 %v1950, %v2790
      %v2877 = vadd.f32 %v1955, %v2795
      %v2878 = vadd.f32 %v1960, %v2800
      %v2879 = vadd.f32 %v1965, %v2805
      %v2880 = vadd.f32 %v1970, %v2810
      %v2881 = vadd.f32 %v1975, %v2815
      %v2882 = vadd.f32 %v1980, %v2820
      %v2883 = vadd.f32 %v1985, %v2825
      %v2884 = vadd.f32 %v1990, %v2830
      %v2885 = vadd.f32 %v1995, %v2835
      %v2886 = vadd.f32 %v2000, %v2840
      %v2887 = vadd.f32 %v2005, %v2845
      %v2888 = vadd.f32 %v2010, %v2850
      %v2889 = vadd.f32 %v2015, %v2855
      %2890 = vst.msk [vmem:[%s208] sm:$0xff] %vm215, %v2858
      %2891 = vst.msk [vmem:[%s208 + $0x8] sm:$0xff] %vm215, %v2859
      %2892 = vst.msk [vmem:[%s208 + $0x10] sm:$0xff] %vm215, %v2860
      %2893 = vst.msk [vmem:[%s208 + $0x18] sm:$0xff] %vm215, %v2861
      %2894 = vst.msk [vmem:[%s208 + $0x20] sm:$0xff] %vm215, %v2862
      %2895 = vst.msk [vmem:[%s208 + $0x28] sm:$0xff] %vm215, %v2863
      %2896 = vst.msk [vmem:[%s208 + $0x30] sm:$0xff] %vm215, %v2864
      %2897 = vst.msk [vmem:[%s208 + $0x38] sm:$0xff] %vm215, %v2865
      %2898 = vst.msk [vmem:[%s208 + $0x40] sm:$0xff] %vm215, %v2866
      %2899 = vst.msk [vmem:[%s208 + $0x48] sm:$0xff] %vm215, %v2867
      %2900 = vst.msk [vmem:[%s208 + $0x50] sm:$0xff] %vm215, %v2868
      %2901 = vst.msk [vmem:[%s208 + $0x58] sm:$0xff] %vm215, %v2869
      %2902 = vst.msk [vmem:[%s208 + $0x60] sm:$0xff] %vm215, %v2870
      %2903 = vst.msk [vmem:[%s208 + $0x68] sm:$0xff] %vm215, %v2871
      %2904 = vst.msk [vmem:[%s208 + $0x70] sm:$0xff] %vm215, %v2872
      %2905 = vst.msk [vmem:[%s208 + $0x78] sm:$0xff] %vm215, %v2873
      %2906 = vst.msk [vmem:[%s208 + $0x80] sm:$0xff] %vm215, %v2874
      %2907 = vst.msk [vmem:[%s208 + $0x88] sm:$0xff] %vm215, %v2875
      %2908 = vst.msk [vmem:[%s208 + $0x90] sm:$0xff] %vm215, %v2876
      %2909 = vst.msk [vmem:[%s208 + $0x98] sm:$0xff] %vm215, %v2877
      %2910 = vst.msk [vmem:[%s208 + $0xa0] sm:$0xff] %vm215, %v2878
      %2911 = vst.msk [vmem:[%s208 + $0xa8] sm:$0xff] %vm215, %v2879
      %2912 = vst.msk [vmem:[%s208 + $0xb0] sm:$0xff] %vm215, %v2880
      %2913 = vst.msk [vmem:[%s208 + $0xb8] sm:$0xff] %vm215, %v2881
      %2914 = vst.msk [vmem:[%s208 + $0xc0] sm:$0xff] %vm215, %v2882
      %2915 = vst.msk [vmem:[%s208 + $0xc8] sm:$0xff] %vm215, %v2883
      %2916 = vst.msk [vmem:[%s208 + $0xd0] sm:$0xff] %vm215, %v2884
      %2917 = vst.msk [vmem:[%s208 + $0xd8] sm:$0xff] %vm215, %v2885
      %2918 = vst.msk [vmem:[%s208 + $0xe0] sm:$0xff] %vm215, %v2886
      %2919 = vst.msk [vmem:[%s208 + $0xe8] sm:$0xff] %vm215, %v2887
      %2920 = vst.msk [vmem:[%s208 + $0xf0] sm:$0xff] %vm215, %v2888
      %2921 = vst.msk [vmem:[%s208 + $0xf8] sm:$0xff] %vm215, %v2889
      %v2922 = vsel %vm215, %v2858, 0.0
      %v2923 = vsel %vm215, %v2859, 0.0
      %v2924 = vadd.f32 %v2922, %v2923
      %v2925 = vsel %vm215, %v2860, 0.0
      %v2926 = vadd.f32 %v2924, %v2925
      %v2927 = vsel %vm215, %v2861, 0.0
      %v2928 = vadd.f32 %v2926, %v2927
      %v2929 = vsel %vm215, %v2862, 0.0
      %v2930 = vadd.f32 %v2928, %v2929
      %v2931 = vsel %vm215, %v2863, 0.0
      %v2932 = vadd.f32 %v2930, %v2931
      %v2933 = vsel %vm215, %v2864, 0.0
      %v2934 = vadd.f32 %v2932, %v2933
      %v2935 = vsel %vm215, %v2865, 0.0
      %v2936 = vadd.f32 %v2934, %v2935
      %v2937 = vsel %vm215, %v2866, 0.0
      %v2938 = vadd.f32 %v2936, %v2937
      %v2939 = vsel %vm215, %v2867, 0.0
      %v2940 = vadd.f32 %v2938, %v2939
      %v2941 = vsel %vm215, %v2868, 0.0
      %v2942 = vadd.f32 %v2940, %v2941
      %v2943 = vsel %vm215, %v2869, 0.0
      %v2944 = vadd.f32 %v2942, %v2943
      %v2945 = vsel %vm215, %v2870, 0.0
      %v2946 = vadd.f32 %v2944, %v2945
      %v2947 = vsel %vm215, %v2871, 0.0
      %v2948 = vadd.f32 %v2946, %v2947
      %v2949 = vsel %vm215, %v2872, 0.0
      %v2950 = vadd.f32 %v2948, %v2949
      %v2951 = vsel %vm215, %v2873, 0.0
      %v2952 = vadd.f32 %v2950, %v2951
      %v2953 = vsel %vm215, %v2874, 0.0
      %v2954 = vadd.f32 %v2952, %v2953
      %v2955 = vsel %vm215, %v2875, 0.0
      %v2956 = vadd.f32 %v2954, %v2955
      %v2957 = vsel %vm215, %v2876, 0.0
      %v2958 = vadd.f32 %v2956, %v2957
      %v2959 = vsel %vm215, %v2877, 0.0
      %v2960 = vadd.f32 %v2958, %v2959
      %v2961 = vsel %vm215, %v2878, 0.0
      %v2962 = vadd.f32 %v2960, %v2961
      %v2963 = vsel %vm215, %v2879, 0.0
      %v2964 = vadd.f32 %v2962, %v2963
      %v2965 = vsel %vm215, %v2880, 0.0
      %v2966 = vadd.f32 %v2964, %v2965
      %v2967 = vsel %vm215, %v2881, 0.0
      %v2968 = vadd.f32 %v2966, %v2967
      %v2969 = vsel %vm215, %v2882, 0.0
      %v2970 = vadd.f32 %v2968, %v2969
      %v2971 = vsel %vm215, %v2883, 0.0
      %v2972 = vadd.f32 %v2970, %v2971
      %v2973 = vsel %vm215, %v2884, 0.0
      %v2974 = vadd.f32 %v2972, %v2973
      %v2975 = vsel %vm215, %v2885, 0.0
      %v2976 = vadd.f32 %v2974, %v2975
      %v2977 = vsel %vm215, %v2886, 0.0
      %v2978 = vadd.f32 %v2976, %v2977
      %v2979 = vsel %vm215, %v2887, 0.0
      %v2980 = vadd.f32 %v2978, %v2979
      %v2981 = vsel %vm215, %v2888, 0.0
      %v2982 = vadd.f32 %v2980, %v2981
      %v2983 = vsel %vm215, %v2889, 0.0
      %v2984 = vadd.f32 %v2982, %v2983
      %v2985 = vrot.slane %v2984, 4
      %v2986 = vadd.f32 %v2984, %v2985
      %v2987 = vrot.slane %v2986, 2
      %v2988 = vadd.f32 %v2986, %v2987
      %v2989 = vrot.slane %v2988, 1
      %v2990 = vadd.f32 %v2988, %v2989
      %vm2991 = vcmask 24576
      %2992 = vst.msk [vmem:[%s211] sm:$0x1] %vm2991, %v2990
      %v2993 = vmul.f32 %v2858, %v2858
      %v2994 = vmul.f32 %v2859, %v2859
      %v2995 = vmul.f32 %v2860, %v2860
      %v2996 = vmul.f32 %v2861, %v2861
      %v2997 = vmul.f32 %v2862, %v2862
      %v2998 = vmul.f32 %v2863, %v2863
      %v2999 = vmul.f32 %v2864, %v2864
      %v3000 = vmul.f32 %v2865, %v2865
      %v3001 = vmul.f32 %v2866, %v2866
      %v3002 = vmul.f32 %v2867, %v2867
      %v3003 = vmul.f32 %v2868, %v2868
      %v3004 = vmul.f32 %v2869, %v2869
      %v3005 = vmul.f32 %v2870, %v2870
      %v3006 = vmul.f32 %v2871, %v2871
      %v3007 = vmul.f32 %v2872, %v2872
      %v3008 = vmul.f32 %v2873, %v2873
      %v3009 = vmul.f32 %v2874, %v2874
      %v3010 = vmul.f32 %v2875, %v2875
      %v3011 = vmul.f32 %v2876, %v2876
      %v3012 = vmul.f32 %v2877, %v2877
      %v3013 = vmul.f32 %v2878, %v2878
      %v3014 = vmul.f32 %v2879, %v2879
      %v3015 = vmul.f32 %v2880, %v2880
      %v3016 = vmul.f32 %v2881, %v2881
      %v3017 = vmul.f32 %v2882, %v2882
      %v3018 = vmul.f32 %v2883, %v2883
      %v3019 = vmul.f32 %v2884, %v2884
      %v3020 = vmul.f32 %v2885, %v2885
      %v3021 = vmul.f32 %v2886, %v2886
      %v3022 = vmul.f32 %v2887, %v2887
      %v3023 = vmul.f32 %v2888, %v2888
      %v3024 = vmul.f32 %v2889, %v2889
      %v3025 = vsel %vm215, %v2993, 0.0
      %v3026 = vsel %vm215, %v2994, 0.0
      %v3027 = vadd.f32 %v3025, %v3026
      %v3028 = vsel %vm215, %v2995, 0.0
      %v3029 = vadd.f32 %v3027, %v3028
      %v3030 = vsel %vm215, %v2996, 0.0
      %v3031 = vadd.f32 %v3029, %v3030
      %v3032 = vsel %vm215, %v2997, 0.0
      %v3033 = vadd.f32 %v3031, %v3032
      %v3034 = vsel %vm215, %v2998, 0.0
      %v3035 = vadd.f32 %v3033, %v3034
      %v3036 = vsel %vm215, %v2999, 0.0
      %v3037 = vadd.f32 %v3035, %v3036
      %v3038 = vsel %vm215, %v3000, 0.0
      %v3039 = vadd.f32 %v3037, %v3038
      %v3040 = vsel %vm215, %v3001, 0.0
      %v3041 = vadd.f32 %v3039, %v3040
      %v3042 = vsel %vm215, %v3002, 0.0
      %v3043 = vadd.f32 %v3041, %v3042
      %v3044 = vsel %vm215, %v3003, 0.0
      %v3045 = vadd.f32 %v3043, %v3044
      %v3046 = vsel %vm215, %v3004, 0.0
      %v3047 = vadd.f32 %v3045, %v3046
      %v3048 = vsel %vm215, %v3005, 0.0
      %v3049 = vadd.f32 %v3047, %v3048
      %v3050 = vsel %vm215, %v3006, 0.0
      %v3051 = vadd.f32 %v3049, %v3050
      %v3052 = vsel %vm215, %v3007, 0.0
      %v3053 = vadd.f32 %v3051, %v3052
      %v3054 = vsel %vm215, %v3008, 0.0
      %v3055 = vadd.f32 %v3053, %v3054
      %v3056 = vsel %vm215, %v3009, 0.0
      %v3057 = vadd.f32 %v3055, %v3056
      %v3058 = vsel %vm215, %v3010, 0.0
      %v3059 = vadd.f32 %v3057, %v3058
      %v3060 = vsel %vm215, %v3011, 0.0
      %v3061 = vadd.f32 %v3059, %v3060
      %v3062 = vsel %vm215, %v3012, 0.0
      %v3063 = vadd.f32 %v3061, %v3062
      %v3064 = vsel %vm215, %v3013, 0.0
      %v3065 = vadd.f32 %v3063, %v3064
      %v3066 = vsel %vm215, %v3014, 0.0
      %v3067 = vadd.f32 %v3065, %v3066
      %v3068 = vsel %vm215, %v3015, 0.0
      %v3069 = vadd.f32 %v3067, %v3068
      %v3070 = vsel %vm215, %v3016, 0.0
      %v3071 = vadd.f32 %v3069, %v3070
      %v3072 = vsel %vm215, %v3017, 0.0
      %v3073 = vadd.f32 %v3071, %v3072
      %v3074 = vsel %vm215, %v3018, 0.0
      %v3075 = vadd.f32 %v3073, %v3074
      %v3076 = vsel %vm215, %v3019, 0.0
      %v3077 = vadd.f32 %v3075, %v3076
      %v3078 = vsel %vm215, %v3020, 0.0
      %v3079 = vadd.f32 %v3077, %v3078
      %v3080 = vsel %vm215, %v3021, 0.0
      %v3081 = vadd.f32 %v3079, %v3080
      %v3082 = vsel %vm215, %v3022, 0.0
      %v3083 = vadd.f32 %v3081, %v3082
      %v3084 = vsel %vm215, %v3023, 0.0
      %v3085 = vadd.f32 %v3083, %v3084
      %v3086 = vsel %vm215, %v3024, 0.0
      %v3087 = vadd.f32 %v3085, %v3086
      %v3088 = vrot.slane %v3087, 4
      %v3089 = vadd.f32 %v3087, %v3088
      %v3090 = vrot.slane %v3089, 2
      %v3091 = vadd.f32 %v3089, %v3090
      %v3092 = vrot.slane %v3091, 1
      %v3093 = vadd.f32 %v3091, %v3092
      %3094 = vst.msk [vmem:[%s214] sm:$0x1] %vm2991, %v3093
      %p3095 = scmp.lt.s32.totalorder %s16, 1
      %s3096 = scalar_select %p3095, %s16, 1
      %s3097 = smul.addr %s3096, 32
      %s3098 = smul.addr %s3097, 8
      %s3099 = scalar_lea.vmem %s2, %s3098
      %p3100 = scmp.lt.s32.totalorder %s16, 1
      %s3101 = scalar_select %p3100, %s16, 1
      %s3102 = scalar_lea.vmem %s3, %s3101
      %p3103 = scmp.lt.s32.totalorder %s16, 1
      %s3104 = scalar_select %p3103, %s16, 1
      %s3105 = scalar_lea.vmem %s4, %s3104
      // Predicated region
      $region29: #{residual_block_forward.3} parent=27 // pred_check
        %p3106 = pneg %p81
      $region30: #{residual_block_forward.3} parent=27 // pred_check_branch
        %3108 = sbr.rel (%p3106) target = $region32
      $region31: #{residual_block_forward.3} parent=27 // pred_region
        _
      $region32: #{residual_block_forward.3} parent=27 // pred_fallthru
        _
      // Predicated region
      $region33: #{residual_block_forward.3} parent=27 // pred_check
        %p3109 = pneg %p107
      $region34: #{residual_block_forward.3} parent=27 // pred_check_branch
        %3111 = sbr.rel (%p3109) target = $region36
      $region35: #{residual_block_forward.3} parent=27 // pred_region
        _
      $region36: #{residual_block_forward.3} parent=27 // pred_fallthru
        _
      // Predicated region
      $region37: #{residual_block_forward.3} parent=27 // pred_check
        %p3112 = pneg %p133
      $region38: #{residual_block_forward.3} parent=27 // pred_check_branch
        %3114 = sbr.rel (%p3112) target = $region40
      $region39: #{residual_block_forward.3} parent=27 // pred_region
        _
      $region40: #{residual_block_forward.3} parent=27 // pred_fallthru
        _
    $region28: #{residual_block_forward.3} parent=5 // pred_fallthru
      _
    %p3115 = scmp.le.s32.totalorder 2, %s11
    // Predicated region
    $region41: #{residual_block_forward.3} parent=5 // pred_check
      %p3116 = pneg %p3115
    $region42: #{residual_block_forward.3} parent=5 // pred_check_branch
      %3118 = sbr.rel (%p3116) target = $region44
    $region43: #{residual_block_forward.3} parent=5 // pred_region
      %s3119 = ssub.s32 %s11, 2
      // Predicated region
      $region45: #{residual_block_forward.3} parent=43 // pred_check
        %p3120 = pneg %p87
      $region46: #{residual_block_forward.3} parent=43 // pred_check_branch
        %3122 = sbr.rel (%p3120) target = $region48
      $region47: #{residual_block_forward.3} parent=43 // pred_region
        %p3123 = scmp.lt.s32.totalorder %s17, 1
        %s3124 = scalar_select %p3123, %s17, 1
        %s3125 = smul.addr %s3124, 32
        %s3126 = smul.addr %s3125, 8
        %s3127 = scalar_lea.vmem %s2, %s3126
      $region48: #{residual_block_forward.3} parent=43 // pred_fallthru
        _
      // Predicated region
      $region49: #{residual_block_forward.3} parent=43 // pred_check
        %p3128 = pneg %p113
      $region50: #{residual_block_forward.3} parent=43 // pred_check_branch
        %3130 = sbr.rel (%p3128) target = $region52
      $region51: #{residual_block_forward.3} parent=43 // pred_region
        %p3131 = scmp.lt.s32.totalorder %s17, 1
        %s3132 = scalar_select %p3131, %s17, 1
        %s3133 = scalar_lea.vmem %s3, %s3132
      $region52: #{residual_block_forward.3} parent=43 // pred_fallthru
        _
      // Predicated region
      $region53: #{residual_block_forward.3} parent=43 // pred_check
        %p3134 = pneg %p139
      $region54: #{residual_block_forward.3} parent=43 // pred_check_branch
        %3136 = sbr.rel (%p3134) target = $region56
      $region55: #{residual_block_forward.3} parent=43 // pred_region
        %p3137 = scmp.lt.s32.totalorder %s17, 1
        %s3138 = scalar_select %p3137, %s17, 1
        %s3139 = scalar_lea.vmem %s4, %s3138
      $region56: #{residual_block_forward.3} parent=43 // pred_fallthru
        _
    $region44: #{residual_block_forward.3} parent=5 // pred_fallthru
      _
  $region6: #{residual_block_forward.3} parent=0 // loop_footer
    %s15 = sadd.s32 1, %s11
  $region7: #{residual_block_forward.3} parent=0 // loop_footer_branch
    %10 = sbr.rel target = $region3
  $region8: #{residual_block_forward.3} parent=0 // loop_exit
    _

// kernel: residual_block_forward.4
$region0: #{residual_block_forward.4}
  #allocation0 [shape = 'u32[]', space=smem, size = 0x4, offset = 0x4, fixed_abs, tag = 'smem constant byte address 0x4 - core index']
  #allocation1 [shape = 'u32[144,128]{1,0:T(1,128)}', space=vmem, size = 0x12000, scoped, tag = 'internal scratch']
  #allocation2 [shape = 'f32[18,18,4]{2,1,0:T(8,128)}', space=vmem, size = 0x36000, scoped, tag = 'scratch operand']
  %s0 = inlined_call_operand.vmem [shape: f32[2,16,16,4], index: 0, kind: input, shape index: {}]
  %s1 = inlined_call_operand.vmem [shape: f32[1,4], index: 1, kind: input, shape index: {}]
  %s2 = inlined_call_operand.vmem [shape: f32[1,4], index: 2, kind: input, shape index: {}]
  %s3 = inlined_call_operand.vmem [shape: f32[3,12,4], index: 3, kind: input, shape index: {}]
  %s4 = inlined_call_operand.vmem [shape: f32[2,16,16,4], index: 4, kind: output, shape index: {0}]
  %s5 = inlined_call_operand.vmem [shape: f32[2,1,4], index: 5, kind: output, shape index: {1}]
  %s6 = inlined_call_operand.vmem [shape: f32[2,1,4], index: 6, kind: output, shape index: {2}]
  %7 = xla_tuple %s4, %s5, %s6
  %s8 = sld [smem:[#allocation0]]
  $region65: #{residual_block_forward.4} parent=0
    _
  %s10 = ssub.s32 1, %s8
  %s11 = scalar_select 0, %s10, %s8
  loop: start=0, step=1, limit=4
  $region2: #{residual_block_forward.4} parent=0 // loop_pre_header
    _
  $region3: #{residual_block_forward.4} parent=0 // loop_header
    %s13 = sphi 0, %s17
    %p14 = scmp.ge.s32.totalorder %s13, 4
    %s23 = sphi 0, %s25
    %s26 = sphi 0, %s23
    %s27 = sphi 0, %s26
    %s43 = sphi 0, %s27
    %s47 = sphi 0, %s47
    %s49 = sphi 0, %s47
    %s50 = sphi 0, %s49
    %s64 = sphi 0, %s50
    %s68 = sphi 0, %s68
    %s70 = sphi 0, %s68
    %s71 = sphi 0, %s70
    %s85 = sphi 0, %s71
    %s89 = sphi 0, %s89
    %s91 = sphi 0, %s89
    %s92 = sphi 0, %s91
    %s106 = sphi 0, %s92
    %s112 = sphi 0, %s114
    %s115 = sphi 0, %s112
    %s116 = sphi 0, %s115
    %s132 = sphi 0, %s116
    %s138 = sphi 0, %s140
    %s141 = sphi 0, %s138
    %s142 = sphi 0, %s141
    %s158 = sphi 0, %s142
    %s164 = sphi 0, %s166
    %s167 = sphi 0, %s164
    %s168 = sphi 0, %s167
    %s184 = sphi 0, %s168
  $region4: #{residual_block_forward.4} parent=0 // loop_header_branch
    %16 = sbr.rel (%p14) target = $region8
  $region5: #{residual_block_forward.4} parent=0 // loop_body
    %s18 = ssub.s32 %s13, 1
    %s19 = ssub.s32 %s13, 2
    %s20 = sadd.s32 %s13, 1
    %s21 = ssub.s32 %s13, %s20
    %p22 = scmp.eq.s32.totalorder %s21, 0
    %s24 = sadd.s32 %s23, 1
    %s25 = scalar_select %p22, %s23, %s24
    %p28 = pneg %p22
    %p29 = scmp.eq.s32.totalorder %s13, 1
    %p30 = por %p28, %p29
    %p31 = scmp.ne.s32.totalorder %s23, %s26
    %p32 = scmp.eq.s32.totalorder %s13, 0
    %p33 = por %p31, %p32
    %p34 = scmp.ne.s32.totalorder %s23, %s26
    %p35 = scmp.eq.s32.totalorder %s18, 1
    %p36 = por %p34, %p35
    %p37 = scmp.ne.s32.totalorder %s26, %s27
    %p38 = scmp.eq.s32.totalorder %s18, 0
    %p39 = por %p37, %p38
    %p40 = scmp.ne.s32.totalorder %s26, %s27
    %p41 = scmp.eq.s32.totalorder %s19, 1
    %p42 = por %p40, %p41
    %p44 = scmp.ne.s32.totalorder %s27, %s43
    %p45 = scmp.eq.s32.totalorder %s19, 0
    %p46 = por %p44, %p45
    %s48 = sadd.s32 %s47, 1
    %p51 = scmp.eq.s32.totalorder %s13, 1
    %p52 = scmp.ne.s32.totalorder %s47, %s49
    %p53 = scmp.eq.s32.totalorder %s13, 0
    %p54 = por %p52, %p53
    %p55 = scmp.ne.s32.totalorder %s47, %s49
    %p56 = scmp.eq.s32.totalorder %s18, 1
    %p57 = por %p55, %p56
    %p58 = scmp.ne.s32.totalorder %s49, %s50
    %p59 = scmp.eq.s32.totalorder %s18, 0
    %p60 = por %p58, %p59
    %p61 = scmp.ne.s32.totalorder %s49, %s50
    %p62 = scmp.eq.s32.totalorder %s19, 1
    %p63 = por %p61, %p62
    %p65 = scmp.ne.s32.totalorder %s50, %s64
    %p66 = scmp.eq.s32.totalorder %s19, 0
    %p67 = por %p65, %p66
    %s69 = sadd.s32 %s68, 1
    %p72 = scmp.eq.s32.totalorder %s13, 1
    %p73 = scmp.ne.s32.totalorder %s68, %s70
    %p74 = scmp.eq.s32.totalorder %s13, 0
    %p75 = por %p73, %p74
    %p76 = scmp.ne.s32.totalorder %s68, %s70
    %p77 = scmp.eq.s32.totalorder %s18, 1
    %p78 = por %p76, %p77
    %p79 = scmp.ne.s32.totalorder %s70, %s71
    %p80 = scmp.eq.s32.totalorder %s18, 0
    %p81 = por %p79, %p80
    %p82 = scmp.ne.s32.totalorder %s70, %s71
    %p83 = scmp.eq.s32.totalorder %s19, 1
    %p84 = por %p82, %p83
    %p86 = scmp.ne.s32.totalorder %s71, %s85
    %p87 = scmp.eq.s32.totalorder %s19, 0
    %p88 = por %p86, %p87
    %s90 = sadd.s32 %s89, 1
    %p93 = scmp.eq.s32.totalorder %s13, 1
    %p94 = scmp.ne.s32.totalorder %s89, %s91
    %p95 = scmp.eq.s32.totalorder %s13, 0
    %p96 = por %p94, %p95
    %p97 = scmp.ne.s32.totalorder %s89, %s91
    %p98 = scmp.eq.s32.totalorder %s18, 1
    %p99 = por %p97, %p98
    %p100 = scmp.ne.s32.totalorder %s91, %s92
    %p101 = scmp.eq.s32.totalorder %s18, 0
    %p102 = por %p100, %p101
    %p103 = scmp.ne.s32.totalorder %s91, %s92
    %p104 = scmp.eq.s32.totalorder %s19, 1
    %p105 = por %p103, %p104
    %p107 = scmp.ne.s32.totalorder %s92, %s106
    %p108 = scmp.eq.s32.totalorder %s19, 0
    %p109 = por %p107, %p108
    %s110 = ssub.s32 %s13, %s20
    %p111 = scmp.eq.s32.totalorder %s110, 0
    %s113 = sadd.s32 %s112, 1
    %s114 = scalar_select %p111, %s112, %s113
    %p117 = pneg %p111
    %p118 = scmp.eq.s32.totalorder %s13, 1
    %p119 = por %p117, %p118
    %p120 = scmp.ne.s32.totalorder %s112, %s115
    %p121 = scmp.eq.s32.totalorder %s13, 0
    %p122 = por %p120, %p121
    %p123 = scmp.ne.s32.totalorder %s112, %s115
    %p124 = scmp.eq.s32.totalorder %s18, 1
    %p125 = por %p123, %p124
    %p126 = scmp.ne.s32.totalorder %s115, %s116
    %p127 = scmp.eq.s32.totalorder %s18, 0
    %p128 = por %p126, %p127
    %p129 = scmp.ne.s32.totalorder %s115, %s116
    %p130 = scmp.eq.s32.totalorder %s19, 1
    %p131 = por %p129, %p130
    %p133 = scmp.ne.s32.totalorder %s116, %s132
    %p134 = scmp.eq.s32.totalorder %s19, 0
    %p135 = por %p133, %p134
    %s136 = ssub.s32 %s13, %s20
    %p137 = scmp.eq.s32.totalorder %s136, 0
    %s139 = sadd.s32 %s138, 1
    %s140 = scalar_select %p137, %s138, %s139
    %p143 = pneg %p137
    %p144 = scmp.eq.s32.totalorder %s13, 1
    %p145 = por %p143, %p144
    %p146 = scmp.ne.s32.totalorder %s138, %s141
    %p147 = scmp.eq.s32.totalorder %s13, 0
    %p148 = por %p146, %p147
    %p149 = scmp.ne.s32.totalorder %s138, %s141
    %p150 = scmp.eq.s32.totalorder %s18, 1
    %p151 = por %p149, %p150
    %p152 = scmp.ne.s32.totalorder %s141, %s142
    %p153 = scmp.eq.s32.totalorder %s18, 0
    %p154 = por %p152, %p153
    %p155 = scmp.ne.s32.totalorder %s141, %s142
    %p156 = scmp.eq.s32.totalorder %s19, 1
    %p157 = por %p155, %p156
    %p159 = scmp.ne.s32.totalorder %s142, %s158
    %p160 = scmp.eq.s32.totalorder %s19, 0
    %p161 = por %p159, %p160
    %s162 = ssub.s32 %s13, %s20
    %p163 = scmp.eq.s32.totalorder %s162, 0
    %s165 = sadd.s32 %s164, 1
    %s166 = scalar_select %p163, %s164, %s165
    %p169 = pneg %p163
    %p170 = scmp.eq.s32.totalorder %s13, 1
    %p171 = por %p169, %p170
    %p172 = scmp.ne.s32.totalorder %s164, %s167
    %p173 = scmp.eq.s32.totalorder %s13, 0
    %p174 = por %p172, %p173
    %p175 = scmp.ne.s32.totalorder %s164, %s167
    %p176 = scmp.eq.s32.totalorder %s18, 1
    %p177 = por %p175, %p176
    %p178 = scmp.ne.s32.totalorder %s167, %s168
    %p179 = scmp.eq.s32.totalorder %s18, 0
    %p180 = por %p178, %p179
    %p181 = scmp.ne.s32.totalorder %s167, %s168
    %p182 = scmp.eq.s32.totalorder %s19, 1
    %p183 = por %p181, %p182
    %p185 = scmp.ne.s32.totalorder %s168, %s184
    %p186 = scmp.eq.s32.totalorder %s19, 0
    %p187 = por %p185, %p186
    %p188 = scmp.le.s32.totalorder 1, %s13
    %p189 = scmp.lt.s32.totalorder %s13, 3
    %p190 = pnand %p188, %p189
    %p191 = pneg %p190
    // Predicated region
    $region9: #{residual_block_forward.4} parent=5 // pred_check
      _
    $region10: #{residual_block_forward.4} parent=5 // pred_check_branch
      %193 = sbr.rel (%p190) target = $region12
    $region11: #{residual_block_forward.4} parent=5 // pred_region
      %s194 = ssub.s32 %s13, 1
      // Predicated region
      $region13: #{residual_block_forward.4} parent=11 // pred_check
        %p195 = pneg %p60
      $region14: #{residual_block_forward.4} parent=11 // pred_check_branch
        %197 = sbr.rel (%p195) target = $region16
      $region15: #{residual_block_forward.4} parent=11 // pred_region
        _
      $region16: #{residual_block_forward.4} parent=11 // pred_fallthru
        _
      // Predicated region
      $region17: #{residual_block_forward.4} parent=11 // pred_check
        %p198 = pneg %p81
      $region18: #{residual_block_forward.4} parent=11 // pred_check_branch
        %200 = sbr.rel (%p198) target = $region20
      $region19: #{residual_block_forward.4} parent=11 // pred_region
        _
      $region20: #{residual_block_forward.4} parent=11 // pred_fallthru
        _
      // Predicated region
      $region21: #{residual_block_forward.4} parent=11 // pred_check
        %p201 = pneg %p102
      $region22: #{residual_block_forward.4} parent=11 // pred_check_branch
        %203 = sbr.rel (%p201) target = $region24
      $region23: #{residual_block_forward.4} parent=11 // pred_region
        _
      $region24: #{residual_block_forward.4} parent=11 // pred_fallthru
        _
    $region12: #{residual_block_forward.4} parent=5 // pred_fallthru
      _
    %p204 = scmp.lt.s32.totalorder %s13, 2
    // Predicated region
    $region25: #{residual_block_forward.4} parent=5 // pred_check
      %p205 = pneg %p204
    $region26: #{residual_block_forward.4} parent=5 // pred_check_branch
      %207 = sbr.rel (%p205) target = $region28
    $region27: #{residual_block_forward.4} parent=5 // pred_region
      // Predicated region
      $region29: #{residual_block_forward.4} parent=27 // pred_check
        %p208 = pneg %p33
      $region30: #{residual_block_forward.4} parent=27 // pred_check_branch
        %210 = sbr.rel (%p208) target = $region32
      $region31: #{residual_block_forward.4} parent=27 // pred_region
        %p211 = scmp.lt.s32.totalorder %s13, 1
        %s212 = scalar_select %p211, %s13, 1
        %s213 = smul.addr %s212, 32
        %s214 = smul.addr %s213, 8
        %s215 = scalar_lea.vmem %s0, %s214
      $region32: #{residual_block_forward.4} parent=27 // pred_fallthru
        _
    $region28: #{residual_block_forward.4} parent=5 // pred_fallthru
      _
    %p216 = scmp.le.s32.totalorder 1, %s13
    %p217 = scmp.lt.s32.totalorder %s13, 3
    %p218 = pnand %p216, %p217
    %p219 = pneg %p218
    // Predicated region
    $region33: #{residual_block_forward.4} parent=5 // pred_check
      _
    $region34: #{residual_block_forward.4} parent=5 // pred_check_branch
      %221 = sbr.rel (%p218) target = $region36
    $region35: #{residual_block_forward.4} parent=5 // pred_region
      %s222 = ssub.s32 %s13, 1
      %p223 = scmp.lt.s32.totalorder %s18, 1
      %s224 = scalar_select %p223, %s18, 1
      %s225 = smul.addr %s224, 32
      %s226 = smul.addr %s225, 8
      %s227 = scalar_lea.vmem %s0, %s226
      %p228 = pneg %p39
      %p229 = pneg %p36
      %p230 = pneg %p60
      %p231 = pneg %p57
      %p232 = pneg %p81
      %p233 = pneg %p78
      %p234 = pneg %p102
      %p235 = pneg %p99
      %p236 = pneg %p128
      %p237 = pneg %p125
      %p238 = scmp.lt.s32.totalorder %s18, 1
      %s239 = scalar_select %p238, %s18, 1
      %s240 = smul.addr %s239, 32
      %s241 = smul.addr %s240, 8
      %s242 = scalar_lea.vmem %s4, %s241
      %p243 = pneg %p154
      %p244 = pneg %p151
      %p245 = scmp.lt.s32.totalorder %s18, 1
      %s246 = scalar_select %p245, %s18, 1
      %s247 = scalar_lea.vmem %s5, %s246
      %p248 = pneg %p180
      %p249 = pneg %p177
      %p250 = scmp.lt.s32.totalorder %s18, 1
      %s251 = scalar_select %p250, %s18, 1
      %s252 = scalar_lea.vmem %s6, %s251
      %p253 = scmp.lt.s32.totalorder %s18, 1
      %s254 = scalar_select %p253, %s18, 1
      %s255 = smul.addr %s254, 32
      %s256 = smul.addr %s255, 8
      %s257 = scalar_lea.vmem %s0, %s256
      %p258 = scmp.lt.s32.totalorder %s18, 1
      %s259 = scalar_select %p258, %s18, 1
      %s260 = smul.addr %s259, 32
      %s261 = smul.addr %s260, 8
      %s262 = scalar_lea.vmem %s4, %s261
      %p263 = scmp.lt.s32.totalorder %s18, 1
      %s264 = scalar_select %p263, %s18, 1
      %s265 = scalar_lea.vmem %s5, %s264
      %p266 = scmp.lt.s32.totalorder %s18, 1
      %s267 = scalar_select %p266, %s18, 1
      %s268 = scalar_lea.vmem %s6, %s267
      %v269 = vld [vmem:[%s1] sm:$0x1]
      %v270 = vld [vmem:[%s2] sm:$0x1]
      %v271 = vld [vmem:[%s257] sm:$0xff]
      %v272 = vld [vmem:[%s257 + $0x8] sm:$0xff]
      %v273 = vld [vmem:[%s257 + $0x10] sm:$0xff]
      %v274 = vld [vmem:[%s257 + $0x18] sm:$0xff]
      %v275 = vld [vmem:[%s257 + $0x20] sm:$0xff]
      %v276 = vld [vmem:[%s257 + $0x28] sm:$0xff]
      %v277 = vld [vmem:[%s257 + $0x30] sm:$0xff]
      %v278 = vld [vmem:[%s257 + $0x38] sm:$0xff]
      %v279 = vld [vmem:[%s257 + $0x40] sm:$0xff]
      %v280 = vld [vmem:[%s257 + $0x48] sm:$0xff]
      %v281 = vld [vmem:[%s257 + $0x50] sm:$0xff]
      %v282 = vld [vmem:[%s257 + $0x58] sm:$0xff]
      %v283 = vld [vmem:[%s257 + $0x60] sm:$0xff]
      %v284 = vld [vmem:[%s257 + $0x68] sm:$0xff]
      %v285 = vld [vmem:[%s257 + $0x70] sm:$0xff]
      %v286 = vld [vmem:[%s257 + $0x78] sm:$0xff]
      %v287 = vld [vmem:[%s257 + $0x80] sm:$0xff]
      %v288 = vld [vmem:[%s257 + $0x88] sm:$0xff]
      %v289 = vld [vmem:[%s257 + $0x90] sm:$0xff]
      %v290 = vld [vmem:[%s257 + $0x98] sm:$0xff]
      %v291 = vld [vmem:[%s257 + $0xa0] sm:$0xff]
      %v292 = vld [vmem:[%s257 + $0xa8] sm:$0xff]
      %v293 = vld [vmem:[%s257 + $0xb0] sm:$0xff]
      %v294 = vld [vmem:[%s257 + $0xb8] sm:$0xff]
      %v295 = vld [vmem:[%s257 + $0xc0] sm:$0xff]
      %v296 = vld [vmem:[%s257 + $0xc8] sm:$0xff]
      %v297 = vld [vmem:[%s257 + $0xd0] sm:$0xff]
      %v298 = vld [vmem:[%s257 + $0xd8] sm:$0xff]
      %v299 = vld [vmem:[%s257 + $0xe0] sm:$0xff]
      %v300 = vld [vmem:[%s257 + $0xe8] sm:$0xff]
      %v301 = vld [vmem:[%s257 + $0xf0] sm:$0xff]
      %v302 = vld [vmem:[%s257 + $0xf8] sm:$0xff]
      %v304 = vlaneseq
      %v305 = vshrl.u32 %v304, 7
      %v306 = vsub.s32 0, %v305
      %v307 = vrot.slane %v269, %v306
      %v309 = vmul.f32 %v271, %v307
      %v310 = vmul.f32 %v272, %v307
      %v311 = vmul.f32 %v273, %v307
      %v312 = vmul.f32 %v274, %v307
      %v313 = vmul.f32 %v275, %v307
      %v314 = vmul.f32 %v276, %v307
      %v315 = vmul.f32 %v277, %v307
      %v316 = vmul.f32 %v278, %v307
      %v317 = vmul.f32 %v279, %v307
      %v318 = vmul.f32 %v280, %v307
      %v319 = vmul.f32 %v281, %v307
      %v320 = vmul.f32 %v282, %v307
      %v321 = vmul.f32 %v283, %v307
      %v322 = vmul.f32 %v284, %v307
      %v323 = vmul.f32 %v285, %v307
      %v324 = vmul.f32 %v286, %v307
      %v325 = vmul.f32 %v287, %v307
      %v326 = vmul.f32 %v288, %v307
      %v327 = vmul.f32 %v289, %v307
      %v328 = vmul.f32 %v290, %v307
      %v329 = vmul.f32 %v291, %v307
      %v330 = vmul.f32 %v292, %v307
      %v331 = vmul.f32 %v293, %v307
      %v332 = vmul.f32 %v294, %v307
      %v333 = vmul.f32 %v295, %v307
      %v334 = vmul.f32 %v296, %v307
      %v335 = vmul.f32 %v297, %v307
      %v336 = vmul.f32 %v298, %v307
      %v337 = vmul.f32 %v299, %v307
      %v338 = vmul.f32 %v300, %v307
      %v339 = vmul.f32 %v301, %v307
      %v340 = vmul.f32 %v302, %v307
      %v342 = vlaneseq
      %v343 = vshrl.u32 %v342, 7
      %v344 = vsub.s32 0, %v343
      %v345 = vrot.slane %v270, %v344
      %v347 = vadd.f32 %v309, %v345
      %v348 = vadd.f32 %v310, %v345
      %v349 = vadd.f32 %v311, %v345
      %v350 = vadd.f32 %v312, %v345
      %v351 = vadd.f32 %v313, %v345
      %v352 = vadd.f32 %v314, %v345
      %v353 = vadd.f32 %v315, %v345
      %v354 = vadd.f32 %v316, %v345
      %v355 = vadd.f32 %v317, %v345
      %v356 = vadd.f32 %v318, %v345
      %v357 = vadd.f32 %v319, %v345
      %v358 = vadd.f32 %v320, %v345
      %v359 = vadd.f32 %v321, %v345
      %v360 = vadd.f32 %v322, %v345
      %v361 = vadd.f32 %v323, %v345
      %v362 = vadd.f32 %v324, %v345
      %v363 = vadd.f32 %v325, %v345
      %v364 = vadd.f32 %v326, %v345
      %v365 = vadd.f32 %v327, %v345
      %v366 = vadd.f32 %v328, %v345
      %v367 = vadd.f32 %v329, %v345
      %v368 = vadd.f32 %v330, %v345
      %v369 = vadd.f32 %v331, %v345
      %v370 = vadd.f32 %v332, %v345
      %v371 = vadd.f32 %v333, %v345
      %v372 = vadd.f32 %v334, %v345
      %v373 = vadd.f32 %v335, %v345
      %v374 = vadd.f32 %v336, %v345
      %v375 = vadd.f32 %v337, %v345
      %v376 = vadd.f32 %v338, %v345
      %v377 = vadd.f32 %v339, %v345
      %v378 = vadd.f32 %v340, %v345
      %v379 = vmax.f32 %v347, 0.0
      %v380 = vmax.f32 %v348, 0.0
      %v381 = vmax.f32 %v349, 0.0
      %v382 = vmax.f32 %v350, 0.0
      %v383 = vmax.f32 %v351, 0.0
      %v384 = vmax.f32 %v352, 0.0
      %v385 = vmax.f32 %v353, 0.0
      %v386 = vmax.f32 %v354, 0.0
      %v387 = vmax.f32 %v355, 0.0
      %v388 = vmax.f32 %v356, 0.0
      %v389 = vmax.f32 %v357, 0.0
      %v390 = vmax.f32 %v358, 0.0
      %v391 = vmax.f32 %v359, 0.0
      %v392 = vmax.f32 %v360, 0.0
      %v393 = vmax.f32 %v361, 0.0
      %v394 = vmax.f32 %v362, 0.0
      %v395 = vmax.f32 %v363, 0.0
      %v396 = vmax.f32 %v364, 0.0
      %v397 = vmax.f32 %v365, 0.0
      %v398 = vmax.f32 %v366, 0.0
      %v399 = vmax.f32 %v367, 0.0
      %v400 = vmax.f32 %v368, 0.0
      %v401 = vmax.f32 %v369, 0.0
      %v402 = vmax.f32 %v370, 0.0
      %v403 = vmax.f32 %v371, 0.0
      %v404 = vmax.f32 %v372, 0.0
      %v405 = vmax.f32 %v373, 0.0
      %v406 = vmax.f32 %v374, 0.0
      %v407 = vmax.f32 %v375, 0.0
      %v408 = vmax.f32 %v376, 0.0
      %v409 = vmax.f32 %v377, 0.0
      %v410 = vmax.f32 %v378, 0.0
      %vm411 = vcmask 31744
      %412 = vst.msk [vmem:[#allocation2] sm:$0xff] %vm411, 0.0
      %413 = vst.msk [vmem:[#allocation2 + $0x8] sm:$0xff] %vm411, 0.0
      %vm414 = vcmask 25600
      %415 = vst.msk [vmem:[#allocation2 + $0x10] sm:$0x3] %vm414, 0.0
      %416 = vst.msk [vmem:[#allocation2 + $0x18] sm:$0xff] %vm411, 0.0
      %417 = vst.msk [vmem:[#allocation2 + $0x20] sm:$0xff] %vm411, 0.0
      %418 = vst.msk [vmem:[#allocation2 + $0x28] sm:$0x3] %vm414, 0.0
      %419 = vst.msk [vmem:[#allocation2 + $0x30] sm:$0xff] %vm411, 0.0
      %420 = vst.msk [vmem:[#allocation2 + $0x38] sm:$0xff] %vm411, 0.0
      %421 = vst.msk [vmem:[#allocation2 + $0x40] sm:$0x3] %vm414, 0.0
      %422 = vst.msk [vmem:[#allocation2 + $0x48] sm:$0xff] %vm411, 0.0
      %423 = vst.msk [vmem:[#allocation2 + $0x50] sm:$0xff] %vm411, 0.0
      %424 = vst.msk [vmem:[#allocation2 + $0x58] sm:$0x3] %vm414, 0.0
      %425 = vst.msk [vmem:[#allocation2 + $0x60] sm:$0xff] %vm411, 0.0
      %426 = vst.msk [vmem:[#allocation2 + $0x68] sm:$0xff] %vm411, 0.0
      %427 = vst.msk [vmem:[#allocation2 + $0x70] sm:$0x3] %vm414, 0.0
      %428 = vst.msk [vmem:[#allocation2 + $0x78] sm:$0xff] %vm411, 0.0
      %429 = vst.msk [vmem:[#allocation2 + $0x80] sm:$0xff] %vm411, 0.0
      %430 = vst.msk [vmem:[#allocation2 + $0x88] sm:$0x3] %vm414, 0.0
      %431 = vst.msk [vmem:[#allocation2 + $0x90] sm:$0xff] %vm411, 0.0
      %432 = vst.msk [vmem:[#allocation2 + $0x98] sm:$0xff] %vm411, 0.0
      %433 = vst.msk [vmem:[#allocation2 + $0xa0] sm:$0x3] %vm414, 0.0
      %434 = vst.msk [vmem:[#allocation2 + $0xa8] sm:$0xff] %vm411, 0.0
      %435 = vst.msk [vmem:[#allocation2 + $0xb0] sm:$0xff] %vm411, 0.0
      %436 = vst.msk [vmem:[#allocation2 + $0xb8] sm:$0x3] %vm414, 0.0
      %437 = vst.msk [vmem:[#allocation2 + $0xc0] sm:$0xff] %vm411, 0.0
      %438 = vst.msk [vmem:[#allocation2 + $0xc8] sm:$0xff] %vm411, 0.0
      %439 = vst.msk [vmem:[#allocation2 + $0xd0] sm:$0x3] %vm414, 0.0
      %440 = vst.msk [vmem:[#allocation2 + $0xd8] sm:$0xff] %vm411, 0.0
      %441 = vst.msk [vmem:[#allocation2 + $0xe0] sm:$0xff] %vm411, 0.0
      %442 = vst.msk [vmem:[#allocation2 + $0xe8] sm:$0x3] %vm414, 0.0
      %443 = vst.msk [vmem:[#allocation2 + $0xf0] sm:$0xff] %vm411, 0.0
      %444 = vst.msk [vmem:[#allocation2 + $0xf8] sm:$0xff] %vm411, 0.0
      %445 = vst.msk [vmem:[#allocation2 + $0x100] sm:$0x3] %vm414, 0.0
      %446 = vst.msk [vmem:[#allocation2 + $0x108] sm:$0xff] %vm411, 0.0
      %447 = vst.msk [vmem:[#allocation2 + $0x110] sm:$0xff] %vm411, 0.0
      %448 = vst.msk [vmem:[#allocation2 + $0x118] sm:$0x3] %vm414, 0.0
      %449 = vst.msk [vmem:[#allocation2 + $0x120] sm:$0xff] %vm411, 0.0
      %450 = vst.msk [vmem:[#allocation2 + $0x128] sm:$0xff] %vm411, 0.0
      %451 = vst.msk [vmem:[#allocation2 + $0x130] sm:$0x3] %vm414, 0.0
      %452 = vst.msk [vmem:[#allocation2 + $0x138] sm:$0xff] %vm411, 0.0
      %453 = vst.msk [vmem:[#allocation2 + $0x140] sm:$0xff] %vm411, 0.0
      %454 = vst.msk [vmem:[#allocation2 + $0x148] sm:$0x3] %vm414, 0.0
      %455 = vst.msk [vmem:[#allocation2 + $0x150] sm:$0xff] %vm411, 0.0
      %456 = vst.msk [vmem:[#allocation2 + $0x158] sm:$0xff] %vm411, 0.0
      %457 = vst.msk [vmem:[#allocation2 + $0x160] sm:$0x3] %vm414, 0.0
      %458 = vst.msk [vmem:[#allocation2 + $0x168] sm:$0xff] %vm411, 0.0
      %459 = vst.msk [vmem:[#allocation2 + $0x170] sm:$0xff] %vm411, 0.0
      %460 = vst.msk [vmem:[#allocation2 + $0x178] sm:$0x3] %vm414, 0.0
      %461 = vst.msk [vmem:[#allocation2 + $0x180] sm:$0xff] %vm411, 0.0
      %462 = vst.msk [vmem:[#allocation2 + $0x188] sm:$0xff] %vm411, 0.0
      %463 = vst.msk [vmem:[#allocation2 + $0x190] sm:$0x3] %vm414, 0.0
      %464 = vst.msk [vmem:[#allocation2 + $0x198] sm:$0xff] %vm411, 0.0
      %465 = vst.msk [vmem:[#allocation2 + $0x1a0] sm:$0xff] %vm411, 0.0
      %466 = vst.msk [vmem:[#allocation2 + $0x1a8] sm:$0x3] %vm414, 0.0
      %s467 = scalar_lea.vmem [#allocation2], 24
      %468 = vst.msk [vmem:[%s467 + $0x1] sm:$0xff] %vm411, %v379
      %469 = vst.msk [vmem:[%s467 + $0x9] sm:$0xff] %vm411, %v380
      %470 = vst.msk [vmem:[%s467 + $0x19] sm:$0xff] %vm411, %v381
      %471 = vst.msk [vmem:[%s467 + $0x21] sm:$0xff] %vm411, %v382
      %472 = vst.msk [vmem:[%s467 + $0x31] sm:$0xff] %vm411, %v383
      %473 = vst.msk [vmem:[%s467 + $0x39] sm:$0xff] %vm411, %v384
      %474 = vst.msk [vmem:[%s467 + $0x49] sm:$0xff] %vm411, %v385
      %475 = vst.msk [vmem:[%s467 + $0x51] sm:$0xff] %vm411, %v386
      %476 = vst.msk [vmem:[%s467 + $0x61] sm:$0xff] %vm411, %v387
      %477 = vst.msk [vmem:[%s467 + $0x69] sm:$0xff] %vm411, %v388
      %478 = vst.msk [vmem:[%s467 + $0x79] sm:$0xff] %vm411, %v389
      %479 = vst.msk [vmem:[%s467 + $0x81] sm:$0xff] %vm411, %v390
      %480 = vst.msk [vmem:[%s467 + $0x91] sm:$0xff] %vm411, %v391
      %481 = vst.msk [vmem:[%s467 + $0x99] sm:$0xff] %vm411, %v392
      %482 = vst.msk [vmem:[%s467 + $0xa9] sm:$0xff] %vm411, %v393
      %483 = vst.msk [vmem:[%s467 + $0xb1] sm:$0xff] %vm411, %v394
      %484 = vst.msk [vmem:[%s467 + $0xc1] sm:$0xff] %vm411, %v395
      %485 = vst.msk [vmem:[%s467 + $0xc9] sm:$0xff] %vm411, %v396
      %486 = vst.msk [vmem:[%s467 + $0xd9] sm:$0xff] %vm411, %v397
      %487 = vst.msk [vmem:[%s467 + $0xe1] sm:$0xff] %vm411, %v398
      %488 = vst.msk [vmem:[%s467 + $0xf1] sm:$0xff] %vm411, %v399
      %489 = vst.msk [vmem:[%s467 + $0xf9] sm:$0xff] %vm411, %v400
      %490 = vst.msk [vmem:[%s467 + $0x109] sm:$0xff] %vm411, %v401
      %491 = vst.msk [vmem:[%s467 + $0x111] sm:$0xff] %vm411, %v402
      %492 = vst.msk [vmem:[%s467 + $0x121] sm:$0xff] %vm411, %v403
      %493 = vst.msk [vmem:[%s467 + $0x129] sm:$0xff] %vm411, %v404
      %494 = vst.msk [vmem:[%s467 + $0x139] sm:$0xff] %vm411, %v405
      %495 = vst.msk [vmem:[%s467 + $0x141] sm:$0xff] %vm411, %v406
      %496 = vst.msk [vmem:[%s467 + $0x151] sm:$0xff] %vm411, %v407
      %497 = vst.msk [vmem:[%s467 + $0x159] sm:$0xff] %vm411, %v408
      %498 = vst.msk [vmem:[%s467 + $0x169] sm:$0xff] %vm411, %v409
      %499 = vst.msk [vmem:[%s467 + $0x171] sm:$0xff] %vm411, %v410
      %v500 = vld [vmem:[#allocation2] sm:$0xff]
      %v501 = vld [vmem:[#allocation2 + $0x8] sm:$0xff]
      %v502 = vld [vmem:[#allocation2 + $0x10] sm:$0x3]
      %v503 = vld [vmem:[#allocation2 + $0x18] sm:$0xff]
      %v504 = vld [vmem:[#allocation2 + $0x20] sm:$0xff]
      %v505 = vld [vmem:[#allocation2 + $0x28] sm:$0x3]
      %v506 = vld [vmem:[#allocation2 + $0x30] sm:$0xff]
      %v507 = vld [vmem:[#allocation2 + $0x38] sm:$0xff]
      %v508 = vld [vmem:[#allocation2 + $0x40] sm:$0x3]
      %v509 = vld [vmem:[#allocation2 + $0x48] sm:$0xff]
      %v510 = vld [vmem:[#allocation2 + $0x50] sm:$0xff]
      %v511 = vld [vmem:[#allocation2 + $0x58] sm:$0x3]
      %v512 = vld [vmem:[#allocation2 + $0x60] sm:$0xff]
      %v513 = vld [vmem:[#allocation2 + $0x68] sm:$0xff]
      %v514 = vld [vmem:[#allocation2 + $0x70] sm:$0x3]
      %v515 = vld [vmem:[#allocation2 + $0x78] sm:$0xff]
      %v516 = vld [vmem:[#allocation2 + $0x80] sm:$0xff]
      %v517 = vld [vmem:[#allocation2 + $0x88] sm:$0x3]
      %v518 = vld [vmem:[#allocation2 + $0x90] sm:$0xff]
      %v519 = vld [vmem:[#allocation2 + $0x98] sm:$0xff]
      %v520 = vld [vmem:[#allocation2 + $0xa0] sm:$0x3]
      %v521 = vld [vmem:[#allocation2 + $0xa8] sm:$0xff]
      %v522 = vld [vmem:[#allocation2 + $0xb0] sm:$0xff]
      %v523 = vld [vmem:[#allocation2 + $0xb8] sm:$0x3]
      %v524 = vld [vmem:[#allocation2 + $0xc0] sm:$0xff]
      %v525 = vld [vmem:[#allocation2 + $0xc8] sm:$0xff]
      %v526 = vld [vmem:[#allocation2 + $0xd0] sm:$0x3]
      %v527 = vld [vmem:[#allocation2 + $0xd8] sm:$0xff]
      %v528 = vld [vmem:[#allocation2 + $0xe0] sm:$0xff]
      %v529 = vld [vmem:[#allocation2 + $0xe8] sm:$0x3]
      %v530 = vld [vmem:[#allocation2 + $0xf0] sm:$0xff]
      %v531 = vld [vmem:[#allocation2 + $0xf8] sm:$0xff]
      %v532 = vld [vmem:[#allocation2 + $0x100] sm:$0x3]
      %v533 = vld [vmem:[#allocation2 + $0x108] sm:$0xff]
      %v534 = vld [vmem:[#allocation2 + $0x110] sm:$0xff]
      %v535 = vld [vmem:[#allocation2 + $0x118] sm:$0x3]
      %v536 = vld [vmem:[#allocation2 + $0x120] sm:$0xff]
      %v537 = vld [vmem:[#allocation2 + $0x128] sm:$0xff]
      %v538 = vld [vmem:[#allocation2 + $0x130] sm:$0x3]
      %v539 = vld [vmem:[#allocation2 + $0x138] sm:$0xff]
      %v540 = vld [vmem:[#allocation2 + $0x140] sm:$0xff]
      %v541 = vld [vmem:[#allocation2 + $0x148] sm:$0x3]
      %v542 = vld [vmem:[#allocation2 + $0x150] sm:$0xff]
      %v543 = vld [vmem:[#allocation2 + $0x158] sm:$0xff]
      %v544 = vld [vmem:[#allocation2 + $0x160] sm:$0x3]
      %v545 = vld [vmem:[#allocation2 + $0x168] sm:$0xff]
      %v546 = vld [vmem:[#allocation2 + $0x170] sm:$0xff]
      %v547 = vld [vmem:[#allocation2 + $0x178] sm:$0x3]
      %vm596 = vcmask 1046528
      %v597 = vrot.slane %v500, 1
      %v598 = vrot.slane %v501, 1
      %v599 = vsel %vm596, %v597, %v598
      %v600 = vrot.slane %v502, 1
      %v601 = vsel %vm596, %v598, %v600
      %v602 = vrot.slane %v503, 1
      %v603 = vrot.slane %v504, 1
      %v604 = vsel %vm596, %v602, %v603
      %v605 = vrot.slane %v505, 1
      %v606 = vsel %vm596, %v603, %v605
      %v607 = vrot.slane %v506, 1
      %v608 = vrot.slane %v507, 1
      %v609 = vsel %vm596, %v607, %v608
      %v610 = vrot.slane %v508, 1
      %v611 = vsel %vm596, %v608, %v610
      %v612 = vrot.slane %v509, 1
      %v613 = vrot.slane %v510, 1
      %v614 = vsel %vm596, %v612, %v613
      %v615 = vrot.slane %v511, 1
      %v616 = vsel %vm596, %v613, %v615
      %v617 = vrot.slane %v512, 1
      %v618 = vrot.slane %v513, 1
      %v619 = vsel %vm596, %v617, %v618
      %v620 = vrot.slane %v514, 1
      %v621 = vsel %vm596, %v618, %v620
      %v622 = vrot.slane %v515, 1
      %v623 = vrot.slane %v516, 1
      %v624 = vsel %vm596, %v622, %v623
      %v625 = vrot.slane %v517, 1
      %v626 = vsel %vm596, %v623, %v625
      %v627 = vrot.slane %v518, 1
      %v628 = vrot.slane %v519, 1
      %v629 = vsel %vm596, %v627, %v628
      %v630 = vrot.slane %v520, 1
      %v631 = vsel %vm596, %v628, %v630
      %v632 = vrot.slane %v521, 1
      %v633 = vrot.slane %v522, 1
      %v634 = vsel %vm596, %v632, %v633
      %v635 = vrot.slane %v523, 1
      %v636 = vsel %vm596, %v633, %v635
      %v637 = vrot.slane %v524, 1
      %v638 = vrot.slane %v525, 1
      %v639 = vsel %vm596, %v637, %v638
      %v640 = vrot.slane %v526, 1
      %v641 = vsel %vm596, %v638, %v640
      %v642 = vrot.slane %v527, 1
      %v643 = vrot.slane %v528, 1
      %v644 = vsel %vm596, %v642, %v643
      %v645 = vrot.slane %v529, 1
      %v646 = vsel %vm596, %v643, %v645
      %v647 = vrot.slane %v530, 1
      %v648 = vrot.slane %v531, 1
      %v649 = vsel %vm596, %v647, %v648
      %v650 = vrot.slane %v532, 1
      %v651 = vsel %vm596, %v648, %v650
      %v652 = vrot.slane %v533, 1
      %v653 = vrot.slane %v534, 1
      %v654 = vsel %vm596, %v652, %v653
      %v655 = vrot.slane %v535, 1
      %v656 = vsel %vm596, %v653, %v655
      %v657 = vrot.slane %v536, 1
      %v658 = vrot.slane %v537, 1
      %v659 = vsel %vm596, %v657, %v658
      %v660 = vrot.slane %v538, 1
      %v661 = vsel %vm596, %v658, %v660
      %v662 = vrot.slane %v539, 1
      %v663 = vrot.slane %v540, 1
      %v664 = vsel %vm596, %v662, %v663
      %v665 = vrot.slane %v541, 1
      %v666 = vsel %vm596, %v663, %v665
      %v667 = vrot.slane %v542, 1
      %v668 = vrot.slane %v543, 1
      %v669 = vsel %vm596, %v667, %v668
      %v670 = vrot.slane %v544, 1
      %v671 = vsel %vm596, %v668, %v670
      %v672 = vrot.slane %v545, 1
      %v673 = vrot.slane %v546, 1
      %v674 = vsel %vm596, %v672, %v673
      %v675 = vrot.slane %v547, 1
      %v676 = vsel %vm596, %v673, %v675
      %677 = vrot.lane.b32.xlu0 %v599, 4
      %v678 = vpop.permute.xlu0 %677
      %679 = vrot.lane.b32.xlu0 %v601, 4
      %v680 = vpop.permute.xlu0 %679
      %681 = vrot.lane.b32.xlu0 %v604, 4
      %v682 = vpop.permute.xlu0 %681
      %683 = vrot.lane.b32.xlu0 %v606, 4
      %v684 = vpop.permute.xlu0 %683
      %685 = vrot.lane.b32.xlu0 %v609, 4
      %v686 = vpop.permute.xlu0 %685
      %687 = vrot.lane.b32.xlu0 %v611, 4
      %v688 = vpop.permute.xlu0 %687
      %689 = vrot.lane.b32.xlu0 %v614, 4
      %v690 = vpop.permute.xlu0 %689
      %691 = vrot.lane.b32.xlu0 %v616, 4
      %v692 = vpop.permute.xlu0 %691
      %693 = vrot.lane.b32.xlu0 %v619, 4
      %v694 = vpop.permute.xlu0 %693
      %695 = vrot.lane.b32.xlu0 %v621, 4
      %v696 = vpop.permute.xlu0 %695
      %697 = vrot.lane.b32.xlu0 %v624, 4
      %v698 = vpop.permute.xlu0 %697
      %699 = vrot.lane.b32.xlu0 %v626, 4
      %v700 = vpop.permute.xlu0 %699
      %701 = vrot.lane.b32.xlu0 %v629, 4
      %v702 = vpop.permute.xlu0 %701
      %703 = vrot.lane.b32.xlu0 %v631, 4
      %v704 = vpop.permute.xlu0 %703
      %705 = vrot.lane.b32.xlu0 %v634, 4
      %v706 = vpop.permute.xlu0 %705
      %707 = vrot.lane.b32.xlu0 %v636, 4
      %v708 = vpop.permute.xlu0 %707
      %709 = vrot.lane.b32.xlu0 %v639, 4
      %v710 = vpop.permute.xlu0 %709
      %711 = vrot.lane.b32.xlu0 %v641, 4
      %v712 = vpop.permute.xlu0 %711
      %713 = vrot.lane.b32.xlu0 %v644, 4
      %v714 = vpop.permute.xlu0 %713
      %715 = vrot.lane.b32.xlu0 %v646, 4
      %v716 = vpop.permute.xlu0 %715
      %717 = vrot.lane.b32.xlu0 %v649, 4
      %v718 = vpop.permute.xlu0 %717
      %719 = vrot.lane.b32.xlu0 %v651, 4
      %v720 = vpop.permute.xlu0 %719
      %721 = vrot.lane.b32.xlu0 %v654, 4
      %v722 = vpop.permute.xlu0 %721
      %723 = vrot.lane.b32.xlu0 %v656, 4
      %v724 = vpop.permute.xlu0 %723
      %725 = vrot.lane.b32.xlu0 %v659, 4
      %v726 = vpop.permute.xlu0 %725
      %727 = vrot.lane.b32.xlu0 %v661, 4
      %v728 = vpop.permute.xlu0 %727
      %729 = vrot.lane.b32.xlu0 %v664, 4
      %v730 = vpop.permute.xlu0 %729
      %731 = vrot.lane.b32.xlu0 %v666, 4
      %v732 = vpop.permute.xlu0 %731
      %733 = vrot.lane.b32.xlu0 %v669, 4
      %v734 = vpop.permute.xlu0 %733
      %735 = vrot.lane.b32.xlu0 %v671, 4
      %v736 = vpop.permute.xlu0 %735
      %737 = vrot.lane.b32.xlu0 %v674, 4
      %v738 = vpop.permute.xlu0 %737
      %739 = vrot.lane.b32.xlu0 %v676, 4
      %v740 = vpop.permute.xlu0 %739
      %vm773 = vcmask 1045504
      %v774 = vrot.slane %v500, 2
      %v775 = vrot.slane %v501, 2
      %v776 = vsel %vm773, %v774, %v775
      %v777 = vrot.slane %v502, 2
      %v778 = vsel %vm773, %v775, %v777
      %v779 = vrot.slane %v503, 2
      %v780 = vrot.slane %v504, 2
      %v781 = vsel %vm773, %v779, %v780
      %v782 = vrot.slane %v505, 2
      %v783 = vsel %vm773, %v780, %v782
      %v784 = vrot.slane %v506, 2
      %v785 = vrot.slane %v507, 2
      %v786 = vsel %vm773, %v784, %v785
      %v787 = vrot.slane %v508, 2
      %v788 = vsel %vm773, %v785, %v787
      %v789 = vrot.slane %v509, 2
      %v790 = vrot.slane %v510, 2
      %v791 = vsel %vm773, %v789, %v790
      %v792 = vrot.slane %v511, 2
      %v793 = vsel %vm773, %v790, %v792
      %v794 = vrot.slane %v512, 2
      %v795 = vrot.slane %v513, 2
      %v796 = vsel %vm773, %v794, %v795
      %v797 = vrot.slane %v514, 2
      %v798 = vsel %vm773, %v795, %v797
      %v799 = vrot.slane %v515, 2
      %v800 = vrot.slane %v516, 2
      %v801 = vsel %vm773, %v799, %v800
      %v802 = vrot.slane %v517, 2
      %v803 = vsel %vm773, %v800, %v802
      %v804 = vrot.slane %v518, 2
      %v805 = vrot.slane %v519, 2
      %v806 = vsel %vm773, %v804, %v805
      %v807 = vrot.slane %v520, 2
      %v808 = vsel %vm773, %v805, %v807
      %v809 = vrot.slane %v521, 2
      %v810 = vrot.slane %v522, 2
      %v811 = vsel %vm773, %v809, %v810
      %v812 = vrot.slane %v523, 2
      %v813 = vsel %vm773, %v810, %v812
      %v814 = vrot.slane %v524, 2
      %v815 = vrot.slane %v525, 2
      %v816 = vsel %vm773, %v814, %v815
      %v817 = vrot.slane %v526, 2
      %v818 = vsel %vm773, %v815, %v817
      %v819 = vrot.slane %v527, 2
      %v820 = vrot.slane %v528, 2
      %v821 = vsel %vm773, %v819, %v820
      %v822 = vrot.slane %v529, 2
      %v823 = vsel %vm773, %v820, %v822
      %v824 = vrot.slane %v530, 2
      %v825 = vrot.slane %v531, 2
      %v826 = vsel %vm773, %v824, %v825
      %v827 = vrot.slane %v532, 2
      %v828 = vsel %vm773, %v825, %v827
      %v829 = vrot.slane %v533, 2
      %v830 = vrot.slane %v534, 2
      %v831 = vsel %vm773, %v829, %v830
      %v832 = vrot.slane %v535, 2
      %v833 = vsel %vm773, %v830, %v832
      %v834 = vrot.slane %v536, 2
      %v835 = vrot.slane %v537, 2
      %v836 = vsel %vm773, %v834, %v835
      %v837 = vrot.slane %v538, 2
      %v838 = vsel %vm773, %v835, %v837
      %v839 = vrot.slane %v539, 2
      %v840 = vrot.slane %v540, 2
      %v841 = vsel %vm773, %v839, %v840
      %v842 = vrot.slane %v541, 2
      %v843 = vsel %vm773, %v840, %v842
      %v844 = vrot.slane %v542, 2
      %v845 = vrot.slane %v543, 2
      %v846 = vsel %vm773, %v844, %v845
      %v847 = vrot.slane %v544, 2
      %v848 = vsel %vm773, %v845, %v847
      %v849 = vrot.slane %v545, 2
      %v850 = vrot.slane %v546, 2
      %v851 = vsel %vm773, %v849, %v850
      %v852 = vrot.slane %v547, 2
      %v853 = vsel %vm773, %v850, %v852
      %854 = vrot.lane.b32.xlu0 %v776, 8
      %v855 = vpop.permute.xlu0 %854
      %856 = vrot.lane.b32.xlu0 %v778, 8
      %v857 = vpop.permute.xlu0 %856
      %858 = vrot.lane.b32.xlu0 %v781, 8
      %v859 = vpop.permute.xlu0 %858
      %860 = vrot.lane.b32.xlu0 %v783, 8
      %v861 = vpop.permute.xlu0 %860
      %862 = vrot.lane.b32.xlu0 %v786, 8
      %v863 = vpop.permute.xlu0 %862
      %864 = vrot.lane.b32.xlu0 %v788, 8
      %v865 = vpop.permute.xlu0 %864
      %866 = vrot.lane.b32.xlu0 %v791, 8
      %v867 = vpop.permute.xlu0 %866
      %868 = vrot.lane.b32.xlu0 %v793, 8
      %v869 = vpop.permute.xlu0 %868
      %870 = vrot.lane.b32.xlu0 %v796, 8
      %v871 = vpop.permute.xlu0 %870
      %872 = vrot.lane.b32.xlu0 %v798, 8
      %v873 = vpop.permute.xlu0 %872
      %874 = vrot.lane.b32.xlu0 %v801, 8
      %v875 = vpop.permute.xlu0 %874
      %876 = vrot.lane.b32.xlu0 %v803, 8
      %v877 = vpop.permute.xlu0 %876
      %878 = vrot.lane.b32.xlu0 %v806, 8
      %v879 = vpop.permute.xlu0 %878
      %880 = vrot.lane.b32.xlu0 %v808, 8
      %v881 = vpop.permute.xlu0 %880
      %882 = vrot.lane.b32.xlu0 %v811, 8
      %v883 = vpop.permute.xlu0 %882
      %884 = vrot.lane.b32.xlu0 %v813, 8
      %v885 = vpop.permute.xlu0 %884
      %886 = vrot.lane.b32.xlu0 %v816, 8
      %v887 = vpop.permute.xlu0 %886
      %888 = vrot.lane.b32.xlu0 %v818, 8
      %v889 = vpop.permute.xlu0 %888
      %890 = vrot.lane.b32.xlu0 %v821, 8
      %v891 = vpop.permute.xlu0 %890
      %892 = vrot.lane.b32.xlu0 %v823, 8
      %v893 = vpop.permute.xlu0 %892
      %894 = vrot.lane.b32.xlu0 %v826, 8
      %v895 = vpop.permute.xlu0 %894
      %896 = vrot.lane.b32.xlu0 %v828, 8
      %v897 = vpop.permute.xlu0 %896
      %898 = vrot.lane.b32.xlu0 %v831, 8
      %v899 = vpop.permute.xlu0 %898
      %900 = vrot.lane.b32.xlu0 %v833, 8
      %v901 = vpop.permute.xlu0 %900
      %902 = vrot.lane.b32.xlu0 %v836, 8
      %v903 = vpop.permute.xlu0 %902
      %904 = vrot.lane.b32.xlu0 %v838, 8
      %v905 = vpop.permute.xlu0 %904
      %906 = vrot.lane.b32.xlu0 %v841, 8
      %v907 = vpop.permute.xlu0 %906
      %908 = vrot.lane.b32.xlu0 %v843, 8
      %v909 = vpop.permute.xlu0 %908
      %910 = vrot.lane.b32.xlu0 %v846, 8
      %v911 = vpop.permute.xlu0 %910
      %912 = vrot.lane.b32.xlu0 %v848, 8
      %v913 = vpop.permute.xlu0 %912
      %914 = vrot.lane.b32.xlu0 %v851, 8
      %v915 = vpop.permute.xlu0 %914
      %916 = vrot.lane.b32.xlu0 %v853, 8
      %v917 = vpop.permute.xlu0 %916
      %v950 = vsel %vm411, %v500, %v678
      %v951 = vsel %vm411, %v501, %v680
      %v952 = vsel %vm411, %v503, %v682
      %v953 = vsel %vm411, %v504, %v684
      %v954 = vsel %vm411, %v506, %v686
      %v955 = vsel %vm411, %v507, %v688
      %v956 = vsel %vm411, %v509, %v690
      %v957 = vsel %vm411, %v510, %v692
      %v958 = vsel %vm411, %v512, %v694
      %v959 = vsel %vm411, %v513, %v696
      %v960 = vsel %vm411, %v515, %v698
      %v961 = vsel %vm411, %v516, %v700
      %v962 = vsel %vm411, %v518, %v702
      %v963 = vsel %vm411, %v519, %v704
      %v964 = vsel %vm411, %v521, %v706
      %v965 = vsel %vm411, %v522, %v708
      %v966 = vsel %vm411, %v524, %v710
      %v967 = vsel %vm411, %v525, %v712
      %v968 = vsel %vm411, %v527, %v714
      %v969 = vsel %vm411, %v528, %v716
      %v970 = vsel %vm411, %v530, %v718
      %v971 = vsel %vm411, %v531, %v720
      %v972 = vsel %vm411, %v533, %v722
      %v973 = vsel %vm411, %v534, %v724
      %v974 = vsel %vm411, %v536, %v726
      %v975 = vsel %vm411, %v537, %v728
      %v976 = vsel %vm411, %v539, %v730
      %v977 = vsel %vm411, %v540, %v732
      %v978 = vsel %vm411, %v542, %v734
      %v979 = vsel %vm411, %v543, %v736
      %v980 = vsel %vm411, %v545, %v738
      %v981 = vsel %vm411, %v546, %v740
      %vm982 = vcmask 64512
      %v983 = vsel %vm982, %v950, %v855
      %v984 = vsel %vm982, %v951, %v857
      %v985 = vsel %vm982, %v952, %v859
      %v986 = vsel %vm982, %v953, %v861
      %v987 = vsel %vm982, %v954, %v863
      %v988 = vsel %vm982, %v955, %v865
      %v989 = vsel %vm982, %v956, %v867
      %v990 = vsel %vm982, %v957, %v869
      %v991 = vsel %vm982, %v958, %v871
      %v992 = vsel %vm982, %v959, %v873
      %v993 = vsel %vm982, %v960, %v875
      %v994 = vsel %vm982, %v961, %v877
      %v995 = vsel %vm982, %v962, %v879
      %v996 = vsel %vm982, %v963, %v881
      %v997 = vsel %vm982, %v964, %v883
      %v998 = vsel %vm982, %v965, %v885
      %v999 = vsel %vm982, %v966, %v887
      %v1000 = vsel %vm982, %v967, %v889
      %v1001 = vsel %vm982, %v968, %v891
      %v1002 = vsel %vm982, %v969, %v893
      %v1003 = vsel %vm982, %v970, %v895
      %v1004 = vsel %vm982, %v971, %v897
      %v1005 = vsel %vm982, %v972, %v899
      %v1006 = vsel %vm982, %v973, %v901
      %v1007 = vsel %vm982, %v974, %v903
      %v1008 = vsel %vm982, %v975, %v905
      %v1009 = vsel %vm982, %v976, %v907
      %v1010 = vsel %vm982, %v977, %v909
      %v1011 = vsel %vm982, %v978, %v911
      %v1012 = vsel %vm982, %v979, %v913
      %v1013 = vsel %vm982, %v980, %v915
      %v1014 = vsel %vm982, %v981, %v917
      %v1015 = vld [vmem:[%s3] sm:$0xff]
      %v1016 = vld [vmem:[%s3 + $0x8] sm:$0xf]
      %v1017 = vld [vmem:[%s467] sm:$0xff]
      %v1018 = vld [vmem:[%s467 + $0x8] sm:$0xff]
      %v1019 = vld [vmem:[%s467 + $0x10] sm:$0x3]
      %v1020 = vld [vmem:[%s467 + $0x18] sm:$0xff]
      %v1021 = vld [vmem:[%s467 + $0x20] sm:$0xff]
      %v1022 = vld [vmem:[%s467 + $0x28] sm:$0x3]
      %v1023 = vld [vmem:[%s467 + $0x30] sm:$0xff]
      %v1024 = vld [vmem:[%s467 + $0x38] sm:$0xff]
      %v1025 = vld [vmem:[%s467 + $0x40] sm:$0x3]
      %v1026 = vld [vmem:[%s467 + $0x48] sm:$0xff]
      %v1027 = vld [vmem:[%s467 + $0x50] sm:$0xff]
      %v1028 = vld [vmem:[%s467 + $0x58] sm:$0x3]
      %v1029 = vld [vmem:[%s467 + $0x60] sm:$0xff]
      %v1030 = vld [vmem:[%s467 + $0x68] sm:$0xff]
      %v1031 = vld [vmem:[%s467 + $0x70] sm:$0x3]
      %v1032 = vld [vmem:[%s467 + $0x78] sm:$0xff]
      %v1033 = vld [vmem:[%s467 + $0x80] sm:$0xff]
      %v1034 = vld [vmem:[%s467 + $0x88] sm:$0x3]
      %v1035 = vld [vmem:[%s467 + $0x90] sm:$0xff]
      %v1036 = vld [vmem:[%s467 + $0x98] sm:$0xff]
      %v1037 = vld [vmem:[%s467 + $0xa0] sm:$0x3]
      %v1038 = vld [vmem:[%s467 + $0xa8] sm:$0xff]
      %v1039 = vld [vmem:[%s467 + $0xb0] sm:$0xff]
      %v1040 = vld [vmem:[%s467 + $0xb8] sm:$0x3]
      %v1041 = vld [vmem:[%s467 + $0xc0] sm:$0xff]
      %v1042 = vld [vmem:[%s467 + $0xc8] sm:$0xff]
      %v1043 = vld [vmem:[%s467 + $0xd0] sm:$0x3]
      %v1044 = vld [vmem:[%s467 + $0xd8] sm:$0xff]
      %v1045 = vld [vmem:[%s467 + $0xe0] sm:$0xff]
      %v1046 = vld [vmem:[%s467 + $0xe8] sm:$0x3]
      %v1047 = vld [vmem:[%s467 + $0xf0] sm:$0xff]
      %v1048 = vld [vmem:[%s467 + $0xf8] sm:$0xff]
      %v1049 = vld [vmem:[%s467 + $0x100] sm:$0x3]
      %v1050 = vld [vmem:[%s467 + $0x108] sm:$0xff]
      %v1051 = vld [vmem:[%s467 + $0x110] sm:$0xff]
      %v1052 = vld [vmem:[%s467 + $0x118] sm:$0x3]
      %v1053 = vld [vmem:[%s467 + $0x120] sm:$0xff]
      %v1054 = vld [vmem:[%s467 + $0x128] sm:$0xff]
      %v1055 = vld [vmem:[%s467 + $0x130] sm:$0x3]
      %v1056 = vld [vmem:[%s467 + $0x138] sm:$0xff]
      %v1057 = vld [vmem:[%s467 + $0x140] sm:$0xff]
      %v1058 = vld [vmem:[%s467 + $0x148] sm:$0x3]
      %v1059 = vld [vmem:[%s467 + $0x150] sm:$0xff]
      %v1060 = vld [vmem:[%s467 + $0x158] sm:$0xff]
      %v1061 = vld [vmem:[%s467 + $0x160] sm:$0x3]
      %v1062 = vld [vmem:[%s467 + $0x168] sm:$0xff]
      %v1063 = vld [vmem:[%s467 + $0x170] sm:$0xff]
      %v1064 = vld [vmem:[%s467 + $0x178] sm:$0x3]
      %v1113 = vrot.slane %v1017, 1
      %v1114 = vrot.slane %v1018, 1
      %v1115 = vsel %vm596, %v1113, %v1114
      %v1116 = vrot.slane %v1019, 1
      %v1117 = vsel %vm596, %v1114, %v1116
      %v1118 = vrot.slane %v1020, 1
      %v1119 = vrot.slane %v1021, 1
      %v1120 = vsel %vm596, %v1118, %v1119
      %v1121 = vrot.slane %v1022, 1
      %v1122 = vsel %vm596, %v1119, %v1121
      %v1123 = vrot.slane %v1023, 1
      %v1124 = vrot.slane %v1024, 1
      %v1125 = vsel %vm596, %v1123, %v1124
      %v1126 = vrot.slane %v1025, 1
      %v1127 = vsel %vm596, %v1124, %v1126
      %v1128 = vrot.slane %v1026, 1
      %v1129 = vrot.slane %v1027, 1
      %v1130 = vsel %vm596, %v1128, %v1129
      %v1131 = vrot.slane %v1028, 1
      %v1132 = vsel %vm596, %v1129, %v1131
      %v1133 = vrot.slane %v1029, 1
      %v1134 = vrot.slane %v1030, 1
      %v1135 = vsel %vm596, %v1133, %v1134
      %v1136 = vrot.slane %v1031, 1
      %v1137 = vsel %vm596, %v1134, %v1136
      %v1138 = vrot.slane %v1032, 1
      %v1139 = vrot.slane %v1033, 1
      %v1140 = vsel %vm596, %v1138, %v1139
      %v1141 = vrot.slane %v1034, 1
      %v1142 = vsel %vm596, %v1139, %v1141
      %v1143 = vrot.slane %v1035, 1
      %v1144 = vrot.slane %v1036, 1
      %v1145 = vsel %vm596, %v1143, %v1144
      %v1146 = vrot.slane %v1037, 1
      %v1147 = vsel %vm596, %v1144, %v1146
      %v1148 = vrot.slane %v1038, 1
      %v1149 = vrot.slane %v1039, 1
      %v1150 = vsel %vm596, %v1148, %v1149
      %v1151 = vrot.slane %v1040, 1
      %v1152 = vsel %vm596, %v1149, %v1151
      %v1153 = vrot.slane %v1041, 1
      %v1154 = vrot.slane %v1042, 1
      %v1155 = vsel %vm596, %v1153, %v1154
      %v1156 = vrot.slane %v1043, 1
      %v1157 = vsel %vm596, %v1154, %v1156
      %v1158 = vrot.slane %v1044, 1
      %v1159 = vrot.slane %v1045, 1
      %v1160 = vsel %vm596, %v1158, %v1159
      %v1161 = vrot.slane %v1046, 1
      %v1162 = vsel %vm596, %v1159, %v1161
      %v1163 = vrot.slane %v1047, 1
      %v1164 = vrot.slane %v1048, 1
      %v1165 = vsel %vm596, %v1163, %v1164
      %v1166 = vrot.slane %v1049, 1
      %v1167 = vsel %vm596, %v1164, %v1166
      %v1168 = vrot.slane %v1050, 1
      %v1169 = vrot.slane %v1051, 1
      %v1170 = vsel %vm596, %v1168, %v1169
      %v1171 = vrot.slane %v1052, 1
      %v1172 = vsel %vm596, %v1169, %v1171
      %v1173 = vrot.slane %v1053, 1
      %v1174 = vrot.slane %v1054, 1
      %v1175 = vsel %vm596, %v1173, %v1174
      %v1176 = vrot.slane %v1055, 1
      %v1177 = vsel %vm596, %v1174, %v1176
      %v1178 = vrot.slane %v1056, 1
      %v1179 = vrot.slane %v1057, 1
      %v1180 = vsel %vm596, %v1178, %v1179
      %v1181 = vrot.slane %v1058, 1
      %v1182 = vsel %vm596, %v1179, %v1181
      %v1183 = vrot.slane %v1059, 1
      %v1184 = vrot.slane %v1060, 1
      %v1185 = vsel %vm596, %v1183, %v1184
      %v1186 = vrot.slane %v1061, 1
      %v1187 = vsel %vm596, %v1184, %v1186
      %v1188 = vrot.slane %v1062, 1
      %v1189 = vrot.slane %v1063, 1
      %v1190 = vsel %vm596, %v1188, %v1189
      %v1191 = vrot.slane %v1064, 1
      %v1192 = vsel %vm596, %v1189, %v1191
      %1193 = vrot.lane.b32.xlu0 %v1115, 4
      %v1194 = vpop.permute.xlu0 %1193
      %1195 = vrot.lane.b32.xlu0 %v1117, 4
      %v1196 = vpop.permute.xlu0 %1195
      %1197 = vrot.lane.b32.xlu0 %v1120, 4
      %v1198 = vpop.permute.xlu0 %1197
      %1199 = vrot.lane.b32.xlu0 %v1122, 4
      %v1200 = vpop.permute.xlu0 %1199
      %1201 = vrot.lane.b32.xlu0 %v1125, 4
      %v1202 = vpop.permute.xlu0 %1201
      %1203 = vrot.lane.b32.xlu0 %v1127, 4
      %v1204 = vpop.permute.xlu0 %1203
      %1205 = vrot.lane.b32.xlu0 %v1130, 4
      %v1206 = vpop.permute.xlu0 %1205
      %1207 = vrot.lane.b32.xlu0 %v1132, 4
      %v1208 = vpop.permute.xlu0 %1207
      %1209 = vrot.lane.b32.xlu0 %v1135, 4
      %v1210 = vpop.permute.xlu0 %1209
      %1211 = vrot.lane.b32.xlu0 %v1137, 4
      %v1212 = vpop.permute.xlu0 %1211
      %1213 = vrot.lane.b32.xlu0 %v1140, 4
      %v1214 = vpop.permute.xlu0 %1213
      %1215 = vrot.lane.b32.xlu0 %v1142, 4
      %v1216 = vpop.permute.xlu0 %1215
      %1217 = vrot.lane.b32.xlu0 %v1145, 4
      %v1218 = vpop.permute.xlu0 %1217
      %1219 = vrot.lane.b32.xlu0 %v1147, 4
      %v1220 = vpop.permute.xlu0 %1219
      %1221 = vrot.lane.b32.xlu0 %v1150, 4
      %v1222 = vpop.permute.xlu0 %1221
      %1223 = vrot.lane.b32.xlu0 %v1152, 4
      %v1224 = vpop.permute.xlu0 %1223
      %1225 = vrot.lane.b32.xlu0 %v1155, 4
      %v1226 = vpop.permute.xlu0 %1225
      %1227 = vrot.lane.b32.xlu0 %v1157, 4
      %v1228 = vpop.permute.xlu0 %1227
      %1229 = vrot.lane.b32.xlu0 %v1160, 4
      %v1230 = vpop.permute.xlu0 %1229
      %1231 = vrot.lane.b32.xlu0 %v1162, 4
      %v1232 = vpop.permute.xlu0 %1231
      %1233 = vrot.lane.b32.xlu0 %v1165, 4
      %v1234 = vpop.permute.xlu0 %1233
      %1235 = vrot.lane.b32.xlu0 %v1167, 4
      %v1236 = vpop.permute.xlu0 %1235
      %1237 = vrot.lane.b32.xlu0 %v1170, 4
      %v1238 = vpop.permute.xlu0 %1237
      %1239 = vrot.lane.b32.xlu0 %v1172, 4
      %v1240 = vpop.permute.xlu0 %1239
      %1241 = vrot.lane.b32.xlu0 %v1175, 4
      %v1242 = vpop.permute.xlu0 %1241
      %1243 = vrot.lane.b32.xlu0 %v1177, 4
      %v1244 = vpop.permute.xlu0 %1243
      %1245 = vrot.lane.b32.xlu0 %v1180, 4
      %v1246 = vpop.permute.xlu0 %1245
      %1247 = vrot.lane.b32.xlu0 %v1182, 4
      %v1248 = vpop.permute.xlu0 %1247
      %1249 = vrot.lane.b32.xlu0 %v1185, 4
      %v1250 = vpop.permute.xlu0 %1249
      %1251 = vrot.lane.b32.xlu0 %v1187, 4
      %v1252 = vpop.permute.xlu0 %1251
      %1253 = vrot.lane.b32.xlu0 %v1190, 4
      %v1254 = vpop.permute.xlu0 %1253
      %1255 = vrot.lane.b32.xlu0 %v1192, 4
      %v1256 = vpop.permute.xlu0 %1255
      %v1289 = vrot.slane %v1017, 2
      %v1290 = vrot.slane %v1018, 2
      %v1291 = vsel %vm773, %v1289, %v1290
      %v1292 = vrot.slane %v1019, 2
      %v1293 = vsel %vm773, %v1290, %v1292
      %v1294 = vrot.slane %v1020, 2
      %v1295 = vrot.slane %v1021, 2
      %v1296 = vsel %vm773, %v1294, %v1295
      %v1297 = vrot.slane %v1022, 2
      %v1298 = vsel %vm773, %v1295, %v1297
      %v1299 = vrot.slane %v1023, 2
      %v1300 = vrot.slane %v1024, 2
      %v1301 = vsel %vm773, %v1299, %v1300
      %v1302 = vrot.slane %v1025, 2
      %v1303 = vsel %vm773, %v1300, %v1302
      %v1304 = vrot.slane %v1026, 2
      %v1305 = vrot.slane %v1027, 2
      %v1306 = vsel %vm773, %v1304, %v1305
      %v1307 = vrot.slane %v1028, 2
      %v1308 = vsel %vm773, %v1305, %v1307
      %v1309 = vrot.slane %v1029, 2
      %v1310 = vrot.slane %v1030, 2
      %v1311 = vsel %vm773, %v1309, %v1310
      %v1312 = vrot.slane %v1031, 2
      %v1313 = vsel %vm773, %v1310, %v1312
      %v1314 = vrot.slane %v1032, 2
      %v1315 = vrot.slane %v1033, 2
      %v1316 = vsel %vm773, %v1314, %v1315
      %v1317 = vrot.slane %v1034, 2
      %v1318 = vsel %vm773, %v1315, %v1317
      %v1319 = vrot.slane %v1035, 2
      %v1320 = vrot.slane %v1036, 2
      %v1321 = vsel %vm773, %v1319, %v1320
      %v1322 = vrot.slane %v1037, 2
      %v1323 = vsel %vm773, %v1320, %v1322
      %v1324 = vrot.slane %v1038, 2
      %v1325 = vrot.slane %v1039, 2
      %v1326 = vsel %vm773, %v1324, %v1325
      %v1327 = vrot.slane %v1040, 2
      %v1328 = vsel %vm773, %v1325, %v1327
      %v1329 = vrot.slane %v1041, 2
      %v1330 = vrot.slane %v1042, 2
      %v1331 = vsel %vm773, %v1329, %v1330
      %v1332 = vrot.slane %v1043, 2
      %v1333 = vsel %vm773, %v1330, %v1332
      %v1334 = vrot.slane %v1044, 2
      %v1335 = vrot.slane %v1045, 2
      %v1336 = vsel %vm773, %v1334, %v1335
      %v1337 = vrot.slane %v1046, 2
      %v1338 = vsel %vm773, %v1335, %v1337
      %v1339 = vrot.slane %v1047, 2
      %v1340 = vrot.slane %v1048, 2
      %v1341 = vsel %vm773, %v1339, %v1340
      %v1342 = vrot.slane %v1049, 2
      %v1343 = vsel %vm773, %v1340, %v1342
      %v1344 = vrot.slane %v1050, 2
      %v1345 = vrot.slane %v1051, 2
      %v1346 = vsel %vm773, %v1344, %v1345
      %v1347 = vrot.slane %v1052, 2
      %v1348 = vsel %vm773, %v1345, %v1347
      %v1349 = vrot.slane %v1053, 2
      %v1350 = vrot.slane %v1054, 2
      %v1351 = vsel %vm773, %v1349, %v1350
      %v1352 = vrot.slane %v1055, 2
      %v1353 = vsel %vm773, %v1350, %v1352
      %v1354 = vrot.slane %v1056, 2
      %v1355 = vrot.slane %v1057, 2
      %v1356 = vsel %vm773, %v1354, %v1355
      %v1357 = vrot.slane %v1058, 2
      %v1358 = vsel %vm773, %v1355, %v1357
      %v1359 = vrot.slane %v1059, 2
      %v1360 = vrot.slane %v1060, 2
      %v1361 = vsel %vm773, %v1359, %v1360
      %v1362 = vrot.slane %v1061, 2
      %v1363 = vsel %vm773, %v1360, %v1362
      %v1364 = vrot.slane %v1062, 2
      %v1365 = vrot.slane %v1063, 2
      %v1366 = vsel %vm773, %v1364, %v1365
      %v1367 = vrot.slane %v1064, 2
      %v1368 = vsel %vm773, %v1365, %v1367
      %1369 = vrot.lane.b32.xlu0 %v1291, 8
      %v1370 = vpop.permute.xlu0 %1369
      %1371 = vrot.lane.b32.xlu0 %v1293, 8
      %v1372 = vpop.permute.xlu0 %1371
      %1373 = vrot.lane.b32.xlu0 %v1296, 8
      %v1374 = vpop.permute.xlu0 %1373
      %1375 = vrot.lane.b32.xlu0 %v1298, 8
      %v1376 = vpop.permute.xlu0 %1375
      %1377 = vrot.lane.b32.xlu0 %v1301, 8
      %v1378 = vpop.permute.xlu0 %1377
      %1379 = vrot.lane.b32.xlu0 %v1303, 8
      %v1380 = vpop.permute.xlu0 %1379
      %1381 = vrot.lane.b32.xlu0 %v1306, 8
      %v1382 = vpop.permute.xlu0 %1381
      %1383 = vrot.lane.b32.xlu0 %v1308, 8
      %v1384 = vpop.permute.xlu0 %1383
      %1385 = vrot.lane.b32.xlu0 %v1311, 8
      %v1386 = vpop.permute.xlu0 %1385
      %1387 = vrot.lane.b32.xlu0 %v1313, 8
      %v1388 = vpop.permute.xlu0 %1387
      %1389 = vrot.lane.b32.xlu0 %v1316, 8
      %v1390 = vpop.permute.xlu0 %1389
      %1391 = vrot.lane.b32.xlu0 %v1318, 8
      %v1392 = vpop.permute.xlu0 %1391
      %1393 = vrot.lane.b32.xlu0 %v1321, 8
      %v1394 = vpop.permute.xlu0 %1393
      %1395 = vrot.lane.b32.xlu0 %v1323, 8
      %v1396 = vpop.permute.xlu0 %1395
      %1397 = vrot.lane.b32.xlu0 %v1326, 8
      %v1398 = vpop.permute.xlu0 %1397
      %1399 = vrot.lane.b32.xlu0 %v1328, 8
      %v1400 = vpop.permute.xlu0 %1399
      %1401 = vrot.lane.b32.xlu0 %v1331, 8
      %v1402 = vpop.permute.xlu0 %1401
      %1403 = vrot.lane.b32.xlu0 %v1333, 8
      %v1404 = vpop.permute.xlu0 %1403
      %1405 = vrot.lane.b32.xlu0 %v1336, 8
      %v1406 = vpop.permute.xlu0 %1405
      %1407 = vrot.lane.b32.xlu0 %v1338, 8
      %v1408 = vpop.permute.xlu0 %1407
      %1409 = vrot.lane.b32.xlu0 %v1341, 8
      %v1410 = vpop.permute.xlu0 %1409
      %1411 = vrot.lane.b32.xlu0 %v1343, 8
      %v1412 = vpop.permute.xlu0 %1411
      %1413 = vrot.lane.b32.xlu0 %v1346, 8
      %v1414 = vpop.permute.xlu0 %1413
      %1415 = vrot.lane.b32.xlu0 %v1348, 8
      %v1416 = vpop.permute.xlu0 %1415
      %1417 = vrot.lane.b32.xlu0 %v1351, 8
      %v1418 = vpop.permute.xlu0 %1417
      %1419 = vrot.lane.b32.xlu0 %v1353, 8
      %v1420 = vpop.permute.xlu0 %1419
      %1421 = vrot.lane.b32.xlu0 %v1356, 8
      %v1422 = vpop.permute.xlu0 %1421
      %1423 = vrot.lane.b32.xlu0 %v1358, 8
      %v1424 = vpop.permute.xlu0 %1423
      %1425 = vrot.lane.b32.xlu0 %v1361, 8
      %v1426 = vpop.permute.xlu0 %1425
      %1427 = vrot.lane.b32.xlu0 %v1363, 8
      %v1428 = vpop.permute.xlu0 %1427
      %1429 = vrot.lane.b32.xlu0 %v1366, 8
      %v1430 = vpop.permute.xlu0 %1429
      %1431 = vrot.lane.b32.xlu0 %v1368, 8
      %v1432 = vpop.permute.xlu0 %1431
      %v1465 = vsel %vm411, %v1017, %v1194
      %v1466 = vsel %vm411, %v1018, %v1196
      %v1467 = vsel %vm411, %v1020, %v1198
      %v1468 = vsel %vm411, %v1021, %v1200
      %v1469 = vsel %vm411, %v1023, %v1202
      %v1470 = vsel %vm411, %v1024, %v1204
      %v1471 = vsel %vm411, %v1026, %v1206
      %v1472 = vsel %vm411, %v1027, %v1208
      %v1473 = vsel %vm411, %v1029, %v1210
      %v1474 = vsel %vm411, %v1030, %v1212
      %v1475 = vsel %vm411, %v1032, %v1214
      %v1476 = vsel %vm411, %v1033, %v1216
      %v1477 = vsel %vm411, %v1035, %v1218
      %v1478 = vsel %vm411, %v1036, %v1220
      %v1479 = vsel %vm411, %v1038, %v1222
      %v1480 = vsel %vm411, %v1039, %v1224
      %v1481 = vsel %vm411, %v1041, %v1226
      %v1482 = vsel %vm411, %v1042, %v1228
      %v1483 = vsel %vm411, %v1044, %v1230
      %v1484 = vsel %vm411, %v1045, %v1232
      %v1485 = vsel %vm411, %v1047, %v1234
      %v1486 = vsel %vm411, %v1048, %v1236
      %v1487 = vsel %vm411, %v1050, %v1238
      %v1488 = vsel %vm411, %v1051, %v1240
      %v1489 = vsel %vm411, %v1053, %v1242
      %v1490 = vsel %vm411, %v1054, %v1244
      %v1491 = vsel %vm411, %v1056, %v1246
      %v1492 = vsel %vm411, %v1057, %v1248
      %v1493 = vsel %vm411, %v1059, %v1250
      %v1494 = vsel %vm411, %v1060, %v1252
      %v1495 = vsel %vm411, %v1062, %v1254
      %v1496 = vsel %vm411, %v1063, %v1256
      %v1497 = vsel %vm982, %v1465, %v1370
      %v1498 = vsel %vm982, %v1466, %v1372
      %v1499 = vsel %vm982, %v1467, %v1374
      %v1500 = vsel %vm982, %v1468, %v1376
      %v1501 = vsel %vm982, %v1469, %v1378
      %v1502 = vsel %vm982, %v1470, %v1380
      %v1503 = vsel %vm982, %v1471, %v1382
      %v1504 = vsel %vm982, %v1472, %v1384
      %v1505 = vsel %vm982, %v1473, %v1386
      %v1506 = vsel %vm982, %v1474, %v1388
      %v1507 = vsel %vm982, %v1475, %v1390
      %v1508 = vsel %vm982, %v1476, %v1392
      %v1509 = vsel %vm982, %v1477, %v1394
      %v1510 = vsel %vm982, %v1478, %v1396
      %v1511 = vsel %vm982, %v1479, %v1398
      %v1512 = vsel %vm982, %v1480, %v1400
      %v1513 = vsel %vm982, %v1481, %v1402
      %v1514 = vsel %vm982, %v1482, %v1404
      %v1515 = vsel %vm982, %v1483, %v1406
      %v1516 = vsel %vm982, %v1484, %v1408
      %v1517 = vsel %vm982, %v1485, %v1410
      %v1518 = vsel %vm982, %v1486, %v1412
      %v1519 = vsel %vm982, %v1487, %v1414
      %v1520 = vsel %vm982, %v1488, %v1416
      %v1521 = vsel %vm982, %v1489, %v1418
      %v1522 = vsel %vm982, %v1490, %v1420
      %v1523 = vsel %vm982, %v1491, %v1422
      %v1524 = vsel %vm982, %v1492, %v1424
      %v1525 = vsel %vm982, %v1493, %v1426
      %v1526 = vsel %vm982, %v1494, %v1428
      %v1527 = vsel %vm982, %v1495, %v1430
      %v1528 = vsel %vm982, %v1496, %v1432
      %s1529 = scalar_lea.vmem %s3, 16
      %v1530 = vld [vmem:[%s1529] sm:$0xff]
      %v1531 = vld [vmem:[%s1529 + $0x8] sm:$0xf]
      %vm1532 = vcmask 97280
      %v1534 = vsel %vm1532, %v1497, 0
      %v1537 = vsel %vm1532, %v1498, 0
      %v1540 = vsel %vm1532, %v1499, 0
      %v1543 = vsel %vm1532, %v1500, 0
      %v1546 = vsel %vm1532, %v1501, 0
      %v1549 = vsel %vm1532, %v1502, 0
      %v1552 = vsel %vm1532, %v1503, 0
      %v1555 = vsel %vm1532, %v1504, 0
      %v1558 = vsel %vm1532, %v1505, 0
      %v1561 = vsel %vm1532, %v1506, 0
      %v1564 = vsel %vm1532, %v1507, 0
      %v1567 = vsel %vm1532, %v1508, 0
      %v1570 = vsel %vm1532, %v1509, 0
      %v1573 = vsel %vm1532, %v1510, 0
      %v1576 = vsel %vm1532, %v1511, 0
      %v1579 = vsel %vm1532, %v1512, 0
      %v1582 = vsel %vm1532, %v1513, 0
      %v1585 = vsel %vm1532, %v1514, 0
      %v1588 = vsel %vm1532, %v1515, 0
      %v1591 = vsel %vm1532, %v1516, 0
      %v1594 = vsel %vm1532, %v1517, 0
      %v1597 = vsel %vm1532, %v1518, 0
      %v1600 = vsel %vm1532, %v1519, 0
      %v1603 = vsel %vm1532, %v1520, 0
      %v1606 = vsel %vm1532, %v1521, 0
      %v1609 = vsel %vm1532, %v1522, 0
      %v1612 = vsel %vm1532, %v1523, 0
      %v1615 = vsel %vm1532, %v1524, 0
      %v1618 = vsel %vm1532, %v1525, 0
      %v1621 = vsel %vm1532, %v1526, 0
      %v1624 = vsel %vm1532, %v1527, 0
      %v1627 = vsel %vm1532, %v1528, 0
      %vm1629 = vcmask 1043456
      %v1631 = vsel %vm1629, %v1531, 0
      %1633 = vmatprep.subr.mxu0 0.0
      %1634 = vmatpush1.msra.mxu0 %v1530
      %1635 = vmatprep.subr.mxu0 0.0
      %1636 = vmatpush1.msra.mxu0 %v1631
      %1637 = vmatprep.subr.mxu0 0.0
      %1638 = vmatpush1.msra.mxu0 0.0
      %1639 = vmatprep.subr.mxu0 0.0
      %1640 = vmatpush1.msra.mxu0 0.0
      %1641 = vmatprep.subr.mxu0 0.0
      %1642 = vmatpush1.msra.mxu0 0.0
      %1643 = vmatprep.subr.mxu0 0.0
      %1644 = vmatpush1.msra.mxu0 0.0
      %1645 = vmatprep.subr.mxu0 0.0
      %1646 = vmatpush1.msra.mxu0 0.0
      %1647 = vmatprep.subr.mxu0 0.0
      %1648 = vmatpush1.msra.mxu0 0.0
      %1649 = vmatprep.subr.mxu0 0.0
      %1650 = vmatpush1.msra.mxu0 0.0
      %1651 = vmatprep.subr.mxu0 0.0
      %1652 = vmatpush1.msra.mxu0 0.0
      %1653 = vmatprep.subr.mxu0 0.0
      %1654 = vmatpush1.msra.mxu0 0.0
      %1655 = vmatprep.subr.mxu0 0.0
      %1656 = vmatpush1.msra.mxu0 0.0
      %1657 = vmatprep.subr.mxu0 0.0
      %1658 = vmatpush1.msra.mxu0 0.0
      %1659 = vmatprep.subr.mxu0 0.0
      %1660 = vmatpush1.msra.mxu0 0.0
      %1661 = vmatprep.subr.mxu0 0.0
      %1662 = vmatpush1.msra.mxu0 0.0
      %1663 = vmatprep.subr.mxu0 0.0
      %1664 = vmatpush1.msra.mxu0 0.0
      %1665 = vmatprep.subr.mxu0 0.0
      %1666 = vmatpush1.msra.mxu0 0.0
      %1667 = vmatprep.subr.mxu0 0.0
      %1668 = vmatpush1.msra.mxu0 0.0
      %1669 = vmatprep.subr.mxu0 0.0
      %1670 = vmatpush1.msra.mxu0 0.0
      %1671 = vmatprep.subr.mxu0 0.0
      %1672 = vmatpush1.msra.mxu0 0.0
      %1673 = vmatprep.subr.mxu0 0.0
      %1674 = vmatpush1.msra.mxu0 0.0
      %1675 = vmatprep.subr.mxu0 0.0
      %1676 = vmatpush1.msra.mxu0 0.0
      %1677 = vmatprep.subr.mxu0 0.0
      %1678 = vmatpush1.msra.mxu0 0.0
      %1679 = vmatprep.subr.mxu0 0.0
      %1680 = vmatpush1.msra.mxu0 0.0
      %1681 = vmatprep.subr.mxu0 0.0
      %1682 = vmatpush1.msra.mxu0 0.0
      %1683 = vmatprep.subr.mxu0 0.0
      %1684 = vmatpush1.msra.mxu0 0.0
      %1685 = vmatprep.subr.mxu0 0.0
      %1686 = vmatpush1.msra.mxu0 0.0
      %1687 = vmatprep.subr.mxu0 0.0
      %1688 = vmatpush1.msra.mxu0 0.0
      %1689 = vmatprep.subr.mxu0 0.0
      %1690 = vmatpush1.msra.mxu0 0.0
      %1691 = vmatprep.subr.mxu0 0.0
      %1692 = vmatpush1.msra.mxu0 0.0
      %1693 = vmatprep.subr.mxu0 0.0
      %1694 = vmatpush1.msra.mxu0 0.0
      %1695 = vmatprep.subr.mxu0 0.0
      %1696 = vmatpush1.msra.mxu0 0.0
      %1697 = vmatprep.mubr.f32.mxu0 0.0
      %1698 = vmatmul.mubr.f32.gmra.mrb[0].mxu0 %v1534
      %v1699 = vpop.f32.mrb[0].mxu0
      %v1700 = vadd.f32 0.0, %v1699
      %v1701 = vpop.f32.mrb[0].mxu0
      %1702 = vmatprep.mubr.f32.mxu0 0.0
      %1703 = vmatmul.mubr.f32.gmra.mrb[0].mxu0 %v1537
      %v1704 = vpop.f32.mrb[0].mxu0
      %v1705 = vadd.f32 0.0, %v1704
      %v1706 = vpop.f32.mrb[0].mxu0
      %1707 = vmatprep.mubr.f32.mxu0 0.0
      %1708 = vmatmul.mubr.f32.gmra.mrb[0].mxu0 %v1540
      %v1709 = vpop.f32.mrb[0].mxu0
      %v1710 = vadd.f32 0.0, %v1709
      %v1711 = vpop.f32.mrb[0].mxu0
      %1712 = vmatprep.mubr.f32.mxu0 0.0
      %1713 = vmatmul.mubr.f32.gmra.mrb[0].mxu0 %v1543
      %v1714 = vpop.f32.mrb[0].mxu0
      %v1715 = vadd.f32 0.0, %v1714
      %v1716 = vpop.f32.mrb[0].mxu0
      %1717 = vmatprep.mubr.f32.mxu0 0.0
      %1718 = vmatmul.mubr.f32.gmra.mrb[0].mxu0 %v1546
      %v1719 = vpop.f32.mrb[0].mxu0
      %v1720 = vadd.f32 0.0, %v1719
      %v1721 = vpop.f32.mrb[0].mxu0
      %1722 = vmatprep.mubr.f32.mxu0 0.0
      %1723 = vmatmul.mubr.f32.gmra.mrb[0].mxu0 %v1549
      %v1724 = vpop.f32.mrb[0].mxu0
      %v1725 = vadd.f32 0.0, %v1724
      %v1726 = vpop.f32.mrb[0].mxu0
      %1727 = vmatprep.mubr.f32.mxu0 0.0
      %1728 = vmatmul.mubr.f32.gmra.mrb[0].mxu0 %v1552
      %v1729 = vpop.f32.mrb[0].mxu0
      %v1730 = vadd.f32 0.0, %v1729
      %v1731 = vpop.f32.mrb[0].mxu0
      %1732 = vmatprep.mubr.f32.mxu0 0.0
      %1733 = vmatmul.mubr.f32.gmra.mrb[0].mxu0 %v1555
      %v1734 = vpop.f32.mrb[0].mxu0
      %v1735 = vadd.f32 0.0, %v1734
      %v1736 = vpop.f32.mrb[0].mxu0
      %1737 = vmatprep.mubr.f32.mxu0 0.0
      %1738 = vmatmul.mubr.f32.gmra.mrb[0].mxu0 %v1558
      %v1739 = vpop.f32.mrb[0].mxu0
      %v1740 = vadd.f32 0.0, %v1739
      %v1741 = vpop.f32.mrb[0].mxu0
      %1742 = vmatprep.mubr.f32.mxu0 0.0
      %1743 = vmatmul.mubr.f32.gmra.mrb[0].mxu0 %v1561
      %v1744 = vpop.f32.mrb[0].mxu0
      %v1745 = vadd.f32 0.0, %v1744
      %v1746 = vpop.f32.mrb[0].mxu0
      %1747 = vmatprep.mubr.f32.mxu0 0.0
      %1748 = vmatmul.mubr.f32.gmra.mrb[0].mxu0 %v1564
      %v1749 = vpop.f32.mrb[0].mxu0
      %v1750 = vadd.f32 0.0, %v1749
      %v1751 = vpop.f32.mrb[0].mxu0
      %1752 = vmatprep.mubr.f32.mxu0 0.0
      %1753 = vmatmul.mubr.f32.gmra.mrb[0].mxu0 %v1567
      %v1754 = vpop.f32.mrb[0].mxu0
      %v1755 = vadd.f32 0.0, %v1754
      %v1756 = vpop.f32.mrb[0].mxu0
      %1757 = vmatprep.mubr.f32.mxu0 0.0
      %1758 = vmatmul.mubr.f32.gmra.mrb[0].mxu0 %v1570
      %v1759 = vpop.f32.mrb[0].mxu0
      %v1760 = vadd.f32 0.0, %v1759
      %v1761 = vpop.f32.mrb[0].mxu0
      %1762 = vmatprep.mubr.f32.mxu0 0.0
      %1763 = vmatmul.mubr.f32.gmra.mrb[0].mxu0 %v1573
      %v1764 = vpop.f32.mrb[0].mxu0
      %v1765 = vadd.f32 0.0, %v1764
      %v1766 = vpop.f32.mrb[0].mxu0
      %1767 = vmatprep.mubr.f32.mxu0 0.0
      %1768 = vmatmul.mubr.f32.gmra.mrb[0].mxu0 %v1576
      %v1769 = vpop.f32.mrb[0].mxu0
      %v1770 = vadd.f32 0.0, %v1769
      %v1771 = vpop.f32.mrb[0].mxu0
      %1772 = vmatprep.mubr.f32.mxu0 0.0
      %1773 = vmatmul.mubr.f32.gmra.mrb[0].mxu0 %v1579
      %v1774 = vpop.f32.mrb[0].mxu0
      %v1775 = vadd.f32 0.0, %v1774
      %v1776 = vpop.f32.mrb[0].mxu0
      %1777 = vmatprep.mubr.f32.mxu0 0.0
      %1778 = vmatmul.mubr.f32.gmra.mrb[0].mxu0 %v1582
      %v1779 = vpop.f32.mrb[0].mxu0
      %v1780 = vadd.f32 0.0, %v1779
      %v1781 = vpop.f32.mrb[0].mxu0
      %1782 = vmatprep.mubr.f32.mxu0 0.0
      %1783 = vmatmul.mubr.f32.gmra.mrb[0].mxu0 %v1585
      %v1784 = vpop.f32.mrb[0].mxu0
      %v1785 = vadd.f32 0.0, %v1784
      %v1786 = vpop.f32.mrb[0].mxu0
      %1787 = vmatprep.mubr.f32.mxu0 0.0
      %1788 = vmatmul.mubr.f32.gmra.mrb[0].mxu0 %v1588
      %v1789 = vpop.f32.mrb[0].mxu0
      %v1790 = vadd.f32 0.0, %v1789
      %v1791 = vpop.f32.mrb[0].mxu0
      %1792 = vmatprep.mubr.f32.mxu0 0.0
      %1793 = vmatmul.mubr.f32.gmra.mrb[0].mxu0 %v1591
      %v1794 = vpop.f32.mrb[0].mxu0
      %v1795 = vadd.f32 0.0, %v1794
      %v1796 = vpop.f32.mrb[0].mxu0
      %1797 = vmatprep.mubr.f32.mxu0 0.0
      %1798 = vmatmul.mubr.f32.gmra.mrb[0].mxu0 %v1594
      %v1799 = vpop.f32.mrb[0].mxu0
      %v1800 = vadd.f32 0.0, %v1799
      %v1801 = vpop.f32.mrb[0].mxu0
      %1802 = vmatprep.mubr.f32.mxu0 0.0
      %1803 = vmatmul.mubr.f32.gmra.mrb[0].mxu0 %v1597
      %v1804 = vpop.f32.mrb[0].mxu0
      %v1805 = vadd.f32 0.0, %v1804
      %v1806 = vpop.f32.mrb[0].mxu0
      %1807 = vmatprep.mubr.f32.mxu0 0.0
      %1808 = vmatmul.mubr.f32.gmra.mrb[0].mxu0 %v1600
      %v1809 = vpop.f32.mrb[0].mxu0
      %v1810 = vadd.f32 0.0, %v1809
      %v1811 = vpop.f32.mrb[0].mxu0
      %1812 = vmatprep.mubr.f32.mxu0 0.0
      %1813 = vmatmul.mubr.f32.gmra.mrb[0].mxu0 %v1603
      %v1814 = vpop.f32.mrb[0].mxu0
      %v1815 = vadd.f32 0.0, %v1814
      %v1816 = vpop.f32.mrb[0].mxu0
      %1817 = vmatprep.mubr.f32.mxu0 0.0
      %1818 = vmatmul.mubr.f32.gmra.mrb[0].mxu0 %v1606
      %v1819 = vpop.f32.mrb[0].mxu0
      %v1820 = vadd.f32 0.0, %v1819
      %v1821 = vpop.f32.mrb[0].mxu0
      %1822 = vmatprep.mubr.f32.mxu0 0.0
      %1823 = vmatmul.mubr.f32.gmra.mrb[0].mxu0 %v1609
      %v1824 = vpop.f32.mrb[0].mxu0
      %v1825 = vadd.f32 0.0, %v1824
      %v1826 = vpop.f32.mrb[0].mxu0
      %1827 = vmatprep.mubr.f32.mxu0 0.0
      %1828 = vmatmul.mubr.f32.gmra.mrb[0].mxu0 %v1612
      %v1829 = vpop.f32.mrb[0].mxu0
      %v1830 = vadd.f32 0.0, %v1829
      %v1831 = vpop.f32.mrb[0].mxu0
      %1832 = vmatprep.mubr.f32.mxu0 0.0
      %1833 = vmatmul.mubr.f32.gmra.mrb[0].mxu0 %v1615
      %v1834 = vpop.f32.mrb[0].mxu0
      %v1835 = vadd.f32 0.0, %v1834
      %v1836 = vpop.f32.mrb[0].mxu0
      %1837 = vmatprep.mubr.f32.mxu0 0.0
      %1838 = vmatmul.mubr.f32.gmra.mrb[0].mxu0 %v1618
      %v1839 = vpop.f32.mrb[0].mxu0
      %v1840 = vadd.f32 0.0, %v1839
      %v1841 = vpop.f32.mrb[0].mxu0
      %1842 = vmatprep.mubr.f32.mxu0 0.0
      %1843 = vmatmul.mubr.f32.gmra.mrb[0].mxu0 %v1621
      %v1844 = vpop.f32.mrb[0].mxu0
      %v1845 = vadd.f32 0.0, %v1844
      %v1846 = vpop.f32.mrb[0].mxu0
      %1847 = vmatprep.mubr.f32.mxu0 0.0
      %1848 = vmatmul.mubr.f32.gmra.mrb[0].mxu0 %v1624
      %v1849 = vpop.f32.mrb[0].mxu0
      %v1850 = vadd.f32 0.0, %v1849
      %v1851 = vpop.f32.mrb[0].mxu0
      %1852 = vmatprep.mubr.f32.mxu0 0.0
      %1853 = vmatmul.mubr.f32.gmra.mrb[0].mxu0 %v1627
      %v1854 = vpop.f32.mrb[0].mxu0
      %v1855 = vadd.f32 0.0, %v1854
      %v1856 = vpop.f32.mrb[0].mxu0
      %1857 = vdwg.mxu0
      %v1859 = vsel %vm1532, %v983, 0
      %v1862 = vsel %vm1532, %v984, 0
      %v1865 = vsel %vm1532, %v985, 0
      %v1868 = vsel %vm1532, %v986, 0
      %v1871 = vsel %vm1532, %v987, 0
      %v1874 = vsel %vm1532, %v988, 0
      %v1877 = vsel %vm1532, %v989, 0
      %v1880 = vsel %vm1532, %v990, 0
      %v1883 = vsel %vm1532, %v991, 0
      %v1886 = vsel %vm1532, %v992, 0
      %v1889 = vsel %vm1532, %v993, 0
      %v1892 = vsel %vm1532, %v994, 0
      %v1895 = vsel %vm1532, %v995, 0
      %v1898 = vsel %vm1532, %v996, 0
      %v1901 = vsel %vm1532, %v997, 0
      %v1904 = vsel %vm1532, %v998, 0
      %v1907 = vsel %vm1532, %v999, 0
      %v1910 = vsel %vm1532, %v1000, 0
      %v1913 = vsel %vm1532, %v1001, 0
      %v1916 = vsel %vm1532, %v1002, 0
      %v1919 = vsel %vm1532, %v1003, 0
      %v1922 = vsel %vm1532, %v1004, 0
      %v1925 = vsel %vm1532, %v1005, 0
      %v1928 = vsel %vm1532, %v1006, 0
      %v1931 = vsel %vm1532, %v1007, 0
      %v1934 = vsel %vm1532, %v1008, 0
      %v1937 = vsel %vm1532, %v1009, 0
      %v1940 = vsel %vm1532, %v1010, 0
      %v1943 = vsel %vm1532, %v1011, 0
      %v1946 = vsel %vm1532, %v1012, 0
      %v1949 = vsel %vm1532, %v1013, 0
      %v1952 = vsel %vm1532, %v1014, 0
      %v1955 = vsel %vm1629, %v1016, 0
      %1957 = vmatprep.subr.mxu0 0.0
      %1958 = vmatpush1.msra.mxu0 %v1015
      %1959 = vmatprep.subr.mxu0 0.0
      %1960 = vmatpush1.msra.mxu0 %v1955
      %1961 = vmatprep.subr.mxu0 0.0
      %1962 = vmatpush1.msra.mxu0 0.0
      %1963 = vmatprep.subr.mxu0 0.0
      %1964 = vmatpush1.msra.mxu0 0.0
      %1965 = vmatprep.subr.mxu0 0.0
      %1966 = vmatpush1.msra.mxu0 0.0
      %1967 = vmatprep.subr.mxu0 0.0
      %1968 = vmatpush1.msra.mxu0 0.0
      %1969 = vmatprep.subr.mxu0 0.0
      %1970 = vmatpush1.msra.mxu0 0.0
      %1971 = vmatprep.subr.mxu0 0.0
      %1972 = vmatpush1.msra.mxu0 0.0
      %1973 = vmatprep.subr.mxu0 0.0
      %1974 = vmatpush1.msra.mxu0 0.0
      %1975 = vmatprep.subr.mxu0 0.0
      %1976 = vmatpush1.msra.mxu0 0.0
      %1977 = vmatprep.subr.mxu0 0.0
      %1978 = vmatpush1.msra.mxu0 0.0
      %1979 = vmatprep.subr.mxu0 0.0
      %1980 = vmatpush1.msra.mxu0 0.0
      %1981 = vmatprep.subr.mxu0 0.0
      %1982 = vmatpush1.msra.mxu0 0.0
      %1983 = vmatprep.subr.mxu0 0.0
      %1984 = vmatpush1.msra.mxu0 0.0
      %1985 = vmatprep.subr.mxu0 0.0
      %1986 = vmatpush1.msra.mxu0 0.0
      %1987 = vmatprep.subr.mxu0 0.0
      %1988 = vmatpush1.msra.mxu0 0.0
      %1989 = vmatprep.subr.mxu0 0.0
      %1990 = vmatpush1.msra.mxu0 0.0
      %1991 = vmatprep.subr.mxu0 0.0
      %1992 = vmatpush1.msra.mxu0 0.0
      %1993 = vmatprep.subr.mxu0 0.0
      %1994 = vmatpush1.msra.mxu0 0.0
      %1995 = vmatprep.subr.mxu0 0.0
      %1996 = vmatpush1.msra.mxu0 0.0
      %1997 = vmatprep.subr.mxu0 0.0
      %1998 = vmatpush1.msra.mxu0 0.0
      %1999 = vmatprep.subr.mxu0 0.0
      %2000 = vmatpush1.msra.mxu0 0.0
      %2001 = vmatprep.subr.mxu0 0.0
      %2002 = vmatpush1.msra.mxu0 0.0
      %2003 = vmatprep.subr.mxu0 0.0
      %2004 = vmatpush1.msra.mxu0 0.0
      %2005 = vmatprep.subr.mxu0 0.0
      %2006 = vmatpush1.msra.mxu0 0.0
      %2007 = vmatprep.subr.mxu0 0.0
      %2008 = vmatpush1.msra.mxu0 0.0
      %2009 = vmatprep.subr.mxu0 0.0
      %2010 = vmatpush1.msra.mxu0 0.0
      %2011 = vmatprep.subr.mxu0 0.0
      %2012 = vmatpush1.msra.mxu0 0.0
      %2013 = vmatprep.subr.mxu0 0.0
      %2014 = vmatpush1.msra.mxu0 0.0
      %2015 = vmatprep.subr.mxu0 0.0
      %2016 = vmatpush1.msra.mxu0 0.0
      %2017 = vmatprep.subr.mxu0 0.0
      %2018 = vmatpush1.msra.mxu0 0.0
      %2019 = vmatprep.subr.mxu0 0.0
      %2020 = vmatpush1.msra.mxu0 0.0
      %2021 = vmatprep.mubr.f32.mxu0 0.0
      %2022 = vmatmul.mubr.f32.gmra.mrb[0].mxu0 %v1859
      %v2023 = vpop.f32.mrb[0].mxu0
      %v2024 = vadd.f32 %v1700, %v2023
      %v2025 = vpop.f32.mrb[0].mxu0
      %2026 = vmatprep.mubr.f32.mxu0 0.0
      %2027 = vmatmul.mubr.f32.gmra.mrb[0].mxu0 %v1862
      %v2028 = vpop.f32.mrb[0].mxu0
      %v2029 = vadd.f32 %v1705, %v2028
      %v2030 = vpop.f32.mrb[0].mxu0
      %2031 = vmatprep.mubr.f32.mxu0 0.0
      %2032 = vmatmul.mubr.f32.gmra.mrb[0].mxu0 %v1865
      %v2033 = vpop.f32.mrb[0].mxu0
      %v2034 = vadd.f32 %v1710, %v2033
      %v2035 = vpop.f32.mrb[0].mxu0
      %2036 = vmatprep.mubr.f32.mxu0 0.0
      %2037 = vmatmul.mubr.f32.gmra.mrb[0].mxu0 %v1868
      %v2038 = vpop.f32.mrb[0].mxu0
      %v2039 = vadd.f32 %v1715, %v2038
      %v2040 = vpop.f32.mrb[0].mxu0
      %2041 = vmatprep.mubr.f32.mxu0 0.0
      %2042 = vmatmul.mubr.f32.gmra.mrb[0].mxu0 %v1871
      %v2043 = vpop.f32.mrb[0].mxu0
      %v2044 = vadd.f32 %v1720, %v2043
      %v2045 = vpop.f32.mrb[0].mxu0
      %2046 = vmatprep.mubr.f32.mxu0 0.0
      %2047 = vmatmul.mubr.f32.gmra.mrb[0].mxu0 %v1874
      %v2048 = vpop.f32.mrb[0].mxu0
      %v2049 = vadd.f32 %v1725, %v2048
      %v2050 = vpop.f32.mrb[0].mxu0
      %2051 = vmatprep.mubr.f32.mxu0 0.0
      %2052 = vmatmul.mubr.f32.gmra.mrb[0].mxu0 %v1877
      %v2053 = vpop.f32.mrb[0].mxu0
      %v2054 = vadd.f32 %v1730, %v2053
      %v2055 = vpop.f32.mrb[0].mxu0
      %2056 = vmatprep.mubr.f32.mxu0 0.0
      %2057 = vmatmul.mubr.f32.gmra.mrb[0].mxu0 %v1880
      %v2058 = vpop.f32.mrb[0].mxu0
      %v2059 = vadd.f32 %v1735, %v2058
      %v2060 = vpop.f32.mrb[0].mxu0
      %2061 = vmatprep.mubr.f32.mxu0 0.0
      %2062 = vmatmul.mubr.f32.gmra.mrb[0].mxu0 %v1883
      %v2063 = vpop.f32.mrb[0].mxu0
      %v2064 = vadd.f32 %v1740, %v2063
      %v2065 = vpop.f32.mrb[0].mxu0
      %2066 = vmatprep.mubr.f32.mxu0 0.0
      %2067 = vmatmul.mubr.f32.gmra.mrb[0].mxu0 %v1886
      %v2068 = vpop.f32.mrb[0].mxu0
      %v2069 = vadd.f32 %v1745, %v2068
      %v2070 = vpop.f32.mrb[0].mxu0
      %2071 = vmatprep.mubr.f32.mxu0 0.0
      %2072 = vmatmul.mubr.f32.gmra.mrb[0].mxu0 %v1889
      %v2073 = vpop.f32.mrb[0].mxu0
      %v2074 = vadd.f32 %v1750, %v2073
      %v2075 = vpop.f32.mrb[0].mxu0
      %2076 = vmatprep.mubr.f32.mxu0 0.0
      %2077 = vmatmul.mubr.f32.gmra.mrb[0].mxu0 %v1892
      %v2078 = vpop.f32.mrb[0].mxu0
      %v2079 = vadd.f32 %v1755, %v2078
      %v2080 = vpop.f32.mrb[0].mxu0
      %2081 = vmatprep.mubr.f32.mxu0 0.0
      %2082 = vmatmul.mubr.f32.gmra.mrb[0].mxu0 %v1895
      %v2083 = vpop.f32.mrb[0].mxu0
      %v2084 = vadd.f32 %v1760, %v2083
      %v2085 = vpop.f32.mrb[0].mxu0
      %2086 = vmatprep.mubr.f32.mxu0 0.0
      %2087 = vmatmul.mubr.f32.gmra.mrb[0].mxu0 %v1898
      %v2088 = vpop.f32.mrb[0].mxu0
      %v2089 = vadd.f32 %v1765, %v2088
      %v2090 = vpop.f32.mrb[0].mxu0
      %2091 = vmatprep.mubr.f32.mxu0 0.0
      %2092 = vmatmul.mubr.f32.gmra.mrb[0].mxu0 %v1901
      %v2093 = vpop.f32.mrb[0].mxu0
      %v2094 = vadd.f32 %v1770, %v2093
      %v2095 = vpop.f32.mrb[0].mxu0
      %2096 = vmatprep.mubr.f32.mxu0 0.0
      %2097 = vmatmul.mubr.f32.gmra.mrb[0].mxu0 %v1904
      %v2098 = vpop.f32.mrb[0].mxu0
      %v2099 = vadd.f32 %v1775, %v2098
      %v2100 = vpop.f32.mrb[0].mxu0
      %2101 = vmatprep.mubr.f32.mxu0 0.0
      %2102 = vmatmul.mubr.f32.gmra.mrb[0].mxu0 %v1907
      %v2103 = vpop.f32.mrb[0].mxu0
      %v2104 = vadd.f32 %v1780, %v2103
      %v2105 = vpop.f32.mrb[0].mxu0
      %2106 = vmatprep.mubr.f32.mxu0 0.0
      %2107 = vmatmul.mubr.f32.gmra.mrb[0].mxu0 %v1910
      %v2108 = vpop.f32.mrb[0].mxu0
      %v2109 = vadd.f32 %v1785, %v2108
      %v2110 = vpop.f32.mrb[0].mxu0
      %2111 = vmatprep.mubr.f32.mxu0 0.0
      %2112 = vmatmul.mubr.f32.gmra.mrb[0].mxu0 %v1913
      %v2113 = vpop.f32.mrb[0].mxu0
      %v2114 = vadd.f32 %v1790, %v2113
      %v2115 = vpop.f32.mrb[0].mxu0
      %2116 = vmatprep.mubr.f32.mxu0 0.0
      %2117 = vmatmul.mubr.f32.gmra.mrb[0].mxu0 %v1916
      %v2118 = vpop.f32.mrb[0].mxu0
      %v2119 = vadd.f32 %v1795, %v2118
      %v2120 = vpop.f32.mrb[0].mxu0
      %2121 = vmatprep.mubr.f32.mxu0 0.0
      %2122 = vmatmul.mubr.f32.gmra.mrb[0].mxu0 %v1919
      %v2123 = vpop.f32.mrb[0].mxu0
      %v2124 = vadd.f32 %v1800, %v2123
      %v2125 = vpop.f32.mrb[0].mxu0
      %2126 = vmatprep.mubr.f32.mxu0 0.0
      %2127 = vmatmul.mubr.f32.gmra.mrb[0].mxu0 %v1922
      %v2128 = vpop.f32.mrb[0].mxu0
      %v2129 = vadd.f32 %v1805, %v2128
      %v2130 = vpop.f32.mrb[0].mxu0
      %2131 = vmatprep.mubr.f32.mxu0 0.0
      %2132 = vmatmul.mubr.f32.gmra.mrb[0].mxu0 %v1925
      %v2133 = vpop.f32.mrb[0].mxu0
      %v2134 = vadd.f32 %v1810, %v2133
      %v2135 = vpop.f32.mrb[0].mxu0
      %2136 = vmatprep.mubr.f32.mxu0 0.0
      %2137 = vmatmul.mubr.f32.gmra.mrb[0].mxu0 %v1928
      %v2138 = vpop.f32.mrb[0].mxu0
      %v2139 = vadd.f32 %v1815, %v2138
      %v2140 = vpop.f32.mrb[0].mxu0
      %2141 = vmatprep.mubr.f32.mxu0 0.0
      %2142 = vmatmul.mubr.f32.gmra.mrb[0].mxu0 %v1931
      %v2143 = vpop.f32.mrb[0].mxu0
      %v2144 = vadd.f32 %v1820, %v2143
      %v2145 = vpop.f32.mrb[0].mxu0
      %2146 = vmatprep.mubr.f32.mxu0 0.0
      %2147 = vmatmul.mubr.f32.gmra.mrb[0].mxu0 %v1934
      %v2148 = vpop.f32.mrb[0].mxu0
      %v2149 = vadd.f32 %v1825, %v2148
      %v2150 = vpop.f32.mrb[0].mxu0
      %2151 = vmatprep.mubr.f32.mxu0 0.0
      %2152 = vmatmul.mubr.f32.gmra.mrb[0].mxu0 %v1937
      %v2153 = vpop.f32.mrb[0].mxu0
      %v2154 = vadd.f32 %v1830, %v2153
      %v2155 = vpop.f32.mrb[0].mxu0
      %2156 = vmatprep.mubr.f32.mxu0 0.0
      %2157 = vmatmul.mubr.f32.gmra.mrb[0].mxu0 %v1940
      %v2158 = vpop.f32.mrb[0].mxu0
      %v2159 = vadd.f32 %v1835, %v2158
      %v2160 = vpop.f32.mrb[0].mxu0
      %2161 = vmatprep.mubr.f32.mxu0 0.0
      %2162 = vmatmul.mubr.f32.gmra.mrb[0].mxu0 %v1943
      %v2163 = vpop.f32.mrb[0].mxu0
      %v2164 = vadd.f32 %v1840, %v2163
      %v2165 = vpop.f32.mrb[0].mxu0
      %2166 = vmatprep.mubr.f32.mxu0 0.0
      %2167 = vmatmul.mubr.f32.gmra.mrb[0].mxu0 %v1946
      %v2168 = vpop.f32.mrb[0].mxu0
      %v2169 = vadd.f32 %v1845, %v2168
      %v2170 = vpop.f32.mrb[0].mxu0
      %2171 = vmatprep.mubr.f32.mxu0 0.0
      %2172 = vmatmul.mubr.f32.gmra.mrb[0].mxu0 %v1949
      %v2173 = vpop.f32.mrb[0].mxu0
      %v2174 = vadd.f32 %v1850, %v2173
      %v2175 = vpop.f32.mrb[0].mxu0
      %2176 = vmatprep.mubr.f32.mxu0 0.0
      %2177 = vmatmul.mubr.f32.gmra.mrb[0].mxu0 %v1952
      %v2178 = vpop.f32.mrb[0].mxu0
      %v2179 = vadd.f32 %v1855, %v2178
      %v2180 = vpop.f32.mrb[0].mxu0
      %2181 = vdwg.mxu0
      %s2182 = scalar_lea.vmem [#allocation2], 48
      %v2183 = vld [vmem:[%s2182] sm:$0xff]
      %v2184 = vld [vmem:[%s2182 + $0x8] sm:$0xff]
      %v2185 = vld [vmem:[%s2182 + $0x10] sm:$0x3]
      %v2186 = vld [vmem:[%s2182 + $0x18] sm:$0xff]
      %v2187 = vld [vmem:[%s2182 + $0x20] sm:$0xff]
      %v2188 = vld [vmem:[%s2182 + $0x28] sm:$0x3]
      %v2189 = vld [vmem:[%s2182 + $0x30] sm:$0xff]
      %v2190 = vld [vmem:[%s2182 + $0x38] sm:$0xff]
      %v2191 = vld [vmem:[%s2182 + $0x40] sm:$0x3]
      %v2192 = vld [vmem:[%s2182 + $0x48] sm:$0xff]
      %v2193 = vld [vmem:[%s2182 + $0x50] sm:$0xff]
      %v2194 = vld [vmem:[%s2182 + $0x58] sm:$0x3]
      %v2195 = vld [vmem:[%s2182 + $0x60] sm:$0xff]
      %v2196 = vld [vmem:[%s2182 + $0x68] sm:$0xff]
      %v2197 = vld [vmem:[%s2182 + $0x70] sm:$0x3]
      %v2198 = vld [vmem:[%s2182 + $0x78] sm:$0xff]
      %v2199 = vld [vmem:[%s2182 + $0x80] sm:$0xff]
      %v2200 = vld [vmem:[%s2182 + $0x88] sm:$0x3]
      %v2201 = vld [vmem:[%s2182 + $0x90] sm:$0xff]
      %v2202 = vld [vmem:[%s2182 + $0x98] sm:$0xff]
      %v2203 = vld [vmem:[%s2182 + $0xa0] sm:$0x3]
      %v2204 = vld [vmem:[%s2182 + $0xa8] sm:$0xff]
      %v2205 = vld [vmem:[%s2182 + $0xb0] sm:$0xff]
      %v2206 = vld [vmem:[%s2182 + $0xb8] sm:$0x3]
      %v2207 = vld [vmem:[%s2182 + $0xc0] sm:$0xff]
      %v2208 = vld [vmem:[%s2182 + $0xc8] sm:$0xff]
      %v2209 = vld [vmem:[%s2182 + $0xd0] sm:$0x3]
      %v2210 = vld [vmem:[%s2182 + $0xd8] sm:$0xff]
      %v2211 = vld [vmem:[%s2182 + $0xe0] sm:$0xff]
      %v2212 = vld [vmem:[%s2182 + $0xe8] sm:$0x3]
      %v2213 = vld [vmem:[%s2182 + $0xf0] sm:$0xff]
      %v2214 = vld [vmem:[%s2182 + $0xf8] sm:$0xff]
      %v2215 = vld [vmem:[%s2182 + $0x100] sm:$0x3]
      %v2216 = vld [vmem:[%s2182 + $0x108] sm:$0xff]
      %v2217 = vld [vmem:[%s2182 + $0x110] sm:$0xff]
      %v2218 = vld [vmem:[%s2182 + $0x118] sm:$0x3]
      %v2219 = vld [vmem:[%s2182 + $0x120] sm:$0xff]
      %v2220 = vld [vmem:[%s2182 + $0x128] sm:$0xff]
      %v2221 = vld [vmem:[%s2182 + $0x130] sm:$0x3]
      %v2222 = vld [vmem:[%s2182 + $0x138] sm:$0xff]
      %v2223 = vld [vmem:[%s2182 + $0x140] sm:$0xff]
      %v2224 = vld [vmem:[%s2182 + $0x148] sm:$0x3]
      %v2225 = vld [vmem:[%s2182 + $0x150] sm:$0xff]
      %v2226 = vld [vmem:[%s2182 + $0x158] sm:$0xff]
      %v2227 = vld [vmem:[%s2182 + $0x160] sm:$0x3]
      %v2228 = vld [vmem:[%s2182 + $0x168] sm:$0xff]
      %v2229 = vld [vmem:[%s2182 + $0x170] sm:$0xff]
      %v2230 = vld [vmem:[%s2182 + $0x178] sm:$0x3]
      %v2279 = vrot.slane %v2183, 1
      %v2280 = vrot.slane %v2184, 1
      %v2281 = vsel %vm596, %v2279, %v2280
      %v2282 = vrot.slane %v2185, 1
      %v2283 = vsel %vm596, %v2280, %v2282
      %v2284 = vrot.slane %v2186, 1
      %v2285 = vrot.slane %v2187, 1
      %v2286 = vsel %vm596, %v2284, %v2285
      %v2287 = vrot.slane %v2188, 1
      %v2288 = vsel %vm596, %v2285, %v2287
      %v2289 = vrot.slane %v2189, 1
      %v2290 = vrot.slane %v2190, 1
      %v2291 = vsel %vm596, %v2289, %v2290
      %v2292 = vrot.slane %v2191, 1
      %v2293 = vsel %vm596, %v2290, %v2292
      %v2294 = vrot.slane %v2192, 1
      %v2295 = vrot.slane %v2193, 1
      %v2296 = vsel %vm596, %v2294, %v2295
      %v2297 = vrot.slane %v2194, 1
      %v2298 = vsel %vm596, %v2295, %v2297
      %v2299 = vrot.slane %v2195, 1
      %v2300 = vrot.slane %v2196, 1
      %v2301 = vsel %vm596, %v2299, %v2300
      %v2302 = vrot.slane %v2197, 1
      %v2303 = vsel %vm596, %v2300, %v2302
      %v2304 = vrot.slane %v2198, 1
      %v2305 = vrot.slane %v2199, 1
      %v2306 = vsel %vm596, %v2304, %v2305
      %v2307 = vrot.slane %v2200, 1
      %v2308 = vsel %vm596, %v2305, %v2307
      %v2309 = vrot.slane %v2201, 1
      %v2310 = vrot.slane %v2202, 1
      %v2311 = vsel %vm596, %v2309, %v2310
      %v2312 = vrot.slane %v2203, 1
      %v2313 = vsel %vm596, %v2310, %v2312
      %v2314 = vrot.slane %v2204, 1
      %v2315 = vrot.slane %v2205, 1
      %v2316 = vsel %vm596, %v2314, %v2315
      %v2317 = vrot.slane %v2206, 1
      %v2318 = vsel %vm596, %v2315, %v2317
      %v2319 = vrot.slane %v2207, 1
      %v2320 = vrot.slane %v2208, 1
      %v2321 = vsel %vm596, %v2319, %v2320
      %v2322 = vrot.slane %v2209, 1
      %v2323 = vsel %vm596, %v2320, %v2322
      %v2324 = vrot.slane %v2210, 1
      %v2325 = vrot.slane %v2211, 1
      %v2326 = vsel %vm596, %v2324, %v2325
      %v2327 = vrot.slane %v2212, 1
      %v2328 = vsel %vm596, %v2325, %v2327
      %v2329 = vrot.slane %v2213, 1
      %v2330 = vrot.slane %v2214, 1
      %v2331 = vsel %vm596, %v2329, %v2330
      %v2332 = vrot.slane %v2215, 1
      %v2333 = vsel %vm596, %v2330, %v2332
      %v2334 = vrot.slane %v2216, 1
      %v2335 = vrot.slane %v2217, 1
      %v2336 = vsel %vm596, %v2334, %v2335
      %v2337 = vrot.slane %v2218, 1
      %v2338 = vsel %vm596, %v2335, %v2337
      %v2339 = vrot.slane %v2219, 1
      %v2340 = vrot.slane %v2220, 1
      %v2341 = vsel %vm596, %v2339, %v2340
      %v2342 = vrot.slane %v2221, 1
      %v2343 = vsel %vm596, %v2340, %v2342
      %v2344 = vrot.slane %v2222, 1
      %v2345 = vrot.slane %v2223, 1
      %v2346 = vsel %vm596, %v2344, %v2345
      %v2347 = vrot.slane %v2224, 1
      %v2348 = vsel %vm596, %v2345, %v2347
      %v2349 = vrot.slane %v2225, 1
      %v2350 = vrot.slane %v2226, 1
      %v2351 = vsel %vm596, %v2349, %v2350
      %v2352 = vrot.slane %v2227, 1
      %v2353 = vsel %vm596, %v2350, %v2352
      %v2354 = vrot.slane %v2228, 1
      %v2355 = vrot.slane %v2229, 1
      %v2356 = vsel %vm596, %v2354, %v2355
      %v2357 = vrot.slane %v2230, 1
      %v2358 = vsel %vm596, %v2355, %v2357
      %2359 = vrot.lane.b32.xlu0 %v2281, 4
      %v2360 = vpop.permute.xlu0 %2359
      %2361 = vrot.lane.b32.xlu0 %v2283, 4
      %v2362 = vpop.permute.xlu0 %2361
      %2363 = vrot.lane.b32.xlu0 %v2286, 4
      %v2364 = vpop.permute.xlu0 %2363
      %2365 = vrot.lane.b32.xlu0 %v2288, 4
      %v2366 = vpop.permute.xlu0 %2365
      %2367 = vrot.lane.b32.xlu0 %v2291, 4
      %v2368 = vpop.permute.xlu0 %2367
      %2369 = vrot.lane.b32.xlu0 %v2293, 4
      %v2370 = vpop.permute.xlu0 %2369
      %2371 = vrot.lane.b32.xlu0 %v2296, 4
      %v2372 = vpop.permute.xlu0 %2371
      %2373 = vrot.lane.b32.xlu0 %v2298, 4
      %v2374 = vpop.permute.xlu0 %2373
      %2375 = vrot.lane.b32.xlu0 %v2301, 4
      %v2376 = vpop.permute.xlu0 %2375
      %2377 = vrot.lane.b32.xlu0 %v2303, 4
      %v2378 = vpop.permute.xlu0 %2377
      %2379 = vrot.lane.b32.xlu0 %v2306, 4
      %v2380 = vpop.permute.xlu0 %2379
      %2381 = vrot.lane.b32.xlu0 %v2308, 4
      %v2382 = vpop.permute.xlu0 %2381
      %2383 = vrot.lane.b32.xlu0 %v2311, 4
      %v2384 = vpop.permute.xlu0 %2383
      %2385 = vrot.lane.b32.xlu0 %v2313, 4
      %v2386 = vpop.permute.xlu0 %2385
      %2387 = vrot.lane.b32.xlu0 %v2316, 4
      %v2388 = vpop.permute.xlu0 %2387
      %2389 = vrot.lane.b32.xlu0 %v2318, 4
      %v2390 = vpop.permute.xlu0 %2389
      %2391 = vrot.lane.b32.xlu0 %v2321, 4
      %v2392 = vpop.permute.xlu0 %2391
      %2393 = vrot.lane.b32.xlu0 %v2323, 4
      %v2394 = vpop.permute.xlu0 %2393
      %2395 = vrot.lane.b32.xlu0 %v2326, 4
      %v2396 = vpop.permute.xlu0 %2395
      %2397 = vrot.lane.b32.xlu0 %v2328, 4
      %v2398 = vpop.permute.xlu0 %2397
      %2399 = vrot.lane.b32.xlu0 %v2331, 4
      %v2400 = vpop.permute.xlu0 %2399
      %2401 = vrot.lane.b32.xlu0 %v2333, 4
      %v2402 = vpop.permute.xlu0 %2401
      %2403 = vrot.lane.b32.xlu0 %v2336, 4
      %v2404 = vpop.permute.xlu0 %2403
      %2405 = vrot.lane.b32.xlu0 %v2338, 4
      %v2406 = vpop.permute.xlu0 %2405
      %2407 = vrot.lane.b32.xlu0 %v2341, 4
      %v2408 = vpop.permute.xlu0 %2407
      %2409 = vrot.lane.b32.xlu0 %v2343, 4
      %v2410 = vpop.permute.xlu0 %2409
      %2411 = vrot.lane.b32.xlu0 %v2346, 4
      %v2412 = vpop.permute.xlu0 %2411
      %2413 = vrot.lane.b32.xlu0 %v2348, 4
      %v2414 = vpop.permute.xlu0 %2413
      %2415 = vrot.lane.b32.xlu0 %v2351, 4
      %v2416 = vpop.permute.xlu0 %2415
      %2417 = vrot.lane.b32.xlu0 %v2353, 4
      %v2418 = vpop.permute.xlu0 %2417
      %2419 = vrot.lane.b32.xlu0 %v2356, 4
      %v2420 = vpop.permute.xlu0 %2419
      %2421 = vrot.lane.b32.xlu0 %v2358, 4
      %v2422 = vpop.permute.xlu0 %2421
      %v2455 = vrot.slane %v2183, 2
      %v2456 = vrot.slane %v2184, 2
      %v2457 = vsel %vm773, %v2455, %v2456
      %v2458 = vrot.slane %v2185, 2
      %v2459 = vsel %vm773, %v2456, %v2458
      %v2460 = vrot.slane %v2186, 2
      %v2461 = vrot.slane %v2187, 2
      %v2462 = vsel %vm773, %v2460, %v2461
      %v2463 = vrot.slane %v2188, 2
      %v2464 = vsel %vm773, %v2461, %v2463
      %v2465 = vrot.slane %v2189, 2
      %v2466 = vrot.slane %v2190, 2
      %v2467 = vsel %vm773, %v2465, %v2466
      %v2468 = vrot.slane %v2191, 2
      %v2469 = vsel %vm773, %v2466, %v2468
      %v2470 = vrot.slane %v2192, 2
      %v2471 = vrot.slane %v2193, 2
      %v2472 = vsel %vm773, %v2470, %v2471
      %v2473 = vrot.slane %v2194, 2
      %v2474 = vsel %vm773, %v2471, %v2473
      %v2475 = vrot.slane %v2195, 2
      %v2476 = vrot.slane %v2196, 2
      %v2477 = vsel %vm773, %v2475, %v2476
      %v2478 = vrot.slane %v2197, 2
      %v2479 = vsel %vm773, %v2476, %v2478
      %v2480 = vrot.slane %v2198, 2
      %v2481 = vrot.slane %v2199, 2
      %v2482 = vsel %vm773, %v2480, %v2481
      %v2483 = vrot.slane %v2200, 2
      %v2484 = vsel %vm773, %v2481, %v2483
      %v2485 = vrot.slane %v2201, 2
      %v2486 = vrot.slane %v2202, 2
      %v2487 = vsel %vm773, %v2485, %v2486
      %v2488 = vrot.slane %v2203, 2
      %v2489 = vsel %vm773, %v2486, %v2488
      %v2490 = vrot.slane %v2204, 2
      %v2491 = vrot.slane %v2205, 2
      %v2492 = vsel %vm773, %v2490, %v2491
      %v2493 = vrot.slane %v2206, 2
      %v2494 = vsel %vm773, %v2491, %v2493
      %v2495 = vrot.slane %v2207, 2
      %v2496 = vrot.slane %v2208, 2
      %v2497 = vsel %vm773, %v2495, %v2496
      %v2498 = vrot.slane %v2209, 2
      %v2499 = vsel %vm773, %v2496, %v2498
      %v2500 = vrot.slane %v2210, 2
      %v2501 = vrot.slane %v2211, 2
      %v2502 = vsel %vm773, %v2500, %v2501
      %v2503 = vrot.slane %v2212, 2
      %v2504 = vsel %vm773, %v2501, %v2503
      %v2505 = vrot.slane %v2213, 2
      %v2506 = vrot.slane %v2214, 2
      %v2507 = vsel %vm773, %v2505, %v2506
      %v2508 = vrot.slane %v2215, 2
      %v2509 = vsel %vm773, %v2506, %v2508
      %v2510 = vrot.slane %v2216, 2
      %v2511 = vrot.slane %v2217, 2
      %v2512 = vsel %vm773, %v2510, %v2511
      %v2513 = vrot.slane %v2218, 2
      %v2514 = vsel %vm773, %v2511, %v2513
      %v2515 = vrot.slane %v2219, 2
      %v2516 = vrot.slane %v2220, 2
      %v2517 = vsel %vm773, %v2515, %v2516
      %v2518 = vrot.slane %v2221, 2
      %v2519 = vsel %vm773, %v2516, %v2518
      %v2520 = vrot.slane %v2222, 2
      %v2521 = vrot.slane %v2223, 2
      %v2522 = vsel %vm773, %v2520, %v2521
      %v2523 = vrot.slane %v2224, 2
      %v2524 = vsel %vm773, %v2521, %v2523
      %v2525 = vrot.slane %v2225, 2
      %v2526 = vrot.slane %v2226, 2
      %v2527 = vsel %vm773, %v2525, %v2526
      %v2528 = vrot.slane %v2227, 2
      %v2529 = vsel %vm773, %v2526, %v2528
      %v2530 = vrot.slane %v2228, 2
      %v2531 = vrot.slane %v2229, 2
      %v2532 = vsel %vm773, %v2530, %v2531
      %v2533 = vrot.slane %v2230, 2
      %v2534 = vsel %vm773, %v2531, %v2533
      %2535 = vrot.lane.b32.xlu0 %v2457, 8
      %v2536 = vpop.permute.xlu0 %2535
      %2537 = vrot.lane.b32.xlu0 %v2459, 8
      %v2538 = vpop.permute.xlu0 %2537
      %2539 = vrot.lane.b32.xlu0 %v2462, 8
      %v2540 = vpop.permute.xlu0 %2539
      %2541 = vrot.lane.b32.xlu0 %v2464, 8
      %v2542 = vpop.permute.xlu0 %2541
      %2543 = vrot.lane.b32.xlu0 %v2467, 8
      %v2544 = vpop.permute.xlu0 %2543
      %2545 = vrot.lane.b32.xlu0 %v2469, 8
      %v2546 = vpop.permute.xlu0 %2545
      %2547 = vrot.lane.b32.xlu0 %v2472, 8
      %v2548 = vpop.permute.xlu0 %2547
      %2549 = vrot.lane.b32.xlu0 %v2474, 8
      %v2550 = vpop.permute.xlu0 %2549
      %2551 = vrot.lane.b32.xlu0 %v2477, 8
      %v2552 = vpop.permute.xlu0 %2551
      %2553 = vrot.lane.b32.xlu0 %v2479, 8
      %v2554 = vpop.permute.xlu0 %2553
      %2555 = vrot.lane.b32.xlu0 %v2482, 8
      %v2556 = vpop.permute.xlu0 %2555
      %2557 = vrot.lane.b32.xlu0 %v2484, 8
      %v2558 = vpop.permute.xlu0 %2557
      %2559 = vrot.lane.b32.xlu0 %v2487, 8
      %v2560 = vpop.permute.xlu0 %2559
      %2561 = vrot.lane.b32.xlu0 %v2489, 8
      %v2562 = vpop.permute.xlu0 %2561
      %2563 = vrot.lane.b32.xlu0 %v2492, 8
      %v2564 = vpop.permute.xlu0 %2563
      %2565 = vrot.lane.b32.xlu0 %v2494, 8
      %v2566 = vpop.permute.xlu0 %2565
      %2567 = vrot.lane.b32.xlu0 %v2497, 8
      %v2568 = vpop.permute.xlu0 %2567
      %2569 = vrot.lane.b32.xlu0 %v2499, 8
      %v2570 = vpop.permute.xlu0 %2569
      %2571 = vrot.lane.b32.xlu0 %v2502, 8
      %v2572 = vpop.permute.xlu0 %2571
      %2573 = vrot.lane.b32.xlu0 %v2504, 8
      %v2574 = vpop.permute.xlu0 %2573
      %2575 = vrot.lane.b32.xlu0 %v2507, 8
      %v2576 = vpop.permute.xlu0 %2575
      %2577 = vrot.lane.b32.xlu0 %v2509, 8
      %v2578 = vpop.permute.xlu0 %2577
      %2579 = vrot.lane.b32.xlu0 %v2512, 8
      %v2580 = vpop.permute.xlu0 %2579
      %2581 = vrot.lane.b32.xlu0 %v2514, 8
      %v2582 = vpop.permute.xlu0 %2581
      %2583 = vrot.lane.b32.xlu0 %v2517, 8
      %v2584 = vpop.permute.xlu0 %2583
      %2585 = vrot.lane.b32.xlu0 %v2519, 8
      %v2586 = vpop.permute.xlu0 %2585
      %2587 = vrot.lane.b32.xlu0 %v2522, 8
      %v2588 = vpop.permute.xlu0 %2587
      %2589 = vrot.lane.b32.xlu0 %v2524, 8
      %v2590 = vpop.permute.xlu0 %2589
      %2591 = vrot.lane.b32.xlu0 %v2527, 8
      %v2592 = vpop.permute.xlu0 %2591
      %2593 = vrot.lane.b32.xlu0 %v2529, 8
      %v2594 = vpop.permute.xlu0 %2593
      %2595 = vrot.lane.b32.xlu0 %v2532, 8
      %v2596 = vpop.permute.xlu0 %2595
      %2597 = vrot.lane.b32.xlu0 %v2534, 8
      %v2598 = vpop.permute.xlu0 %2597
      %v2631 = vsel %vm411, %v2183, %v2360
      %v2632 = vsel %vm411, %v2184, %v2362
      %v2633 = vsel %vm411, %v2186, %v2364
      %v2634 = vsel %vm411, %v2187, %v2366
      %v2635 = vsel %vm411, %v2189, %v2368
      %v2636 = vsel %vm411, %v2190, %v2370
      %v2637 = vsel %vm411, %v2192, %v2372
      %v2638 = vsel %vm411, %v2193, %v2374
      %v2639 = vsel %vm411, %v2195, %v2376
      %v2640 = vsel %vm411, %v2196, %v2378
      %v2641 = vsel %vm411, %v2198, %v2380
      %v2642 = vsel %vm411, %v2199, %v2382
      %v2643 = vsel %vm411, %v2201, %v2384
      %v2644 = vsel %vm411, %v2202, %v2386
      %v2645 = vsel %vm411, %v2204, %v2388
      %v2646 = vsel %vm411, %v2205, %v2390
      %v2647 = vsel %vm411, %v2207, %v2392
      %v2648 = vsel %vm411, %v2208, %v2394
      %v2649 = vsel %vm411, %v2210, %v2396
      %v2650 = vsel %vm411, %v2211, %v2398
      %v2651 = vsel %vm411, %v2213, %v2400
      %v2652 = vsel %vm411, %v2214, %v2402
      %v2653 = vsel %vm411, %v2216, %v2404
      %v2654 = vsel %vm411, %v2217, %v2406
      %v2655 = vsel %vm411, %v2219, %v2408
      %v2656 = vsel %vm411, %v2220, %v2410
      %v2657 = vsel %vm411, %v2222, %v2412
      %v2658 = vsel %vm411, %v2223, %v2414
      %v2659 = vsel %vm411, %v2225, %v2416
      %v2660 = vsel %vm411, %v2226, %v2418
      %v2661 = vsel %vm411, %v2228, %v2420
      %v2662 = vsel %vm411, %v2229, %v2422
      %v2663 = vsel %vm982, %v2631, %v2536
      %v2664 = vsel %vm982, %v2632, %v2538
      %v2665 = vsel %vm982, %v2633, %v2540
      %v2666 = vsel %vm982, %v2634, %v2542
      %v2667 = vsel %vm982, %v2635, %v2544
      %v2668 = vsel %vm982, %v2636, %v2546
      %v2669 = vsel %vm982, %v2637, %v2548
      %v2670 = vsel %vm982, %v2638, %v2550
      %v2671 = vsel %vm982, %v2639, %v2552
      %v2672 = vsel %vm982, %v2640, %v2554
      %v2673 = vsel %vm982, %v2641, %v2556
      %v2674 = vsel %vm982, %v2642, %v2558
      %v2675 = vsel %vm982, %v2643, %v2560
      %v2676 = vsel %vm982, %v2644, %v2562
      %v2677 = vsel %vm982, %v2645, %v2564
      %v2678 = vsel %vm982, %v2646, %v2566
      %v2679 = vsel %vm982, %v2647, %v2568
      %v2680 = vsel %vm982, %v2648, %v2570
      %v2681 = vsel %vm982, %v2649, %v2572
      %v2682 = vsel %vm982, %v2650, %v2574
      %v2683 = vsel %vm982, %v2651, %v2576
      %v2684 = vsel %vm982, %v2652, %v2578
      %v2685 = vsel %vm982, %v2653, %v2580
      %v2686 = vsel %vm982, %v2654, %v2582
      %v2687 = vsel %vm982, %v2655, %v2584
      %v2688 = vsel %vm982, %v2656, %v2586
      %v2689 = vsel %vm982, %v2657, %v2588
      %v2690 = vsel %vm982, %v2658, %v2590
      %v2691 = vsel %vm982, %v2659, %v2592
      %v2692 = vsel %vm982, %v2660, %v2594
      %v2693 = vsel %vm982, %v2661, %v2596
      %v2694 = vsel %vm982, %v2662, %v2598
      %s2695 = scalar_lea.vmem %s3, 32
      %v2696 = vld [vmem:[%s2695] sm:$0xff]
      %v2697 = vld [vmem:[%s2695 + $0x8] sm:$0xf]
      %v2699 = vsel %vm1532, %v2663, 0
      %v2702 = vsel %vm1532, %v2664, 0
      %v2705 = vsel %vm1532, %v2665, 0
      %v2708 = vsel %vm1532, %v2666, 0
      %v2711 = vsel %vm1532, %v2667, 0
      %v2714 = vsel %vm1532, %v2668, 0
      %v2717 = vsel %vm1532, %v2669, 0
      %v2720 = vsel %vm1532, %v2670, 0
      %v2723 = vsel %vm1532, %v2671, 0
      %v2726 = vsel %vm1532, %v2672, 0
      %v2729 = vsel %vm1532, %v2673, 0
      %v2732 = vsel %vm1532, %v2674, 0
      %v2735 = vsel %vm1532, %v2675, 0
      %v2738 = vsel %vm1532, %v2676, 0
      %v2741 = vsel %vm1532, %v2677, 0
      %v2744 = vsel %vm1532, %v2678, 0
      %v2747 = vsel %vm1532, %v2679, 0
      %v2750 = vsel %vm1532, %v2680, 0
      %v2753 = vsel %vm1532, %v2681, 0
      %v2756 = vsel %vm1532, %v2682, 0
      %v2759 = vsel %vm1532, %v2683, 0
      %v2762 = vsel %vm1532, %v2684, 0
      %v2765 = vsel %vm1532, %v2685, 0
      %v2768 = vsel %vm1532, %v2686, 0
      %v2771 = vsel %vm1532, %v2687, 0
      %v2774 = vsel %vm1532, %v2688, 0
      %v2777 = vsel %vm1532, %v2689, 0
      %v2780 = vsel %vm1532, %v2690, 0
      %v2783 = vsel %vm1532, %v2691, 0
      %v2786 = vsel %vm1532, %v2692, 0
      %v2789 = vsel %vm1532, %v2693, 0
      %v2792 = vsel %vm1532, %v2694, 0
      %v2795 = vsel %vm1629, %v2697, 0
      %2797 = vmatprep.subr.mxu0 0.0
      %2798 = vmatpush1.msra.mxu0 %v2696
      %2799 = vmatprep.subr.mxu0 0.0
      %2800 = vmatpush1.msra.mxu0 %v2795
      %2801 = vmatprep.subr.mxu0 0.0
      %2802 = vmatpush1.msra.mxu0 0.0
      %2803 = vmatprep.subr.mxu0 0.0
      %2804 = vmatpush1.msra.mxu0 0.0
      %2805 = vmatprep.subr.mxu0 0.0
      %2806 = vmatpush1.msra.mxu0 0.0
      %2807 = vmatprep.subr.mxu0 0.0
      %2808 = vmatpush1.msra.mxu0 0.0
      %2809 = vmatprep.subr.mxu0 0.0
      %2810 = vmatpush1.msra.mxu0 0.0
      %2811 = vmatprep.subr.mxu0 0.0
      %2812 = vmatpush1.msra.mxu0 0.0
      %2813 = vmatprep.subr.mxu0 0.0
      %2814 = vmatpush1.msra.mxu0 0.0
      %2815 = vmatprep.subr.mxu0 0.0
      %2816 = vmatpush1.msra.mxu0 0.0
      %2817 = vmatprep.subr.mxu0 0.0
      %2818 = vmatpush1.msra.mxu0 0.0
      %2819 = vmatprep.subr.mxu0 0.0
      %2820 = vmatpush1.msra.mxu0 0.0
      %2821 = vmatprep.subr.mxu0 0.0
      %2822 = vmatpush1.msra.mxu0 0.0
      %2823 = vmatprep.subr.mxu0 0.0
      %2824 = vmatpush1.msra.mxu0 0.0
      %2825 = vmatprep.subr.mxu0 0.0
      %2826 = vmatpush1.msra.mxu0 0.0
      %2827 = vmatprep.subr.mxu0 0.0
      %2828 = vmatpush1.msra.mxu0 0.0
      %2829 = vmatprep.subr.mxu0 0.0
      %2830 = vmatpush1.msra.mxu0 0.0
      %2831 = vmatprep.subr.mxu0 0.0
      %2832 = vmatpush1.msra.mxu0 0.0
      %2833 = vmatprep.subr.mxu0 0.0
      %2834 = vmatpush1.msra.mxu0 0.0
      %2835 = vmatprep.subr.mxu0 0.0
      %2836 = vmatpush1.msra.mxu0 0.0
      %2837 = vmatprep.subr.mxu0 0.0
      %2838 = vmatpush1.msra.mxu0 0.0
      %2839 = vmatprep.subr.mxu0 0.0
      %2840 = vmatpush1.msra.mxu0 0.0
      %2841 = vmatprep.subr.mxu0 0.0
      %2842 = vmatpush1.msra.mxu0 0.0
      %2843 = vmatprep.subr.mxu0 0.0
      %2844 = vmatpush1.msra.mxu0 0.0
      %2845 = vmatprep.subr.mxu0 0.0
      %2846 = vmatpush1.msra.mxu0 0.0
      %2847 = vmatprep.subr.mxu0 0.0
      %2848 = vmatpush1.msra.mxu0 0.0
      %2849 = vmatprep.subr.mxu0 0.0
      %2850 = vmatpush1.msra.mxu0 0.0
      %2851 = vmatprep.subr.mxu0 0.0
      %2852 = vmatpush1.msra.mxu0 0.0
      %2853 = vmatprep.subr.mxu0 0.0
      %2854 = vmatpush1.msra.mxu0 0.0
      %2855 = vmatprep.subr.mxu0 0.0
      %2856 = vmatpush1.msra.mxu0 0.0
      %2857 = vmatprep.subr.mxu0 0.0
      %2858 = vmatpush1.msra.mxu0 0.0
      %2859 = vmatprep.subr.mxu0 0.0
      %2860 = vmatpush1.msra.mxu0 0.0
      %2861 = vmatprep.mubr.f32.mxu0 0.0
      %2862 = vmatmul.mubr.f32.gmra.mrb[0].mxu0 %v2699
      %v2863 = vpop.f32.mrb[0].mxu0
      %v2864 = vadd.f32 0.0, %v2863
      %v2865 = vpop.f32.mrb[0].mxu0
      %2866 = vmatprep.mubr.f32.mxu0 0.0
      %2867 = vmatmul.mubr.f32.gmra.mrb[0].mxu0 %v2702
      %v2868 = vpop.f32.mrb[0].mxu0
      %v2869 = vadd.f32 0.0, %v2868
      %v2870 = vpop.f32.mrb[0].mxu0
      %2871 = vmatprep.mubr.f32.mxu0 0.0
      %2872 = vmatmul.mubr.f32.gmra.mrb[0].mxu0 %v2705
      %v2873 = vpop.f32.mrb[0].mxu0
      %v2874 = vadd.f32 0.0, %v2873
      %v2875 = vpop.f32.mrb[0].mxu0
      %2876 = vmatprep.mubr.f32.mxu0 0.0
      %2877 = vmatmul.mubr.f32.gmra.mrb[0].mxu0 %v2708
      %v2878 = vpop.f32.mrb[0].mxu0
      %v2879 = vadd.f32 0.0, %v2878
      %v2880 = vpop.f32.mrb[0].mxu0
      %2881 = vmatprep.mubr.f32.mxu0 0.0
      %2882 = vmatmul.mubr.f32.gmra.mrb[0].mxu0 %v2711
      %v2883 = vpop.f32.mrb[0].mxu0
      %v2884 = vadd.f32 0.0, %v2883
      %v2885 = vpop.f32.mrb[0].mxu0
      %2886 = vmatprep.mubr.f32.mxu0 0.0
      %2887 = vmatmul.mubr.f32.gmra.mrb[0].mxu0 %v2714
      %v2888 = vpop.f32.mrb[0].mxu0
      %v2889 = vadd.f32 0.0, %v2888
      %v2890 = vpop.f32.mrb[0].mxu0
      %2891 = vmatprep.mubr.f32.mxu0 0.0
      %2892 = vmatmul.mubr.f32.gmra.mrb[0].mxu0 %v2717
      %v2893 = vpop.f32.mrb[0].mxu0
      %v2894 = vadd.f32 0.0, %v2893
      %v2895 = vpop.f32.mrb[0].mxu0
      %2896 = vmatprep.mubr.f32.mxu0 0.0
      %2897 = vmatmul.mubr.f32.gmra.mrb[0].mxu0 %v2720
      %v2898 = vpop.f32.mrb[0].mxu0
      %v2899 = vadd.f32 0.0, %v2898
      %v2900 = vpop.f32.mrb[0].mxu0
      %2901 = vmatprep.mubr.f32.mxu0 0.0
      %2902 = vmatmul.mubr.f32.gmra.mrb[0].mxu0 %v2723
      %v2903 = vpop.f32.mrb[0].mxu0
      %v2904 = vadd.f32 0.0, %v2903
      %v2905 = vpop.f32.mrb[0].mxu0
      %2906 = vmatprep.mubr.f32.mxu0 0.0
      %2907 = vmatmul.mubr.f32.gmra.mrb[0].mxu0 %v2726
      %v2908 = vpop.f32.mrb[0].mxu0
      %v2909 = vadd.f32 0.0, %v2908
      %v2910 = vpop.f32.mrb[0].mxu0
      %2911 = vmatprep.mubr.f32.mxu0 0.0
      %2912 = vmatmul.mubr.f32.gmra.mrb[0].mxu0 %v2729
      %v2913 = vpop.f32.mrb[0].mxu0
      %v2914 = vadd.f32 0.0, %v2913
      %v2915 = vpop.f32.mrb[0].mxu0
      %2916 = vmatprep.mubr.f32.mxu0 0.0
      %2917 = vmatmul.mubr.f32.gmra.mrb[0].mxu0 %v2732
      %v2918 = vpop.f32.mrb[0].mxu0
      %v2919 = vadd.f32 0.0, %v2918
      %v2920 = vpop.f32.mrb[0].mxu0
      %2921 = vmatprep.mubr.f32.mxu0 0.0
      %2922 = vmatmul.mubr.f32.gmra.mrb[0].mxu0 %v2735
      %v2923 = vpop.f32.mrb[0].mxu0
      %v2924 = vadd.f32 0.0, %v2923
      %v2925 = vpop.f32.mrb[0].mxu0
      %2926 = vmatprep.mubr.f32.mxu0 0.0
      %2927 = vmatmul.mubr.f32.gmra.mrb[0].mxu0 %v2738
      %v2928 = vpop.f32.mrb[0].mxu0
      %v2929 = vadd.f32 0.0, %v2928
      %v2930 = vpop.f32.mrb[0].mxu0
      %2931 = vmatprep.mubr.f32.mxu0 0.0
      %2932 = vmatmul.mubr.f32.gmra.mrb[0].mxu0 %v2741
      %v2933 = vpop.f32.mrb[0].mxu0
      %v2934 = vadd.f32 0.0, %v2933
      %v2935 = vpop.f32.mrb[0].mxu0
      %2936 = vmatprep.mubr.f32.mxu0 0.0
      %2937 = vmatmul.mubr.f32.gmra.mrb[0].mxu0 %v2744
      %v2938 = vpop.f32.mrb[0].mxu0
      %v2939 = vadd.f32 0.0, %v2938
      %v2940 = vpop.f32.mrb[0].mxu0
      %2941 = vmatprep.mubr.f32.mxu0 0.0
      %2942 = vmatmul.mubr.f32.gmra.mrb[0].mxu0 %v2747
      %v2943 = vpop.f32.mrb[0].mxu0
      %v2944 = vadd.f32 0.0, %v2943
      %v2945 = vpop.f32.mrb[0].mxu0
      %2946 = vmatprep.mubr.f32.mxu0 0.0
      %2947 = vmatmul.mubr.f32.gmra.mrb[0].mxu0 %v2750
      %v2948 = vpop.f32.mrb[0].mxu0
      %v2949 = vadd.f32 0.0, %v2948
      %v2950 = vpop.f32.mrb[0].mxu0
      %2951 = vmatprep.mubr.f32.mxu0 0.0
      %2952 = vmatmul.mubr.f32.gmra.mrb[0].mxu0 %v2753
      %v2953 = vpop.f32.mrb[0].mxu0
      %v2954 = vadd.f32 0.0, %v2953
      %v2955 = vpop.f32.mrb[0].mxu0
      %2956 = vmatprep.mubr.f32.mxu0 0.0
      %2957 = vmatmul.mubr.f32.gmra.mrb[0].mxu0 %v2756
      %v2958 = vpop.f32.mrb[0].mxu0
      %v2959 = vadd.f32 0.0, %v2958
      %v2960 = vpop.f32.mrb[0].mxu0
      %2961 = vmatprep.mubr.f32.mxu0 0.0
      %2962 = vmatmul.mubr.f32.gmra.mrb[0].mxu0 %v2759
      %v2963 = vpop.f32.mrb[0].mxu0
      %v2964 = vadd.f32 0.0, %v2963
      %v2965 = vpop.f32.mrb[0].mxu0
      %2966 = vmatprep.mubr.f32.mxu0 0.0
      %2967 = vmatmul.mubr.f32.gmra.mrb[0].mxu0 %v2762
      %v2968 = vpop.f32.mrb[0].mxu0
      %v2969 = vadd.f32 0.0, %v2968
      %v2970 = vpop.f32.mrb[0].mxu0
      %2971 = vmatprep.mubr.f32.mxu0 0.0
      %2972 = vmatmul.mubr.f32.gmra.mrb[0].mxu0 %v2765
      %v2973 = vpop.f32.mrb[0].mxu0
      %v2974 = vadd.f32 0.0, %v2973
      %v2975 = vpop.f32.mrb[0].mxu0
      %2976 = vmatprep.mubr.f32.mxu0 0.0
      %2977 = vmatmul.mubr.f32.gmra.mrb[0].mxu0 %v2768
      %v2978 = vpop.f32.mrb[0].mxu0
      %v2979 = vadd.f32 0.0, %v2978
      %v2980 = vpop.f32.mrb[0].mxu0
      %2981 = vmatprep.mubr.f32.mxu0 0.0
      %2982 = vmatmul.mubr.f32.gmra.mrb[0].mxu0 %v2771
      %v2983 = vpop.f32.mrb[0].mxu0
      %v2984 = vadd.f32 0.0, %v2983
      %v2985 = vpop.f32.mrb[0].mxu0
      %2986 = vmatprep.mubr.f32.mxu0 0.0
      %2987 = vmatmul.mubr.f32.gmra.mrb[0].mxu0 %v2774
      %v2988 = vpop.f32.mrb[0].mxu0
      %v2989 = vadd.f32 0.0, %v2988
      %v2990 = vpop.f32.mrb[0].mxu0
      %2991 = vmatprep.mubr.f32.mxu0 0.0
      %2992 = vmatmul.mubr.f32.gmra.mrb[0].mxu0 %v2777
      %v2993 = vpop.f32.mrb[0].mxu0
      %v2994 = vadd.f32 0.0, %v2993
      %v2995 = vpop.f32.mrb[0].mxu0
      %2996 = vmatprep.mubr.f32.mxu0 0.0
      %2997 = vmatmul.mubr.f32.gmra.mrb[0].mxu0 %v2780
      %v2998 = vpop.f32.mrb[0].mxu0
      %v2999 = vadd.f32 0.0, %v2998
      %v3000 = vpop.f32.mrb[0].mxu0
      %3001 = vmatprep.mubr.f32.mxu0 0.0
      %3002 = vmatmul.mubr.f32.gmra.mrb[0].mxu0 %v2783
      %v3003 = vpop.f32.mrb[0].mxu0
      %v3004 = vadd.f32 0.0, %v3003
      %v3005 = vpop.f32.mrb[0].mxu0
      %3006 = vmatprep.mubr.f32.mxu0 0.0
      %3007 = vmatmul.mubr.f32.gmra.mrb[0].mxu0 %v2786
      %v3008 = vpop.f32.mrb[0].mxu0
      %v3009 = vadd.f32 0.0, %v3008
      %v3010 = vpop.f32.mrb[0].mxu0
      %3011 = vmatprep.mubr.f32.mxu0 0.0
      %3012 = vmatmul.mubr.f32.gmra.mrb[0].mxu0 %v2789
      %v3013 = vpop.f32.mrb[0].mxu0
      %v3014 = vadd.f32 0.0, %v3013
      %v3015 = vpop.f32.mrb[0].mxu0
      %3016 = vmatprep.mubr.f32.mxu0 0.0
      %3017 = vmatmul.mubr.f32.gmra.mrb[0].mxu0 %v2792
      %v3018 = vpop.f32.mrb[0].mxu0
      %v3019 = vadd.f32 0.0, %v3018
      %v3020 = vpop.f32.mrb[0].mxu0
      %3021 = vdwg.mxu0
      %v3022 = vadd.f32 %v2024, %v2864
      %v3023 = vadd.f32 %v2029, %v2869
      %v3024 = vadd.f32 %v2034, %v2874
      %v3025 = vadd.f32 %v2039, %v2879
      %v3026 = vadd.f32 %v2044, %v2884
      %v3027 = vadd.f32 %v2049, %v2889
      %v3028 = vadd.f32 %v2054, %v2894
      %v3029 = vadd.f32 %v2059, %v2899
      %v3030 = vadd.f32 %v2064, %v2904
      %v3031 = vadd.f32 %v2069, %v2909
      %v3032 = vadd.f32 %v2074, %v2914
      %v3033 = vadd.f32 %v2079, %v2919
      %v3034 = vadd.f32 %v2084, %v2924
      %v3035 = vadd.f32 %v2089, %v2929
      %v3036 = vadd.f32 %v2094, %v2934
      %v3037 = vadd.f32 %v2099, %v2939
      %v3038 = vadd.f32 %v2104, %v2944
      %v3039 = vadd.f32 %v2109, %v2949
      %v3040 = vadd.f32 %v2114, %v2954
      %v3041 = vadd.f32 %v2119, %v2959
      %v3042 = vadd.f32 %v2124, %v2964
      %v3043 = vadd.f32 %v2129, %v2969
      %v3044 = vadd.f32 %v2134, %v2974
      %v3045 = vadd.f32 %v2139, %v2979
      %v3046 = vadd.f32 %v2144, %v2984
      %v3047 = vadd.f32 %v2149, %v2989
      %v3048 = vadd.f32 %v2154, %v2994
      %v3049 = vadd.f32 %v2159, %v2999
      %v3050 = vadd.f32 %v2164, %v3004
      %v3051 = vadd.f32 %v2169, %v3009
      %v3052 = vadd.f32 %v2174, %v3014
      %v3053 = vadd.f32 %v2179, %v3019
      %3054 = vst.msk [vmem:[%s262] sm:$0xff] %vm411, %v3022
      %3055 = vst.msk [vmem:[%s262 + $0x8] sm:$0xff] %vm411, %v3023
      %3056 = vst.msk [vmem:[%s262 + $0x10] sm:$0xff] %vm411, %v3024
      %3057 = vst.msk [vmem:[%s262 + $0x18] sm:$0xff] %vm411, %v3025
      %3058 = vst.msk [vmem:[%s262 + $0x20] sm:$0xff] %vm411, %v3026
      %3059 = vst.msk [vmem:[%s262 + $0x28] sm:$0xff] %vm411, %v3027
      %3060 = vst.msk [vmem:[%s262 + $0x30] sm:$0xff] %vm411, %v3028
      %3061 = vst.msk [vmem:[%s262 + $0x38] sm:$0xff] %vm411, %v3029
      %3062 = vst.msk [vmem:[%s262 + $0x40] sm:$0xff] %vm411, %v3030
      %3063 = vst.msk [vmem:[%s262 + $0x48] sm:$0xff] %vm411, %v3031
      %3064 = vst.msk [vmem:[%s262 + $0x50] sm:$0xff] %vm411, %v3032
      %3065 = vst.msk [vmem:[%s262 + $0x58] sm:$0xff] %vm411, %v3033
      %3066 = vst.msk [vmem:[%s262 + $0x60] sm:$0xff] %vm411, %v3034
      %3067 = vst.msk [vmem:[%s262 + $0x68] sm:$0xff] %vm411, %v3035
      %3068 = vst.msk [vmem:[%s262 + $0x70] sm:$0xff] %vm411, %v3036
      %3069 = vst.msk [vmem:[%s262 + $0x78] sm:$0xff] %vm411, %v3037
      %3070 = vst.msk [vmem:[%s262 + $0x80] sm:$0xff] %vm411, %v3038
      %3071 = vst.msk [vmem:[%s262 + $0x88] sm:$0xff] %vm411, %v3039
      %3072 = vst.msk [vmem:[%s262 + $0x90] sm:$0xff] %vm411, %v3040
      %3073 = vst.msk [vmem:[%s262 + $0x98] sm:$0xff] %vm411, %v3041
      %3074 = vst.msk [vmem:[%s262 + $0xa0] sm:$0xff] %vm411, %v3042
      %3075 = vst.msk [vmem:[%s262 + $0xa8] sm:$0xff] %vm411, %v3043
      %3076 = vst.msk [vmem:[%s262 + $0xb0] sm:$0xff] %vm411, %v3044
      %3077 = vst.msk [vmem:[%s262 + $0xb8] sm:$0xff] %vm411, %v3045
      %3078 = vst.msk [vmem:[%s262 + $0xc0] sm:$0xff] %vm411, %v3046
      %3079 = vst.msk [vmem:[%s262 + $0xc8] sm:$0xff] %vm411, %v3047
      %3080 = vst.msk [vmem:[%s262 + $0xd0] sm:$0xff] %vm411, %v3048
      %3081 = vst.msk [vmem:[%s262 + $0xd8] sm:$0xff] %vm411, %v3049
      %3082 = vst.msk [vmem:[%s262 + $0xe0] sm:$0xff] %vm411, %v3050
      %3083 = vst.msk [vmem:[%s262 + $0xe8] sm:$0xff] %vm411, %v3051
      %3084 = vst.msk [vmem:[%s262 + $0xf0] sm:$0xff] %vm411, %v3052
      %3085 = vst.msk [vmem:[%s262 + $0xf8] sm:$0xff] %vm411, %v3053
      %v3086 = vsel %vm411, %v3022, 0.0
      %v3087 = vsel %vm411, %v3023, 0.0
      %v3088 = vadd.f32 %v3086, %v3087
      %v3089 = vsel %vm411, %v3024, 0.0
      %v3090 = vadd.f32 %v3088, %v3089
      %v3091 = vsel %vm411, %v3025, 0.0
      %v3092 = vadd.f32 %v3090, %v3091
      %v3093 = vsel %vm411, %v3026, 0.0
      %v3094 = vadd.f32 %v3092, %v3093
      %v3095 = vsel %vm411, %v3027, 0.0
      %v3096 = vadd.f32 %v3094, %v3095
      %v3097 = vsel %vm411, %v3028, 0.0
      %v3098 = vadd.f32 %v3096, %v3097
      %v3099 = vsel %vm411, %v3029, 0.0
      %v3100 = vadd.f32 %v3098, %v3099
      %v3101 = vsel %vm411, %v3030, 0.0
      %v3102 = vadd.f32 %v3100, %v3101
      %v3103 = vsel %vm411, %v3031, 0.0
      %v3104 = vadd.f32 %v3102, %v3103
      %v3105 = vsel %vm411, %v3032, 0.0
      %v3106 = vadd.f32 %v3104, %v3105
      %v3107 = vsel %vm411, %v3033, 0.0
      %v3108 = vadd.f32 %v3106, %v3107
      %v3109 = vsel %vm411, %v3034, 0.0
      %v3110 = vadd.f32 %v3108, %v3109
      %v3111 = vsel %vm411, %v3035, 0.0
      %v3112 = vadd.f32 %v3110, %v3111
      %v3113 = vsel %vm411, %v3036, 0.0
      %v3114 = vadd.f32 %v3112, %v3113
      %v3115 = vsel %vm411, %v3037, 0.0
      %v3116 = vadd.f32 %v3114, %v3115
      %v3117 = vsel %vm411, %v3038, 0.0
      %v3118 = vadd.f32 %v3116, %v3117
      %v3119 = vsel %vm411, %v3039, 0.0
      %v3120 = vadd.f32 %v3118, %v3119
      %v3121 = vsel %vm411, %v3040, 0.0
      %v3122 = vadd.f32 %v3120, %v3121
      %v3123 = vsel %vm411, %v3041, 0.0
      %v3124 = vadd.f32 %v3122, %v3123
      %v3125 = vsel %vm411, %v3042, 0.0
      %v3126 = vadd.f32 %v3124, %v3125
      %v3127 = vsel %vm411, %v3043, 0.0
      %v3128 = vadd.f32 %v3126, %v3127
      %v3129 = vsel %vm411, %v3044, 0.0
      %v3130 = vadd.f32 %v3128, %v3129
      %v3131 = vsel %vm411, %v3045, 0.0
      %v3132 = vadd.f32 %v3130, %v3131
      %v3133 = vsel %vm411, %v3046, 0.0
      %v3134 = vadd.f32 %v3132, %v3133
      %v3135 = vsel %vm411, %v3047, 0.0
      %v3136 = vadd.f32 %v3134, %v3135
      %v3137 = vsel %vm411, %v3048, 0.0
      %v3138 = vadd.f32 %v3136, %v3137
      %v3139 = vsel %vm411, %v3049, 0.0
      %v3140 = vadd.f32 %v3138, %v3139
      %v3141 = vsel %vm411, %v3050, 0.0
      %v3142 = vadd.f32 %v3140, %v3141
      %v3143 = vsel %vm411, %v3051, 0.0
      %v3144 = vadd.f32 %v3142, %v3143
      %v3145 = vsel %vm411, %v3052, 0.0
      %v3146 = vadd.f32 %v3144, %v3145
      %v3147 = vsel %vm411, %v3053, 0.0
      %v3148 = vadd.f32 %v3146, %v3147
      %v3149 = vrot.slane %v3148, 4
      %v3150 = vadd.f32 %v3148, %v3149
      %v3151 = vrot.slane %v3150, 2
      %v3152 = vadd.f32 %v3150, %v3151
      %v3153 = vrot.slane %v3152, 1
      %v3154 = vadd.f32 %v3152, %v3153
      %vm3155 = vcmask 24576
      %3156 = vst.msk [vmem:[%s265] sm:$0x1] %vm3155, %v3154
      %v3157 = vmul.f32 %v3022, %v3022
      %v3158 = vmul.f32 %v3023, %v3023
      %v3159 = vmul.f32 %v3024, %v3024
      %v3160 = vmul.f32 %v3025, %v3025
      %v3161 = vmul.f32 %v3026, %v3026
      %v3162 = vmul.f32 %v3027, %v3027
      %v3163 = vmul.f32 %v3028, %v3028
      %v3164 = vmul.f32 %v3029, %v3029
      %v3165 = vmul.f32 %v3030, %v3030
      %v3166 = vmul.f32 %v3031, %v3031
      %v3167 = vmul.f32 %v3032, %v3032
      %v3168 = vmul.f32 %v3033, %v3033
      %v3169 = vmul.f32 %v3034, %v3034
      %v3170 = vmul.f32 %v3035, %v3035
      %v3171 = vmul.f32 %v3036, %v3036
      %v3172 = vmul.f32 %v3037, %v3037
      %v3173 = vmul.f32 %v3038, %v3038
      %v3174 = vmul.f32 %v3039, %v3039
      %v3175 = vmul.f32 %v3040, %v3040
      %v3176 = vmul.f32 %v3041, %v3041
      %v3177 = vmul.f32 %v3042, %v3042
      %v3178 = vmul.f32 %v3043, %v3043
      %v3179 = vmul.f32 %v3044, %v3044
      %v3180 = vmul.f32 %v3045, %v3045
      %v3181 = vmul.f32 %v3046, %v3046
      %v3182 = vmul.f32 %v3047, %v3047
      %v3183 = vmul.f32 %v3048, %v3048
      %v3184 = vmul.f32 %v3049, %v3049
      %v3185 = vmul.f32 %v3050, %v3050
      %v3186 = vmul.f32 %v3051, %v3051
      %v3187 = vmul.f32 %v3052, %v3052
      %v3188 = vmul.f32 %v3053, %v3053
      %v3189 = vsel %vm411, %v3157, 0.0
      %v3190 = vsel %vm411, %v3158, 0.0
      %v3191 = vadd.f32 %v3189, %v3190
      %v3192 = vsel %vm411, %v3159, 0.0
      %v3193 = vadd.f32 %v3191, %v3192
      %v3194 = vsel %vm411, %v3160, 0.0
      %v3195 = vadd.f32 %v3193, %v3194
      %v3196 = vsel %vm411, %v3161, 0.0
      %v3197 = vadd.f32 %v3195, %v3196
      %v3198 = vsel %vm411, %v3162, 0.0
      %v3199 = vadd.f32 %v3197, %v3198
      %v3200 = vsel %vm411, %v3163, 0.0
      %v3201 = vadd.f32 %v3199, %v3200
      %v3202 = vsel %vm411, %v3164, 0.0
      %v3203 = vadd.f32 %v3201, %v3202
      %v3204 = vsel %vm411, %v3165, 0.0
      %v3205 = vadd.f32 %v3203, %v3204
      %v3206 = vsel %vm411, %v3166, 0.0
      %v3207 = vadd.f32 %v3205, %v3206
      %v3208 = vsel %vm411, %v3167, 0.0
      %v3209 = vadd.f32 %v3207, %v3208
      %v3210 = vsel %vm411, %v3168, 0.0
      %v3211 = vadd.f32 %v3209, %v3210
      %v3212 = vsel %vm411, %v3169, 0.0
      %v3213 = vadd.f32 %v3211, %v3212
      %v3214 = vsel %vm411, %v3170, 0.0
      %v3215 = vadd.f32 %v3213, %v3214
      %v3216 = vsel %vm411, %v3171, 0.0
      %v3217 = vadd.f32 %v3215, %v3216
      %v3218 = vsel %vm411, %v3172, 0.0
      %v3219 = vadd.f32 %v3217, %v3218
      %v3220 = vsel %vm411, %v3173, 0.0
      %v3221 = vadd.f32 %v3219, %v3220
      %v3222 = vsel %vm411, %v3174, 0.0
      %v3223 = vadd.f32 %v3221, %v3222
      %v3224 = vsel %vm411, %v3175, 0.0
      %v3225 = vadd.f32 %v3223, %v3224
      %v3226 = vsel %vm411, %v3176, 0.0
      %v3227 = vadd.f32 %v3225, %v3226
      %v3228 = vsel %vm411, %v3177, 0.0
      %v3229 = vadd.f32 %v3227, %v3228
      %v3230 = vsel %vm411, %v3178, 0.0
      %v3231 = vadd.f32 %v3229, %v3230
      %v3232 = vsel %vm411, %v3179, 0.0
      %v3233 = vadd.f32 %v3231, %v3232
      %v3234 = vsel %vm411, %v3180, 0.0
      %v3235 = vadd.f32 %v3233, %v3234
      %v3236 = vsel %vm411, %v3181, 0.0
      %v3237 = vadd.f32 %v3235, %v3236
      %v3238 = vsel %vm411, %v3182, 0.0
      %v3239 = vadd.f32 %v3237, %v3238
      %v3240 = vsel %vm411, %v3183, 0.0
      %v3241 = vadd.f32 %v3239, %v3240
      %v3242 = vsel %vm411, %v3184, 0.0
      %v3243 = vadd.f32 %v3241, %v3242
      %v3244 = vsel %vm411, %v3185, 0.0
      %v3245 = vadd.f32 %v3243, %v3244
      %v3246 = vsel %vm411, %v3186, 0.0
      %v3247 = vadd.f32 %v3245, %v3246
      %v3248 = vsel %vm411, %v3187, 0.0
      %v3249 = vadd.f32 %v3247, %v3248
      %v3250 = vsel %vm411, %v3188, 0.0
      %v3251 = vadd.f32 %v3249, %v3250
      %v3252 = vrot.slane %v3251, 4
      %v3253 = vadd.f32 %v3251, %v3252
      %v3254 = vrot.slane %v3253, 2
      %v3255 = vadd.f32 %v3253, %v3254
      %v3256 = vrot.slane %v3255, 1
      %v3257 = vadd.f32 %v3255, %v3256
      %3258 = vst.msk [vmem:[%s268] sm:$0x1] %vm3155, %v3257
      %p3259 = scmp.lt.s32.totalorder %s18, 1
      %s3260 = scalar_select %p3259, %s18, 1
      %s3261 = smul.addr %s3260, 32
      %s3262 = smul.addr %s3261, 8
      %s3263 = scalar_lea.vmem %s4, %s3262
      %p3264 = scmp.lt.s32.totalorder %s18, 1
      %s3265 = scalar_select %p3264, %s18, 1
      %s3266 = scalar_lea.vmem %s5, %s3265
      %p3267 = scmp.lt.s32.totalorder %s18, 1
      %s3268 = scalar_select %p3267, %s18, 1
      %s3269 = scalar_lea.vmem %s6, %s3268
      // Predicated region
      $region37: #{residual_block_forward.4} parent=35 // pred_check
        %p3270 = pneg %p125
      $region38: #{residual_block_forward.4} parent=35 // pred_check_branch
        %3272 = sbr.rel (%p3270) target = $region40
      $region39: #{residual_block_forward.4} parent=35 // pred_region
        _
      $region40: #{residual_block_forward.4} parent=35 // pred_fallthru
        _
      // Predicated region
      $region41: #{residual_block_forward.4} parent=35 // pred_check
        %p3273 = pneg %p151
      $region42: #{residual_block_forward.4} parent=35 // pred_check_branch
        %3275 = sbr.rel (%p3273) target = $region44
      $region43: #{residual_block_forward.4} parent=35 // pred_region
        _
      $region44: #{residual_block_forward.4} parent=35 // pred_fallthru
        _
      // Predicated region
      $region45: #{residual_block_forward.4} parent=35 // pred_check
        %p3276 = pneg %p177
      $region46: #{residual_block_forward.4} parent=35 // pred_check_branch
        %3278 = sbr.rel (%p3276) target = $region48
      $region47: #{residual_block_forward.4} parent=35 // pred_region
        _
      $region48: #{residual_block_forward.4} parent=35 // pred_fallthru
        _
    $region36: #{residual_block_forward.4} parent=5 // pred_fallthru
      _
    %p3279 = scmp.le.s32.totalorder 2, %s13
    // Predicated region
    $region49: #{residual_block_forward.4} parent=5 // pred_check
      %p3280 = pneg %p3279
    $region50: #{residual_block_forward.4} parent=5 // pred_check_branch
      %3282 = sbr.rel (%p3280) target = $region52
    $region51: #{residual_block_forward.4} parent=5 // pred_region
      %s3283 = ssub.s32 %s13, 2
      // Predicated region
      $region53: #{residual_block_forward.4} parent=51 // pred_check
        %p3284 = pneg %p131
      $region54: #{residual_block_forward.4} parent=51 // pred_check_branch
        %3286 = sbr.rel (%p3284) target = $region56
      $region55: #{residual_block_forward.4} parent=51 // pred_region
        %p3287 = scmp.lt.s32.totalorder %s19, 1
        %s3288 = scalar_select %p3287, %s19, 1
        %s3289 = smul.addr %s3288, 32
        %s3290 = smul.addr %s3289, 8
        %s3291 = scalar_lea.vmem %s4, %s3290
      $region56: #{residual_block_forward.4} parent=51 // pred_fallthru
        _
      // Predicated region
      $region57: #{residual_block_forward.4} parent=51 // pred_check
        %p3292 = pneg %p157
      $region58: #{residual_block_forward.4} parent=51 // pred_check_branch
        %3294 = sbr.rel (%p3292) target = $region60
      $region59: #{residual_block_forward.4} parent=51 // pred_region
        %p3295 = scmp.lt.s32.totalorder %s19, 1
        %s3296 = scalar_select %p3295, %s19, 1
        %s3297 = scalar_lea.vmem %s5, %s3296
      $region60: #{residual_block_forward.4} parent=51 // pred_fallthru
        _
      // Predicated region
      $region61: #{residual_block_forward.4} parent=51 // pred_check
        %p3298 = pneg %p183
      $region62: #{residual_block_forward.4} parent=51 // pred_check_branch
        %3300 = sbr.rel (%p3298) target = $region64
      $region63: #{residual_block_forward.4} parent=51 // pred_region
        %p3301 = scmp.lt.s32.totalorder %s19, 1
        %s3302 = scalar_select %p3301, %s19, 1
        %s3303 = scalar_lea.vmem %s6, %s3302
      $region64: #{residual_block_forward.4} parent=51 // pred_fallthru
        _
    $region52: #{residual_block_forward.4} parent=5 // pred_fallthru
      _
  $region6: #{residual_block_forward.4} parent=0 // loop_footer
    %s17 = sadd.s32 1, %s13
  $region7: #{residual_block_forward.4} parent=0 // loop_footer_branch
    %12 = sbr.rel target = $region3
  $region8: #{residual_block_forward.4} parent=0 // loop_exit
    _

</llo_original>
